<compile_context>
chip_gen: v7x
topology: tpu7x:2x2x1
jax: 0.10.0
libtpu: 0.0.40
codegen_flags: <defaults>
</compile_context>

<pallas_src>
import functools

import jax
import jax.numpy as jnp
from jax import lax
from jax.experimental import pallas as pl
from jax.experimental.pallas import tpu as pltpu

INPUT_DIM = 143
K_PAD = 144                 # features padded to a sublane multiple
HIDDEN = 128
GATES = 4 * HIDDEN          # 512 (gate order permuted to i, f, o, g)
MID = 80                    # Linear(256, 80)
MID_PAD = 128               # lane-dense head intermediate
NUM_TAGS = 10
TIME_CHUNK = 8              # TT: serial time steps per grid step
HEAD_TILE = 512             # row tile for the head GEMM

# v5e: the 128-deep MXU turns the zero off-diagonal blocks of the fused
# (B,2H)@(2H,8H) recurrent matmul into wasted passes; set True there.
SPLIT_RECURRENT_MATMUL = False


def _round_up(x, m):
    return (x + m - 1) // m * m


# ----------------------------------------------------------------------------
# 1) Fused input projection + bidirectional LSTM recurrence, chunked over time.
#    grid = (C,) sequential, C = T_pad // TT.
#    Forward direction consumes x block c; backward direction consumes x block
#    C-1-c (block-level time reversal folded into the index_map) and reverses
#    rows within the chunk in VMEM.  h/c state for both directions persists in
#    VMEM scratch across grid steps.
# ----------------------------------------------------------------------------
def _bilstm_chunk_kernel(xf_ref, xb_ref, wihf_ref, wihb_ref, bf_ref, bb_ref,
                         whh_ref, hf_ref, hb_ref,
                         gxf_sc, gxb_sc, h_sc, c_sc,
                         *, tt, batch, hidden, pad_lead):
    c = pl.program_id(0)

    @pl.when(c == 0)
    def _():
        h_sc[...] = jnp.zeros_like(h_sc)
        c_sc[...] = jnp.zeros_like(c_sc)

    # Chunk input projection (off the serial chain): gx = x @ W_ih^T + (b_ih+b_hh)
    gxf_sc[...] = jnp.dot(xf_ref[...], wihf_ref[...],
                          preferred_element_type=jnp.float32) + bf_ref[...]
    gxb_sc[...] = jnp.dot(xb_ref[...], wihb_ref[...],
                          preferred_element_type=jnp.float32) + bb_ref[...]

    g4 = 4 * hidden

    def cell(gates, c_prev):
        # gate order pre-permuted to (i, f, o, g): one contiguous sigmoid slab
        sig = jax.nn.sigmoid(gates[:, :3 * hidden])
        g = jnp.tanh(gates[:, 3 * hidden:])
        i = sig[:, :hidden]
        f = sig[:, hidden:2 * hidden]
        o = sig[:, 2 * hidden:]
        c_new = f * c_prev + i * g
        return o * jnp.tanh(c_new), c_new

    def step(j, carry):
        row = pl.multiple_of(j * batch, 8)               # fwd local time j
        rrow = pl.multiple_of((tt - 1 - j) * batch, 8)   # bwd local time tt-1-j

        if SPLIT_RECURRENT_MATMUL:
            hh_f = jnp.dot(h_sc[:, :hidden], whh_ref[:hidden, :g4],
                           preferred_element_type=jnp.float32)
            hh_b = jnp.dot(h_sc[:, hidden:], whh_ref[hidden:, g4:],
                           preferred_element_type=jnp.float32)
        else:
            # h_sc = [h_f | h_b]; whh = blockdiag(W_hh_f^T, W_hh_b^T) (2H, 8H)
            hh = jnp.dot(h_sc[...], whh_ref[...],
                         preferred_element_type=jnp.float32)
            hh_f = hh[:, :g4]
            hh_b = hh[:, g4:]

        h_f, c_f = cell(gxf_sc[pl.ds(row, batch), :] + hh_f, c_sc[:, :hidden])
        h_b, c_b = cell(gxb_sc[pl.ds(rrow, batch), :] + hh_b, c_sc[:, hidden:])

        if pad_lead > 0:
            # Zero-padded time steps sit at the end of padded time, so the
            # (reversed) backward direction processes them first: hold its
            # state at zero until the first real step.
            ok = (c * tt + j) >= pad_lead
            h_b = jnp.where(ok, h_b, 0.0)
            c_b = jnp.where(ok, c_b, 0.0)

        h_sc[:, :hidden] = h_f
        h_sc[:, hidden:] = h_b
        c_sc[:, :hidden] = c_f
        c_sc[:, hidden:] = c_b

        hf_ref[pl.ds(row, batch), :] = h_f
        hb_ref[pl.ds(rrow, batch), :] = h_b
        return carry

    lax.fori_loop(0, tt, step, 0, unroll=True)


def bilstm_fused_pallas(x2d, wih_f, wih_b, b_f, b_b, whh_big, *,
                        tt, batch, t_pad, pad_lead, hidden=HIDDEN):
    """x2d: (T_pad*B, 144) time-major.  Returns (h_f, h_b), each
    (T_pad*B, hidden) time-major, already in original time order."""
    num_chunks = t_pad // tt
    rows = tt * batch
    m = t_pad * batch
    kernel = functools.partial(_bilstm_chunk_kernel, tt=tt, batch=batch,
                               hidden=hidden, pad_lead=pad_lead)
    return pl.pallas_call(
        kernel,
        out_shape=(jax.ShapeDtypeStruct((m, hidden), jnp.float32),
                   jax.ShapeDtypeStruct((m, hidden), jnp.float32)),
        grid=(num_chunks,),
        in_specs=[
            pl.BlockSpec((rows, K_PAD), lambda c: (c, 0)),
            # backward direction: time reversal folded into the index_map
            pl.BlockSpec((rows, K_PAD), lambda c: (num_chunks - 1 - c, 0)),
            pl.BlockSpec((K_PAD, GATES), lambda c: (0, 0)),
            pl.BlockSpec((K_PAD, GATES), lambda c: (0, 0)),
            pl.BlockSpec((1, GATES), lambda c: (0, 0)),
            pl.BlockSpec((1, GATES), lambda c: (0, 0)),
            pl.BlockSpec((2 * hidden, 2 * GATES), lambda c: (0, 0)),
        ],
        out_specs=[
            pl.BlockSpec((rows, hidden), lambda c: (c, 0)),
            pl.BlockSpec((rows, hidden), lambda c: (num_chunks - 1 - c, 0)),
        ],
        scratch_shapes=[
            pltpu.VMEM((rows, GATES), jnp.float32),       # gx chunk (forward)
            pltpu.VMEM((rows, GATES), jnp.float32),       # gx chunk (backward)
            pltpu.VMEM((batch, 2 * hidden), jnp.float32),  # [h_f | h_b]
            pltpu.VMEM((batch, 2 * hidden), jnp.float32),  # [c_f | c_b]
        ],
        compiler_params=pltpu.CompilerParams(
            dimension_semantics=("arbitrary",)),
    )(x2d, x2d, wih_f, wih_b, b_f, b_b, whh_big)


# ----------------------------------------------------------------------------
# 2) Fused lane-dense head:
#    out = relu(relu([h_f|h_b]) @ W1^T + b1) @ W2^T + b2
#    W1 split per direction (no (M,256) concat ever exists), 80/num_tags padded
#    to 128 lanes so every intermediate / output store is unmasked.
# ----------------------------------------------------------------------------
def _head_kernel(hf_ref, hb_ref, w1f_ref, w1b_ref, b1_ref, w2_ref, b2_ref,
                 o_ref):
    a_f = jnp.maximum(hf_ref[...], 0.0)
    a_b = jnp.maximum(hb_ref[...], 0.0)
    s1 = (jnp.dot(a_f, w1f_ref[...], preferred_element_type=jnp.float32)
          + jnp.dot(a_b, w1b_ref[...], preferred_element_type=jnp.float32)
          + b1_ref[...])
    s1 = jnp.maximum(s1, 0.0)
    o_ref[...] = (jnp.dot(s1, w2_ref[...], preferred_element_type=jnp.float32)
                  + b2_ref[...])


def head_pallas(h_f, h_b, w1f, w1b, b1, w2, b2):
    m = h_f.shape[0]
    n1 = w1f.shape[1]
    n2 = w2.shape[1]
    if m > HEAD_TILE:
        # keep the row tile at 512 (near HBM roofline) for arbitrary T*B
        m_pad = _round_up(m, HEAD_TILE)
        if m_pad != m:
            h_f = jnp.pad(h_f, ((0, m_pad - m), (0, 0)))
            h_b = jnp.pad(h_b, ((0, m_pad - m), (0, 0)))
        tm = HEAD_TILE
    else:
        m_pad, tm = m, m
    out = pl.pallas_call(
        _head_kernel,
        out_shape=jax.ShapeDtypeStruct((m_pad, n2), jnp.float32),
        grid=(m_pad // tm,),
        in_specs=[
            pl.BlockSpec((tm, HIDDEN), lambda i: (i, 0)),
            pl.BlockSpec((tm, HIDDEN), lambda i: (i, 0)),
            pl.BlockSpec((HIDDEN, n1), lambda i: (0, 0)),
            pl.BlockSpec((HIDDEN, n1), lambda i: (0, 0)),
            pl.BlockSpec((1, n1), lambda i: (0, 0)),
            pl.BlockSpec((n1, n2), lambda i: (0, 0)),
            pl.BlockSpec((1, n2), lambda i: (0, 0)),
        ],
        out_specs=pl.BlockSpec((tm, n2), lambda i: (i, 0)),
        compiler_params=pltpu.CompilerParams(
            dimension_semantics=("parallel",)),
    )(h_f, h_b, w1f, w1b, b1, w2, b2)
    return out[:m]


# ----------------------------------------------------------------------------
# Full forward pass
# ----------------------------------------------------------------------------
def sample_lstm_forward(features, seq_len, params):
    # TODO(synk): seq_len (pack_padded_sequence-style length masking) not implemented
    del seq_len
    b, t, _ = features.shape
    x = features[:, :, :INPUT_DIM]                       # (B, T, 143)

    b_pad = _round_up(b, 8)
    tt = TIME_CHUNK
    t_pad = _round_up(t, tt)
    pad_lead = t_pad - t

    # Pad batch -> sublane multiple, features 143 -> 144, time -> chunk
    # multiple, and go time-major ONCE on the narrow input.
    x = jnp.pad(x, ((0, b_pad - b), (0, t_pad - t), (0, K_PAD - INPUT_DIM)))
    x2d = jnp.transpose(x, (1, 0, 2)).reshape(t_pad * b_pad, K_PAD)

    # ---- one-time weight layout prep (tiny reshapes/pads) -----------------
    def perm_gates(w):       # PyTorch gate blocks (i,f,g,o) -> (i,f,o,g)
        gi, gf, gg, go = jnp.split(w, 4, axis=0)
        return jnp.concatenate([gi, gf, go, gg], axis=0)

    def prep_wih(w):         # (4H, 143) -> (144, 4H)
        return jnp.pad(perm_gates(w).T, ((0, K_PAD - INPUT_DIM), (0, 0)))

    wih_f = prep_wih(params["w_ih_f"])
    wih_b = prep_wih(params["w_ih_b"])
    bf = perm_gates(params["b_ih_f"] + params["b_hh_f"]).reshape(1, GATES)
    bb = perm_gates(params["b_ih_b"] + params["b_hh_b"]).reshape(1, GATES)

    whh_big = jnp.zeros((2 * HIDDEN, 2 * GATES), jnp.float32)
    whh_big = whh_big.at[:HIDDEN, :GATES].set(perm_gates(params["w_hh_f"]).T)
    whh_big = whh_big.at[HIDDEN:, GATES:].set(perm_gates(params["w_hh_b"]).T)

    # Lane-dense head weights: MID 80 -> 128, num_tags -> multiple of 128.
    num_tags = params["w2"].shape[0]
    tags_pad = _round_up(num_tags, 128)
    w1_t = params["w1"].T                                        # (256, 80)
    w1f = jnp.pad(w1_t[:HIDDEN], ((0, 0), (0, MID_PAD - MID)))   # (128, 128)
    w1b = jnp.pad(w1_t[HIDDEN:], ((0, 0), (0, MID_PAD - MID)))
    b1 = jnp.pad(params["b1"], (0, MID_PAD - MID)).reshape(1, MID_PAD)
    w2 = jnp.pad(params["w2"].T,
                 ((0, MID_PAD - MID), (0, tags_pad - num_tags)))  # (128, 128)
    b2 = jnp.pad(params["b2"], (0, tags_pad - num_tags)).reshape(1, tags_pad)

    # ---- 1) fused input projection + bidirectional recurrence -------------
    h_f, h_b = bilstm_fused_pallas(x2d, wih_f, wih_b, bf, bb, whh_big,
                                   tt=tt, batch=b_pad, t_pad=t_pad,
                                   pad_lead=pad_lead)     # each (T_pad*B_pad, 128)

    # ---- 2) fused lane-dense head ------------------------------------------
    out = head_pallas(h_f, h_b, w1f, w1b, b1, w2, b2)     # (M, tags_pad)
    out = out[:, :num_tags]
    out = out.reshape(t_pad, b_pad, num_tags).transpose(1, 0, 2)[:b, :t]
    return out


def init_params(key):
    ks = jax.random.split(key, 12)
    s = 0.05
    return {
        # forward direction LSTM
        "w_ih_f": s * jax.random.normal(ks[0], (GATES, INPUT_DIM), jnp.float32),
        "w_hh_f": s * jax.random.normal(ks[1], (GATES, HIDDEN), jnp.float32),
        "b_ih_f": s * jax.random.normal(ks[2], (GATES,), jnp.float32),
        "b_hh_f": s * jax.random.normal(ks[3], (GATES,), jnp.float32),
        # backward direction LSTM
        "w_ih_b": s * jax.random.normal(ks[4], (GATES, INPUT_DIM), jnp.float32),
        "w_hh_b": s * jax.random.normal(ks[5], (GATES, HIDDEN), jnp.float32),
        "b_ih_b": s * jax.random.normal(ks[6], (GATES,), jnp.float32),
        "b_hh_b": s * jax.random.normal(ks[7], (GATES,), jnp.float32),
        # Linear(256, 80)
        "w1": s * jax.random.normal(ks[8], (MID, 2 * HIDDEN), jnp.float32),
        "b1": s * jax.random.normal(ks[9], (MID,), jnp.float32),
        # Linear(80, num_tags)
        "w2": s * jax.random.normal(ks[10], (NUM_TAGS, MID), jnp.float32),
        "b2": s * jax.random.normal(ks[11], (NUM_TAGS,), jnp.float32),
    }


if __name__ == "__main__":
    key = jax.random.PRNGKey(0)
    B, T, F_IN = 2, 8, 150                         # F_IN >= 143; forward slices to 143
    features = jax.random.normal(key, (B, T, F_IN), jnp.float32)
    seq_len = jnp.full((B,), T, jnp.int32)

    params = init_params(jax.random.PRNGKey(42))

    out = sample_lstm_forward(features, seq_len, params)
    out = jax.block_until_ready(out)
    assert out.shape == (B, T, NUM_TAGS), out.shape
    assert jnp.all(jnp.isfinite(out))
    print("KERNEL_OK")
</pallas_src>

<mosaic_0001>
module attributes {stable_mosaic.version = 11 : i64} {
  func.func @_bilstm_chunk_kernel(%arg0: i32, %arg1: memref<64x144xf32, #tpu.memory_space<vmem>>, %arg2: memref<64x144xf32, #tpu.memory_space<vmem>>, %arg3: memref<144x512xf32, #tpu.memory_space<vmem>>, %arg4: memref<144x512xf32, #tpu.memory_space<vmem>>, %arg5: memref<1x512xf32, #tpu.memory_space<vmem>>, %arg6: memref<1x512xf32, #tpu.memory_space<vmem>>, %arg7: memref<256x1024xf32, #tpu.memory_space<vmem>>, %arg8: memref<64x128xf32, #tpu.memory_space<vmem>>, %arg9: memref<64x128xf32, #tpu.memory_space<vmem>>, %arg10: memref<64x512xf32, #tpu.memory_space<vmem>>, %arg11: memref<64x512xf32, #tpu.memory_space<vmem>>, %arg12: memref<8x256xf32, #tpu.memory_space<vmem>>, %arg13: memref<8x256xf32, #tpu.memory_space<vmem>>) attributes {dimension_semantics = [#tpu.dimension_semantics<arbitrary>], iteration_bounds = array<i64: 1>, scalar_prefetch = 0 : i64, scratch_operands = 4 : i64, tpu.core_type = #tpu.core_type<tc>, window_params = [{transform_indices = @transform_0, window_bounds = array<i64: 64, 144>}, {transform_indices = @transform_1, window_bounds = array<i64: 64, 144>}, {pipeline_mode = #tpu.pipeline_mode<synchronous>, transform_indices = @transform_2, window_bounds = array<i64: 144, 512>}, {pipeline_mode = #tpu.pipeline_mode<synchronous>, transform_indices = @transform_3, window_bounds = array<i64: 144, 512>}, {pipeline_mode = #tpu.pipeline_mode<synchronous>, transform_indices = @transform_4, window_bounds = array<i64: 1, 512>}, {pipeline_mode = #tpu.pipeline_mode<synchronous>, transform_indices = @transform_5, window_bounds = array<i64: 1, 512>}, {pipeline_mode = #tpu.pipeline_mode<synchronous>, transform_indices = @transform_6, window_bounds = array<i64: 256, 1024>}, {transform_indices = @transform_7, window_bounds = array<i64: 64, 128>}, {transform_indices = @transform_8, window_bounds = array<i64: 64, 128>}]} {
    %c0_i32 = arith.constant 0 : i32
    %0 = arith.cmpi eq, %arg0, %c0_i32 : i32
    %1 = arith.extui %0 : i1 to i32
    %c0_i32_0 = arith.constant 0 : i32
    %2 = arith.cmpi ne, %1, %c0_i32_0 : i32
    scf.if %2 {
      %cst_225 = arith.constant 0.000000e+00 : f32
      %481 = vector.broadcast %cst_225 : f32 to vector<8x256xf32>
      %c0_226 = arith.constant 0 : index
      %c0_227 = arith.constant 0 : index
      %482 = vector.load %arg12[%c0_226, %c0_227] : memref<8x256xf32, #tpu.memory_space<vmem>>, vector<8x256xf32>
      tpu.vector_store %arg12[%c0_226, %c0_227], %481 {strides = array<i32>} : memref<8x256xf32, #tpu.memory_space<vmem>>, vector<8x256xf32>,
      %cst_228 = arith.constant 0.000000e+00 : f32
      %483 = vector.broadcast %cst_228 : f32 to vector<8x256xf32>
      %c0_229 = arith.constant 0 : index
      %c0_230 = arith.constant 0 : index
      %484 = vector.load %arg13[%c0_229, %c0_230] : memref<8x256xf32, #tpu.memory_space<vmem>>, vector<8x256xf32>
      tpu.vector_store %arg13[%c0_229, %c0_230], %483 {strides = array<i32>} : memref<8x256xf32, #tpu.memory_space<vmem>>, vector<8x256xf32>,
    } else {
    }
    %c0 = arith.constant 0 : index
    %c0_1 = arith.constant 0 : index
    %3 = vector.load %arg1[%c0, %c0_1] : memref<64x144xf32, #tpu.memory_space<vmem>>, vector<64x144xf32>
    %c0_2 = arith.constant 0 : index
    %c0_3 = arith.constant 0 : index
    %4 = vector.load %arg3[%c0_2, %c0_3] : memref<144x512xf32, #tpu.memory_space<vmem>>, vector<144x512xf32>
    %cst = arith.constant dense<0.000000e+00> : vector<64x512xf32>
    %5 = tpu.matmul %3, %4, %cst {dimension_numbers = #tpu.dot_dimension_numbers<[1], [0], [0], [1], [0, 0, 1, 1], [], []>} : vector<64x144xf32>, vector<144x512xf32>, vector<64x512xf32> -> vector<64x512xf32>
    %c0_4 = arith.constant 0 : index
    %c0_5 = arith.constant 0 : index
    %6 = vector.load %arg5[%c0_4, %c0_5] : memref<1x512xf32, #tpu.memory_space<vmem>>, vector<1x512xf32>
    %7 = vector.broadcast %6 : vector<1x512xf32> to vector<64x512xf32>
    %8 = arith.addf %5, %7 : vector<64x512xf32>
    %c0_6 = arith.constant 0 : index
    %c0_7 = arith.constant 0 : index
    %9 = vector.load %arg10[%c0_6, %c0_7] : memref<64x512xf32, #tpu.memory_space<vmem>>, vector<64x512xf32>
    tpu.vector_store %arg10[%c0_6, %c0_7], %8 {strides = array<i32>} : memref<64x512xf32, #tpu.memory_space<vmem>>, vector<64x512xf32>,
    %c0_8 = arith.constant 0 : index
    %c0_9 = arith.constant 0 : index
    %10 = vector.load %arg2[%c0_8, %c0_9] : memref<64x144xf32, #tpu.memory_space<vmem>>, vector<64x144xf32>
    %c0_10 = arith.constant 0 : index
    %c0_11 = arith.constant 0 : index
    %11 = vector.load %arg4[%c0_10, %c0_11] : memref<144x512xf32, #tpu.memory_space<vmem>>, vector<144x512xf32>
    %cst_12 = arith.constant dense<0.000000e+00> : vector<64x512xf32>
    %12 = tpu.matmul %10, %11, %cst_12 {dimension_numbers = #tpu.dot_dimension_numbers<[1], [0], [0], [1], [0, 0, 1, 1], [], []>} : vector<64x144xf32>, vector<144x512xf32>, vector<64x512xf32> -> vector<64x512xf32>
    %c0_13 = arith.constant 0 : index
    %c0_14 = arith.constant 0 : index
    %13 = vector.load %arg6[%c0_13, %c0_14] : memref<1x512xf32, #tpu.memory_space<vmem>>, vector<1x512xf32>
    %14 = vector.broadcast %13 : vector<1x512xf32> to vector<64x512xf32>
    %15 = arith.addf %12, %14 : vector<64x512xf32>
    %c0_15 = arith.constant 0 : index
    %c0_16 = arith.constant 0 : index
    %16 = vector.load %arg11[%c0_15, %c0_16] : memref<64x512xf32, #tpu.memory_space<vmem>>, vector<64x512xf32>
    tpu.vector_store %arg11[%c0_15, %c0_16], %15 {strides = array<i32>} : memref<64x512xf32, #tpu.memory_space<vmem>>, vector<64x512xf32>,
    %c0_i32_17 = arith.constant 0 : i32
    %c8_i32 = arith.constant 8 : i32
    %17 = arith.muli %c0_i32_17, %c8_i32 : i32
    %18 = tpu.assume_multiple %17, 8 : i32
    %c7_i32 = arith.constant 7 : i32
    %19 = arith.subi %c7_i32, %c0_i32_17 : i32
    %c8_i32_18 = arith.constant 8 : i32
    %20 = arith.muli %19, %c8_i32_18 : i32
    %21 = tpu.assume_multiple %20, 8 : i32
    %c0_19 = arith.constant 0 : index
    %c0_20 = arith.constant 0 : index
    %22 = vector.load %arg12[%c0_19, %c0_20] : memref<8x256xf32, #tpu.memory_space<vmem>>, vector<8x256xf32>
    %c0_21 = arith.constant 0 : index
    %c0_22 = arith.constant 0 : index
    %23 = vector.load %arg7[%c0_21, %c0_22] : memref<256x1024xf32, #tpu.memory_space<vmem>>, vector<256x1024xf32>
    %cst_23 = arith.constant dense<0.000000e+00> : vector<8x1024xf32>
    %24 = tpu.matmul %22, %23, %cst_23 {dimension_numbers = #tpu.dot_dimension_numbers<[1], [0], [0], [1], [0, 0, 1, 1], [], []>} : vector<8x256xf32>, vector<256x1024xf32>, vector<8x1024xf32> -> vector<8x1024xf32>
    %25 = vector.extract_strided_slice %24 {offsets = [0, 0], sizes = [8, 512], strides = [1, 1]} : vector<8x1024xf32> to vector<8x512xf32>
    %26 = vector.extract_strided_slice %24 {offsets = [0, 512], sizes = [8, 512], strides = [1, 1]} : vector<8x1024xf32> to vector<8x512xf32>
    %27 = arith.index_cast %18 : i32 to index
    %c0_24 = arith.constant 0 : index
    %28 = vector.load %arg10[%27, %c0_24] : memref<64x512xf32, #tpu.memory_space<vmem>>, vector<8x512xf32>
    %29 = arith.addf %28, %25 : vector<8x512xf32>
    %c0_25 = arith.constant 0 : index
    %c0_26 = arith.constant 0 : index
    %30 = vector.load %arg13[%c0_25, %c0_26] : memref<8x256xf32, #tpu.memory_space<vmem>>, vector<8x128xf32>
    %31 = vector.extract_strided_slice %29 {offsets = [0, 0], sizes = [8, 384], strides = [1, 1]} : vector<8x512xf32> to vector<8x384xf32>
    %32 = arith.negf %31 : vector<8x384xf32>
    %33 = math.exp %32 : vector<8x384xf32>
    %cst_27 = arith.constant 1.000000e+00 : f32
    %34 = vector.broadcast %cst_27 : f32 to vector<8x384xf32>
    %35 = arith.addf %34, %33 : vector<8x384xf32>
    %36 = arith.divf %34, %35 : vector<8x384xf32>
    %37 = vector.extract_strided_slice %29 {offsets = [0, 384], sizes = [8, 128], strides = [1, 1]} : vector<8x512xf32> to vector<8x128xf32>
    %38 = math.tanh %37 : vector<8x128xf32>
    %39 = vector.extract_strided_slice %36 {offsets = [0, 0], sizes = [8, 128], strides = [1, 1]} : vector<8x384xf32> to vector<8x128xf32>
    %40 = vector.extract_strided_slice %36 {offsets = [0, 128], sizes = [8, 128], strides = [1, 1]} : vector<8x384xf32> to vector<8x128xf32>
    %41 = vector.extract_strided_slice %36 {offsets = [0, 256], sizes = [8, 128], strides = [1, 1]} : vector<8x384xf32> to vector<8x128xf32>
    %42 = arith.mulf %40, %30 : vector<8x128xf32>
    %43 = arith.mulf %39, %38 : vector<8x128xf32>
    %44 = arith.addf %42, %43 : vector<8x128xf32>
    %45 = math.tanh %44 : vector<8x128xf32>
    %46 = arith.mulf %41, %45 : vector<8x128xf32>
    %47 = arith.index_cast %21 : i32 to index
    %c0_28 = arith.constant 0 : index
    %48 = vector.load %arg11[%47, %c0_28] : memref<64x512xf32, #tpu.memory_space<vmem>>, vector<8x512xf32>
    %49 = arith.addf %48, %26 : vector<8x512xf32>
    %c0_29 = arith.constant 0 : index
    %c128 = arith.constant 128 : index
    %50 = vector.load %arg13[%c0_29, %c128] : memref<8x256xf32, #tpu.memory_space<vmem>>, vector<8x128xf32>
    %51 = vector.extract_strided_slice %49 {offsets = [0, 0], sizes = [8, 384], strides = [1, 1]} : vector<8x512xf32> to vector<8x384xf32>
    %52 = arith.negf %51 : vector<8x384xf32>
    %53 = math.exp %52 : vector<8x384xf32>
    %cst_30 = arith.constant 1.000000e+00 : f32
    %54 = vector.broadcast %cst_30 : f32 to vector<8x384xf32>
    %55 = arith.addf %54, %53 : vector<8x384xf32>
    %56 = arith.divf %54, %55 : vector<8x384xf32>
    %57 = vector.extract_strided_slice %49 {offsets = [0, 384], sizes = [8, 128], strides = [1, 1]} : vector<8x512xf32> to vector<8x128xf32>
    %58 = math.tanh %57 : vector<8x128xf32>
    %59 = vector.extract_strided_slice %56 {offsets = [0, 0], sizes = [8, 128], strides = [1, 1]} : vector<8x384xf32> to vector<8x128xf32>
    %60 = vector.extract_strided_slice %56 {offsets = [0, 128], sizes = [8, 128], strides = [1, 1]} : vector<8x384xf32> to vector<8x128xf32>
    %61 = vector.extract_strided_slice %56 {offsets = [0, 256], sizes = [8, 128], strides = [1, 1]} : vector<8x384xf32> to vector<8x128xf32>
    %62 = arith.mulf %60, %50 : vector<8x128xf32>
    %63 = arith.mulf %59, %58 : vector<8x128xf32>
    %64 = arith.addf %62, %63 : vector<8x128xf32>
    %65 = math.tanh %64 : vector<8x128xf32>
    %66 = arith.mulf %61, %65 : vector<8x128xf32>
    %c0_31 = arith.constant 0 : index
    %c0_32 = arith.constant 0 : index
    %67 = vector.load %arg12[%c0_31, %c0_32] : memref<8x256xf32, #tpu.memory_space<vmem>>, vector<8x128xf32>
    tpu.vector_store %arg12[%c0_31, %c0_32], %46 {strides = array<i32>} : memref<8x256xf32, #tpu.memory_space<vmem>>, vector<8x128xf32>,
    %c0_33 = arith.constant 0 : index
    %c128_34 = arith.constant 128 : index
    %68 = vector.load %arg12[%c0_33, %c128_34] : memref<8x256xf32, #tpu.memory_space<vmem>>, vector<8x128xf32>
    tpu.vector_store %arg12[%c0_33, %c128_34], %66 {strides = array<i32>} : memref<8x256xf32, #tpu.memory_space<vmem>>, vector<8x128xf32>,
    %c0_35 = arith.constant 0 : index
    %c0_36 = arith.constant 0 : index
    %69 = vector.load %arg13[%c0_35, %c0_36] : memref<8x256xf32, #tpu.memory_space<vmem>>, vector<8x128xf32>
    tpu.vector_store %arg13[%c0_35, %c0_36], %44 {strides = array<i32>} : memref<8x256xf32, #tpu.memory_space<vmem>>, vector<8x128xf32>,
    %c0_37 = arith.constant 0 : index
    %c128_38 = arith.constant 128 : index
    %70 = vector.load %arg13[%c0_37, %c128_38] : memref<8x256xf32, #tpu.memory_space<vmem>>, vector<8x128xf32>
    tpu.vector_store %arg13[%c0_37, %c128_38], %64 {strides = array<i32>} : memref<8x256xf32, #tpu.memory_space<vmem>>, vector<8x128xf32>,
    %71 = arith.index_cast %18 : i32 to index
    %c0_39 = arith.constant 0 : index
    %72 = vector.load %arg8[%71, %c0_39] : memref<64x128xf32, #tpu.memory_space<vmem>>, vector<8x128xf32>
    tpu.vector_store %arg8[%71, %c0_39], %46 {strides = array<i32>} : memref<64x128xf32, #tpu.memory_space<vmem>>, vector<8x128xf32>,
    %73 = arith.index_cast %21 : i32 to index
    %c0_40 = arith.constant 0 : index
    %74 = vector.load %arg9[%73, %c0_40] : memref<64x128xf32, #tpu.memory_space<vmem>>, vector<8x128xf32>
    tpu.vector_store %arg9[%73, %c0_40], %66 {strides = array<i32>} : memref<64x128xf32, #tpu.memory_space<vmem>>, vector<8x128xf32>,
    %c1_i32 = arith.constant 1 : i32
    %c8_i32_41 = arith.constant 8 : i32
    %75 = arith.muli %c1_i32, %c8_i32_41 : i32
    %76 = tpu.assume_multiple %75, 8 : i32
    %c7_i32_42 = arith.constant 7 : i32
    %77 = arith.subi %c7_i32_42, %c1_i32 : i32
    %c8_i32_43 = arith.constant 8 : i32
    %78 = arith.muli %77, %c8_i32_43 : i32
    %79 = tpu.assume_multiple %78, 8 : i32
    %c0_44 = arith.constant 0 : index
    %c0_45 = arith.constant 0 : index
    %80 = vector.load %arg12[%c0_44, %c0_45] : memref<8x256xf32, #tpu.memory_space<vmem>>, vector<8x256xf32>
    %c0_46 = arith.constant 0 : index
    %c0_47 = arith.constant 0 : index
    %81 = vector.load %arg7[%c0_46, %c0_47] : memref<256x1024xf32, #tpu.memory_space<vmem>>, vector<256x1024xf32>
    %cst_48 = arith.constant dense<0.000000e+00> : vector<8x1024xf32>
    %82 = tpu.matmul %80, %81, %cst_48 {dimension_numbers = #tpu.dot_dimension_numbers<[1], [0], [0], [1], [0, 0, 1, 1], [], []>} : vector<8x256xf32>, vector<256x1024xf32>, vector<8x1024xf32> -> vector<8x1024xf32>
    %83 = vector.extract_strided_slice %82 {offsets = [0, 0], sizes = [8, 512], strides = [1, 1]} : vector<8x1024xf32> to vector<8x512xf32>
    %84 = vector.extract_strided_slice %82 {offsets = [0, 512], sizes = [8, 512], strides = [1, 1]} : vector<8x1024xf32> to vector<8x512xf32>
    %85 = arith.index_cast %76 : i32 to index
    %c0_49 = arith.constant 0 : index
    %86 = vector.load %arg10[%85, %c0_49] : memref<64x512xf32, #tpu.memory_space<vmem>>, vector<8x512xf32>
    %87 = arith.addf %86, %83 : vector<8x512xf32>
    %c0_50 = arith.constant 0 : index
    %c0_51 = arith.constant 0 : index
    %88 = vector.load %arg13[%c0_50, %c0_51] : memref<8x256xf32, #tpu.memory_space<vmem>>, vector<8x128xf32>
    %89 = vector.extract_strided_slice %87 {offsets = [0, 0], sizes = [8, 384], strides = [1, 1]} : vector<8x512xf32> to vector<8x384xf32>
    %90 = arith.negf %89 : vector<8x384xf32>
    %91 = math.exp %90 : vector<8x384xf32>
    %cst_52 = arith.constant 1.000000e+00 : f32
    %92 = vector.broadcast %cst_52 : f32 to vector<8x384xf32>
    %93 = arith.addf %92, %91 : vector<8x384xf32>
    %94 = arith.divf %92, %93 : vector<8x384xf32>
    %95 = vector.extract_strided_slice %87 {offsets = [0, 384], sizes = [8, 128], strides = [1, 1]} : vector<8x512xf32> to vector<8x128xf32>
    %96 = math.tanh %95 : vector<8x128xf32>
    %97 = vector.extract_strided_slice %94 {offsets = [0, 0], sizes = [8, 128], strides = [1, 1]} : vector<8x384xf32> to vector<8x128xf32>
    %98 = vector.extract_strided_slice %94 {offsets = [0, 128], sizes = [8, 128], strides = [1, 1]} : vector<8x384xf32> to vector<8x128xf32>
    %99 = vector.extract_strided_slice %94 {offsets = [0, 256], sizes = [8, 128], strides = [1, 1]} : vector<8x384xf32> to vector<8x128xf32>
    %100 = arith.mulf %98, %88 : vector<8x128xf32>
    %101 = arith.mulf %97, %96 : vector<8x128xf32>
    %102 = arith.addf %100, %101 : vector<8x128xf32>
    %103 = math.tanh %102 : vector<8x128xf32>
    %104 = arith.mulf %99, %103 : vector<8x128xf32>
    %105 = arith.index_cast %79 : i32 to index
    %c0_53 = arith.constant 0 : index
    %106 = vector.load %arg11[%105, %c0_53] : memref<64x512xf32, #tpu.memory_space<vmem>>, vector<8x512xf32>
    %107 = arith.addf %106, %84 : vector<8x512xf32>
    %c0_54 = arith.constant 0 : index
    %c128_55 = arith.constant 128 : index
    %108 = vector.load %arg13[%c0_54, %c128_55] : memref<8x256xf32, #tpu.memory_space<vmem>>, vector<8x128xf32>
    %109 = vector.extract_strided_slice %107 {offsets = [0, 0], sizes = [8, 384], strides = [1, 1]} : vector<8x512xf32> to vector<8x384xf32>
    %110 = arith.negf %109 : vector<8x384xf32>
    %111 = math.exp %110 : vector<8x384xf32>
    %cst_56 = arith.constant 1.000000e+00 : f32
    %112 = vector.broadcast %cst_56 : f32 to vector<8x384xf32>
    %113 = arith.addf %112, %111 : vector<8x384xf32>
    %114 = arith.divf %112, %113 : vector<8x384xf32>
    %115 = vector.extract_strided_slice %107 {offsets = [0, 384], sizes = [8, 128], strides = [1, 1]} : vector<8x512xf32> to vector<8x128xf32>
    %116 = math.tanh %115 : vector<8x128xf32>
    %117 = vector.extract_strided_slice %114 {offsets = [0, 0], sizes = [8, 128], strides = [1, 1]} : vector<8x384xf32> to vector<8x128xf32>
    %118 = vector.extract_strided_slice %114 {offsets = [0, 128], sizes = [8, 128], strides = [1, 1]} : vector<8x384xf32> to vector<8x128xf32>
    %119 = vector.extract_strided_slice %114 {offsets = [0, 256], sizes = [8, 128], strides = [1, 1]} : vector<8x384xf32> to vector<8x128xf32>
    %120 = arith.mulf %118, %108 : vector<8x128xf32>
    %121 = arith.mulf %117, %116 : vector<8x128xf32>
    %122 = arith.addf %120, %121 : vector<8x128xf32>
    %123 = math.tanh %122 : vector<8x128xf32>
    %124 = arith.mulf %119, %123 : vector<8x128xf32>
    %c0_57 = arith.constant 0 : index
    %c0_58 = arith.constant 0 : index
    %125 = vector.load %arg12[%c0_57, %c0_58] : memref<8x256xf32, #tpu.memory_space<vmem>>, vector<8x128xf32>
    tpu.vector_store %arg12[%c0_57, %c0_58], %104 {strides = array<i32>} : memref<8x256xf32, #tpu.memory_space<vmem>>, vector<8x128xf32>,
    %c0_59 = arith.constant 0 : index
    %c128_60 = arith.constant 128 : index
    %126 = vector.load %arg12[%c0_59, %c128_60] : memref<8x256xf32, #tpu.memory_space<vmem>>, vector<8x128xf32>
    tpu.vector_store %arg12[%c0_59, %c128_60], %124 {strides = array<i32>} : memref<8x256xf32, #tpu.memory_space<vmem>>, vector<8x128xf32>,
    %c0_61 = arith.constant 0 : index
    %c0_62 = arith.constant 0 : index
    %127 = vector.load %arg13[%c0_61, %c0_62] : memref<8x256xf32, #tpu.memory_space<vmem>>, vector<8x128xf32>
    tpu.vector_store %arg13[%c0_61, %c0_62], %102 {strides = array<i32>} : memref<8x256xf32, #tpu.memory_space<vmem>>, vector<8x128xf32>,
    %c0_63 = arith.constant 0 : index
    %c128_64 = arith.constant 128 : index
    %128 = vector.load %arg13[%c0_63, %c128_64] : memref<8x256xf32, #tpu.memory_space<vmem>>, vector<8x128xf32>
    tpu.vector_store %arg13[%c0_63, %c128_64], %122 {strides = array<i32>} : memref<8x256xf32, #tpu.memory_space<vmem>>, vector<8x128xf32>,
    %129 = arith.index_cast %76 : i32 to index
    %c0_65 = arith.constant 0 : index
    %130 = vector.load %arg8[%129, %c0_65] : memref<64x128xf32, #tpu.memory_space<vmem>>, vector<8x128xf32>
    tpu.vector_store %arg8[%129, %c0_65], %104 {strides = array<i32>} : memref<64x128xf32, #tpu.memory_space<vmem>>, vector<8x128xf32>,
    %131 = arith.index_cast %79 : i32 to index
    %c0_66 = arith.constant 0 : index
    %132 = vector.load %arg9[%131, %c0_66] : memref<64x128xf32, #tpu.memory_space<vmem>>, vector<8x128xf32>
    tpu.vector_store %arg9[%131, %c0_66], %124 {strides = array<i32>} : memref<64x128xf32, #tpu.memory_space<vmem>>, vector<8x128xf32>,
    %c2_i32 = arith.constant 2 : i32
    %c8_i32_67 = arith.constant 8 : i32
    %133 = arith.muli %c2_i32, %c8_i32_67 : i32
    %134 = tpu.assume_multiple %133, 8 : i32
    %c7_i32_68 = arith.constant 7 : i32
    %135 = arith.subi %c7_i32_68, %c2_i32 : i32
    %c8_i32_69 = arith.constant 8 : i32
    %136 = arith.muli %135, %c8_i32_69 : i32
    %137 = tpu.assume_multiple %136, 8 : i32
    %c0_70 = arith.constant 0 : index
    %c0_71 = arith.constant 0 : index
    %138 = vector.load %arg12[%c0_70, %c0_71] : memref<8x256xf32, #tpu.memory_space<vmem>>, vector<8x256xf32>
    %c0_72 = arith.constant 0 : index
    %c0_73 = arith.constant 0 : index
    %139 = vector.load %arg7[%c0_72, %c0_73] : memref<256x1024xf32, #tpu.memory_space<vmem>>, vector<256x1024xf32>
    %cst_74 = arith.constant dense<0.000000e+00> : vector<8x1024xf32>
    %140 = tpu.matmul %138, %139, %cst_74 {dimension_numbers = #tpu.dot_dimension_numbers<[1], [0], [0], [1], [0, 0, 1, 1], [], []>} : vector<8x256xf32>, vector<256x1024xf32>, vector<8x1024xf32> -> vector<8x1024xf32>
    %141 = vector.extract_strided_slice %140 {offsets = [0, 0], sizes = [8, 512], strides = [1, 1]} : vector<8x1024xf32> to vector<8x512xf32>
    %142 = vector.extract_strided_slice %140 {offsets = [0, 512], sizes = [8, 512], strides = [1, 1]} : vector<8x1024xf32> to vector<8x512xf32>
    %143 = arith.index_cast %134 : i32 to index
    %c0_75 = arith.constant 0 : index
    %144 = vector.load %arg10[%143, %c0_75] : memref<64x512xf32, #tpu.memory_space<vmem>>, vector<8x512xf32>
    %145 = arith.addf %144, %141 : vector<8x512xf32>
    %c0_76 = arith.constant 0 : index
    %c0_77 = arith.constant 0 : index
    %146 = vector.load %arg13[%c0_76, %c0_77] : memref<8x256xf32, #tpu.memory_space<vmem>>, vector<8x128xf32>
    %147 = vector.extract_strided_slice %145 {offsets = [0, 0], sizes = [8, 384], strides = [1, 1]} : vector<8x512xf32> to vector<8x384xf32>
    %148 = arith.negf %147 : vector<8x384xf32>
    %149 = math.exp %148 : vector<8x384xf32>
    %cst_78 = arith.constant 1.000000e+00 : f32
    %150 = vector.broadcast %cst_78 : f32 to vector<8x384xf32>
    %151 = arith.addf %150, %149 : vector<8x384xf32>
    %152 = arith.divf %150, %151 : vector<8x384xf32>
    %153 = vector.extract_strided_slice %145 {offsets = [0, 384], sizes = [8, 128], strides = [1, 1]} : vector<8x512xf32> to vector<8x128xf32>
    %154 = math.tanh %153 : vector<8x128xf32>
    %155 = vector.extract_strided_slice %152 {offsets = [0, 0], sizes = [8, 128], strides = [1, 1]} : vector<8x384xf32> to vector<8x128xf32>
    %156 = vector.extract_strided_slice %152 {offsets = [0, 128], sizes = [8, 128], strides = [1, 1]} : vector<8x384xf32> to vector<8x128xf32>
    %157 = vector.extract_strided_slice %152 {offsets = [0, 256], sizes = [8, 128], strides = [1, 1]} : vector<8x384xf32> to vector<8x128xf32>
    %158 = arith.mulf %156, %146 : vector<8x128xf32>
    %159 = arith.mulf %155, %154 : vector<8x128xf32>
    %160 = arith.addf %158, %159 : vector<8x128xf32>
    %161 = math.tanh %160 : vector<8x128xf32>
    %162 = arith.mulf %157, %161 : vector<8x128xf32>
    %163 = arith.index_cast %137 : i32 to index
    %c0_79 = arith.constant 0 : index
    %164 = vector.load %arg11[%163, %c0_79] : memref<64x512xf32, #tpu.memory_space<vmem>>, vector<8x512xf32>
    %165 = arith.addf %164, %142 : vector<8x512xf32>
    %c0_80 = arith.constant 0 : index
    %c128_81 = arith.constant 128 : index
    %166 = vector.load %arg13[%c0_80, %c128_81] : memref<8x256xf32, #tpu.memory_space<vmem>>, vector<8x128xf32>
    %167 = vector.extract_strided_slice %165 {offsets = [0, 0], sizes = [8, 384], strides = [1, 1]} : vector<8x512xf32> to vector<8x384xf32>
    %168 = arith.negf %167 : vector<8x384xf32>
    %169 = math.exp %168 : vector<8x384xf32>
    %cst_82 = arith.constant 1.000000e+00 : f32
    %170 = vector.broadcast %cst_82 : f32 to vector<8x384xf32>
    %171 = arith.addf %170, %169 : vector<8x384xf32>
    %172 = arith.divf %170, %171 : vector<8x384xf32>
    %173 = vector.extract_strided_slice %165 {offsets = [0, 384], sizes = [8, 128], strides = [1, 1]} : vector<8x512xf32> to vector<8x128xf32>
    %174 = math.tanh %173 : vector<8x128xf32>
    %175 = vector.extract_strided_slice %172 {offsets = [0, 0], sizes = [8, 128], strides = [1, 1]} : vector<8x384xf32> to vector<8x128xf32>
    %176 = vector.extract_strided_slice %172 {offsets = [0, 128], sizes = [8, 128], strides = [1, 1]} : vector<8x384xf32> to vector<8x128xf32>
    %177 = vector.extract_strided_slice %172 {offsets = [0, 256], sizes = [8, 128], strides = [1, 1]} : vector<8x384xf32> to vector<8x128xf32>
    %178 = arith.mulf %176, %166 : vector<8x128xf32>
    %179 = arith.mulf %175, %174 : vector<8x128xf32>
    %180 = arith.addf %178, %179 : vector<8x128xf32>
    %181 = math.tanh %180 : vector<8x128xf32>
    %182 = arith.mulf %177, %181 : vector<8x128xf32>
    %c0_83 = arith.constant 0 : index
    %c0_84 = arith.constant 0 : index
    %183 = vector.load %arg12[%c0_83, %c0_84] : memref<8x256xf32, #tpu.memory_space<vmem>>, vector<8x128xf32>
    tpu.vector_store %arg12[%c0_83, %c0_84], %162 {strides = array<i32>} : memref<8x256xf32, #tpu.memory_space<vmem>>, vector<8x128xf32>,
    %c0_85 = arith.constant 0 : index
    %c128_86 = arith.constant 128 : index
    %184 = vector.load %arg12[%c0_85, %c128_86] : memref<8x256xf32, #tpu.memory_space<vmem>>, vector<8x128xf32>
    tpu.vector_store %arg12[%c0_85, %c128_86], %182 {strides = array<i32>} : memref<8x256xf32, #tpu.memory_space<vmem>>, vector<8x128xf32>,
    %c0_87 = arith.constant 0 : index
    %c0_88 = arith.constant 0 : index
    %185 = vector.load %arg13[%c0_87, %c0_88] : memref<8x256xf32, #tpu.memory_space<vmem>>, vector<8x128xf32>
    tpu.vector_store %arg13[%c0_87, %c0_88], %160 {strides = array<i32>} : memref<8x256xf32, #tpu.memory_space<vmem>>, vector<8x128xf32>,
    %c0_89 = arith.constant 0 : index
    %c128_90 = arith.constant 128 : index
    %186 = vector.load %arg13[%c0_89, %c128_90] : memref<8x256xf32, #tpu.memory_space<vmem>>, vector<8x128xf32>
    tpu.vector_store %arg13[%c0_89, %c128_90], %180 {strides = array<i32>} : memref<8x256xf32, #tpu.memory_space<vmem>>, vector<8x128xf32>,
    %187 = arith.index_cast %134 : i32 to index
    %c0_91 = arith.constant 0 : index
    %188 = vector.load %arg8[%187, %c0_91] : memref<64x128xf32, #tpu.memory_space<vmem>>, vector<8x128xf32>
    tpu.vector_store %arg8[%187, %c0_91], %162 {strides = array<i32>} : memref<64x128xf32, #tpu.memory_space<vmem>>, vector<8x128xf32>,
    %189 = arith.index_cast %137 : i32 to index
    %c0_92 = arith.constant 0 : index
    %190 = vector.load %arg9[%189, %c0_92] : memref<64x128xf32, #tpu.memory_space<vmem>>, vector<8x128xf32>
    tpu.vector_store %arg9[%189, %c0_92], %182 {strides = array<i32>} : memref<64x128xf32, #tpu.memory_space<vmem>>, vector<8x128xf32>,
    %c3_i32 = arith.constant 3 : i32
    %c8_i32_93 = arith.constant 8 : i32
    %191 = arith.muli %c3_i32, %c8_i32_93 : i32
    %192 = tpu.assume_multiple %191, 8 : i32
    %c7_i32_94 = arith.constant 7 : i32
    %193 = arith.subi %c7_i32_94, %c3_i32 : i32
    %c8_i32_95 = arith.constant 8 : i32
    %194 = arith.muli %193, %c8_i32_95 : i32
    %195 = tpu.assume_multiple %194, 8 : i32
    %c0_96 = arith.constant 0 : index
    %c0_97 = arith.constant 0 : index
    %196 = vector.load %arg12[%c0_96, %c0_97] : memref<8x256xf32, #tpu.memory_space<vmem>>, vector<8x256xf32>
    %c0_98 = arith.constant 0 : index
    %c0_99 = arith.constant 0 : index
    %197 = vector.load %arg7[%c0_98, %c0_99] : memref<256x1024xf32, #tpu.memory_space<vmem>>, vector<256x1024xf32>
    %cst_100 = arith.constant dense<0.000000e+00> : vector<8x1024xf32>
    %198 = tpu.matmul %196, %197, %cst_100 {dimension_numbers = #tpu.dot_dimension_numbers<[1], [0], [0], [1], [0, 0, 1, 1], [], []>} : vector<8x256xf32>, vector<256x1024xf32>, vector<8x1024xf32> -> vector<8x1024xf32>
    %199 = vector.extract_strided_slice %198 {offsets = [0, 0], sizes = [8, 512], strides = [1, 1]} : vector<8x1024xf32> to vector<8x512xf32>
    %200 = vector.extract_strided_slice %198 {offsets = [0, 512], sizes = [8, 512], strides = [1, 1]} : vector<8x1024xf32> to vector<8x512xf32>
    %201 = arith.index_cast %192 : i32 to index
    %c0_101 = arith.constant 0 : index
    %202 = vector.load %arg10[%201, %c0_101] : memref<64x512xf32, #tpu.memory_space<vmem>>, vector<8x512xf32>
    %203 = arith.addf %202, %199 : vector<8x512xf32>
    %c0_102 = arith.constant 0 : index
    %c0_103 = arith.constant 0 : index
    %204 = vector.load %arg13[%c0_102, %c0_103] : memref<8x256xf32, #tpu.memory_space<vmem>>, vector<8x128xf32>
    %205 = vector.extract_strided_slice %203 {offsets = [0, 0], sizes = [8, 384], strides = [1, 1]} : vector<8x512xf32> to vector<8x384xf32>
    %206 = arith.negf %205 : vector<8x384xf32>
    %207 = math.exp %206 : vector<8x384xf32>
    %cst_104 = arith.constant 1.000000e+00 : f32
    %208 = vector.broadcast %cst_104 : f32 to vector<8x384xf32>
    %209 = arith.addf %208, %207 : vector<8x384xf32>
    %210 = arith.divf %208, %209 : vector<8x384xf32>
    %211 = vector.extract_strided_slice %203 {offsets = [0, 384], sizes = [8, 128], strides = [1, 1]} : vector<8x512xf32> to vector<8x128xf32>
    %212 = math.tanh %211 : vector<8x128xf32>
    %213 = vector.extract_strided_slice %210 {offsets = [0, 0], sizes = [8, 128], strides = [1, 1]} : vector<8x384xf32> to vector<8x128xf32>
    %214 = vector.extract_strided_slice %210 {offsets = [0, 128], sizes = [8, 128], strides = [1, 1]} : vector<8x384xf32> to vector<8x128xf32>
    %215 = vector.extract_strided_slice %210 {offsets = [0, 256], sizes = [8, 128], strides = [1, 1]} : vector<8x384xf32> to vector<8x128xf32>
    %216 = arith.mulf %214, %204 : vector<8x128xf32>
    %217 = arith.mulf %213, %212 : vector<8x128xf32>
    %218 = arith.addf %216, %217 : vector<8x128xf32>
    %219 = math.tanh %218 : vector<8x128xf32>
    %220 = arith.mulf %215, %219 : vector<8x128xf32>
    %221 = arith.index_cast %195 : i32 to index
    %c0_105 = arith.constant 0 : index
    %222 = vector.load %arg11[%221, %c0_105] : memref<64x512xf32, #tpu.memory_space<vmem>>, vector<8x512xf32>
    %223 = arith.addf %222, %200 : vector<8x512xf32>
    %c0_106 = arith.constant 0 : index
    %c128_107 = arith.constant 128 : index
    %224 = vector.load %arg13[%c0_106, %c128_107] : memref<8x256xf32, #tpu.memory_space<vmem>>, vector<8x128xf32>
    %225 = vector.extract_strided_slice %223 {offsets = [0, 0], sizes = [8, 384], strides = [1, 1]} : vector<8x512xf32> to vector<8x384xf32>
    %226 = arith.negf %225 : vector<8x384xf32>
    %227 = math.exp %226 : vector<8x384xf32>
    %cst_108 = arith.constant 1.000000e+00 : f32
    %228 = vector.broadcast %cst_108 : f32 to vector<8x384xf32>
    %229 = arith.addf %228, %227 : vector<8x384xf32>
    %230 = arith.divf %228, %229 : vector<8x384xf32>
    %231 = vector.extract_strided_slice %223 {offsets = [0, 384], sizes = [8, 128], strides = [1, 1]} : vector<8x512xf32> to vector<8x128xf32>
    %232 = math.tanh %231 : vector<8x128xf32>
    %233 = vector.extract_strided_slice %230 {offsets = [0, 0], sizes = [8, 128], strides = [1, 1]} : vector<8x384xf32> to vector<8x128xf32>
    %234 = vector.extract_strided_slice %230 {offsets = [0, 128], sizes = [8, 128], strides = [1, 1]} : vector<8x384xf32> to vector<8x128xf32>
    %235 = vector.extract_strided_slice %230 {offsets = [0, 256], sizes = [8, 128], strides = [1, 1]} : vector<8x384xf32> to vector<8x128xf32>
    %236 = arith.mulf %234, %224 : vector<8x128xf32>
    %237 = arith.mulf %233, %232 : vector<8x128xf32>
    %238 = arith.addf %236, %237 : vector<8x128xf32>
    %239 = math.tanh %238 : vector<8x128xf32>
    %240 = arith.mulf %235, %239 : vector<8x128xf32>
    %c0_109 = arith.constant 0 : index
    %c0_110 = arith.constant 0 : index
    %241 = vector.load %arg12[%c0_109, %c0_110] : memref<8x256xf32, #tpu.memory_space<vmem>>, vector<8x128xf32>
    tpu.vector_store %arg12[%c0_109, %c0_110], %220 {strides = array<i32>} : memref<8x256xf32, #tpu.memory_space<vmem>>, vector<8x128xf32>,
    %c0_111 = arith.constant 0 : index
    %c128_112 = arith.constant 128 : index
    %242 = vector.load %arg12[%c0_111, %c128_112] : memref<8x256xf32, #tpu.memory_space<vmem>>, vector<8x128xf32>
    tpu.vector_store %arg12[%c0_111, %c128_112], %240 {strides = array<i32>} : memref<8x256xf32, #tpu.memory_space<vmem>>, vector<8x128xf32>,
    %c0_113 = arith.constant 0 : index
    %c0_114 = arith.constant 0 : index
    %243 = vector.load %arg13[%c0_113, %c0_114] : memref<8x256xf32, #tpu.memory_space<vmem>>, vector<8x128xf32>
    tpu.vector_store %arg13[%c0_113, %c0_114], %218 {strides = array<i32>} : memref<8x256xf32, #tpu.memory_space<vmem>>, vector<8x128xf32>,
    %c0_115 = arith.constant 0 : index
    %c128_116 = arith.constant 128 : index
    %244 = vector.load %arg13[%c0_115, %c128_116] : memref<8x256xf32, #tpu.memory_space<vmem>>, vector<8x128xf32>
    tpu.vector_store %arg13[%c0_115, %c128_116], %238 {strides = array<i32>} : memref<8x256xf32, #tpu.memory_space<vmem>>, vector<8x128xf32>,
    %245 = arith.index_cast %192 : i32 to index
    %c0_117 = arith.constant 0 : index
    %246 = vector.load %arg8[%245, %c0_117] : memref<64x128xf32, #tpu.memory_space<vmem>>, vector<8x128xf32>
    tpu.vector_store %arg8[%245, %c0_117], %220 {strides = array<i32>} : memref<64x128xf32, #tpu.memory_space<vmem>>, vector<8x128xf32>,
    %247 = arith.index_cast %195 : i32 to index
    %c0_118 = arith.constant 0 : index
    %248 = vector.load %arg9[%247, %c0_118] : memref<64x128xf32, #tpu.memory_space<vmem>>, vector<8x128xf32>
    tpu.vector_store %arg9[%247, %c0_118], %240 {strides = array<i32>} : memref<64x128xf32, #tpu.memory_space<vmem>>, vector<8x128xf32>,
    %c4_i32 = arith.constant 4 : i32
    %c8_i32_119 = arith.constant 8 : i32
    %249 = arith.muli %c4_i32, %c8_i32_119 : i32
    %250 = tpu.assume_multiple %249, 8 : i32
    %c7_i32_120 = arith.constant 7 : i32
    %251 = arith.subi %c7_i32_120, %c4_i32 : i32
    %c8_i32_121 = arith.constant 8 : i32
    %252 = arith.muli %251, %c8_i32_121 : i32
    %253 = tpu.assume_multiple %252, 8 : i32
    %c0_122 = arith.constant 0 : index
    %c0_123 = arith.constant 0 : index
    %254 = vector.load %arg12[%c0_122, %c0_123] : memref<8x256xf32, #tpu.memory_space<vmem>>, vector<8x256xf32>
    %c0_124 = arith.constant 0 : index
    %c0_125 = arith.constant 0 : index
    %255 = vector.load %arg7[%c0_124, %c0_125] : memref<256x1024xf32, #tpu.memory_space<vmem>>, vector<256x1024xf32>
    %cst_126 = arith.constant dense<0.000000e+00> : vector<8x1024xf32>
    %256 = tpu.matmul %254, %255, %cst_126 {dimension_numbers = #tpu.dot_dimension_numbers<[1], [0], [0], [1], [0, 0, 1, 1], [], []>} : vector<8x256xf32>, vector<256x1024xf32>, vector<8x1024xf32> -> vector<8x1024xf32>
    %257 = vector.extract_strided_slice %256 {offsets = [0, 0], sizes = [8, 512], strides = [1, 1]} : vector<8x1024xf32> to vector<8x512xf32>
    %258 = vector.extract_strided_slice %256 {offsets = [0, 512], sizes = [8, 512], strides = [1, 1]} : vector<8x1024xf32> to vector<8x512xf32>
    %259 = arith.index_cast %250 : i32 to index
    %c0_127 = arith.constant 0 : index
    %260 = vector.load %arg10[%259, %c0_127] : memref<64x512xf32, #tpu.memory_space<vmem>>, vector<8x512xf32>
    %261 = arith.addf %260, %257 : vector<8x512xf32>
    %c0_128 = arith.constant 0 : index
    %c0_129 = arith.constant 0 : index
    %262 = vector.load %arg13[%c0_128, %c0_129] : memref<8x256xf32, #tpu.memory_space<vmem>>, vector<8x128xf32>
    %263 = vector.extract_strided_slice %261 {offsets = [0, 0], sizes = [8, 384], strides = [1, 1]} : vector<8x512xf32> to vector<8x384xf32>
    %264 = arith.negf %263 : vector<8x384xf32>
    %265 = math.exp %264 : vector<8x384xf32>
    %cst_130 = arith.constant 1.000000e+00 : f32
    %266 = vector.broadcast %cst_130 : f32 to vector<8x384xf32>
    %267 = arith.addf %266, %265 : vector<8x384xf32>
    %268 = arith.divf %266, %267 : vector<8x384xf32>
    %269 = vector.extract_strided_slice %261 {offsets = [0, 384], sizes = [8, 128], strides = [1, 1]} : vector<8x512xf32> to vector<8x128xf32>
    %270 = math.tanh %269 : vector<8x128xf32>
    %271 = vector.extract_strided_slice %268 {offsets = [0, 0], sizes = [8, 128], strides = [1, 1]} : vector<8x384xf32> to vector<8x128xf32>
    %272 = vector.extract_strided_slice %268 {offsets = [0, 128], sizes = [8, 128], strides = [1, 1]} : vector<8x384xf32> to vector<8x128xf32>
    %273 = vector.extract_strided_slice %268 {offsets = [0, 256], sizes = [8, 128], strides = [1, 1]} : vector<8x384xf32> to vector<8x128xf32>
    %274 = arith.mulf %272, %262 : vector<8x128xf32>
    %275 = arith.mulf %271, %270 : vector<8x128xf32>
    %276 = arith.addf %274, %275 : vector<8x128xf32>
    %277 = math.tanh %276 : vector<8x128xf32>
    %278 = arith.mulf %273, %277 : vector<8x128xf32>
    %279 = arith.index_cast %253 : i32 to index
    %c0_131 = arith.constant 0 : index
    %280 = vector.load %arg11[%279, %c0_131] : memref<64x512xf32, #tpu.memory_space<vmem>>, vector<8x512xf32>
    %281 = arith.addf %280, %258 : vector<8x512xf32>
    %c0_132 = arith.constant 0 : index
    %c128_133 = arith.constant 128 : index
    %282 = vector.load %arg13[%c0_132, %c128_133] : memref<8x256xf32, #tpu.memory_space<vmem>>, vector<8x128xf32>
    %283 = vector.extract_strided_slice %281 {offsets = [0, 0], sizes = [8, 384], strides = [1, 1]} : vector<8x512xf32> to vector<8x384xf32>
    %284 = arith.negf %283 : vector<8x384xf32>
    %285 = math.exp %284 : vector<8x384xf32>
    %cst_134 = arith.constant 1.000000e+00 : f32
    %286 = vector.broadcast %cst_134 : f32 to vector<8x384xf32>
    %287 = arith.addf %286, %285 : vector<8x384xf32>
    %288 = arith.divf %286, %287 : vector<8x384xf32>
    %289 = vector.extract_strided_slice %281 {offsets = [0, 384], sizes = [8, 128], strides = [1, 1]} : vector<8x512xf32> to vector<8x128xf32>
    %290 = math.tanh %289 : vector<8x128xf32>
    %291 = vector.extract_strided_slice %288 {offsets = [0, 0], sizes = [8, 128], strides = [1, 1]} : vector<8x384xf32> to vector<8x128xf32>
    %292 = vector.extract_strided_slice %288 {offsets = [0, 128], sizes = [8, 128], strides = [1, 1]} : vector<8x384xf32> to vector<8x128xf32>
    %293 = vector.extract_strided_slice %288 {offsets = [0, 256], sizes = [8, 128], strides = [1, 1]} : vector<8x384xf32> to vector<8x128xf32>
    %294 = arith.mulf %292, %282 : vector<8x128xf32>
    %295 = arith.mulf %291, %290 : vector<8x128xf32>
    %296 = arith.addf %294, %295 : vector<8x128xf32>
    %297 = math.tanh %296 : vector<8x128xf32>
    %298 = arith.mulf %293, %297 : vector<8x128xf32>
    %c0_135 = arith.constant 0 : index
    %c0_136 = arith.constant 0 : index
    %299 = vector.load %arg12[%c0_135, %c0_136] : memref<8x256xf32, #tpu.memory_space<vmem>>, vector<8x128xf32>
    tpu.vector_store %arg12[%c0_135, %c0_136], %278 {strides = array<i32>} : memref<8x256xf32, #tpu.memory_space<vmem>>, vector<8x128xf32>,
    %c0_137 = arith.constant 0 : index
    %c128_138 = arith.constant 128 : index
    %300 = vector.load %arg12[%c0_137, %c128_138] : memref<8x256xf32, #tpu.memory_space<vmem>>, vector<8x128xf32>
    tpu.vector_store %arg12[%c0_137, %c128_138], %298 {strides = array<i32>} : memref<8x256xf32, #tpu.memory_space<vmem>>, vector<8x128xf32>,
    %c0_139 = arith.constant 0 : index
    %c0_140 = arith.constant 0 : index
    %301 = vector.load %arg13[%c0_139, %c0_140] : memref<8x256xf32, #tpu.memory_space<vmem>>, vector<8x128xf32>
    tpu.vector_store %arg13[%c0_139, %c0_140], %276 {strides = array<i32>} : memref<8x256xf32, #tpu.memory_space<vmem>>, vector<8x128xf32>,
    %c0_141 = arith.constant 0 : index
    %c128_142 = arith.constant 128 : index
    %302 = vector.load %arg13[%c0_141, %c128_142] : memref<8x256xf32, #tpu.memory_space<vmem>>, vector<8x128xf32>
    tpu.vector_store %arg13[%c0_141, %c128_142], %296 {strides = array<i32>} : memref<8x256xf32, #tpu.memory_space<vmem>>, vector<8x128xf32>,
    %303 = arith.index_cast %250 : i32 to index
    %c0_143 = arith.constant 0 : index
    %304 = vector.load %arg8[%303, %c0_143] : memref<64x128xf32, #tpu.memory_space<vmem>>, vector<8x128xf32>
    tpu.vector_store %arg8[%303, %c0_143], %278 {strides = array<i32>} : memref<64x128xf32, #tpu.memory_space<vmem>>, vector<8x128xf32>,
    %305 = arith.index_cast %253 : i32 to index
    %c0_144 = arith.constant 0 : index
    %306 = vector.load %arg9[%305, %c0_144] : memref<64x128xf32, #tpu.memory_space<vmem>>, vector<8x128xf32>
    tpu.vector_store %arg9[%305, %c0_144], %298 {strides = array<i32>} : memref<64x128xf32, #tpu.memory_space<vmem>>, vector<8x128xf32>,
    %c5_i32 = arith.constant 5 : i32
    %c8_i32_145 = arith.constant 8 : i32
    %307 = arith.muli %c5_i32, %c8_i32_145 : i32
    %308 = tpu.assume_multiple %307, 8 : i32
    %c7_i32_146 = arith.constant 7 : i32
    %309 = arith.subi %c7_i32_146, %c5_i32 : i32
    %c8_i32_147 = arith.constant 8 : i32
    %310 = arith.muli %309, %c8_i32_147 : i32
    %311 = tpu.assume_multiple %310, 8 : i32
    %c0_148 = arith.constant 0 : index
    %c0_149 = arith.constant 0 : index
    %312 = vector.load %arg12[%c0_148, %c0_149] : memref<8x256xf32, #tpu.memory_space<vmem>>, vector<8x256xf32>
    %c0_150 = arith.constant 0 : index
    %c0_151 = arith.constant 0 : index
    %313 = vector.load %arg7[%c0_150, %c0_151] : memref<256x1024xf32, #tpu.memory_space<vmem>>, vector<256x1024xf32>
    %cst_152 = arith.constant dense<0.000000e+00> : vector<8x1024xf32>
    %314 = tpu.matmul %312, %313, %cst_152 {dimension_numbers = #tpu.dot_dimension_numbers<[1], [0], [0], [1], [0, 0, 1, 1], [], []>} : vector<8x256xf32>, vector<256x1024xf32>, vector<8x1024xf32> -> vector<8x1024xf32>
    %315 = vector.extract_strided_slice %314 {offsets = [0, 0], sizes = [8, 512], strides = [1, 1]} : vector<8x1024xf32> to vector<8x512xf32>
    %316 = vector.extract_strided_slice %314 {offsets = [0, 512], sizes = [8, 512], strides = [1, 1]} : vector<8x1024xf32> to vector<8x512xf32>
    %317 = arith.index_cast %308 : i32 to index
    %c0_153 = arith.constant 0 : index
    %318 = vector.load %arg10[%317, %c0_153] : memref<64x512xf32, #tpu.memory_space<vmem>>, vector<8x512xf32>
    %319 = arith.addf %318, %315 : vector<8x512xf32>
    %c0_154 = arith.constant 0 : index
    %c0_155 = arith.constant 0 : index
    %320 = vector.load %arg13[%c0_154, %c0_155] : memref<8x256xf32, #tpu.memory_space<vmem>>, vector<8x128xf32>
    %321 = vector.extract_strided_slice %319 {offsets = [0, 0], sizes = [8, 384], strides = [1, 1]} : vector<8x512xf32> to vector<8x384xf32>
    %322 = arith.negf %321 : vector<8x384xf32>
    %323 = math.exp %322 : vector<8x384xf32>
    %cst_156 = arith.constant 1.000000e+00 : f32
    %324 = vector.broadcast %cst_156 : f32 to vector<8x384xf32>
    %325 = arith.addf %324, %323 : vector<8x384xf32>
    %326 = arith.divf %324, %325 : vector<8x384xf32>
    %327 = vector.extract_strided_slice %319 {offsets = [0, 384], sizes = [8, 128], strides = [1, 1]} : vector<8x512xf32> to vector<8x128xf32>
    %328 = math.tanh %327 : vector<8x128xf32>
    %329 = vector.extract_strided_slice %326 {offsets = [0, 0], sizes = [8, 128], strides = [1, 1]} : vector<8x384xf32> to vector<8x128xf32>
    %330 = vector.extract_strided_slice %326 {offsets = [0, 128], sizes = [8, 128], strides = [1, 1]} : vector<8x384xf32> to vector<8x128xf32>
    %331 = vector.extract_strided_slice %326 {offsets = [0, 256], sizes = [8, 128], strides = [1, 1]} : vector<8x384xf32> to vector<8x128xf32>
    %332 = arith.mulf %330, %320 : vector<8x128xf32>
    %333 = arith.mulf %329, %328 : vector<8x128xf32>
    %334 = arith.addf %332, %333 : vector<8x128xf32>
    %335 = math.tanh %334 : vector<8x128xf32>
    %336 = arith.mulf %331, %335 : vector<8x128xf32>
    %337 = arith.index_cast %311 : i32 to index
    %c0_157 = arith.constant 0 : index
    %338 = vector.load %arg11[%337, %c0_157] : memref<64x512xf32, #tpu.memory_space<vmem>>, vector<8x512xf32>
    %339 = arith.addf %338, %316 : vector<8x512xf32>
    %c0_158 = arith.constant 0 : index
    %c128_159 = arith.constant 128 : index
    %340 = vector.load %arg13[%c0_158, %c128_159] : memref<8x256xf32, #tpu.memory_space<vmem>>, vector<8x128xf32>
    %341 = vector.extract_strided_slice %339 {offsets = [0, 0], sizes = [8, 384], strides = [1, 1]} : vector<8x512xf32> to vector<8x384xf32>
    %342 = arith.negf %341 : vector<8x384xf32>
    %343 = math.exp %342 : vector<8x384xf32>
    %cst_160 = arith.constant 1.000000e+00 : f32
    %344 = vector.broadcast %cst_160 : f32 to vector<8x384xf32>
    %345 = arith.addf %344, %343 : vector<8x384xf32>
    %346 = arith.divf %344, %345 : vector<8x384xf32>
    %347 = vector.extract_strided_slice %339 {offsets = [0, 384], sizes = [8, 128], strides = [1, 1]} : vector<8x512xf32> to vector<8x128xf32>
    %348 = math.tanh %347 : vector<8x128xf32>
    %349 = vector.extract_strided_slice %346 {offsets = [0, 0], sizes = [8, 128], strides = [1, 1]} : vector<8x384xf32> to vector<8x128xf32>
    %350 = vector.extract_strided_slice %346 {offsets = [0, 128], sizes = [8, 128], strides = [1, 1]} : vector<8x384xf32> to vector<8x128xf32>
    %351 = vector.extract_strided_slice %346 {offsets = [0, 256], sizes = [8, 128], strides = [1, 1]} : vector<8x384xf32> to vector<8x128xf32>
    %352 = arith.mulf %350, %340 : vector<8x128xf32>
    %353 = arith.mulf %349, %348 : vector<8x128xf32>
    %354 = arith.addf %352, %353 : vector<8x128xf32>
    %355 = math.tanh %354 : vector<8x128xf32>
    %356 = arith.mulf %351, %355 : vector<8x128xf32>
    %c0_161 = arith.constant 0 : index
    %c0_162 = arith.constant 0 : index
    %357 = vector.load %arg12[%c0_161, %c0_162] : memref<8x256xf32, #tpu.memory_space<vmem>>, vector<8x128xf32>
    tpu.vector_store %arg12[%c0_161, %c0_162], %336 {strides = array<i32>} : memref<8x256xf32, #tpu.memory_space<vmem>>, vector<8x128xf32>,
    %c0_163 = arith.constant 0 : index
    %c128_164 = arith.constant 128 : index
    %358 = vector.load %arg12[%c0_163, %c128_164] : memref<8x256xf32, #tpu.memory_space<vmem>>, vector<8x128xf32>
    tpu.vector_store %arg12[%c0_163, %c128_164], %356 {strides = array<i32>} : memref<8x256xf32, #tpu.memory_space<vmem>>, vector<8x128xf32>,
    %c0_165 = arith.constant 0 : index
    %c0_166 = arith.constant 0 : index
    %359 = vector.load %arg13[%c0_165, %c0_166] : memref<8x256xf32, #tpu.memory_space<vmem>>, vector<8x128xf32>
    tpu.vector_store %arg13[%c0_165, %c0_166], %334 {strides = array<i32>} : memref<8x256xf32, #tpu.memory_space<vmem>>, vector<8x128xf32>,
    %c0_167 = arith.constant 0 : index
    %c128_168 = arith.constant 128 : index
    %360 = vector.load %arg13[%c0_167, %c128_168] : memref<8x256xf32, #tpu.memory_space<vmem>>, vector<8x128xf32>
    tpu.vector_store %arg13[%c0_167, %c128_168], %354 {strides = array<i32>} : memref<8x256xf32, #tpu.memory_space<vmem>>, vector<8x128xf32>,
    %361 = arith.index_cast %308 : i32 to index
    %c0_169 = arith.constant 0 : index
    %362 = vector.load %arg8[%361, %c0_169] : memref<64x128xf32, #tpu.memory_space<vmem>>, vector<8x128xf32>
    tpu.vector_store %arg8[%361, %c0_169], %336 {strides = array<i32>} : memref<64x128xf32, #tpu.memory_space<vmem>>, vector<8x128xf32>,
    %363 = arith.index_cast %311 : i32 to index
    %c0_170 = arith.constant 0 : index
    %364 = vector.load %arg9[%363, %c0_170] : memref<64x128xf32, #tpu.memory_space<vmem>>, vector<8x128xf32>
    tpu.vector_store %arg9[%363, %c0_170], %356 {strides = array<i32>} : memref<64x128xf32, #tpu.memory_space<vmem>>, vector<8x128xf32>,
    %c6_i32 = arith.constant 6 : i32
    %c8_i32_171 = arith.constant 8 : i32
    %365 = arith.muli %c6_i32, %c8_i32_171 : i32
    %366 = tpu.assume_multiple %365, 8 : i32
    %c7_i32_172 = arith.constant 7 : i32
    %367 = arith.subi %c7_i32_172, %c6_i32 : i32
    %c8_i32_173 = arith.constant 8 : i32
    %368 = arith.muli %367, %c8_i32_173 : i32
    %369 = tpu.assume_multiple %368, 8 : i32
    %c0_174 = arith.constant 0 : index
    %c0_175 = arith.constant 0 : index
    %370 = vector.load %arg12[%c0_174, %c0_175] : memref<8x256xf32, #tpu.memory_space<vmem>>, vector<8x256xf32>
    %c0_176 = arith.constant 0 : index
    %c0_177 = arith.constant 0 : index
    %371 = vector.load %arg7[%c0_176, %c0_177] : memref<256x1024xf32, #tpu.memory_space<vmem>>, vector<256x1024xf32>
    %cst_178 = arith.constant dense<0.000000e+00> : vector<8x1024xf32>
    %372 = tpu.matmul %370, %371, %cst_178 {dimension_numbers = #tpu.dot_dimension_numbers<[1], [0], [0], [1], [0, 0, 1, 1], [], []>} : vector<8x256xf32>, vector<256x1024xf32>, vector<8x1024xf32> -> vector<8x1024xf32>
    %373 = vector.extract_strided_slice %372 {offsets = [0, 0], sizes = [8, 512], strides = [1, 1]} : vector<8x1024xf32> to vector<8x512xf32>
    %374 = vector.extract_strided_slice %372 {offsets = [0, 512], sizes = [8, 512], strides = [1, 1]} : vector<8x1024xf32> to vector<8x512xf32>
    %375 = arith.index_cast %366 : i32 to index
    %c0_179 = arith.constant 0 : index
    %376 = vector.load %arg10[%375, %c0_179] : memref<64x512xf32, #tpu.memory_space<vmem>>, vector<8x512xf32>
    %377 = arith.addf %376, %373 : vector<8x512xf32>
    %c0_180 = arith.constant 0 : index
    %c0_181 = arith.constant 0 : index
    %378 = vector.load %arg13[%c0_180, %c0_181] : memref<8x256xf32, #tpu.memory_space<vmem>>, vector<8x128xf32>
    %379 = vector.extract_strided_slice %377 {offsets = [0, 0], sizes = [8, 384], strides = [1, 1]} : vector<8x512xf32> to vector<8x384xf32>
    %380 = arith.negf %379 : vector<8x384xf32>
    %381 = math.exp %380 : vector<8x384xf32>
    %cst_182 = arith.constant 1.000000e+00 : f32
    %382 = vector.broadcast %cst_182 : f32 to vector<8x384xf32>
    %383 = arith.addf %382, %381 : vector<8x384xf32>
    %384 = arith.divf %382, %383 : vector<8x384xf32>
    %385 = vector.extract_strided_slice %377 {offsets = [0, 384], sizes = [8, 128], strides = [1, 1]} : vector<8x512xf32> to vector<8x128xf32>
    %386 = math.tanh %385 : vector<8x128xf32>
    %387 = vector.extract_strided_slice %384 {offsets = [0, 0], sizes = [8, 128], strides = [1, 1]} : vector<8x384xf32> to vector<8x128xf32>
    %388 = vector.extract_strided_slice %384 {offsets = [0, 128], sizes = [8, 128], strides = [1, 1]} : vector<8x384xf32> to vector<8x128xf32>
    %389 = vector.extract_strided_slice %384 {offsets = [0, 256], sizes = [8, 128], strides = [1, 1]} : vector<8x384xf32> to vector<8x128xf32>
    %390 = arith.mulf %388, %378 : vector<8x128xf32>
    %391 = arith.mulf %387, %386 : vector<8x128xf32>
    %392 = arith.addf %390, %391 : vector<8x128xf32>
    %393 = math.tanh %392 : vector<8x128xf32>
    %394 = arith.mulf %389, %393 : vector<8x128xf32>
    %395 = arith.index_cast %369 : i32 to index
    %c0_183 = arith.constant 0 : index
    %396 = vector.load %arg11[%395, %c0_183] : memref<64x512xf32, #tpu.memory_space<vmem>>, vector<8x512xf32>
    %397 = arith.addf %396, %374 : vector<8x512xf32>
    %c0_184 = arith.constant 0 : index
    %c128_185 = arith.constant 128 : index
    %398 = vector.load %arg13[%c0_184, %c128_185] : memref<8x256xf32, #tpu.memory_space<vmem>>, vector<8x128xf32>
    %399 = vector.extract_strided_slice %397 {offsets = [0, 0], sizes = [8, 384], strides = [1, 1]} : vector<8x512xf32> to vector<8x384xf32>
    %400 = arith.negf %399 : vector<8x384xf32>
    %401 = math.exp %400 : vector<8x384xf32>
    %cst_186 = arith.constant 1.000000e+00 : f32
    %402 = vector.broadcast %cst_186 : f32 to vector<8x384xf32>
    %403 = arith.addf %402, %401 : vector<8x384xf32>
    %404 = arith.divf %402, %403 : vector<8x384xf32>
    %405 = vector.extract_strided_slice %397 {offsets = [0, 384], sizes = [8, 128], strides = [1, 1]} : vector<8x512xf32> to vector<8x128xf32>
    %406 = math.tanh %405 : vector<8x128xf32>
    %407 = vector.extract_strided_slice %404 {offsets = [0, 0], sizes = [8, 128], strides = [1, 1]} : vector<8x384xf32> to vector<8x128xf32>
    %408 = vector.extract_strided_slice %404 {offsets = [0, 128], sizes = [8, 128], strides = [1, 1]} : vector<8x384xf32> to vector<8x128xf32>
    %409 = vector.extract_strided_slice %404 {offsets = [0, 256], sizes = [8, 128], strides = [1, 1]} : vector<8x384xf32> to vector<8x128xf32>
    %410 = arith.mulf %408, %398 : vector<8x128xf32>
    %411 = arith.mulf %407, %406 : vector<8x128xf32>
    %412 = arith.addf %410, %411 : vector<8x128xf32>
    %413 = math.tanh %412 : vector<8x128xf32>
    %414 = arith.mulf %409, %413 : vector<8x128xf32>
    %c0_187 = arith.constant 0 : index
    %c0_188 = arith.constant 0 : index
    %415 = vector.load %arg12[%c0_187, %c0_188] : memref<8x256xf32, #tpu.memory_space<vmem>>, vector<8x128xf32>
    tpu.vector_store %arg12[%c0_187, %c0_188], %394 {strides = array<i32>} : memref<8x256xf32, #tpu.memory_space<vmem>>, vector<8x128xf32>,
    %c0_189 = arith.constant 0 : index
    %c128_190 = arith.constant 128 : index
    %416 = vector.load %arg12[%c0_189, %c128_190] : memref<8x256xf32, #tpu.memory_space<vmem>>, vector<8x128xf32>
    tpu.vector_store %arg12[%c0_189, %c128_190], %414 {strides = array<i32>} : memref<8x256xf32, #tpu.memory_space<vmem>>, vector<8x128xf32>,
    %c0_191 = arith.constant 0 : index
    %c0_192 = arith.constant 0 : index
    %417 = vector.load %arg13[%c0_191, %c0_192] : memref<8x256xf32, #tpu.memory_space<vmem>>, vector<8x128xf32>
    tpu.vector_store %arg13[%c0_191, %c0_192], %392 {strides = array<i32>} : memref<8x256xf32, #tpu.memory_space<vmem>>, vector<8x128xf32>,
    %c0_193 = arith.constant 0 : index
    %c128_194 = arith.constant 128 : index
    %418 = vector.load %arg13[%c0_193, %c128_194] : memref<8x256xf32, #tpu.memory_space<vmem>>, vector<8x128xf32>
    tpu.vector_store %arg13[%c0_193, %c128_194], %412 {strides = array<i32>} : memref<8x256xf32, #tpu.memory_space<vmem>>, vector<8x128xf32>,
    %419 = arith.index_cast %366 : i32 to index
    %c0_195 = arith.constant 0 : index
    %420 = vector.load %arg8[%419, %c0_195] : memref<64x128xf32, #tpu.memory_space<vmem>>, vector<8x128xf32>
    tpu.vector_store %arg8[%419, %c0_195], %394 {strides = array<i32>} : memref<64x128xf32, #tpu.memory_space<vmem>>, vector<8x128xf32>,
    %421 = arith.index_cast %369 : i32 to index
    %c0_196 = arith.constant 0 : index
    %422 = vector.load %arg9[%421, %c0_196] : memref<64x128xf32, #tpu.memory_space<vmem>>, vector<8x128xf32>
    tpu.vector_store %arg9[%421, %c0_196], %414 {strides = array<i32>} : memref<64x128xf32, #tpu.memory_space<vmem>>, vector<8x128xf32>,
    %c7_i32_197 = arith.constant 7 : i32
    %c8_i32_198 = arith.constant 8 : i32
    %423 = arith.muli %c7_i32_197, %c8_i32_198 : i32
    %424 = tpu.assume_multiple %423, 8 : i32
    %c7_i32_199 = arith.constant 7 : i32
    %425 = arith.subi %c7_i32_199, %c7_i32_197 : i32
    %c8_i32_200 = arith.constant 8 : i32
    %426 = arith.muli %425, %c8_i32_200 : i32
    %427 = tpu.assume_multiple %426, 8 : i32
    %c0_201 = arith.constant 0 : index
    %c0_202 = arith.constant 0 : index
    %428 = vector.load %arg12[%c0_201, %c0_202] : memref<8x256xf32, #tpu.memory_space<vmem>>, vector<8x256xf32>
    %c0_203 = arith.constant 0 : index
    %c0_204 = arith.constant 0 : index
    %429 = vector.load %arg7[%c0_203, %c0_204] : memref<256x1024xf32, #tpu.memory_space<vmem>>, vector<256x1024xf32>
    %cst_205 = arith.constant dense<0.000000e+00> : vector<8x1024xf32>
    %430 = tpu.matmul %428, %429, %cst_205 {dimension_numbers = #tpu.dot_dimension_numbers<[1], [0], [0], [1], [0, 0, 1, 1], [], []>} : vector<8x256xf32>, vector<256x1024xf32>, vector<8x1024xf32> -> vector<8x1024xf32>
    %431 = vector.extract_strided_slice %430 {offsets = [0, 0], sizes = [8, 512], strides = [1, 1]} : vector<8x1024xf32> to vector<8x512xf32>
    %432 = vector.extract_strided_slice %430 {offsets = [0, 512], sizes = [8, 512], strides = [1, 1]} : vector<8x1024xf32> to vector<8x512xf32>
    %433 = arith.index_cast %424 : i32 to index
    %c0_206 = arith.constant 0 : index
    %434 = vector.load %arg10[%433, %c0_206] : memref<64x512xf32, #tpu.memory_space<vmem>>, vector<8x512xf32>
    %435 = arith.addf %434, %431 : vector<8x512xf32>
    %c0_207 = arith.constant 0 : index
    %c0_208 = arith.constant 0 : index
    %436 = vector.load %arg13[%c0_207, %c0_208] : memref<8x256xf32, #tpu.memory_space<vmem>>, vector<8x128xf32>
    %437 = vector.extract_strided_slice %435 {offsets = [0, 0], sizes = [8, 384], strides = [1, 1]} : vector<8x512xf32> to vector<8x384xf32>
    %438 = arith.negf %437 : vector<8x384xf32>
    %439 = math.exp %438 : vector<8x384xf32>
    %cst_209 = arith.constant 1.000000e+00 : f32
    %440 = vector.broadcast %cst_209 : f32 to vector<8x384xf32>
    %441 = arith.addf %440, %439 : vector<8x384xf32>
    %442 = arith.divf %440, %441 : vector<8x384xf32>
    %443 = vector.extract_strided_slice %435 {offsets = [0, 384], sizes = [8, 128], strides = [1, 1]} : vector<8x512xf32> to vector<8x128xf32>
    %444 = math.tanh %443 : vector<8x128xf32>
    %445 = vector.extract_strided_slice %442 {offsets = [0, 0], sizes = [8, 128], strides = [1, 1]} : vector<8x384xf32> to vector<8x128xf32>
    %446 = vector.extract_strided_slice %442 {offsets = [0, 128], sizes = [8, 128], strides = [1, 1]} : vector<8x384xf32> to vector<8x128xf32>
    %447 = vector.extract_strided_slice %442 {offsets = [0, 256], sizes = [8, 128], strides = [1, 1]} : vector<8x384xf32> to vector<8x128xf32>
    %448 = arith.mulf %446, %436 : vector<8x128xf32>
    %449 = arith.mulf %445, %444 : vector<8x128xf32>
    %450 = arith.addf %448, %449 : vector<8x128xf32>
    %451 = math.tanh %450 : vector<8x128xf32>
    %452 = arith.mulf %447, %451 : vector<8x128xf32>
    %453 = arith.index_cast %427 : i32 to index
    %c0_210 = arith.constant 0 : index
    %454 = vector.load %arg11[%453, %c0_210] : memref<64x512xf32, #tpu.memory_space<vmem>>, vector<8x512xf32>
    %455 = arith.addf %454, %432 : vector<8x512xf32>
    %c0_211 = arith.constant 0 : index
    %c128_212 = arith.constant 128 : index
    %456 = vector.load %arg13[%c0_211, %c128_212] : memref<8x256xf32, #tpu.memory_space<vmem>>, vector<8x128xf32>
    %457 = vector.extract_strided_slice %455 {offsets = [0, 0], sizes = [8, 384], strides = [1, 1]} : vector<8x512xf32> to vector<8x384xf32>
    %458 = arith.negf %457 : vector<8x384xf32>
    %459 = math.exp %458 : vector<8x384xf32>
    %cst_213 = arith.constant 1.000000e+00 : f32
    %460 = vector.broadcast %cst_213 : f32 to vector<8x384xf32>
    %461 = arith.addf %460, %459 : vector<8x384xf32>
    %462 = arith.divf %460, %461 : vector<8x384xf32>
    %463 = vector.extract_strided_slice %455 {offsets = [0, 384], sizes = [8, 128], strides = [1, 1]} : vector<8x512xf32> to vector<8x128xf32>
    %464 = math.tanh %463 : vector<8x128xf32>
    %465 = vector.extract_strided_slice %462 {offsets = [0, 0], sizes = [8, 128], strides = [1, 1]} : vector<8x384xf32> to vector<8x128xf32>
    %466 = vector.extract_strided_slice %462 {offsets = [0, 128], sizes = [8, 128], strides = [1, 1]} : vector<8x384xf32> to vector<8x128xf32>
    %467 = vector.extract_strided_slice %462 {offsets = [0, 256], sizes = [8, 128], strides = [1, 1]} : vector<8x384xf32> to vector<8x128xf32>
    %468 = arith.mulf %466, %456 : vector<8x128xf32>
    %469 = arith.mulf %465, %464 : vector<8x128xf32>
    %470 = arith.addf %468, %469 : vector<8x128xf32>
    %471 = math.tanh %470 : vector<8x128xf32>
    %472 = arith.mulf %467, %471 : vector<8x128xf32>
    %c0_214 = arith.constant 0 : index
    %c0_215 = arith.constant 0 : index
    %473 = vector.load %arg12[%c0_214, %c0_215] : memref<8x256xf32, #tpu.memory_space<vmem>>, vector<8x128xf32>
    tpu.vector_store %arg12[%c0_214, %c0_215], %452 {strides = array<i32>} : memref<8x256xf32, #tpu.memory_space<vmem>>, vector<8x128xf32>,
    %c0_216 = arith.constant 0 : index
    %c128_217 = arith.constant 128 : index
    %474 = vector.load %arg12[%c0_216, %c128_217] : memref<8x256xf32, #tpu.memory_space<vmem>>, vector<8x128xf32>
    tpu.vector_store %arg12[%c0_216, %c128_217], %472 {strides = array<i32>} : memref<8x256xf32, #tpu.memory_space<vmem>>, vector<8x128xf32>,
    %c0_218 = arith.constant 0 : index
    %c0_219 = arith.constant 0 : index
    %475 = vector.load %arg13[%c0_218, %c0_219] : memref<8x256xf32, #tpu.memory_space<vmem>>, vector<8x128xf32>
    tpu.vector_store %arg13[%c0_218, %c0_219], %450 {strides = array<i32>} : memref<8x256xf32, #tpu.memory_space<vmem>>, vector<8x128xf32>,
    %c0_220 = arith.constant 0 : index
    %c128_221 = arith.constant 128 : index
    %476 = vector.load %arg13[%c0_220, %c128_221] : memref<8x256xf32, #tpu.memory_space<vmem>>, vector<8x128xf32>
    tpu.vector_store %arg13[%c0_220, %c128_221], %470 {strides = array<i32>} : memref<8x256xf32, #tpu.memory_space<vmem>>, vector<8x128xf32>,
    %477 = arith.index_cast %424 : i32 to index
    %c0_222 = arith.constant 0 : index
    %478 = vector.load %arg8[%477, %c0_222] : memref<64x128xf32, #tpu.memory_space<vmem>>, vector<8x128xf32>
    tpu.vector_store %arg8[%477, %c0_222], %452 {strides = array<i32>} : memref<64x128xf32, #tpu.memory_space<vmem>>, vector<8x128xf32>,
    %479 = arith.index_cast %427 : i32 to index
    %c0_223 = arith.constant 0 : index
    %480 = vector.load %arg9[%479, %c0_223] : memref<64x128xf32, #tpu.memory_space<vmem>>, vector<8x128xf32>
    tpu.vector_store %arg9[%479, %c0_223], %472 {strides = array<i32>} : memref<64x128xf32, #tpu.memory_space<vmem>>, vector<8x128xf32>,
    %c8_i32_224 = arith.constant 8 : i32
    return
  }
  func.func @transform_0(%arg0: i32) -> (i32, i32) {
    %c0_i32 = arith.constant 0 : i32
    %c0_i32_0 = arith.constant 0 : i32
    return %arg0, %c0_i32 : i32, i32
  }
  func.func @transform_1(%arg0: i32) -> (i32, i32) {
    %c0_i32 = arith.constant 0 : i32
    %0 = arith.subi %c0_i32, %arg0 : i32
    %c0_i32_0 = arith.constant 0 : i32
    %c0_i32_1 = arith.constant 0 : i32
    return %0, %c0_i32_0 : i32, i32
  }
  func.func @transform_2(%arg0: i32) -> (i32, i32) {
    %c0_i32 = arith.constant 0 : i32
    %c0_i32_0 = arith.constant 0 : i32
    %c0_i32_1 = arith.constant 0 : i32
    return %c0_i32, %c0_i32_0 : i32, i32
  }
  func.func @transform_3(%arg0: i32) -> (i32, i32) {
    %c0_i32 = arith.constant 0 : i32
    %c0_i32_0 = arith.constant 0 : i32
    %c0_i32_1 = arith.constant 0 : i32
    return %c0_i32, %c0_i32_0 : i32, i32
  }
  func.func @transform_4(%arg0: i32) -> (i32, i32) {
    %c0_i32 = arith.constant 0 : i32
    %c0_i32_0 = arith.constant 0 : i32
    %c0_i32_1 = arith.constant 0 : i32
    return %c0_i32, %c0_i32_0 : i32, i32
  }
  func.func @transform_5(%arg0: i32) -> (i32, i32) {
    %c0_i32 = arith.constant 0 : i32
    %c0_i32_0 = arith.constant 0 : i32
    %c0_i32_1 = arith.constant 0 : i32
    return %c0_i32, %c0_i32_0 : i32, i32
  }
  func.func @transform_6(%arg0: i32) -> (i32, i32) {
    %c0_i32 = arith.constant 0 : i32
    %c0_i32_0 = arith.constant 0 : i32
    %c0_i32_1 = arith.constant 0 : i32
    return %c0_i32, %c0_i32_0 : i32, i32
  }
  func.func @transform_7(%arg0: i32) -> (i32, i32) {
    %c0_i32 = arith.constant 0 : i32
    %c0_i32_0 = arith.constant 0 : i32
    return %arg0, %c0_i32 : i32, i32
  }
  func.func @transform_8(%arg0: i32) -> (i32, i32) {
    %c0_i32 = arith.constant 0 : i32
    %0 = arith.subi %c0_i32, %arg0 : i32
    %c0_i32_0 = arith.constant 0 : i32
    %c0_i32_1 = arith.constant 0 : i32
    return %0, %c0_i32_0 : i32, i32
  }
}

</mosaic_0001>

<llo_original>
// kernel: tpu_custom_call.1
$region0: #{tpu_custom_call.1}
  #allocation0 [shape = 'u32[]', space=smem, size = 0x4, offset = 0x4, fixed_abs, tag = 'smem constant byte address 0x4 - core index']
  #allocation1 [shape = 'u32[144,128]{1,0:T(1,128)}', space=vmem, size = 0x12000, scoped, tag = 'internal scratch']
  #allocation2 [shape = 'f32[64,512]{1,0:T(8,128)}', space=vmem, size = 0x20000, scoped, tag = 'scratch operand']
  #allocation3 [shape = 'f32[64,512]{1,0:T(8,128)}', space=vmem, size = 0x20000, scoped, tag = 'scratch operand']
  #allocation4 [shape = 'f32[8,256]{1,0:T(8,128)}', space=vmem, size = 0x2000, scoped, tag = 'scratch operand']
  #allocation5 [shape = 'f32[8,256]{1,0:T(8,128)}', space=vmem, size = 0x2000, scoped, tag = 'scratch operand']
  %s0 = inlined_call_operand.hbm [shape: f32[64,144], index: 0, kind: input, shape index: {}]
  %s1 = inlined_call_operand.hbm [shape: f32[64,144], index: 1, kind: input, shape index: {}]
  %s2 = inlined_call_operand.hbm [shape: f32[144,512], index: 2, kind: input, shape index: {}]
  %s3 = inlined_call_operand.hbm [shape: f32[144,512], index: 3, kind: input, shape index: {}]
  %s4 = inlined_call_operand.vmem [shape: f32[1,512], index: 4, kind: input, shape index: {}]
  %s5 = inlined_call_operand.vmem [shape: f32[1,512], index: 5, kind: input, shape index: {}]
  %s6 = inlined_call_operand.hbm [shape: f32[256,1024], index: 6, kind: input, shape index: {}]
  %s7 = inlined_call_operand.hbm [shape: f32[64,128], index: 7, kind: output, shape index: {0}]
  %s8 = inlined_call_operand.hbm [shape: f32[64,128], index: 8, kind: output, shape index: {1}]
  %9 = xla_tuple %s7, %s8
  %s10 = sld [smem:[#allocation0]]
  $region70: #{tpu_custom_call.1} parent=0
    _
  %s12 = ssub.s32 1, %s10
  %s13 = scalar_select 0, %s12, %s10
  $region1: #{tpu_custom_call.1} parent=0
    #allocation6 [shape = 'u8[65536]{0}', space=vmem, size = 0x10000, scoped, tag = 'input window, operand 0, single buffered']
    #allocation7 [shape = 's32[1]{0}', space=sflag, size = 0x4, scoped, tag = 'scoped memory for tpu_custom_call.1']
    #allocation8 [shape = 's32[1]{0}', space=sflag, size = 0x4, scoped, tag = 'scoped memory for tpu_custom_call.1']
    #allocation9 [shape = 'u8[65536]{0}', space=vmem, size = 0x10000, scoped, tag = 'input window, operand 1, single buffered']
    #allocation10 [shape = 's32[1]{0}', space=sflag, size = 0x4, scoped, tag = 'scoped memory for tpu_custom_call.1']
    #allocation11 [shape = 'u8[294912]{0}', space=vmem, size = 0x48000, scoped, tag = 'input window, operand 2, single buffered']
    #allocation12 [shape = 'u8[294912]{0}', space=vmem, size = 0x48000, scoped, tag = 'input window, operand 3, single buffered']
    #allocation13 [shape = 's32[1]{0}', space=sflag, size = 0x4, scoped, tag = 'scoped memory for tpu_custom_call.1']
    #allocation14 [shape = 'u8[1048576]{0}', space=vmem, size = 0x100000, scoped, tag = 'input window, operand 6, single buffered']
    #allocation15 [shape = 'u8[32768]{0}', space=vmem, size = 0x8000, scoped, tag = 'output window, operand 0, single buffered']
    #allocation16 [shape = 'u8[32768]{0}', space=vmem, size = 0x8000, scoped, tag = 'output window, operand 1, single buffered']
    #allocation17 [shape = 's32[1]{0}', space=sflag, size = 0x4, scoped, tag = 'scoped memory for tpu_custom_call.1']
    %14 = vsyncpa [#allocation7], 0
    %15 = vsyncpa [#allocation10], 0
    %16 = vsyncpa [#allocation13], 0
    %17 = vsyncpa [#allocation8], 0
    %18 = vsyncpa [#allocation17], 0
    // Predicated region
    $region2: #{tpu_custom_call.1} parent=1 // pred_check
      _
    $region3: #{tpu_custom_call.1} parent=1 // pred_check_branch
      %20 = sbr.rel (0) target = $region5
    $region4: #{tpu_custom_call.1} parent=1 // pred_region
      %s22 = ssub.s32 2048, 2048
      %23 = vsyncadd [#allocation7], %s22
      %s24 = sshll.u32 [#allocation6], 4
      %s25 = int_to_ptr.vmem [resolvable:$true] %s24
      %30 = dma.hbm_to_vmem [thread:$0]  %s0, 2048, %s25, [#allocation7], 256, 256, 16
    $region5: #{tpu_custom_call.1} parent=1 // pred_fallthru
      _
    // Predicated region
    $region6: #{tpu_custom_call.1} parent=1 // pred_check
      _
    $region7: #{tpu_custom_call.1} parent=1 // pred_check_branch
      %32 = sbr.rel (0) target = $region9
    $region8: #{tpu_custom_call.1} parent=1 // pred_region
      %s33 = ssub.s32 0, 0
      %s34 = smul.u32 8, %s33
      %s36 = ssub.s32 2048, 2048
      %37 = vsyncadd [#allocation10], %s36
      %s38 = smul.addr %s34, 2
      %s39 = smul.addr %s38, 128
      %s40 = scalar_lea.hbm %s1, %s39
      %s41 = sshll.u32 [#allocation9], 4
      %s42 = int_to_ptr.vmem [resolvable:$true] %s41
      %47 = dma.hbm_to_vmem [thread:$0]  %s40, 2048, %s42, [#allocation10], 256, 256, 16
    $region9: #{tpu_custom_call.1} parent=1 // pred_fallthru
      _
    // Predicated region
    $region10: #{tpu_custom_call.1} parent=1 // pred_check
      _
    $region11: #{tpu_custom_call.1} parent=1 // pred_check_branch
      %49 = sbr.rel (0) target = $region13
    $region12: #{tpu_custom_call.1} parent=1 // pred_region
      %s51 = ssub.s32 9216, 9216
      %52 = vsyncadd [#allocation10], %s51
      %s53 = sshll.u32 [#allocation11], 4
      %s54 = int_to_ptr.vmem [resolvable:$true] %s53
      %59 = dma.hbm_to_vmem [thread:$0]  %s2, 9216, %s54, [#allocation10], 512, 512, 32
    $region13: #{tpu_custom_call.1} parent=1 // pred_fallthru
      _
    // Predicated region
    $region14: #{tpu_custom_call.1} parent=1 // pred_check
      _
    $region15: #{tpu_custom_call.1} parent=1 // pred_check_branch
      %61 = sbr.rel (0) target = $region17
    $region16: #{tpu_custom_call.1} parent=1 // pred_region
      %s63 = ssub.s32 9216, 9216
      %64 = vsyncadd [#allocation13], %s63
      %s65 = sshll.u32 [#allocation12], 4
      %s66 = int_to_ptr.vmem [resolvable:$true] %s65
      %71 = dma.hbm_to_vmem [thread:$0]  %s3, 9216, %s66, [#allocation13], 512, 512, 32
    $region17: #{tpu_custom_call.1} parent=1 // pred_fallthru
      _
    // Predicated region
    $region18: #{tpu_custom_call.1} parent=1 // pred_check
      _
    $region19: #{tpu_custom_call.1} parent=1 // pred_check_branch
      %73 = sbr.rel (0) target = $region21
    $region20: #{tpu_custom_call.1} parent=1 // pred_region
      _
    $region21: #{tpu_custom_call.1} parent=1 // pred_fallthru
      _
    // Predicated region
    $region22: #{tpu_custom_call.1} parent=1 // pred_check
      _
    $region23: #{tpu_custom_call.1} parent=1 // pred_check_branch
      %75 = sbr.rel (0) target = $region25
    $region24: #{tpu_custom_call.1} parent=1 // pred_region
      _
    $region25: #{tpu_custom_call.1} parent=1 // pred_fallthru
      _
    // Predicated region
    $region26: #{tpu_custom_call.1} parent=1 // pred_check
      _
    $region27: #{tpu_custom_call.1} parent=1 // pred_check_branch
      %77 = sbr.rel (0) target = $region29
    $region28: #{tpu_custom_call.1} parent=1 // pred_region
      %s79 = ssub.s32 32768, 32768
      %80 = vsyncadd [#allocation13], %s79
      %s81 = sshll.u32 [#allocation14], 4
      %s82 = int_to_ptr.vmem [resolvable:$true] %s81
      %87 = dma.hbm_to_vmem [thread:$0]  %s6, 32768, %s82, [#allocation13], 1024, 1024, 64
    $region29: #{tpu_custom_call.1} parent=1 // pred_fallthru
      _
    // Predicated region
    $region30: #{tpu_custom_call.1} parent=1 // pred_check
      _
    $region31: #{tpu_custom_call.1} parent=1 // pred_check_branch
      %89 = sbr.rel (0) target = $region33
    $region32: #{tpu_custom_call.1} parent=1 // pred_region
      %90 = dma.done [#allocation7], 2048
    $region33: #{tpu_custom_call.1} parent=1 // pred_fallthru
      _
    // Predicated region
    $region34: #{tpu_custom_call.1} parent=1 // pred_check
      _
    $region35: #{tpu_custom_call.1} parent=1 // pred_check_branch
      %92 = sbr.rel (0) target = $region37
    $region36: #{tpu_custom_call.1} parent=1 // pred_region
      %93 = dma.done [#allocation10], 2048
    $region37: #{tpu_custom_call.1} parent=1 // pred_fallthru
      _
    // Predicated region
    $region38: #{tpu_custom_call.1} parent=1 // pred_check
      _
    $region39: #{tpu_custom_call.1} parent=1 // pred_check_branch
      %95 = sbr.rel (0) target = $region41
    $region40: #{tpu_custom_call.1} parent=1 // pred_region
      %96 = dma.done [#allocation10], 9216
    $region41: #{tpu_custom_call.1} parent=1 // pred_fallthru
      _
    // Predicated region
    $region42: #{tpu_custom_call.1} parent=1 // pred_check
      _
    $region43: #{tpu_custom_call.1} parent=1 // pred_check_branch
      %98 = sbr.rel (0) target = $region45
    $region44: #{tpu_custom_call.1} parent=1 // pred_region
      %99 = dma.done [#allocation13], 9216
    $region45: #{tpu_custom_call.1} parent=1 // pred_fallthru
      _
    // Predicated region
    $region46: #{tpu_custom_call.1} parent=1 // pred_check
      _
    $region47: #{tpu_custom_call.1} parent=1 // pred_check_branch
      %101 = sbr.rel (0) target = $region49
    $region48: #{tpu_custom_call.1} parent=1 // pred_region
      %102 = dma.done [#allocation13], 32768
    $region49: #{tpu_custom_call.1} parent=1 // pred_fallthru
      _
    %s103 = ssub.s32 0, 0
    %s104 = smul.u32 8, %s103
    %s105 = ssub.s32 0, 0
    %s106 = smul.u32 8, %s105
    %p107 = scmp.eq.s32.totalorder 0, 0
    // Predicated region
    $region50: #{tpu_custom_call.1} parent=1 // pred_check
      %p108 = pneg %p107
    $region51: #{tpu_custom_call.1} parent=1 // pred_check_branch
      %110 = sbr.rel (%p108) target = $region53
    $region52: #{tpu_custom_call.1} parent=1 // pred_region
      %111 = vst [vmem:[#allocation4] sm:$0xff] 0.0
      %112 = vst [vmem:[#allocation4 + $0x8] sm:$0xff] 0.0
      %113 = vst [vmem:[#allocation5] sm:$0xff] 0.0
      %114 = vst [vmem:[#allocation5 + $0x8] sm:$0xff] 0.0
    $region53: #{tpu_custom_call.1} parent=1 // pred_fallthru
      _
    %v115 = vld [vmem:[#allocation6] sm:$0xff]
    %v116 = vld [vmem:[#allocation6 + $0x8] sm:$0xff]
    %v117 = vld [vmem:[#allocation6 + $0x10] sm:$0xff]
    %v118 = vld [vmem:[#allocation6 + $0x18] sm:$0xff]
    %v119 = vld [vmem:[#allocation6 + $0x20] sm:$0xff]
    %v120 = vld [vmem:[#allocation6 + $0x28] sm:$0xff]
    %v121 = vld [vmem:[#allocation6 + $0x30] sm:$0xff]
    %v122 = vld [vmem:[#allocation6 + $0x38] sm:$0xff]
    %v123 = vld [vmem:[#allocation6 + $0x40] sm:$0xff]
    %v124 = vld [vmem:[#allocation6 + $0x48] sm:$0xff]
    %v125 = vld [vmem:[#allocation6 + $0x50] sm:$0xff]
    %v126 = vld [vmem:[#allocation6 + $0x58] sm:$0xff]
    %v127 = vld [vmem:[#allocation6 + $0x60] sm:$0xff]
    %v128 = vld [vmem:[#allocation6 + $0x68] sm:$0xff]
    %v129 = vld [vmem:[#allocation6 + $0x70] sm:$0xff]
    %v130 = vld [vmem:[#allocation6 + $0x78] sm:$0xff]
    %v131 = vld [vmem:[#allocation11] sm:$0xff]
    %v132 = vld [vmem:[#allocation11 + $0x8] sm:$0xff]
    %v133 = vld [vmem:[#allocation11 + $0x10] sm:$0xff]
    %v134 = vld [vmem:[#allocation11 + $0x18] sm:$0xff]
    %v135 = vld [vmem:[#allocation11 + $0x20] sm:$0xff]
    %v136 = vld [vmem:[#allocation11 + $0x28] sm:$0xff]
    %v137 = vld [vmem:[#allocation11 + $0x30] sm:$0xff]
    %v138 = vld [vmem:[#allocation11 + $0x38] sm:$0xff]
    %v139 = vld [vmem:[#allocation11 + $0x40] sm:$0xff]
    %v140 = vld [vmem:[#allocation11 + $0x48] sm:$0xff]
    %v141 = vld [vmem:[#allocation11 + $0x50] sm:$0xff]
    %v142 = vld [vmem:[#allocation11 + $0x58] sm:$0xff]
    %v143 = vld [vmem:[#allocation11 + $0x60] sm:$0xff]
    %v144 = vld [vmem:[#allocation11 + $0x68] sm:$0xff]
    %v145 = vld [vmem:[#allocation11 + $0x70] sm:$0xff]
    %v146 = vld [vmem:[#allocation11 + $0x78] sm:$0xff]
    %v147 = vld [vmem:[#allocation11 + $0x80] sm:$0xff]
    %v148 = vld [vmem:[#allocation11 + $0x88] sm:$0xff]
    %v149 = vld [vmem:[#allocation11 + $0x90] sm:$0xff]
    %v150 = vld [vmem:[#allocation11 + $0x98] sm:$0xff]
    %v151 = vld [vmem:[#allocation11 + $0xa0] sm:$0xff]
    %v152 = vld [vmem:[#allocation11 + $0xa8] sm:$0xff]
    %v153 = vld [vmem:[#allocation11 + $0xb0] sm:$0xff]
    %v154 = vld [vmem:[#allocation11 + $0xb8] sm:$0xff]
    %v155 = vld [vmem:[#allocation11 + $0xc0] sm:$0xff]
    %v156 = vld [vmem:[#allocation11 + $0xc8] sm:$0xff]
    %v157 = vld [vmem:[#allocation11 + $0xd0] sm:$0xff]
    %v158 = vld [vmem:[#allocation11 + $0xd8] sm:$0xff]
    %v159 = vld [vmem:[#allocation11 + $0xe0] sm:$0xff]
    %v160 = vld [vmem:[#allocation11 + $0xe8] sm:$0xff]
    %v161 = vld [vmem:[#allocation11 + $0xf0] sm:$0xff]
    %v162 = vld [vmem:[#allocation11 + $0xf8] sm:$0xff]
    %v163 = vld [vmem:[#allocation11 + $0x100] sm:$0xff]
    %v164 = vld [vmem:[#allocation11 + $0x108] sm:$0xff]
    %v165 = vld [vmem:[#allocation11 + $0x110] sm:$0xff]
    %v166 = vld [vmem:[#allocation11 + $0x118] sm:$0xff]
    %v167 = vld [vmem:[#allocation11 + $0x120] sm:$0xff]
    %v168 = vld [vmem:[#allocation11 + $0x128] sm:$0xff]
    %v169 = vld [vmem:[#allocation11 + $0x130] sm:$0xff]
    %v170 = vld [vmem:[#allocation11 + $0x138] sm:$0xff]
    %v171 = vld [vmem:[#allocation11 + $0x140] sm:$0xff]
    %v172 = vld [vmem:[#allocation11 + $0x148] sm:$0xff]
    %v173 = vld [vmem:[#allocation11 + $0x150] sm:$0xff]
    %v174 = vld [vmem:[#allocation11 + $0x158] sm:$0xff]
    %v175 = vld [vmem:[#allocation11 + $0x160] sm:$0xff]
    %v176 = vld [vmem:[#allocation11 + $0x168] sm:$0xff]
    %v177 = vld [vmem:[#allocation11 + $0x170] sm:$0xff]
    %v178 = vld [vmem:[#allocation11 + $0x178] sm:$0xff]
    %v179 = vld [vmem:[#allocation11 + $0x180] sm:$0xff]
    %v180 = vld [vmem:[#allocation11 + $0x188] sm:$0xff]
    %v181 = vld [vmem:[#allocation11 + $0x190] sm:$0xff]
    %v182 = vld [vmem:[#allocation11 + $0x198] sm:$0xff]
    %v183 = vld [vmem:[#allocation11 + $0x1a0] sm:$0xff]
    %v184 = vld [vmem:[#allocation11 + $0x1a8] sm:$0xff]
    %v185 = vld [vmem:[#allocation11 + $0x1b0] sm:$0xff]
    %v186 = vld [vmem:[#allocation11 + $0x1b8] sm:$0xff]
    %v187 = vld [vmem:[#allocation11 + $0x1c0] sm:$0xff]
    %v188 = vld [vmem:[#allocation11 + $0x1c8] sm:$0xff]
    %v189 = vld [vmem:[#allocation11 + $0x1d0] sm:$0xff]
    %v190 = vld [vmem:[#allocation11 + $0x1d8] sm:$0xff]
    %v191 = vld [vmem:[#allocation11 + $0x1e0] sm:$0xff]
    %v192 = vld [vmem:[#allocation11 + $0x1e8] sm:$0xff]
    %v193 = vld [vmem:[#allocation11 + $0x1f0] sm:$0xff]
    %v194 = vld [vmem:[#allocation11 + $0x1f8] sm:$0xff]
    %v195 = vld [vmem:[#allocation11 + $0x200] sm:$0xff]
    %v196 = vld [vmem:[#allocation11 + $0x208] sm:$0xff]
    %v197 = vld [vmem:[#allocation11 + $0x210] sm:$0xff]
    %v198 = vld [vmem:[#allocation11 + $0x218] sm:$0xff]
    %v199 = vld [vmem:[#allocation11 + $0x220] sm:$0xff]
    %v200 = vld [vmem:[#allocation11 + $0x228] sm:$0xff]
    %v201 = vld [vmem:[#allocation11 + $0x230] sm:$0xff]
    %v202 = vld [vmem:[#allocation11 + $0x238] sm:$0xff]
    %v203 = vld [vmem:[%s4] sm:$0xf]
    %v205 = vlaneseq
    %v206 = vshrl.u32 %v205, 7
    %v207 = vsub.s32 0, %v206
    %v208 = vrot.slane %v203, %v207
    %v209 = vlaneseq
    %v210 = vshrl.u32 %v209, 7
    %v211 = vsub.s32 1, %v210
    %v212 = vrot.slane %v203, %v211
    %v213 = vlaneseq
    %v214 = vshrl.u32 %v213, 7
    %v215 = vsub.s32 2, %v214
    %v216 = vrot.slane %v203, %v215
    %v217 = vlaneseq
    %v218 = vshrl.u32 %v217, 7
    %v219 = vsub.s32 3, %v218
    %v220 = vrot.slane %v203, %v219
    %vm225 = vcmask 130048
    %v227 = vsel %vm225, %v116, 0
    %v230 = vsel %vm225, %v118, 0
    %v233 = vsel %vm225, %v120, 0
    %v236 = vsel %vm225, %v122, 0
    %v239 = vsel %vm225, %v124, 0
    %v242 = vsel %vm225, %v126, 0
    %v245 = vsel %vm225, %v128, 0
    %v248 = vsel %vm225, %v130, 0
    %250 = vmatprep.subr.mxu0 %v132
    %251 = vmatpush1.msra.mxu0 %v131
    %252 = vmatprep.subr.mxu0 %v136
    %253 = vmatpush1.msra.mxu0 %v135
    %254 = vmatprep.subr.mxu0 %v140
    %255 = vmatpush1.msra.mxu0 %v139
    %256 = vmatprep.subr.mxu0 %v144
    %257 = vmatpush1.msra.mxu0 %v143
    %258 = vmatprep.subr.mxu0 %v148
    %259 = vmatpush1.msra.mxu0 %v147
    %260 = vmatprep.subr.mxu0 %v152
    %261 = vmatpush1.msra.mxu0 %v151
    %262 = vmatprep.subr.mxu0 %v156
    %263 = vmatpush1.msra.mxu0 %v155
    %264 = vmatprep.subr.mxu0 %v160
    %265 = vmatpush1.msra.mxu0 %v159
    %266 = vmatprep.subr.mxu0 %v164
    %267 = vmatpush1.msra.mxu0 %v163
    %268 = vmatprep.subr.mxu0 %v168
    %269 = vmatpush1.msra.mxu0 %v167
    %270 = vmatprep.subr.mxu0 %v172
    %271 = vmatpush1.msra.mxu0 %v171
    %272 = vmatprep.subr.mxu0 %v176
    %273 = vmatpush1.msra.mxu0 %v175
    %274 = vmatprep.subr.mxu0 %v180
    %275 = vmatpush1.msra.mxu0 %v179
    %276 = vmatprep.subr.mxu0 %v184
    %277 = vmatpush1.msra.mxu0 %v183
    %278 = vmatprep.subr.mxu0 %v188
    %279 = vmatpush1.msra.mxu0 %v187
    %280 = vmatprep.subr.mxu0 %v192
    %281 = vmatpush1.msra.mxu0 %v191
    %282 = vmatprep.subr.mxu0 %v196
    %283 = vmatpush1.msra.mxu0 %v195
    %284 = vmatprep.subr.mxu0 %v200
    %285 = vmatpush1.msra.mxu0 %v199
    %286 = vmatprep.subr.mxu0 0.0
    %287 = vmatpush1.msra.mxu0 0.0
    %288 = vmatprep.subr.mxu0 0.0
    %289 = vmatpush1.msra.mxu0 0.0
    %290 = vmatprep.subr.mxu0 0.0
    %291 = vmatpush1.msra.mxu0 0.0
    %292 = vmatprep.subr.mxu0 0.0
    %293 = vmatpush1.msra.mxu0 0.0
    %294 = vmatprep.subr.mxu0 0.0
    %295 = vmatpush1.msra.mxu0 0.0
    %296 = vmatprep.subr.mxu0 0.0
    %297 = vmatpush1.msra.mxu0 0.0
    %298 = vmatprep.subr.mxu0 0.0
    %299 = vmatpush1.msra.mxu0 0.0
    %300 = vmatprep.subr.mxu0 0.0
    %301 = vmatpush1.msra.mxu0 0.0
    %302 = vmatprep.subr.mxu0 0.0
    %303 = vmatpush1.msra.mxu0 0.0
    %304 = vmatprep.subr.mxu0 0.0
    %305 = vmatpush1.msra.mxu0 0.0
    %306 = vmatprep.subr.mxu0 0.0
    %307 = vmatpush1.msra.mxu0 0.0
    %308 = vmatprep.subr.mxu0 0.0
    %309 = vmatpush1.msra.mxu0 0.0
    %310 = vmatprep.subr.mxu0 0.0
    %311 = vmatpush1.msra.mxu0 0.0
    %312 = vmatprep.subr.mxu0 0.0
    %313 = vmatpush1.msra.mxu0 0.0
    %314 = vmatprep.mubr.f32.mxu0 %v227
    %315 = vmatmul.mubr.f32.gmra.mrb[0].mxu0 %v115
    %v316 = vpop.f32.mrb[0].mxu0
    %v317 = vadd.f32 %v208, %v316
    %v318 = vpop.f32.mrb[0].mxu0
    %v319 = vadd.f32 %v212, %v318
    %320 = vmatprep.mubr.f32.mxu0 %v230
    %321 = vmatmul.mubr.f32.gmra.mrb[0].mxu0 %v117
    %v322 = vpop.f32.mrb[0].mxu0
    %v323 = vadd.f32 %v208, %v322
    %v324 = vpop.f32.mrb[0].mxu0
    %v325 = vadd.f32 %v212, %v324
    %326 = vmatprep.mubr.f32.mxu0 %v233
    %327 = vmatmul.mubr.f32.gmra.mrb[0].mxu0 %v119
    %v328 = vpop.f32.mrb[0].mxu0
    %v329 = vadd.f32 %v208, %v328
    %v330 = vpop.f32.mrb[0].mxu0
    %v331 = vadd.f32 %v212, %v330
    %332 = vmatprep.mubr.f32.mxu0 %v236
    %333 = vmatmul.mubr.f32.gmra.mrb[0].mxu0 %v121
    %v334 = vpop.f32.mrb[0].mxu0
    %v335 = vadd.f32 %v208, %v334
    %v336 = vpop.f32.mrb[0].mxu0
    %v337 = vadd.f32 %v212, %v336
    %338 = vmatprep.mubr.f32.mxu0 %v239
    %339 = vmatmul.mubr.f32.gmra.mrb[0].mxu0 %v123
    %v340 = vpop.f32.mrb[0].mxu0
    %v341 = vadd.f32 %v208, %v340
    %v342 = vpop.f32.mrb[0].mxu0
    %v343 = vadd.f32 %v212, %v342
    %344 = vmatprep.mubr.f32.mxu0 %v242
    %345 = vmatmul.mubr.f32.gmra.mrb[0].mxu0 %v125
    %v346 = vpop.f32.mrb[0].mxu0
    %v347 = vadd.f32 %v208, %v346
    %v348 = vpop.f32.mrb[0].mxu0
    %v349 = vadd.f32 %v212, %v348
    %350 = vmatprep.mubr.f32.mxu0 %v245
    %351 = vmatmul.mubr.f32.gmra.mrb[0].mxu0 %v127
    %v352 = vpop.f32.mrb[0].mxu0
    %v353 = vadd.f32 %v208, %v352
    %v354 = vpop.f32.mrb[0].mxu0
    %v355 = vadd.f32 %v212, %v354
    %356 = vmatprep.mubr.f32.mxu0 %v248
    %357 = vmatmul.mubr.f32.gmra.mrb[0].mxu0 %v129
    %v358 = vpop.f32.mrb[0].mxu0
    %v359 = vadd.f32 %v208, %v358
    %v360 = vpop.f32.mrb[0].mxu0
    %v361 = vadd.f32 %v212, %v360
    %362 = vdwg.mxu0
    %363 = vmatprep.subr.mxu0 %v134
    %364 = vmatpush1.msra.mxu0 %v133
    %365 = vmatprep.subr.mxu0 %v138
    %366 = vmatpush1.msra.mxu0 %v137
    %367 = vmatprep.subr.mxu0 %v142
    %368 = vmatpush1.msra.mxu0 %v141
    %369 = vmatprep.subr.mxu0 %v146
    %370 = vmatpush1.msra.mxu0 %v145
    %371 = vmatprep.subr.mxu0 %v150
    %372 = vmatpush1.msra.mxu0 %v149
    %373 = vmatprep.subr.mxu0 %v154
    %374 = vmatpush1.msra.mxu0 %v153
    %375 = vmatprep.subr.mxu0 %v158
    %376 = vmatpush1.msra.mxu0 %v157
    %377 = vmatprep.subr.mxu0 %v162
    %378 = vmatpush1.msra.mxu0 %v161
    %379 = vmatprep.subr.mxu0 %v166
    %380 = vmatpush1.msra.mxu0 %v165
    %381 = vmatprep.subr.mxu0 %v170
    %382 = vmatpush1.msra.mxu0 %v169
    %383 = vmatprep.subr.mxu0 %v174
    %384 = vmatpush1.msra.mxu0 %v173
    %385 = vmatprep.subr.mxu0 %v178
    %386 = vmatpush1.msra.mxu0 %v177
    %387 = vmatprep.subr.mxu0 %v182
    %388 = vmatpush1.msra.mxu0 %v181
    %389 = vmatprep.subr.mxu0 %v186
    %390 = vmatpush1.msra.mxu0 %v185
    %391 = vmatprep.subr.mxu0 %v190
    %392 = vmatpush1.msra.mxu0 %v189
    %393 = vmatprep.subr.mxu0 %v194
    %394 = vmatpush1.msra.mxu0 %v193
    %395 = vmatprep.subr.mxu0 %v198
    %396 = vmatpush1.msra.mxu0 %v197
    %397 = vmatprep.subr.mxu0 %v202
    %398 = vmatpush1.msra.mxu0 %v201
    %399 = vmatprep.subr.mxu0 0.0
    %400 = vmatpush1.msra.mxu0 0.0
    %401 = vmatprep.subr.mxu0 0.0
    %402 = vmatpush1.msra.mxu0 0.0
    %403 = vmatprep.subr.mxu0 0.0
    %404 = vmatpush1.msra.mxu0 0.0
    %405 = vmatprep.subr.mxu0 0.0
    %406 = vmatpush1.msra.mxu0 0.0
    %407 = vmatprep.subr.mxu0 0.0
    %408 = vmatpush1.msra.mxu0 0.0
    %409 = vmatprep.subr.mxu0 0.0
    %410 = vmatpush1.msra.mxu0 0.0
    %411 = vmatprep.subr.mxu0 0.0
    %412 = vmatpush1.msra.mxu0 0.0
    %413 = vmatprep.subr.mxu0 0.0
    %414 = vmatpush1.msra.mxu0 0.0
    %415 = vmatprep.subr.mxu0 0.0
    %416 = vmatpush1.msra.mxu0 0.0
    %417 = vmatprep.subr.mxu0 0.0
    %418 = vmatpush1.msra.mxu0 0.0
    %419 = vmatprep.subr.mxu0 0.0
    %420 = vmatpush1.msra.mxu0 0.0
    %421 = vmatprep.subr.mxu0 0.0
    %422 = vmatpush1.msra.mxu0 0.0
    %423 = vmatprep.subr.mxu0 0.0
    %424 = vmatpush1.msra.mxu0 0.0
    %425 = vmatprep.subr.mxu0 0.0
    %426 = vmatpush1.msra.mxu0 0.0
    %427 = vmatprep.mubr.f32.mxu0 %v227
    %428 = vmatmul.mubr.f32.gmra.mrb[0].mxu0 %v115
    %v429 = vpop.f32.mrb[0].mxu0
    %v430 = vadd.f32 %v216, %v429
    %v431 = vpop.f32.mrb[0].mxu0
    %v432 = vadd.f32 %v220, %v431
    %433 = vmatprep.mubr.f32.mxu0 %v230
    %434 = vmatmul.mubr.f32.gmra.mrb[0].mxu0 %v117
    %v435 = vpop.f32.mrb[0].mxu0
    %v436 = vadd.f32 %v216, %v435
    %v437 = vpop.f32.mrb[0].mxu0
    %v438 = vadd.f32 %v220, %v437
    %439 = vmatprep.mubr.f32.mxu0 %v233
    %440 = vmatmul.mubr.f32.gmra.mrb[0].mxu0 %v119
    %v441 = vpop.f32.mrb[0].mxu0
    %v442 = vadd.f32 %v216, %v441
    %v443 = vpop.f32.mrb[0].mxu0
    %v444 = vadd.f32 %v220, %v443
    %445 = vmatprep.mubr.f32.mxu0 %v236
    %446 = vmatmul.mubr.f32.gmra.mrb[0].mxu0 %v121
    %v447 = vpop.f32.mrb[0].mxu0
    %v448 = vadd.f32 %v216, %v447
    %v449 = vpop.f32.mrb[0].mxu0
    %v450 = vadd.f32 %v220, %v449
    %451 = vmatprep.mubr.f32.mxu0 %v239
    %452 = vmatmul.mubr.f32.gmra.mrb[0].mxu0 %v123
    %v453 = vpop.f32.mrb[0].mxu0
    %v454 = vadd.f32 %v216, %v453
    %v455 = vpop.f32.mrb[0].mxu0
    %v456 = vadd.f32 %v220, %v455
    %457 = vmatprep.mubr.f32.mxu0 %v242
    %458 = vmatmul.mubr.f32.gmra.mrb[0].mxu0 %v125
    %v459 = vpop.f32.mrb[0].mxu0
    %v460 = vadd.f32 %v216, %v459
    %v461 = vpop.f32.mrb[0].mxu0
    %v462 = vadd.f32 %v220, %v461
    %463 = vmatprep.mubr.f32.mxu0 %v245
    %464 = vmatmul.mubr.f32.gmra.mrb[0].mxu0 %v127
    %v465 = vpop.f32.mrb[0].mxu0
    %v466 = vadd.f32 %v216, %v465
    %v467 = vpop.f32.mrb[0].mxu0
    %v468 = vadd.f32 %v220, %v467
    %469 = vmatprep.mubr.f32.mxu0 %v248
    %470 = vmatmul.mubr.f32.gmra.mrb[0].mxu0 %v129
    %v471 = vpop.f32.mrb[0].mxu0
    %v472 = vadd.f32 %v216, %v471
    %v473 = vpop.f32.mrb[0].mxu0
    %v474 = vadd.f32 %v220, %v473
    %475 = vdwg.mxu0
    %476 = vst [vmem:[#allocation2] sm:$0xff] %v317
    %477 = vst [vmem:[#allocation2 + $0x8] sm:$0xff] %v319
    %478 = vst [vmem:[#allocation2 + $0x10] sm:$0xff] %v430
    %479 = vst [vmem:[#allocation2 + $0x18] sm:$0xff] %v432
    %480 = vst [vmem:[#allocation2 + $0x20] sm:$0xff] %v323
    %481 = vst [vmem:[#allocation2 + $0x28] sm:$0xff] %v325
    %482 = vst [vmem:[#allocation2 + $0x30] sm:$0xff] %v436
    %483 = vst [vmem:[#allocation2 + $0x38] sm:$0xff] %v438
    %484 = vst [vmem:[#allocation2 + $0x40] sm:$0xff] %v329
    %485 = vst [vmem:[#allocation2 + $0x48] sm:$0xff] %v331
    %486 = vst [vmem:[#allocation2 + $0x50] sm:$0xff] %v442
    %487 = vst [vmem:[#allocation2 + $0x58] sm:$0xff] %v444
    %488 = vst [vmem:[#allocation2 + $0x60] sm:$0xff] %v335
    %489 = vst [vmem:[#allocation2 + $0x68] sm:$0xff] %v337
    %490 = vst [vmem:[#allocation2 + $0x70] sm:$0xff] %v448
    %491 = vst [vmem:[#allocation2 + $0x78] sm:$0xff] %v450
    %492 = vst [vmem:[#allocation2 + $0x80] sm:$0xff] %v341
    %493 = vst [vmem:[#allocation2 + $0x88] sm:$0xff] %v343
    %494 = vst [vmem:[#allocation2 + $0x90] sm:$0xff] %v454
    %495 = vst [vmem:[#allocation2 + $0x98] sm:$0xff] %v456
    %496 = vst [vmem:[#allocation2 + $0xa0] sm:$0xff] %v347
    %497 = vst [vmem:[#allocation2 + $0xa8] sm:$0xff] %v349
    %498 = vst [vmem:[#allocation2 + $0xb0] sm:$0xff] %v460
    %499 = vst [vmem:[#allocation2 + $0xb8] sm:$0xff] %v462
    %500 = vst [vmem:[#allocation2 + $0xc0] sm:$0xff] %v353
    %501 = vst [vmem:[#allocation2 + $0xc8] sm:$0xff] %v355
    %502 = vst [vmem:[#allocation2 + $0xd0] sm:$0xff] %v466
    %503 = vst [vmem:[#allocation2 + $0xd8] sm:$0xff] %v468
    %504 = vst [vmem:[#allocation2 + $0xe0] sm:$0xff] %v359
    %505 = vst [vmem:[#allocation2 + $0xe8] sm:$0xff] %v361
    %506 = vst [vmem:[#allocation2 + $0xf0] sm:$0xff] %v472
    %507 = vst [vmem:[#allocation2 + $0xf8] sm:$0xff] %v474
    %v508 = vld [vmem:[#allocation9] sm:$0xff]
    %v509 = vld [vmem:[#allocation9 + $0x8] sm:$0xff]
    %v510 = vld [vmem:[#allocation9 + $0x10] sm:$0xff]
    %v511 = vld [vmem:[#allocation9 + $0x18] sm:$0xff]
    %v512 = vld [vmem:[#allocation9 + $0x20] sm:$0xff]
    %v513 = vld [vmem:[#allocation9 + $0x28] sm:$0xff]
    %v514 = vld [vmem:[#allocation9 + $0x30] sm:$0xff]
    %v515 = vld [vmem:[#allocation9 + $0x38] sm:$0xff]
    %v516 = vld [vmem:[#allocation9 + $0x40] sm:$0xff]
    %v517 = vld [vmem:[#allocation9 + $0x48] sm:$0xff]
    %v518 = vld [vmem:[#allocation9 + $0x50] sm:$0xff]
    %v519 = vld [vmem:[#allocation9 + $0x58] sm:$0xff]
    %v520 = vld [vmem:[#allocation9 + $0x60] sm:$0xff]
    %v521 = vld [vmem:[#allocation9 + $0x68] sm:$0xff]
    %v522 = vld [vmem:[#allocation9 + $0x70] sm:$0xff]
    %v523 = vld [vmem:[#allocation9 + $0x78] sm:$0xff]
    %v524 = vld [vmem:[#allocation12] sm:$0xff]
    %v525 = vld [vmem:[#allocation12 + $0x8] sm:$0xff]
    %v526 = vld [vmem:[#allocation12 + $0x10] sm:$0xff]
    %v527 = vld [vmem:[#allocation12 + $0x18] sm:$0xff]
    %v528 = vld [vmem:[#allocation12 + $0x20] sm:$0xff]
    %v529 = vld [vmem:[#allocation12 + $0x28] sm:$0xff]
    %v530 = vld [vmem:[#allocation12 + $0x30] sm:$0xff]
    %v531 = vld [vmem:[#allocation12 + $0x38] sm:$0xff]
    %v532 = vld [vmem:[#allocation12 + $0x40] sm:$0xff]
    %v533 = vld [vmem:[#allocation12 + $0x48] sm:$0xff]
    %v534 = vld [vmem:[#allocation12 + $0x50] sm:$0xff]
    %v535 = vld [vmem:[#allocation12 + $0x58] sm:$0xff]
    %v536 = vld [vmem:[#allocation12 + $0x60] sm:$0xff]
    %v537 = vld [vmem:[#allocation12 + $0x68] sm:$0xff]
    %v538 = vld [vmem:[#allocation12 + $0x70] sm:$0xff]
    %v539 = vld [vmem:[#allocation12 + $0x78] sm:$0xff]
    %v540 = vld [vmem:[#allocation12 + $0x80] sm:$0xff]
    %v541 = vld [vmem:[#allocation12 + $0x88] sm:$0xff]
    %v542 = vld [vmem:[#allocation12 + $0x90] sm:$0xff]
    %v543 = vld [vmem:[#allocation12 + $0x98] sm:$0xff]
    %v544 = vld [vmem:[#allocation12 + $0xa0] sm:$0xff]
    %v545 = vld [vmem:[#allocation12 + $0xa8] sm:$0xff]
    %v546 = vld [vmem:[#allocation12 + $0xb0] sm:$0xff]
    %v547 = vld [vmem:[#allocation12 + $0xb8] sm:$0xff]
    %v548 = vld [vmem:[#allocation12 + $0xc0] sm:$0xff]
    %v549 = vld [vmem:[#allocation12 + $0xc8] sm:$0xff]
    %v550 = vld [vmem:[#allocation12 + $0xd0] sm:$0xff]
    %v551 = vld [vmem:[#allocation12 + $0xd8] sm:$0xff]
    %v552 = vld [vmem:[#allocation12 + $0xe0] sm:$0xff]
    %v553 = vld [vmem:[#allocation12 + $0xe8] sm:$0xff]
    %v554 = vld [vmem:[#allocation12 + $0xf0] sm:$0xff]
    %v555 = vld [vmem:[#allocation12 + $0xf8] sm:$0xff]
    %v556 = vld [vmem:[#allocation12 + $0x100] sm:$0xff]
    %v557 = vld [vmem:[#allocation12 + $0x108] sm:$0xff]
    %v558 = vld [vmem:[#allocation12 + $0x110] sm:$0xff]
    %v559 = vld [vmem:[#allocation12 + $0x118] sm:$0xff]
    %v560 = vld [vmem:[#allocation12 + $0x120] sm:$0xff]
    %v561 = vld [vmem:[#allocation12 + $0x128] sm:$0xff]
    %v562 = vld [vmem:[#allocation12 + $0x130] sm:$0xff]
    %v563 = vld [vmem:[#allocation12 + $0x138] sm:$0xff]
    %v564 = vld [vmem:[#allocation12 + $0x140] sm:$0xff]
    %v565 = vld [vmem:[#allocation12 + $0x148] sm:$0xff]
    %v566 = vld [vmem:[#allocation12 + $0x150] sm:$0xff]
    %v567 = vld [vmem:[#allocation12 + $0x158] sm:$0xff]
    %v568 = vld [vmem:[#allocation12 + $0x160] sm:$0xff]
    %v569 = vld [vmem:[#allocation12 + $0x168] sm:$0xff]
    %v570 = vld [vmem:[#allocation12 + $0x170] sm:$0xff]
    %v571 = vld [vmem:[#allocation12 + $0x178] sm:$0xff]
    %v572 = vld [vmem:[#allocation12 + $0x180] sm:$0xff]
    %v573 = vld [vmem:[#allocation12 + $0x188] sm:$0xff]
    %v574 = vld [vmem:[#allocation12 + $0x190] sm:$0xff]
    %v575 = vld [vmem:[#allocation12 + $0x198] sm:$0xff]
    %v576 = vld [vmem:[#allocation12 + $0x1a0] sm:$0xff]
    %v577 = vld [vmem:[#allocation12 + $0x1a8] sm:$0xff]
    %v578 = vld [vmem:[#allocation12 + $0x1b0] sm:$0xff]
    %v579 = vld [vmem:[#allocation12 + $0x1b8] sm:$0xff]
    %v580 = vld [vmem:[#allocation12 + $0x1c0] sm:$0xff]
    %v581 = vld [vmem:[#allocation12 + $0x1c8] sm:$0xff]
    %v582 = vld [vmem:[#allocation12 + $0x1d0] sm:$0xff]
    %v583 = vld [vmem:[#allocation12 + $0x1d8] sm:$0xff]
    %v584 = vld [vmem:[#allocation12 + $0x1e0] sm:$0xff]
    %v585 = vld [vmem:[#allocation12 + $0x1e8] sm:$0xff]
    %v586 = vld [vmem:[#allocation12 + $0x1f0] sm:$0xff]
    %v587 = vld [vmem:[#allocation12 + $0x1f8] sm:$0xff]
    %v588 = vld [vmem:[#allocation12 + $0x200] sm:$0xff]
    %v589 = vld [vmem:[#allocation12 + $0x208] sm:$0xff]
    %v590 = vld [vmem:[#allocation12 + $0x210] sm:$0xff]
    %v591 = vld [vmem:[#allocation12 + $0x218] sm:$0xff]
    %v592 = vld [vmem:[#allocation12 + $0x220] sm:$0xff]
    %v593 = vld [vmem:[#allocation12 + $0x228] sm:$0xff]
    %v594 = vld [vmem:[#allocation12 + $0x230] sm:$0xff]
    %v595 = vld [vmem:[#allocation12 + $0x238] sm:$0xff]
    %v596 = vld [vmem:[%s5] sm:$0xf]
    %v598 = vlaneseq
    %v599 = vshrl.u32 %v598, 7
    %v600 = vsub.s32 0, %v599
    %v601 = vrot.slane %v596, %v600
    %v602 = vlaneseq
    %v603 = vshrl.u32 %v602, 7
    %v604 = vsub.s32 1, %v603
    %v605 = vrot.slane %v596, %v604
    %v606 = vlaneseq
    %v607 = vshrl.u32 %v606, 7
    %v608 = vsub.s32 2, %v607
    %v609 = vrot.slane %v596, %v608
    %v610 = vlaneseq
    %v611 = vshrl.u32 %v610, 7
    %v612 = vsub.s32 3, %v611
    %v613 = vrot.slane %v596, %v612
    %v619 = vsel %vm225, %v509, 0
    %v622 = vsel %vm225, %v511, 0
    %v625 = vsel %vm225, %v513, 0
    %v628 = vsel %vm225, %v515, 0
    %v631 = vsel %vm225, %v517, 0
    %v634 = vsel %vm225, %v519, 0
    %v637 = vsel %vm225, %v521, 0
    %v640 = vsel %vm225, %v523, 0
    %642 = vmatprep.subr.mxu0 %v525
    %643 = vmatpush1.msra.mxu0 %v524
    %644 = vmatprep.subr.mxu0 %v529
    %645 = vmatpush1.msra.mxu0 %v528
    %646 = vmatprep.subr.mxu0 %v533
    %647 = vmatpush1.msra.mxu0 %v532
    %648 = vmatprep.subr.mxu0 %v537
    %649 = vmatpush1.msra.mxu0 %v536
    %650 = vmatprep.subr.mxu0 %v541
    %651 = vmatpush1.msra.mxu0 %v540
    %652 = vmatprep.subr.mxu0 %v545
    %653 = vmatpush1.msra.mxu0 %v544
    %654 = vmatprep.subr.mxu0 %v549
    %655 = vmatpush1.msra.mxu0 %v548
    %656 = vmatprep.subr.mxu0 %v553
    %657 = vmatpush1.msra.mxu0 %v552
    %658 = vmatprep.subr.mxu0 %v557
    %659 = vmatpush1.msra.mxu0 %v556
    %660 = vmatprep.subr.mxu0 %v561
    %661 = vmatpush1.msra.mxu0 %v560
    %662 = vmatprep.subr.mxu0 %v565
    %663 = vmatpush1.msra.mxu0 %v564
    %664 = vmatprep.subr.mxu0 %v569
    %665 = vmatpush1.msra.mxu0 %v568
    %666 = vmatprep.subr.mxu0 %v573
    %667 = vmatpush1.msra.mxu0 %v572
    %668 = vmatprep.subr.mxu0 %v577
    %669 = vmatpush1.msra.mxu0 %v576
    %670 = vmatprep.subr.mxu0 %v581
    %671 = vmatpush1.msra.mxu0 %v580
    %672 = vmatprep.subr.mxu0 %v585
    %673 = vmatpush1.msra.mxu0 %v584
    %674 = vmatprep.subr.mxu0 %v589
    %675 = vmatpush1.msra.mxu0 %v588
    %676 = vmatprep.subr.mxu0 %v593
    %677 = vmatpush1.msra.mxu0 %v592
    %678 = vmatprep.subr.mxu0 0.0
    %679 = vmatpush1.msra.mxu0 0.0
    %680 = vmatprep.subr.mxu0 0.0
    %681 = vmatpush1.msra.mxu0 0.0
    %682 = vmatprep.subr.mxu0 0.0
    %683 = vmatpush1.msra.mxu0 0.0
    %684 = vmatprep.subr.mxu0 0.0
    %685 = vmatpush1.msra.mxu0 0.0
    %686 = vmatprep.subr.mxu0 0.0
    %687 = vmatpush1.msra.mxu0 0.0
    %688 = vmatprep.subr.mxu0 0.0
    %689 = vmatpush1.msra.mxu0 0.0
    %690 = vmatprep.subr.mxu0 0.0
    %691 = vmatpush1.msra.mxu0 0.0
    %692 = vmatprep.subr.mxu0 0.0
    %693 = vmatpush1.msra.mxu0 0.0
    %694 = vmatprep.subr.mxu0 0.0
    %695 = vmatpush1.msra.mxu0 0.0
    %696 = vmatprep.subr.mxu0 0.0
    %697 = vmatpush1.msra.mxu0 0.0
    %698 = vmatprep.subr.mxu0 0.0
    %699 = vmatpush1.msra.mxu0 0.0
    %700 = vmatprep.subr.mxu0 0.0
    %701 = vmatpush1.msra.mxu0 0.0
    %702 = vmatprep.subr.mxu0 0.0
    %703 = vmatpush1.msra.mxu0 0.0
    %704 = vmatprep.subr.mxu0 0.0
    %705 = vmatpush1.msra.mxu0 0.0
    %706 = vmatprep.mubr.f32.mxu0 %v619
    %707 = vmatmul.mubr.f32.gmra.mrb[0].mxu0 %v508
    %v708 = vpop.f32.mrb[0].mxu0
    %v709 = vadd.f32 %v601, %v708
    %v710 = vpop.f32.mrb[0].mxu0
    %v711 = vadd.f32 %v605, %v710
    %712 = vmatprep.mubr.f32.mxu0 %v622
    %713 = vmatmul.mubr.f32.gmra.mrb[0].mxu0 %v510
    %v714 = vpop.f32.mrb[0].mxu0
    %v715 = vadd.f32 %v601, %v714
    %v716 = vpop.f32.mrb[0].mxu0
    %v717 = vadd.f32 %v605, %v716
    %718 = vmatprep.mubr.f32.mxu0 %v625
    %719 = vmatmul.mubr.f32.gmra.mrb[0].mxu0 %v512
    %v720 = vpop.f32.mrb[0].mxu0
    %v721 = vadd.f32 %v601, %v720
    %v722 = vpop.f32.mrb[0].mxu0
    %v723 = vadd.f32 %v605, %v722
    %724 = vmatprep.mubr.f32.mxu0 %v628
    %725 = vmatmul.mubr.f32.gmra.mrb[0].mxu0 %v514
    %v726 = vpop.f32.mrb[0].mxu0
    %v727 = vadd.f32 %v601, %v726
    %v728 = vpop.f32.mrb[0].mxu0
    %v729 = vadd.f32 %v605, %v728
    %730 = vmatprep.mubr.f32.mxu0 %v631
    %731 = vmatmul.mubr.f32.gmra.mrb[0].mxu0 %v516
    %v732 = vpop.f32.mrb[0].mxu0
    %v733 = vadd.f32 %v601, %v732
    %v734 = vpop.f32.mrb[0].mxu0
    %v735 = vadd.f32 %v605, %v734
    %736 = vmatprep.mubr.f32.mxu0 %v634
    %737 = vmatmul.mubr.f32.gmra.mrb[0].mxu0 %v518
    %v738 = vpop.f32.mrb[0].mxu0
    %v739 = vadd.f32 %v601, %v738
    %v740 = vpop.f32.mrb[0].mxu0
    %v741 = vadd.f32 %v605, %v740
    %742 = vmatprep.mubr.f32.mxu0 %v637
    %743 = vmatmul.mubr.f32.gmra.mrb[0].mxu0 %v520
    %v744 = vpop.f32.mrb[0].mxu0
    %v745 = vadd.f32 %v601, %v744
    %v746 = vpop.f32.mrb[0].mxu0
    %v747 = vadd.f32 %v605, %v746
    %748 = vmatprep.mubr.f32.mxu0 %v640
    %749 = vmatmul.mubr.f32.gmra.mrb[0].mxu0 %v522
    %v750 = vpop.f32.mrb[0].mxu0
    %v751 = vadd.f32 %v601, %v750
    %v752 = vpop.f32.mrb[0].mxu0
    %v753 = vadd.f32 %v605, %v752
    %754 = vdwg.mxu0
    %755 = vmatprep.subr.mxu0 %v527
    %756 = vmatpush1.msra.mxu0 %v526
    %757 = vmatprep.subr.mxu0 %v531
    %758 = vmatpush1.msra.mxu0 %v530
    %759 = vmatprep.subr.mxu0 %v535
    %760 = vmatpush1.msra.mxu0 %v534
    %761 = vmatprep.subr.mxu0 %v539
    %762 = vmatpush1.msra.mxu0 %v538
    %763 = vmatprep.subr.mxu0 %v543
    %764 = vmatpush1.msra.mxu0 %v542
    %765 = vmatprep.subr.mxu0 %v547
    %766 = vmatpush1.msra.mxu0 %v546
    %767 = vmatprep.subr.mxu0 %v551
    %768 = vmatpush1.msra.mxu0 %v550
    %769 = vmatprep.subr.mxu0 %v555
    %770 = vmatpush1.msra.mxu0 %v554
    %771 = vmatprep.subr.mxu0 %v559
    %772 = vmatpush1.msra.mxu0 %v558
    %773 = vmatprep.subr.mxu0 %v563
    %774 = vmatpush1.msra.mxu0 %v562
    %775 = vmatprep.subr.mxu0 %v567
    %776 = vmatpush1.msra.mxu0 %v566
    %777 = vmatprep.subr.mxu0 %v571
    %778 = vmatpush1.msra.mxu0 %v570
    %779 = vmatprep.subr.mxu0 %v575
    %780 = vmatpush1.msra.mxu0 %v574
    %781 = vmatprep.subr.mxu0 %v579
    %782 = vmatpush1.msra.mxu0 %v578
    %783 = vmatprep.subr.mxu0 %v583
    %784 = vmatpush1.msra.mxu0 %v582
    %785 = vmatprep.subr.mxu0 %v587
    %786 = vmatpush1.msra.mxu0 %v586
    %787 = vmatprep.subr.mxu0 %v591
    %788 = vmatpush1.msra.mxu0 %v590
    %789 = vmatprep.subr.mxu0 %v595
    %790 = vmatpush1.msra.mxu0 %v594
    %791 = vmatprep.subr.mxu0 0.0
    %792 = vmatpush1.msra.mxu0 0.0
    %793 = vmatprep.subr.mxu0 0.0
    %794 = vmatpush1.msra.mxu0 0.0
    %795 = vmatprep.subr.mxu0 0.0
    %796 = vmatpush1.msra.mxu0 0.0
    %797 = vmatprep.subr.mxu0 0.0
    %798 = vmatpush1.msra.mxu0 0.0
    %799 = vmatprep.subr.mxu0 0.0
    %800 = vmatpush1.msra.mxu0 0.0
    %801 = vmatprep.subr.mxu0 0.0
    %802 = vmatpush1.msra.mxu0 0.0
    %803 = vmatprep.subr.mxu0 0.0
    %804 = vmatpush1.msra.mxu0 0.0
    %805 = vmatprep.subr.mxu0 0.0
    %806 = vmatpush1.msra.mxu0 0.0
    %807 = vmatprep.subr.mxu0 0.0
    %808 = vmatpush1.msra.mxu0 0.0
    %809 = vmatprep.subr.mxu0 0.0
    %810 = vmatpush1.msra.mxu0 0.0
    %811 = vmatprep.subr.mxu0 0.0
    %812 = vmatpush1.msra.mxu0 0.0
    %813 = vmatprep.subr.mxu0 0.0
    %814 = vmatpush1.msra.mxu0 0.0
    %815 = vmatprep.subr.mxu0 0.0
    %816 = vmatpush1.msra.mxu0 0.0
    %817 = vmatprep.subr.mxu0 0.0
    %818 = vmatpush1.msra.mxu0 0.0
    %819 = vmatprep.mubr.f32.mxu0 %v619
    %820 = vmatmul.mubr.f32.gmra.mrb[0].mxu0 %v508
    %v821 = vpop.f32.mrb[0].mxu0
    %v822 = vadd.f32 %v609, %v821
    %v823 = vpop.f32.mrb[0].mxu0
    %v824 = vadd.f32 %v613, %v823
    %825 = vmatprep.mubr.f32.mxu0 %v622
    %826 = vmatmul.mubr.f32.gmra.mrb[0].mxu0 %v510
    %v827 = vpop.f32.mrb[0].mxu0
    %v828 = vadd.f32 %v609, %v827
    %v829 = vpop.f32.mrb[0].mxu0
    %v830 = vadd.f32 %v613, %v829
    %831 = vmatprep.mubr.f32.mxu0 %v625
    %832 = vmatmul.mubr.f32.gmra.mrb[0].mxu0 %v512
    %v833 = vpop.f32.mrb[0].mxu0
    %v834 = vadd.f32 %v609, %v833
    %v835 = vpop.f32.mrb[0].mxu0
    %v836 = vadd.f32 %v613, %v835
    %837 = vmatprep.mubr.f32.mxu0 %v628
    %838 = vmatmul.mubr.f32.gmra.mrb[0].mxu0 %v514
    %v839 = vpop.f32.mrb[0].mxu0
    %v840 = vadd.f32 %v609, %v839
    %v841 = vpop.f32.mrb[0].mxu0
    %v842 = vadd.f32 %v613, %v841
    %843 = vmatprep.mubr.f32.mxu0 %v631
    %844 = vmatmul.mubr.f32.gmra.mrb[0].mxu0 %v516
    %v845 = vpop.f32.mrb[0].mxu0
    %v846 = vadd.f32 %v609, %v845
    %v847 = vpop.f32.mrb[0].mxu0
    %v848 = vadd.f32 %v613, %v847
    %849 = vmatprep.mubr.f32.mxu0 %v634
    %850 = vmatmul.mubr.f32.gmra.mrb[0].mxu0 %v518
    %v851 = vpop.f32.mrb[0].mxu0
    %v852 = vadd.f32 %v609, %v851
    %v853 = vpop.f32.mrb[0].mxu0
    %v854 = vadd.f32 %v613, %v853
    %855 = vmatprep.mubr.f32.mxu0 %v637
    %856 = vmatmul.mubr.f32.gmra.mrb[0].mxu0 %v520
    %v857 = vpop.f32.mrb[0].mxu0
    %v858 = vadd.f32 %v609, %v857
    %v859 = vpop.f32.mrb[0].mxu0
    %v860 = vadd.f32 %v613, %v859
    %861 = vmatprep.mubr.f32.mxu0 %v640
    %862 = vmatmul.mubr.f32.gmra.mrb[0].mxu0 %v522
    %v863 = vpop.f32.mrb[0].mxu0
    %v864 = vadd.f32 %v609, %v863
    %v865 = vpop.f32.mrb[0].mxu0
    %v866 = vadd.f32 %v613, %v865
    %867 = vdwg.mxu0
    %868 = vst [vmem:[#allocation3] sm:$0xff] %v709
    %869 = vst [vmem:[#allocation3 + $0x8] sm:$0xff] %v711
    %870 = vst [vmem:[#allocation3 + $0x10] sm:$0xff] %v822
    %871 = vst [vmem:[#allocation3 + $0x18] sm:$0xff] %v824
    %872 = vst [vmem:[#allocation3 + $0x20] sm:$0xff] %v715
    %873 = vst [vmem:[#allocation3 + $0x28] sm:$0xff] %v717
    %874 = vst [vmem:[#allocation3 + $0x30] sm:$0xff] %v828
    %875 = vst [vmem:[#allocation3 + $0x38] sm:$0xff] %v830
    %876 = vst [vmem:[#allocation3 + $0x40] sm:$0xff] %v721
    %877 = vst [vmem:[#allocation3 + $0x48] sm:$0xff] %v723
    %878 = vst [vmem:[#allocation3 + $0x50] sm:$0xff] %v834
    %879 = vst [vmem:[#allocation3 + $0x58] sm:$0xff] %v836
    %880 = vst [vmem:[#allocation3 + $0x60] sm:$0xff] %v727
    %881 = vst [vmem:[#allocation3 + $0x68] sm:$0xff] %v729
    %882 = vst [vmem:[#allocation3 + $0x70] sm:$0xff] %v840
    %883 = vst [vmem:[#allocation3 + $0x78] sm:$0xff] %v842
    %884 = vst [vmem:[#allocation3 + $0x80] sm:$0xff] %v733
    %885 = vst [vmem:[#allocation3 + $0x88] sm:$0xff] %v735
    %886 = vst [vmem:[#allocation3 + $0x90] sm:$0xff] %v846
    %887 = vst [vmem:[#allocation3 + $0x98] sm:$0xff] %v848
    %888 = vst [vmem:[#allocation3 + $0xa0] sm:$0xff] %v739
    %889 = vst [vmem:[#allocation3 + $0xa8] sm:$0xff] %v741
    %890 = vst [vmem:[#allocation3 + $0xb0] sm:$0xff] %v852
    %891 = vst [vmem:[#allocation3 + $0xb8] sm:$0xff] %v854
    %892 = vst [vmem:[#allocation3 + $0xc0] sm:$0xff] %v745
    %893 = vst [vmem:[#allocation3 + $0xc8] sm:$0xff] %v747
    %894 = vst [vmem:[#allocation3 + $0xd0] sm:$0xff] %v858
    %895 = vst [vmem:[#allocation3 + $0xd8] sm:$0xff] %v860
    %896 = vst [vmem:[#allocation3 + $0xe0] sm:$0xff] %v751
    %897 = vst [vmem:[#allocation3 + $0xe8] sm:$0xff] %v753
    %898 = vst [vmem:[#allocation3 + $0xf0] sm:$0xff] %v864
    %899 = vst [vmem:[#allocation3 + $0xf8] sm:$0xff] %v866
    %v900 = vld [vmem:[#allocation4] sm:$0xff]
    %v901 = vld [vmem:[#allocation4 + $0x8] sm:$0xff]
    %v902 = vld [vmem:[#allocation14] sm:$0xff]
    %v903 = vld [vmem:[#allocation14 + $0x8] sm:$0xff]
    %v904 = vld [vmem:[#allocation14 + $0x10] sm:$0xff]
    %v905 = vld [vmem:[#allocation14 + $0x18] sm:$0xff]
    %v906 = vld [vmem:[#allocation14 + $0x20] sm:$0xff]
    %v907 = vld [vmem:[#allocation14 + $0x28] sm:$0xff]
    %v908 = vld [vmem:[#allocation14 + $0x30] sm:$0xff]
    %v909 = vld [vmem:[#allocation14 + $0x38] sm:$0xff]
    %v910 = vld [vmem:[#allocation14 + $0x40] sm:$0xff]
    %v911 = vld [vmem:[#allocation14 + $0x48] sm:$0xff]
    %v912 = vld [vmem:[#allocation14 + $0x50] sm:$0xff]
    %v913 = vld [vmem:[#allocation14 + $0x58] sm:$0xff]
    %v914 = vld [vmem:[#allocation14 + $0x60] sm:$0xff]
    %v915 = vld [vmem:[#allocation14 + $0x68] sm:$0xff]
    %v916 = vld [vmem:[#allocation14 + $0x70] sm:$0xff]
    %v917 = vld [vmem:[#allocation14 + $0x78] sm:$0xff]
    %v918 = vld [vmem:[#allocation14 + $0x80] sm:$0xff]
    %v919 = vld [vmem:[#allocation14 + $0x88] sm:$0xff]
    %v920 = vld [vmem:[#allocation14 + $0x90] sm:$0xff]
    %v921 = vld [vmem:[#allocation14 + $0x98] sm:$0xff]
    %v922 = vld [vmem:[#allocation14 + $0xa0] sm:$0xff]
    %v923 = vld [vmem:[#allocation14 + $0xa8] sm:$0xff]
    %v924 = vld [vmem:[#allocation14 + $0xb0] sm:$0xff]
    %v925 = vld [vmem:[#allocation14 + $0xb8] sm:$0xff]
    %v926 = vld [vmem:[#allocation14 + $0xc0] sm:$0xff]
    %v927 = vld [vmem:[#allocation14 + $0xc8] sm:$0xff]
    %v928 = vld [vmem:[#allocation14 + $0xd0] sm:$0xff]
    %v929 = vld [vmem:[#allocation14 + $0xd8] sm:$0xff]
    %v930 = vld [vmem:[#allocation14 + $0xe0] sm:$0xff]
    %v931 = vld [vmem:[#allocation14 + $0xe8] sm:$0xff]
    %v932 = vld [vmem:[#allocation14 + $0xf0] sm:$0xff]
    %v933 = vld [vmem:[#allocation14 + $0xf8] sm:$0xff]
    %v934 = vld [vmem:[#allocation14 + $0x100] sm:$0xff]
    %v935 = vld [vmem:[#allocation14 + $0x108] sm:$0xff]
    %v936 = vld [vmem:[#allocation14 + $0x110] sm:$0xff]
    %v937 = vld [vmem:[#allocation14 + $0x118] sm:$0xff]
    %v938 = vld [vmem:[#allocation14 + $0x120] sm:$0xff]
    %v939 = vld [vmem:[#allocation14 + $0x128] sm:$0xff]
    %v940 = vld [vmem:[#allocation14 + $0x130] sm:$0xff]
    %v941 = vld [vmem:[#allocation14 + $0x138] sm:$0xff]
    %v942 = vld [vmem:[#allocation14 + $0x140] sm:$0xff]
    %v943 = vld [vmem:[#allocation14 + $0x148] sm:$0xff]
    %v944 = vld [vmem:[#allocation14 + $0x150] sm:$0xff]
    %v945 = vld [vmem:[#allocation14 + $0x158] sm:$0xff]
    %v946 = vld [vmem:[#allocation14 + $0x160] sm:$0xff]
    %v947 = vld [vmem:[#allocation14 + $0x168] sm:$0xff]
    %v948 = vld [vmem:[#allocation14 + $0x170] sm:$0xff]
    %v949 = vld [vmem:[#allocation14 + $0x178] sm:$0xff]
    %v950 = vld [vmem:[#allocation14 + $0x180] sm:$0xff]
    %v951 = vld [vmem:[#allocation14 + $0x188] sm:$0xff]
    %v952 = vld [vmem:[#allocation14 + $0x190] sm:$0xff]
    %v953 = vld [vmem:[#allocation14 + $0x198] sm:$0xff]
    %v954 = vld [vmem:[#allocation14 + $0x1a0] sm:$0xff]
    %v955 = vld [vmem:[#allocation14 + $0x1a8] sm:$0xff]
    %v956 = vld [vmem:[#allocation14 + $0x1b0] sm:$0xff]
    %v957 = vld [vmem:[#allocation14 + $0x1b8] sm:$0xff]
    %v958 = vld [vmem:[#allocation14 + $0x1c0] sm:$0xff]
    %v959 = vld [vmem:[#allocation14 + $0x1c8] sm:$0xff]
    %v960 = vld [vmem:[#allocation14 + $0x1d0] sm:$0xff]
    %v961 = vld [vmem:[#allocation14 + $0x1d8] sm:$0xff]
    %v962 = vld [vmem:[#allocation14 + $0x1e0] sm:$0xff]
    %v963 = vld [vmem:[#allocation14 + $0x1e8] sm:$0xff]
    %v964 = vld [vmem:[#allocation14 + $0x1f0] sm:$0xff]
    %v965 = vld [vmem:[#allocation14 + $0x1f8] sm:$0xff]
    %v966 = vld [vmem:[#allocation14 + $0x200] sm:$0xff]
    %v967 = vld [vmem:[#allocation14 + $0x208] sm:$0xff]
    %v968 = vld [vmem:[#allocation14 + $0x210] sm:$0xff]
    %v969 = vld [vmem:[#allocation14 + $0x218] sm:$0xff]
    %v970 = vld [vmem:[#allocation14 + $0x220] sm:$0xff]
    %v971 = vld [vmem:[#allocation14 + $0x228] sm:$0xff]
    %v972 = vld [vmem:[#allocation14 + $0x230] sm:$0xff]
    %v973 = vld [vmem:[#allocation14 + $0x238] sm:$0xff]
    %v974 = vld [vmem:[#allocation14 + $0x240] sm:$0xff]
    %v975 = vld [vmem:[#allocation14 + $0x248] sm:$0xff]
    %v976 = vld [vmem:[#allocation14 + $0x250] sm:$0xff]
    %v977 = vld [vmem:[#allocation14 + $0x258] sm:$0xff]
    %v978 = vld [vmem:[#allocation14 + $0x260] sm:$0xff]
    %v979 = vld [vmem:[#allocation14 + $0x268] sm:$0xff]
    %v980 = vld [vmem:[#allocation14 + $0x270] sm:$0xff]
    %v981 = vld [vmem:[#allocation14 + $0x278] sm:$0xff]
    %v982 = vld [vmem:[#allocation14 + $0x280] sm:$0xff]
    %v983 = vld [vmem:[#allocation14 + $0x288] sm:$0xff]
    %v984 = vld [vmem:[#allocation14 + $0x290] sm:$0xff]
    %v985 = vld [vmem:[#allocation14 + $0x298] sm:$0xff]
    %v986 = vld [vmem:[#allocation14 + $0x2a0] sm:$0xff]
    %v987 = vld [vmem:[#allocation14 + $0x2a8] sm:$0xff]
    %v988 = vld [vmem:[#allocation14 + $0x2b0] sm:$0xff]
    %v989 = vld [vmem:[#allocation14 + $0x2b8] sm:$0xff]
    %v990 = vld [vmem:[#allocation14 + $0x2c0] sm:$0xff]
    %v991 = vld [vmem:[#allocation14 + $0x2c8] sm:$0xff]
    %v992 = vld [vmem:[#allocation14 + $0x2d0] sm:$0xff]
    %v993 = vld [vmem:[#allocation14 + $0x2d8] sm:$0xff]
    %v994 = vld [vmem:[#allocation14 + $0x2e0] sm:$0xff]
    %v995 = vld [vmem:[#allocation14 + $0x2e8] sm:$0xff]
    %v996 = vld [vmem:[#allocation14 + $0x2f0] sm:$0xff]
    %v997 = vld [vmem:[#allocation14 + $0x2f8] sm:$0xff]
    %v998 = vld [vmem:[#allocation14 + $0x300] sm:$0xff]
    %v999 = vld [vmem:[#allocation14 + $0x308] sm:$0xff]
    %v1000 = vld [vmem:[#allocation14 + $0x310] sm:$0xff]
    %v1001 = vld [vmem:[#allocation14 + $0x318] sm:$0xff]
    %v1002 = vld [vmem:[#allocation14 + $0x320] sm:$0xff]
    %v1003 = vld [vmem:[#allocation14 + $0x328] sm:$0xff]
    %v1004 = vld [vmem:[#allocation14 + $0x330] sm:$0xff]
    %v1005 = vld [vmem:[#allocation14 + $0x338] sm:$0xff]
    %v1006 = vld [vmem:[#allocation14 + $0x340] sm:$0xff]
    %v1007 = vld [vmem:[#allocation14 + $0x348] sm:$0xff]
    %v1008 = vld [vmem:[#allocation14 + $0x350] sm:$0xff]
    %v1009 = vld [vmem:[#allocation14 + $0x358] sm:$0xff]
    %v1010 = vld [vmem:[#allocation14 + $0x360] sm:$0xff]
    %v1011 = vld [vmem:[#allocation14 + $0x368] sm:$0xff]
    %v1012 = vld [vmem:[#allocation14 + $0x370] sm:$0xff]
    %v1013 = vld [vmem:[#allocation14 + $0x378] sm:$0xff]
    %v1014 = vld [vmem:[#allocation14 + $0x380] sm:$0xff]
    %v1015 = vld [vmem:[#allocation14 + $0x388] sm:$0xff]
    %v1016 = vld [vmem:[#allocation14 + $0x390] sm:$0xff]
    %v1017 = vld [vmem:[#allocation14 + $0x398] sm:$0xff]
    %v1018 = vld [vmem:[#allocation14 + $0x3a0] sm:$0xff]
    %v1019 = vld [vmem:[#allocation14 + $0x3a8] sm:$0xff]
    %v1020 = vld [vmem:[#allocation14 + $0x3b0] sm:$0xff]
    %v1021 = vld [vmem:[#allocation14 + $0x3b8] sm:$0xff]
    %v1022 = vld [vmem:[#allocation14 + $0x3c0] sm:$0xff]
    %v1023 = vld [vmem:[#allocation14 + $0x3c8] sm:$0xff]
    %v1024 = vld [vmem:[#allocation14 + $0x3d0] sm:$0xff]
    %v1025 = vld [vmem:[#allocation14 + $0x3d8] sm:$0xff]
    %v1026 = vld [vmem:[#allocation14 + $0x3e0] sm:$0xff]
    %v1027 = vld [vmem:[#allocation14 + $0x3e8] sm:$0xff]
    %v1028 = vld [vmem:[#allocation14 + $0x3f0] sm:$0xff]
    %v1029 = vld [vmem:[#allocation14 + $0x3f8] sm:$0xff]
    %v1030 = vld [vmem:[#allocation14 + $0x400] sm:$0xff]
    %v1031 = vld [vmem:[#allocation14 + $0x408] sm:$0xff]
    %v1032 = vld [vmem:[#allocation14 + $0x410] sm:$0xff]
    %v1033 = vld [vmem:[#allocation14 + $0x418] sm:$0xff]
    %v1034 = vld [vmem:[#allocation14 + $0x420] sm:$0xff]
    %v1035 = vld [vmem:[#allocation14 + $0x428] sm:$0xff]
    %v1036 = vld [vmem:[#allocation14 + $0x430] sm:$0xff]
    %v1037 = vld [vmem:[#allocation14 + $0x438] sm:$0xff]
    %v1038 = vld [vmem:[#allocation14 + $0x440] sm:$0xff]
    %v1039 = vld [vmem:[#allocation14 + $0x448] sm:$0xff]
    %v1040 = vld [vmem:[#allocation14 + $0x450] sm:$0xff]
    %v1041 = vld [vmem:[#allocation14 + $0x458] sm:$0xff]
    %v1042 = vld [vmem:[#allocation14 + $0x460] sm:$0xff]
    %v1043 = vld [vmem:[#allocation14 + $0x468] sm:$0xff]
    %v1044 = vld [vmem:[#allocation14 + $0x470] sm:$0xff]
    %v1045 = vld [vmem:[#allocation14 + $0x478] sm:$0xff]
    %v1046 = vld [vmem:[#allocation14 + $0x480] sm:$0xff]
    %v1047 = vld [vmem:[#allocation14 + $0x488] sm:$0xff]
    %v1048 = vld [vmem:[#allocation14 + $0x490] sm:$0xff]
    %v1049 = vld [vmem:[#allocation14 + $0x498] sm:$0xff]
    %v1050 = vld [vmem:[#allocation14 + $0x4a0] sm:$0xff]
    %v1051 = vld [vmem:[#allocation14 + $0x4a8] sm:$0xff]
    %v1052 = vld [vmem:[#allocation14 + $0x4b0] sm:$0xff]
    %v1053 = vld [vmem:[#allocation14 + $0x4b8] sm:$0xff]
    %v1054 = vld [vmem:[#allocation14 + $0x4c0] sm:$0xff]
    %v1055 = vld [vmem:[#allocation14 + $0x4c8] sm:$0xff]
    %v1056 = vld [vmem:[#allocation14 + $0x4d0] sm:$0xff]
    %v1057 = vld [vmem:[#allocation14 + $0x4d8] sm:$0xff]
    %v1058 = vld [vmem:[#allocation14 + $0x4e0] sm:$0xff]
    %v1059 = vld [vmem:[#allocation14 + $0x4e8] sm:$0xff]
    %v1060 = vld [vmem:[#allocation14 + $0x4f0] sm:$0xff]
    %v1061 = vld [vmem:[#allocation14 + $0x4f8] sm:$0xff]
    %v1062 = vld [vmem:[#allocation14 + $0x500] sm:$0xff]
    %v1063 = vld [vmem:[#allocation14 + $0x508] sm:$0xff]
    %v1064 = vld [vmem:[#allocation14 + $0x510] sm:$0xff]
    %v1065 = vld [vmem:[#allocation14 + $0x518] sm:$0xff]
    %v1066 = vld [vmem:[#allocation14 + $0x520] sm:$0xff]
    %v1067 = vld [vmem:[#allocation14 + $0x528] sm:$0xff]
    %v1068 = vld [vmem:[#allocation14 + $0x530] sm:$0xff]
    %v1069 = vld [vmem:[#allocation14 + $0x538] sm:$0xff]
    %v1070 = vld [vmem:[#allocation14 + $0x540] sm:$0xff]
    %v1071 = vld [vmem:[#allocation14 + $0x548] sm:$0xff]
    %v1072 = vld [vmem:[#allocation14 + $0x550] sm:$0xff]
    %v1073 = vld [vmem:[#allocation14 + $0x558] sm:$0xff]
    %v1074 = vld [vmem:[#allocation14 + $0x560] sm:$0xff]
    %v1075 = vld [vmem:[#allocation14 + $0x568] sm:$0xff]
    %v1076 = vld [vmem:[#allocation14 + $0x570] sm:$0xff]
    %v1077 = vld [vmem:[#allocation14 + $0x578] sm:$0xff]
    %v1078 = vld [vmem:[#allocation14 + $0x580] sm:$0xff]
    %v1079 = vld [vmem:[#allocation14 + $0x588] sm:$0xff]
    %v1080 = vld [vmem:[#allocation14 + $0x590] sm:$0xff]
    %v1081 = vld [vmem:[#allocation14 + $0x598] sm:$0xff]
    %v1082 = vld [vmem:[#allocation14 + $0x5a0] sm:$0xff]
    %v1083 = vld [vmem:[#allocation14 + $0x5a8] sm:$0xff]
    %v1084 = vld [vmem:[#allocation14 + $0x5b0] sm:$0xff]
    %v1085 = vld [vmem:[#allocation14 + $0x5b8] sm:$0xff]
    %v1086 = vld [vmem:[#allocation14 + $0x5c0] sm:$0xff]
    %v1087 = vld [vmem:[#allocation14 + $0x5c8] sm:$0xff]
    %v1088 = vld [vmem:[#allocation14 + $0x5d0] sm:$0xff]
    %v1089 = vld [vmem:[#allocation14 + $0x5d8] sm:$0xff]
    %v1090 = vld [vmem:[#allocation14 + $0x5e0] sm:$0xff]
    %v1091 = vld [vmem:[#allocation14 + $0x5e8] sm:$0xff]
    %v1092 = vld [vmem:[#allocation14 + $0x5f0] sm:$0xff]
    %v1093 = vld [vmem:[#allocation14 + $0x5f8] sm:$0xff]
    %v1094 = vld [vmem:[#allocation14 + $0x600] sm:$0xff]
    %v1095 = vld [vmem:[#allocation14 + $0x608] sm:$0xff]
    %v1096 = vld [vmem:[#allocation14 + $0x610] sm:$0xff]
    %v1097 = vld [vmem:[#allocation14 + $0x618] sm:$0xff]
    %v1098 = vld [vmem:[#allocation14 + $0x620] sm:$0xff]
    %v1099 = vld [vmem:[#allocation14 + $0x628] sm:$0xff]
    %v1100 = vld [vmem:[#allocation14 + $0x630] sm:$0xff]
    %v1101 = vld [vmem:[#allocation14 + $0x638] sm:$0xff]
    %v1102 = vld [vmem:[#allocation14 + $0x640] sm:$0xff]
    %v1103 = vld [vmem:[#allocation14 + $0x648] sm:$0xff]
    %v1104 = vld [vmem:[#allocation14 + $0x650] sm:$0xff]
    %v1105 = vld [vmem:[#allocation14 + $0x658] sm:$0xff]
    %v1106 = vld [vmem:[#allocation14 + $0x660] sm:$0xff]
    %v1107 = vld [vmem:[#allocation14 + $0x668] sm:$0xff]
    %v1108 = vld [vmem:[#allocation14 + $0x670] sm:$0xff]
    %v1109 = vld [vmem:[#allocation14 + $0x678] sm:$0xff]
    %v1110 = vld [vmem:[#allocation14 + $0x680] sm:$0xff]
    %v1111 = vld [vmem:[#allocation14 + $0x688] sm:$0xff]
    %v1112 = vld [vmem:[#allocation14 + $0x690] sm:$0xff]
    %v1113 = vld [vmem:[#allocation14 + $0x698] sm:$0xff]
    %v1114 = vld [vmem:[#allocation14 + $0x6a0] sm:$0xff]
    %v1115 = vld [vmem:[#allocation14 + $0x6a8] sm:$0xff]
    %v1116 = vld [vmem:[#allocation14 + $0x6b0] sm:$0xff]
    %v1117 = vld [vmem:[#allocation14 + $0x6b8] sm:$0xff]
    %v1118 = vld [vmem:[#allocation14 + $0x6c0] sm:$0xff]
    %v1119 = vld [vmem:[#allocation14 + $0x6c8] sm:$0xff]
    %v1120 = vld [vmem:[#allocation14 + $0x6d0] sm:$0xff]
    %v1121 = vld [vmem:[#allocation14 + $0x6d8] sm:$0xff]
    %v1122 = vld [vmem:[#allocation14 + $0x6e0] sm:$0xff]
    %v1123 = vld [vmem:[#allocation14 + $0x6e8] sm:$0xff]
    %v1124 = vld [vmem:[#allocation14 + $0x6f0] sm:$0xff]
    %v1125 = vld [vmem:[#allocation14 + $0x6f8] sm:$0xff]
    %v1126 = vld [vmem:[#allocation14 + $0x700] sm:$0xff]
    %v1127 = vld [vmem:[#allocation14 + $0x708] sm:$0xff]
    %v1128 = vld [vmem:[#allocation14 + $0x710] sm:$0xff]
    %v1129 = vld [vmem:[#allocation14 + $0x718] sm:$0xff]
    %v1130 = vld [vmem:[#allocation14 + $0x720] sm:$0xff]
    %v1131 = vld [vmem:[#allocation14 + $0x728] sm:$0xff]
    %v1132 = vld [vmem:[#allocation14 + $0x730] sm:$0xff]
    %v1133 = vld [vmem:[#allocation14 + $0x738] sm:$0xff]
    %v1134 = vld [vmem:[#allocation14 + $0x740] sm:$0xff]
    %v1135 = vld [vmem:[#allocation14 + $0x748] sm:$0xff]
    %v1136 = vld [vmem:[#allocation14 + $0x750] sm:$0xff]
    %v1137 = vld [vmem:[#allocation14 + $0x758] sm:$0xff]
    %v1138 = vld [vmem:[#allocation14 + $0x760] sm:$0xff]
    %v1139 = vld [vmem:[#allocation14 + $0x768] sm:$0xff]
    %v1140 = vld [vmem:[#allocation14 + $0x770] sm:$0xff]
    %v1141 = vld [vmem:[#allocation14 + $0x778] sm:$0xff]
    %v1142 = vld [vmem:[#allocation14 + $0x780] sm:$0xff]
    %v1143 = vld [vmem:[#allocation14 + $0x788] sm:$0xff]
    %v1144 = vld [vmem:[#allocation14 + $0x790] sm:$0xff]
    %v1145 = vld [vmem:[#allocation14 + $0x798] sm:$0xff]
    %v1146 = vld [vmem:[#allocation14 + $0x7a0] sm:$0xff]
    %v1147 = vld [vmem:[#allocation14 + $0x7a8] sm:$0xff]
    %v1148 = vld [vmem:[#allocation14 + $0x7b0] sm:$0xff]
    %v1149 = vld [vmem:[#allocation14 + $0x7b8] sm:$0xff]
    %v1150 = vld [vmem:[#allocation14 + $0x7c0] sm:$0xff]
    %v1151 = vld [vmem:[#allocation14 + $0x7c8] sm:$0xff]
    %v1152 = vld [vmem:[#allocation14 + $0x7d0] sm:$0xff]
    %v1153 = vld [vmem:[#allocation14 + $0x7d8] sm:$0xff]
    %v1154 = vld [vmem:[#allocation14 + $0x7e0] sm:$0xff]
    %v1155 = vld [vmem:[#allocation14 + $0x7e8] sm:$0xff]
    %v1156 = vld [vmem:[#allocation14 + $0x7f0] sm:$0xff]
    %v1157 = vld [vmem:[#allocation14 + $0x7f8] sm:$0xff]
    %1158 = vmatprep.subr.mxu0 %v903
    %1159 = vmatpush1.msra.mxu0 %v902
    %1160 = vmatprep.subr.mxu0 %v911
    %1161 = vmatpush1.msra.mxu0 %v910
    %1162 = vmatprep.subr.mxu0 %v919
    %1163 = vmatpush1.msra.mxu0 %v918
    %1164 = vmatprep.subr.mxu0 %v927
    %1165 = vmatpush1.msra.mxu0 %v926
    %1166 = vmatprep.subr.mxu0 %v935
    %1167 = vmatpush1.msra.mxu0 %v934
    %1168 = vmatprep.subr.mxu0 %v943
    %1169 = vmatpush1.msra.mxu0 %v942
    %1170 = vmatprep.subr.mxu0 %v951
    %1171 = vmatpush1.msra.mxu0 %v950
    %1172 = vmatprep.subr.mxu0 %v959
    %1173 = vmatpush1.msra.mxu0 %v958
    %1174 = vmatprep.subr.mxu0 %v967
    %1175 = vmatpush1.msra.mxu0 %v966
    %1176 = vmatprep.subr.mxu0 %v975
    %1177 = vmatpush1.msra.mxu0 %v974
    %1178 = vmatprep.subr.mxu0 %v983
    %1179 = vmatpush1.msra.mxu0 %v982
    %1180 = vmatprep.subr.mxu0 %v991
    %1181 = vmatpush1.msra.mxu0 %v990
    %1182 = vmatprep.subr.mxu0 %v999
    %1183 = vmatpush1.msra.mxu0 %v998
    %1184 = vmatprep.subr.mxu0 %v1007
    %1185 = vmatpush1.msra.mxu0 %v1006
    %1186 = vmatprep.subr.mxu0 %v1015
    %1187 = vmatpush1.msra.mxu0 %v1014
    %1188 = vmatprep.subr.mxu0 %v1023
    %1189 = vmatpush1.msra.mxu0 %v1022
    %1190 = vmatprep.subr.mxu0 %v1031
    %1191 = vmatpush1.msra.mxu0 %v1030
    %1192 = vmatprep.subr.mxu0 %v1039
    %1193 = vmatpush1.msra.mxu0 %v1038
    %1194 = vmatprep.subr.mxu0 %v1047
    %1195 = vmatpush1.msra.mxu0 %v1046
    %1196 = vmatprep.subr.mxu0 %v1055
    %1197 = vmatpush1.msra.mxu0 %v1054
    %1198 = vmatprep.subr.mxu0 %v1063
    %1199 = vmatpush1.msra.mxu0 %v1062
    %1200 = vmatprep.subr.mxu0 %v1071
    %1201 = vmatpush1.msra.mxu0 %v1070
    %1202 = vmatprep.subr.mxu0 %v1079
    %1203 = vmatpush1.msra.mxu0 %v1078
    %1204 = vmatprep.subr.mxu0 %v1087
    %1205 = vmatpush1.msra.mxu0 %v1086
    %1206 = vmatprep.subr.mxu0 %v1095
    %1207 = vmatpush1.msra.mxu0 %v1094
    %1208 = vmatprep.subr.mxu0 %v1103
    %1209 = vmatpush1.msra.mxu0 %v1102
    %1210 = vmatprep.subr.mxu0 %v1111
    %1211 = vmatpush1.msra.mxu0 %v1110
    %1212 = vmatprep.subr.mxu0 %v1119
    %1213 = vmatpush1.msra.mxu0 %v1118
    %1214 = vmatprep.subr.mxu0 %v1127
    %1215 = vmatpush1.msra.mxu0 %v1126
    %1216 = vmatprep.subr.mxu0 %v1135
    %1217 = vmatpush1.msra.mxu0 %v1134
    %1218 = vmatprep.subr.mxu0 %v1143
    %1219 = vmatpush1.msra.mxu0 %v1142
    %1220 = vmatprep.subr.mxu0 %v1151
    %1221 = vmatpush1.msra.mxu0 %v1150
    %1222 = vmatprep.mubr.f32.mxu0 %v901
    %1223 = vmatmul.mubr.f32.gmra.mrb[0].mxu0 %v900
    %v1224 = vpop.f32.mrb[0].mxu0
    %v1225 = vadd.f32 0.0, %v1224
    %v1226 = vpop.f32.mrb[0].mxu0
    %v1227 = vadd.f32 0.0, %v1226
    %1228 = vdwg.mxu0
    %1229 = vmatprep.subr.mxu0 %v905
    %1230 = vmatpush1.msra.mxu0 %v904
    %1231 = vmatprep.subr.mxu0 %v913
    %1232 = vmatpush1.msra.mxu0 %v912
    %1233 = vmatprep.subr.mxu0 %v921
    %1234 = vmatpush1.msra.mxu0 %v920
    %1235 = vmatprep.subr.mxu0 %v929
    %1236 = vmatpush1.msra.mxu0 %v928
    %1237 = vmatprep.subr.mxu0 %v937
    %1238 = vmatpush1.msra.mxu0 %v936
    %1239 = vmatprep.subr.mxu0 %v945
    %1240 = vmatpush1.msra.mxu0 %v944
    %1241 = vmatprep.subr.mxu0 %v953
    %1242 = vmatpush1.msra.mxu0 %v952
    %1243 = vmatprep.subr.mxu0 %v961
    %1244 = vmatpush1.msra.mxu0 %v960
    %1245 = vmatprep.subr.mxu0 %v969
    %1246 = vmatpush1.msra.mxu0 %v968
    %1247 = vmatprep.subr.mxu0 %v977
    %1248 = vmatpush1.msra.mxu0 %v976
    %1249 = vmatprep.subr.mxu0 %v985
    %1250 = vmatpush1.msra.mxu0 %v984
    %1251 = vmatprep.subr.mxu0 %v993
    %1252 = vmatpush1.msra.mxu0 %v992
    %1253 = vmatprep.subr.mxu0 %v1001
    %1254 = vmatpush1.msra.mxu0 %v1000
    %1255 = vmatprep.subr.mxu0 %v1009
    %1256 = vmatpush1.msra.mxu0 %v1008
    %1257 = vmatprep.subr.mxu0 %v1017
    %1258 = vmatpush1.msra.mxu0 %v1016
    %1259 = vmatprep.subr.mxu0 %v1025
    %1260 = vmatpush1.msra.mxu0 %v1024
    %1261 = vmatprep.subr.mxu0 %v1033
    %1262 = vmatpush1.msra.mxu0 %v1032
    %1263 = vmatprep.subr.mxu0 %v1041
    %1264 = vmatpush1.msra.mxu0 %v1040
    %1265 = vmatprep.subr.mxu0 %v1049
    %1266 = vmatpush1.msra.mxu0 %v1048
    %1267 = vmatprep.subr.mxu0 %v1057
    %1268 = vmatpush1.msra.mxu0 %v1056
    %1269 = vmatprep.subr.mxu0 %v1065
    %1270 = vmatpush1.msra.mxu0 %v1064
    %1271 = vmatprep.subr.mxu0 %v1073
    %1272 = vmatpush1.msra.mxu0 %v1072
    %1273 = vmatprep.subr.mxu0 %v1081
    %1274 = vmatpush1.msra.mxu0 %v1080
    %1275 = vmatprep.subr.mxu0 %v1089
    %1276 = vmatpush1.msra.mxu0 %v1088
    %1277 = vmatprep.subr.mxu0 %v1097
    %1278 = vmatpush1.msra.mxu0 %v1096
    %1279 = vmatprep.subr.mxu0 %v1105
    %1280 = vmatpush1.msra.mxu0 %v1104
    %1281 = vmatprep.subr.mxu0 %v1113
    %1282 = vmatpush1.msra.mxu0 %v1112
    %1283 = vmatprep.subr.mxu0 %v1121
    %1284 = vmatpush1.msra.mxu0 %v1120
    %1285 = vmatprep.subr.mxu0 %v1129
    %1286 = vmatpush1.msra.mxu0 %v1128
    %1287 = vmatprep.subr.mxu0 %v1137
    %1288 = vmatpush1.msra.mxu0 %v1136
    %1289 = vmatprep.subr.mxu0 %v1145
    %1290 = vmatpush1.msra.mxu0 %v1144
    %1291 = vmatprep.subr.mxu0 %v1153
    %1292 = vmatpush1.msra.mxu0 %v1152
    %1293 = vmatprep.mubr.f32.mxu0 %v901
    %1294 = vmatmul.mubr.f32.gmra.mrb[0].mxu0 %v900
    %v1295 = vpop.f32.mrb[0].mxu0
    %v1296 = vadd.f32 0.0, %v1295
    %v1297 = vpop.f32.mrb[0].mxu0
    %v1298 = vadd.f32 0.0, %v1297
    %1299 = vdwg.mxu0
    %1300 = vmatprep.subr.mxu0 %v907
    %1301 = vmatpush1.msra.mxu0 %v906
    %1302 = vmatprep.subr.mxu0 %v915
    %1303 = vmatpush1.msra.mxu0 %v914
    %1304 = vmatprep.subr.mxu0 %v923
    %1305 = vmatpush1.msra.mxu0 %v922
    %1306 = vmatprep.subr.mxu0 %v931
    %1307 = vmatpush1.msra.mxu0 %v930
    %1308 = vmatprep.subr.mxu0 %v939
    %1309 = vmatpush1.msra.mxu0 %v938
    %1310 = vmatprep.subr.mxu0 %v947
    %1311 = vmatpush1.msra.mxu0 %v946
    %1312 = vmatprep.subr.mxu0 %v955
    %1313 = vmatpush1.msra.mxu0 %v954
    %1314 = vmatprep.subr.mxu0 %v963
    %1315 = vmatpush1.msra.mxu0 %v962
    %1316 = vmatprep.subr.mxu0 %v971
    %1317 = vmatpush1.msra.mxu0 %v970
    %1318 = vmatprep.subr.mxu0 %v979
    %1319 = vmatpush1.msra.mxu0 %v978
    %1320 = vmatprep.subr.mxu0 %v987
    %1321 = vmatpush1.msra.mxu0 %v986
    %1322 = vmatprep.subr.mxu0 %v995
    %1323 = vmatpush1.msra.mxu0 %v994
    %1324 = vmatprep.subr.mxu0 %v1003
    %1325 = vmatpush1.msra.mxu0 %v1002
    %1326 = vmatprep.subr.mxu0 %v1011
    %1327 = vmatpush1.msra.mxu0 %v1010
    %1328 = vmatprep.subr.mxu0 %v1019
    %1329 = vmatpush1.msra.mxu0 %v1018
    %1330 = vmatprep.subr.mxu0 %v1027
    %1331 = vmatpush1.msra.mxu0 %v1026
    %1332 = vmatprep.subr.mxu0 %v1035
    %1333 = vmatpush1.msra.mxu0 %v1034
    %1334 = vmatprep.subr.mxu0 %v1043
    %1335 = vmatpush1.msra.mxu0 %v1042
    %1336 = vmatprep.subr.mxu0 %v1051
    %1337 = vmatpush1.msra.mxu0 %v1050
    %1338 = vmatprep.subr.mxu0 %v1059
    %1339 = vmatpush1.msra.mxu0 %v1058
    %1340 = vmatprep.subr.mxu0 %v1067
    %1341 = vmatpush1.msra.mxu0 %v1066
    %1342 = vmatprep.subr.mxu0 %v1075
    %1343 = vmatpush1.msra.mxu0 %v1074
    %1344 = vmatprep.subr.mxu0 %v1083
    %1345 = vmatpush1.msra.mxu0 %v1082
    %1346 = vmatprep.subr.mxu0 %v1091
    %1347 = vmatpush1.msra.mxu0 %v1090
    %1348 = vmatprep.subr.mxu0 %v1099
    %1349 = vmatpush1.msra.mxu0 %v1098
    %1350 = vmatprep.subr.mxu0 %v1107
    %1351 = vmatpush1.msra.mxu0 %v1106
    %1352 = vmatprep.subr.mxu0 %v1115
    %1353 = vmatpush1.msra.mxu0 %v1114
    %1354 = vmatprep.subr.mxu0 %v1123
    %1355 = vmatpush1.msra.mxu0 %v1122
    %1356 = vmatprep.subr.mxu0 %v1131
    %1357 = vmatpush1.msra.mxu0 %v1130
    %1358 = vmatprep.subr.mxu0 %v1139
    %1359 = vmatpush1.msra.mxu0 %v1138
    %1360 = vmatprep.subr.mxu0 %v1147
    %1361 = vmatpush1.msra.mxu0 %v1146
    %1362 = vmatprep.subr.mxu0 %v1155
    %1363 = vmatpush1.msra.mxu0 %v1154
    %1364 = vmatprep.mubr.f32.mxu0 %v901
    %1365 = vmatmul.mubr.f32.gmra.mrb[0].mxu0 %v900
    %v1366 = vpop.f32.mrb[0].mxu0
    %v1367 = vadd.f32 0.0, %v1366
    %v1368 = vpop.f32.mrb[0].mxu0
    %v1369 = vadd.f32 0.0, %v1368
    %1370 = vdwg.mxu0
    %1371 = vmatprep.subr.mxu0 %v909
    %1372 = vmatpush1.msra.mxu0 %v908
    %1373 = vmatprep.subr.mxu0 %v917
    %1374 = vmatpush1.msra.mxu0 %v916
    %1375 = vmatprep.subr.mxu0 %v925
    %1376 = vmatpush1.msra.mxu0 %v924
    %1377 = vmatprep.subr.mxu0 %v933
    %1378 = vmatpush1.msra.mxu0 %v932
    %1379 = vmatprep.subr.mxu0 %v941
    %1380 = vmatpush1.msra.mxu0 %v940
    %1381 = vmatprep.subr.mxu0 %v949
    %1382 = vmatpush1.msra.mxu0 %v948
    %1383 = vmatprep.subr.mxu0 %v957
    %1384 = vmatpush1.msra.mxu0 %v956
    %1385 = vmatprep.subr.mxu0 %v965
    %1386 = vmatpush1.msra.mxu0 %v964
    %1387 = vmatprep.subr.mxu0 %v973
    %1388 = vmatpush1.msra.mxu0 %v972
    %1389 = vmatprep.subr.mxu0 %v981
    %1390 = vmatpush1.msra.mxu0 %v980
    %1391 = vmatprep.subr.mxu0 %v989
    %1392 = vmatpush1.msra.mxu0 %v988
    %1393 = vmatprep.subr.mxu0 %v997
    %1394 = vmatpush1.msra.mxu0 %v996
    %1395 = vmatprep.subr.mxu0 %v1005
    %1396 = vmatpush1.msra.mxu0 %v1004
    %1397 = vmatprep.subr.mxu0 %v1013
    %1398 = vmatpush1.msra.mxu0 %v1012
    %1399 = vmatprep.subr.mxu0 %v1021
    %1400 = vmatpush1.msra.mxu0 %v1020
    %1401 = vmatprep.subr.mxu0 %v1029
    %1402 = vmatpush1.msra.mxu0 %v1028
    %1403 = vmatprep.subr.mxu0 %v1037
    %1404 = vmatpush1.msra.mxu0 %v1036
    %1405 = vmatprep.subr.mxu0 %v1045
    %1406 = vmatpush1.msra.mxu0 %v1044
    %1407 = vmatprep.subr.mxu0 %v1053
    %1408 = vmatpush1.msra.mxu0 %v1052
    %1409 = vmatprep.subr.mxu0 %v1061
    %1410 = vmatpush1.msra.mxu0 %v1060
    %1411 = vmatprep.subr.mxu0 %v1069
    %1412 = vmatpush1.msra.mxu0 %v1068
    %1413 = vmatprep.subr.mxu0 %v1077
    %1414 = vmatpush1.msra.mxu0 %v1076
    %1415 = vmatprep.subr.mxu0 %v1085
    %1416 = vmatpush1.msra.mxu0 %v1084
    %1417 = vmatprep.subr.mxu0 %v1093
    %1418 = vmatpush1.msra.mxu0 %v1092
    %1419 = vmatprep.subr.mxu0 %v1101
    %1420 = vmatpush1.msra.mxu0 %v1100
    %1421 = vmatprep.subr.mxu0 %v1109
    %1422 = vmatpush1.msra.mxu0 %v1108
    %1423 = vmatprep.subr.mxu0 %v1117
    %1424 = vmatpush1.msra.mxu0 %v1116
    %1425 = vmatprep.subr.mxu0 %v1125
    %1426 = vmatpush1.msra.mxu0 %v1124
    %1427 = vmatprep.subr.mxu0 %v1133
    %1428 = vmatpush1.msra.mxu0 %v1132
    %1429 = vmatprep.subr.mxu0 %v1141
    %1430 = vmatpush1.msra.mxu0 %v1140
    %1431 = vmatprep.subr.mxu0 %v1149
    %1432 = vmatpush1.msra.mxu0 %v1148
    %1433 = vmatprep.subr.mxu0 %v1157
    %1434 = vmatpush1.msra.mxu0 %v1156
    %1435 = vmatprep.mubr.f32.mxu0 %v901
    %1436 = vmatmul.mubr.f32.gmra.mrb[0].mxu0 %v900
    %v1437 = vpop.f32.mrb[0].mxu0
    %v1438 = vadd.f32 0.0, %v1437
    %v1439 = vpop.f32.mrb[0].mxu0
    %v1440 = vadd.f32 0.0, %v1439
    %1441 = vdwg.mxu0
    %s1442 = smul.u32 0, 4
    %s1443 = smul.addr %s1442, 8
    %s1444 = scalar_lea.vmem [#allocation2], %s1443
    %v1445 = vld [vmem:[%s1444] sm:$0xff]
    %v1446 = vld [vmem:[%s1444 + $0x8] sm:$0xff]
    %v1447 = vld [vmem:[%s1444 + $0x10] sm:$0xff]
    %v1448 = vld [vmem:[%s1444 + $0x18] sm:$0xff]
    %v1449 = vadd.f32 %v1445, %v1225
    %v1450 = vadd.f32 %v1446, %v1227
    %v1451 = vadd.f32 %v1447, %v1296
    %v1452 = vadd.f32 %v1448, %v1298
    %v1453 = vld [vmem:[#allocation5] sm:$0xff]
    %v1454 = vxor.u32 %v1449, 2147483648
    %v1455 = vxor.u32 %v1450, 2147483648
    %v1456 = vxor.u32 %v1451, 2147483648
    %v1457 = vmul.f32 %v1454, 1.442695
    %v1458 = vpow.pop %v1457
    %v1459 = vmul.f32 %v1455, 1.442695
    %v1460 = vpow.pop %v1459
    %v1461 = vmul.f32 %v1456, 1.442695
    %v1462 = vpow.pop %v1461
    %v1463 = vadd.f32 %v1458, 1.0
    %v1464 = vadd.f32 %v1460, 1.0
    %v1465 = vadd.f32 %v1462, 1.0
    %v1466 = vrcp.pop %v1463
    %v1467 = vmul.f32 1.0, %v1466
    %v1468 = vrcp.pop %v1464
    %v1469 = vmul.f32 1.0, %v1468
    %v1470 = vrcp.pop %v1465
    %v1471 = vmul.f32 1.0, %v1470
    %v1472 = vtanh.pop %v1452
    %v1473 = vmul.f32 %v1469, %v1453
    %v1474 = vmul.f32 %v1467, %v1472
    %v1475 = vadd.f32 %v1473, %v1474
    %v1476 = vtanh.pop %v1475
    %v1477 = vmul.f32 %v1471, %v1476
    %s1478 = smul.u32 7, 4
    %s1479 = smul.addr %s1478, 8
    %s1480 = scalar_lea.vmem [#allocation3], %s1479
    %v1481 = vld [vmem:[%s1480] sm:$0xff]
    %v1482 = vld [vmem:[%s1480 + $0x8] sm:$0xff]
    %v1483 = vld [vmem:[%s1480 + $0x10] sm:$0xff]
    %v1484 = vld [vmem:[%s1480 + $0x18] sm:$0xff]
    %v1485 = vadd.f32 %v1481, %v1367
    %v1486 = vadd.f32 %v1482, %v1369
    %v1487 = vadd.f32 %v1483, %v1438
    %v1488 = vadd.f32 %v1484, %v1440
    %v1489 = vld [vmem:[#allocation5 + $0x8] sm:$0xff]
    %v1490 = vxor.u32 %v1485, 2147483648
    %v1491 = vxor.u32 %v1486, 2147483648
    %v1492 = vxor.u32 %v1487, 2147483648
    %v1493 = vmul.f32 %v1490, 1.442695
    %v1494 = vpow.pop %v1493
    %v1495 = vmul.f32 %v1491, 1.442695
    %v1496 = vpow.pop %v1495
    %v1497 = vmul.f32 %v1492, 1.442695
    %v1498 = vpow.pop %v1497
    %v1499 = vadd.f32 %v1494, 1.0
    %v1500 = vadd.f32 %v1496, 1.0
    %v1501 = vadd.f32 %v1498, 1.0
    %v1502 = vrcp.pop %v1499
    %v1503 = vmul.f32 1.0, %v1502
    %v1504 = vrcp.pop %v1500
    %v1505 = vmul.f32 1.0, %v1504
    %v1506 = vrcp.pop %v1501
    %v1507 = vmul.f32 1.0, %v1506
    %v1508 = vtanh.pop %v1488
    %v1509 = vmul.f32 %v1505, %v1489
    %v1510 = vmul.f32 %v1503, %v1508
    %v1511 = vadd.f32 %v1509, %v1510
    %v1512 = vtanh.pop %v1511
    %v1513 = vmul.f32 %v1507, %v1512
    %1514 = vst [vmem:[#allocation4] sm:$0xff] %v1477
    %1515 = vst [vmem:[#allocation4 + $0x8] sm:$0xff] %v1513
    %1516 = vst [vmem:[#allocation5] sm:$0xff] %v1475
    %1517 = vst [vmem:[#allocation5 + $0x8] sm:$0xff] %v1511
    %1518 = vst [vmem:[#allocation15] sm:$0xff] %v1477
    %s1519 = scalar_lea.vmem [#allocation16], 56
    %1520 = vst [vmem:[%s1519] sm:$0xff] %v1513
    %v1521 = vld [vmem:[#allocation4] sm:$0xff]
    %v1522 = vld [vmem:[#allocation4 + $0x8] sm:$0xff]
    %v1523 = vld [vmem:[#allocation14] sm:$0xff]
    %v1524 = vld [vmem:[#allocation14 + $0x8] sm:$0xff]
    %v1525 = vld [vmem:[#allocation14 + $0x10] sm:$0xff]
    %v1526 = vld [vmem:[#allocation14 + $0x18] sm:$0xff]
    %v1527 = vld [vmem:[#allocation14 + $0x20] sm:$0xff]
    %v1528 = vld [vmem:[#allocation14 + $0x28] sm:$0xff]
    %v1529 = vld [vmem:[#allocation14 + $0x30] sm:$0xff]
    %v1530 = vld [vmem:[#allocation14 + $0x38] sm:$0xff]
    %v1531 = vld [vmem:[#allocation14 + $0x40] sm:$0xff]
    %v1532 = vld [vmem:[#allocation14 + $0x48] sm:$0xff]
    %v1533 = vld [vmem:[#allocation14 + $0x50] sm:$0xff]
    %v1534 = vld [vmem:[#allocation14 + $0x58] sm:$0xff]
    %v1535 = vld [vmem:[#allocation14 + $0x60] sm:$0xff]
    %v1536 = vld [vmem:[#allocation14 + $0x68] sm:$0xff]
    %v1537 = vld [vmem:[#allocation14 + $0x70] sm:$0xff]
    %v1538 = vld [vmem:[#allocation14 + $0x78] sm:$0xff]
    %v1539 = vld [vmem:[#allocation14 + $0x80] sm:$0xff]
    %v1540 = vld [vmem:[#allocation14 + $0x88] sm:$0xff]
    %v1541 = vld [vmem:[#allocation14 + $0x90] sm:$0xff]
    %v1542 = vld [vmem:[#allocation14 + $0x98] sm:$0xff]
    %v1543 = vld [vmem:[#allocation14 + $0xa0] sm:$0xff]
    %v1544 = vld [vmem:[#allocation14 + $0xa8] sm:$0xff]
    %v1545 = vld [vmem:[#allocation14 + $0xb0] sm:$0xff]
    %v1546 = vld [vmem:[#allocation14 + $0xb8] sm:$0xff]
    %v1547 = vld [vmem:[#allocation14 + $0xc0] sm:$0xff]
    %v1548 = vld [vmem:[#allocation14 + $0xc8] sm:$0xff]
    %v1549 = vld [vmem:[#allocation14 + $0xd0] sm:$0xff]
    %v1550 = vld [vmem:[#allocation14 + $0xd8] sm:$0xff]
    %v1551 = vld [vmem:[#allocation14 + $0xe0] sm:$0xff]
    %v1552 = vld [vmem:[#allocation14 + $0xe8] sm:$0xff]
    %v1553 = vld [vmem:[#allocation14 + $0xf0] sm:$0xff]
    %v1554 = vld [vmem:[#allocation14 + $0xf8] sm:$0xff]
    %v1555 = vld [vmem:[#allocation14 + $0x100] sm:$0xff]
    %v1556 = vld [vmem:[#allocation14 + $0x108] sm:$0xff]
    %v1557 = vld [vmem:[#allocation14 + $0x110] sm:$0xff]
    %v1558 = vld [vmem:[#allocation14 + $0x118] sm:$0xff]
    %v1559 = vld [vmem:[#allocation14 + $0x120] sm:$0xff]
    %v1560 = vld [vmem:[#allocation14 + $0x128] sm:$0xff]
    %v1561 = vld [vmem:[#allocation14 + $0x130] sm:$0xff]
    %v1562 = vld [vmem:[#allocation14 + $0x138] sm:$0xff]
    %v1563 = vld [vmem:[#allocation14 + $0x140] sm:$0xff]
    %v1564 = vld [vmem:[#allocation14 + $0x148] sm:$0xff]
    %v1565 = vld [vmem:[#allocation14 + $0x150] sm:$0xff]
    %v1566 = vld [vmem:[#allocation14 + $0x158] sm:$0xff]
    %v1567 = vld [vmem:[#allocation14 + $0x160] sm:$0xff]
    %v1568 = vld [vmem:[#allocation14 + $0x168] sm:$0xff]
    %v1569 = vld [vmem:[#allocation14 + $0x170] sm:$0xff]
    %v1570 = vld [vmem:[#allocation14 + $0x178] sm:$0xff]
    %v1571 = vld [vmem:[#allocation14 + $0x180] sm:$0xff]
    %v1572 = vld [vmem:[#allocation14 + $0x188] sm:$0xff]
    %v1573 = vld [vmem:[#allocation14 + $0x190] sm:$0xff]
    %v1574 = vld [vmem:[#allocation14 + $0x198] sm:$0xff]
    %v1575 = vld [vmem:[#allocation14 + $0x1a0] sm:$0xff]
    %v1576 = vld [vmem:[#allocation14 + $0x1a8] sm:$0xff]
    %v1577 = vld [vmem:[#allocation14 + $0x1b0] sm:$0xff]
    %v1578 = vld [vmem:[#allocation14 + $0x1b8] sm:$0xff]
    %v1579 = vld [vmem:[#allocation14 + $0x1c0] sm:$0xff]
    %v1580 = vld [vmem:[#allocation14 + $0x1c8] sm:$0xff]
    %v1581 = vld [vmem:[#allocation14 + $0x1d0] sm:$0xff]
    %v1582 = vld [vmem:[#allocation14 + $0x1d8] sm:$0xff]
    %v1583 = vld [vmem:[#allocation14 + $0x1e0] sm:$0xff]
    %v1584 = vld [vmem:[#allocation14 + $0x1e8] sm:$0xff]
    %v1585 = vld [vmem:[#allocation14 + $0x1f0] sm:$0xff]
    %v1586 = vld [vmem:[#allocation14 + $0x1f8] sm:$0xff]
    %v1587 = vld [vmem:[#allocation14 + $0x200] sm:$0xff]
    %v1588 = vld [vmem:[#allocation14 + $0x208] sm:$0xff]
    %v1589 = vld [vmem:[#allocation14 + $0x210] sm:$0xff]
    %v1590 = vld [vmem:[#allocation14 + $0x218] sm:$0xff]
    %v1591 = vld [vmem:[#allocation14 + $0x220] sm:$0xff]
    %v1592 = vld [vmem:[#allocation14 + $0x228] sm:$0xff]
    %v1593 = vld [vmem:[#allocation14 + $0x230] sm:$0xff]
    %v1594 = vld [vmem:[#allocation14 + $0x238] sm:$0xff]
    %v1595 = vld [vmem:[#allocation14 + $0x240] sm:$0xff]
    %v1596 = vld [vmem:[#allocation14 + $0x248] sm:$0xff]
    %v1597 = vld [vmem:[#allocation14 + $0x250] sm:$0xff]
    %v1598 = vld [vmem:[#allocation14 + $0x258] sm:$0xff]
    %v1599 = vld [vmem:[#allocation14 + $0x260] sm:$0xff]
    %v1600 = vld [vmem:[#allocation14 + $0x268] sm:$0xff]
    %v1601 = vld [vmem:[#allocation14 + $0x270] sm:$0xff]
    %v1602 = vld [vmem:[#allocation14 + $0x278] sm:$0xff]
    %v1603 = vld [vmem:[#allocation14 + $0x280] sm:$0xff]
    %v1604 = vld [vmem:[#allocation14 + $0x288] sm:$0xff]
    %v1605 = vld [vmem:[#allocation14 + $0x290] sm:$0xff]
    %v1606 = vld [vmem:[#allocation14 + $0x298] sm:$0xff]
    %v1607 = vld [vmem:[#allocation14 + $0x2a0] sm:$0xff]
    %v1608 = vld [vmem:[#allocation14 + $0x2a8] sm:$0xff]
    %v1609 = vld [vmem:[#allocation14 + $0x2b0] sm:$0xff]
    %v1610 = vld [vmem:[#allocation14 + $0x2b8] sm:$0xff]
    %v1611 = vld [vmem:[#allocation14 + $0x2c0] sm:$0xff]
    %v1612 = vld [vmem:[#allocation14 + $0x2c8] sm:$0xff]
    %v1613 = vld [vmem:[#allocation14 + $0x2d0] sm:$0xff]
    %v1614 = vld [vmem:[#allocation14 + $0x2d8] sm:$0xff]
    %v1615 = vld [vmem:[#allocation14 + $0x2e0] sm:$0xff]
    %v1616 = vld [vmem:[#allocation14 + $0x2e8] sm:$0xff]
    %v1617 = vld [vmem:[#allocation14 + $0x2f0] sm:$0xff]
    %v1618 = vld [vmem:[#allocation14 + $0x2f8] sm:$0xff]
    %v1619 = vld [vmem:[#allocation14 + $0x300] sm:$0xff]
    %v1620 = vld [vmem:[#allocation14 + $0x308] sm:$0xff]
    %v1621 = vld [vmem:[#allocation14 + $0x310] sm:$0xff]
    %v1622 = vld [vmem:[#allocation14 + $0x318] sm:$0xff]
    %v1623 = vld [vmem:[#allocation14 + $0x320] sm:$0xff]
    %v1624 = vld [vmem:[#allocation14 + $0x328] sm:$0xff]
    %v1625 = vld [vmem:[#allocation14 + $0x330] sm:$0xff]
    %v1626 = vld [vmem:[#allocation14 + $0x338] sm:$0xff]
    %v1627 = vld [vmem:[#allocation14 + $0x340] sm:$0xff]
    %v1628 = vld [vmem:[#allocation14 + $0x348] sm:$0xff]
    %v1629 = vld [vmem:[#allocation14 + $0x350] sm:$0xff]
    %v1630 = vld [vmem:[#allocation14 + $0x358] sm:$0xff]
    %v1631 = vld [vmem:[#allocation14 + $0x360] sm:$0xff]
    %v1632 = vld [vmem:[#allocation14 + $0x368] sm:$0xff]
    %v1633 = vld [vmem:[#allocation14 + $0x370] sm:$0xff]
    %v1634 = vld [vmem:[#allocation14 + $0x378] sm:$0xff]
    %v1635 = vld [vmem:[#allocation14 + $0x380] sm:$0xff]
    %v1636 = vld [vmem:[#allocation14 + $0x388] sm:$0xff]
    %v1637 = vld [vmem:[#allocation14 + $0x390] sm:$0xff]
    %v1638 = vld [vmem:[#allocation14 + $0x398] sm:$0xff]
    %v1639 = vld [vmem:[#allocation14 + $0x3a0] sm:$0xff]
    %v1640 = vld [vmem:[#allocation14 + $0x3a8] sm:$0xff]
    %v1641 = vld [vmem:[#allocation14 + $0x3b0] sm:$0xff]
    %v1642 = vld [vmem:[#allocation14 + $0x3b8] sm:$0xff]
    %v1643 = vld [vmem:[#allocation14 + $0x3c0] sm:$0xff]
    %v1644 = vld [vmem:[#allocation14 + $0x3c8] sm:$0xff]
    %v1645 = vld [vmem:[#allocation14 + $0x3d0] sm:$0xff]
    %v1646 = vld [vmem:[#allocation14 + $0x3d8] sm:$0xff]
    %v1647 = vld [vmem:[#allocation14 + $0x3e0] sm:$0xff]
    %v1648 = vld [vmem:[#allocation14 + $0x3e8] sm:$0xff]
    %v1649 = vld [vmem:[#allocation14 + $0x3f0] sm:$0xff]
    %v1650 = vld [vmem:[#allocation14 + $0x3f8] sm:$0xff]
    %v1651 = vld [vmem:[#allocation14 + $0x400] sm:$0xff]
    %v1652 = vld [vmem:[#allocation14 + $0x408] sm:$0xff]
    %v1653 = vld [vmem:[#allocation14 + $0x410] sm:$0xff]
    %v1654 = vld [vmem:[#allocation14 + $0x418] sm:$0xff]
    %v1655 = vld [vmem:[#allocation14 + $0x420] sm:$0xff]
    %v1656 = vld [vmem:[#allocation14 + $0x428] sm:$0xff]
    %v1657 = vld [vmem:[#allocation14 + $0x430] sm:$0xff]
    %v1658 = vld [vmem:[#allocation14 + $0x438] sm:$0xff]
    %v1659 = vld [vmem:[#allocation14 + $0x440] sm:$0xff]
    %v1660 = vld [vmem:[#allocation14 + $0x448] sm:$0xff]
    %v1661 = vld [vmem:[#allocation14 + $0x450] sm:$0xff]
    %v1662 = vld [vmem:[#allocation14 + $0x458] sm:$0xff]
    %v1663 = vld [vmem:[#allocation14 + $0x460] sm:$0xff]
    %v1664 = vld [vmem:[#allocation14 + $0x468] sm:$0xff]
    %v1665 = vld [vmem:[#allocation14 + $0x470] sm:$0xff]
    %v1666 = vld [vmem:[#allocation14 + $0x478] sm:$0xff]
    %v1667 = vld [vmem:[#allocation14 + $0x480] sm:$0xff]
    %v1668 = vld [vmem:[#allocation14 + $0x488] sm:$0xff]
    %v1669 = vld [vmem:[#allocation14 + $0x490] sm:$0xff]
    %v1670 = vld [vmem:[#allocation14 + $0x498] sm:$0xff]
    %v1671 = vld [vmem:[#allocation14 + $0x4a0] sm:$0xff]
    %v1672 = vld [vmem:[#allocation14 + $0x4a8] sm:$0xff]
    %v1673 = vld [vmem:[#allocation14 + $0x4b0] sm:$0xff]
    %v1674 = vld [vmem:[#allocation14 + $0x4b8] sm:$0xff]
    %v1675 = vld [vmem:[#allocation14 + $0x4c0] sm:$0xff]
    %v1676 = vld [vmem:[#allocation14 + $0x4c8] sm:$0xff]
    %v1677 = vld [vmem:[#allocation14 + $0x4d0] sm:$0xff]
    %v1678 = vld [vmem:[#allocation14 + $0x4d8] sm:$0xff]
    %v1679 = vld [vmem:[#allocation14 + $0x4e0] sm:$0xff]
    %v1680 = vld [vmem:[#allocation14 + $0x4e8] sm:$0xff]
    %v1681 = vld [vmem:[#allocation14 + $0x4f0] sm:$0xff]
    %v1682 = vld [vmem:[#allocation14 + $0x4f8] sm:$0xff]
    %v1683 = vld [vmem:[#allocation14 + $0x500] sm:$0xff]
    %v1684 = vld [vmem:[#allocation14 + $0x508] sm:$0xff]
    %v1685 = vld [vmem:[#allocation14 + $0x510] sm:$0xff]
    %v1686 = vld [vmem:[#allocation14 + $0x518] sm:$0xff]
    %v1687 = vld [vmem:[#allocation14 + $0x520] sm:$0xff]
    %v1688 = vld [vmem:[#allocation14 + $0x528] sm:$0xff]
    %v1689 = vld [vmem:[#allocation14 + $0x530] sm:$0xff]
    %v1690 = vld [vmem:[#allocation14 + $0x538] sm:$0xff]
    %v1691 = vld [vmem:[#allocation14 + $0x540] sm:$0xff]
    %v1692 = vld [vmem:[#allocation14 + $0x548] sm:$0xff]
    %v1693 = vld [vmem:[#allocation14 + $0x550] sm:$0xff]
    %v1694 = vld [vmem:[#allocation14 + $0x558] sm:$0xff]
    %v1695 = vld [vmem:[#allocation14 + $0x560] sm:$0xff]
    %v1696 = vld [vmem:[#allocation14 + $0x568] sm:$0xff]
    %v1697 = vld [vmem:[#allocation14 + $0x570] sm:$0xff]
    %v1698 = vld [vmem:[#allocation14 + $0x578] sm:$0xff]
    %v1699 = vld [vmem:[#allocation14 + $0x580] sm:$0xff]
    %v1700 = vld [vmem:[#allocation14 + $0x588] sm:$0xff]
    %v1701 = vld [vmem:[#allocation14 + $0x590] sm:$0xff]
    %v1702 = vld [vmem:[#allocation14 + $0x598] sm:$0xff]
    %v1703 = vld [vmem:[#allocation14 + $0x5a0] sm:$0xff]
    %v1704 = vld [vmem:[#allocation14 + $0x5a8] sm:$0xff]
    %v1705 = vld [vmem:[#allocation14 + $0x5b0] sm:$0xff]
    %v1706 = vld [vmem:[#allocation14 + $0x5b8] sm:$0xff]
    %v1707 = vld [vmem:[#allocation14 + $0x5c0] sm:$0xff]
    %v1708 = vld [vmem:[#allocation14 + $0x5c8] sm:$0xff]
    %v1709 = vld [vmem:[#allocation14 + $0x5d0] sm:$0xff]
    %v1710 = vld [vmem:[#allocation14 + $0x5d8] sm:$0xff]
    %v1711 = vld [vmem:[#allocation14 + $0x5e0] sm:$0xff]
    %v1712 = vld [vmem:[#allocation14 + $0x5e8] sm:$0xff]
    %v1713 = vld [vmem:[#allocation14 + $0x5f0] sm:$0xff]
    %v1714 = vld [vmem:[#allocation14 + $0x5f8] sm:$0xff]
    %v1715 = vld [vmem:[#allocation14 + $0x600] sm:$0xff]
    %v1716 = vld [vmem:[#allocation14 + $0x608] sm:$0xff]
    %v1717 = vld [vmem:[#allocation14 + $0x610] sm:$0xff]
    %v1718 = vld [vmem:[#allocation14 + $0x618] sm:$0xff]
    %v1719 = vld [vmem:[#allocation14 + $0x620] sm:$0xff]
    %v1720 = vld [vmem:[#allocation14 + $0x628] sm:$0xff]
    %v1721 = vld [vmem:[#allocation14 + $0x630] sm:$0xff]
    %v1722 = vld [vmem:[#allocation14 + $0x638] sm:$0xff]
    %v1723 = vld [vmem:[#allocation14 + $0x640] sm:$0xff]
    %v1724 = vld [vmem:[#allocation14 + $0x648] sm:$0xff]
    %v1725 = vld [vmem:[#allocation14 + $0x650] sm:$0xff]
    %v1726 = vld [vmem:[#allocation14 + $0x658] sm:$0xff]
    %v1727 = vld [vmem:[#allocation14 + $0x660] sm:$0xff]
    %v1728 = vld [vmem:[#allocation14 + $0x668] sm:$0xff]
    %v1729 = vld [vmem:[#allocation14 + $0x670] sm:$0xff]
    %v1730 = vld [vmem:[#allocation14 + $0x678] sm:$0xff]
    %v1731 = vld [vmem:[#allocation14 + $0x680] sm:$0xff]
    %v1732 = vld [vmem:[#allocation14 + $0x688] sm:$0xff]
    %v1733 = vld [vmem:[#allocation14 + $0x690] sm:$0xff]
    %v1734 = vld [vmem:[#allocation14 + $0x698] sm:$0xff]
    %v1735 = vld [vmem:[#allocation14 + $0x6a0] sm:$0xff]
    %v1736 = vld [vmem:[#allocation14 + $0x6a8] sm:$0xff]
    %v1737 = vld [vmem:[#allocation14 + $0x6b0] sm:$0xff]
    %v1738 = vld [vmem:[#allocation14 + $0x6b8] sm:$0xff]
    %v1739 = vld [vmem:[#allocation14 + $0x6c0] sm:$0xff]
    %v1740 = vld [vmem:[#allocation14 + $0x6c8] sm:$0xff]
    %v1741 = vld [vmem:[#allocation14 + $0x6d0] sm:$0xff]
    %v1742 = vld [vmem:[#allocation14 + $0x6d8] sm:$0xff]
    %v1743 = vld [vmem:[#allocation14 + $0x6e0] sm:$0xff]
    %v1744 = vld [vmem:[#allocation14 + $0x6e8] sm:$0xff]
    %v1745 = vld [vmem:[#allocation14 + $0x6f0] sm:$0xff]
    %v1746 = vld [vmem:[#allocation14 + $0x6f8] sm:$0xff]
    %v1747 = vld [vmem:[#allocation14 + $0x700] sm:$0xff]
    %v1748 = vld [vmem:[#allocation14 + $0x708] sm:$0xff]
    %v1749 = vld [vmem:[#allocation14 + $0x710] sm:$0xff]
    %v1750 = vld [vmem:[#allocation14 + $0x718] sm:$0xff]
    %v1751 = vld [vmem:[#allocation14 + $0x720] sm:$0xff]
    %v1752 = vld [vmem:[#allocation14 + $0x728] sm:$0xff]
    %v1753 = vld [vmem:[#allocation14 + $0x730] sm:$0xff]
    %v1754 = vld [vmem:[#allocation14 + $0x738] sm:$0xff]
    %v1755 = vld [vmem:[#allocation14 + $0x740] sm:$0xff]
    %v1756 = vld [vmem:[#allocation14 + $0x748] sm:$0xff]
    %v1757 = vld [vmem:[#allocation14 + $0x750] sm:$0xff]
    %v1758 = vld [vmem:[#allocation14 + $0x758] sm:$0xff]
    %v1759 = vld [vmem:[#allocation14 + $0x760] sm:$0xff]
    %v1760 = vld [vmem:[#allocation14 + $0x768] sm:$0xff]
    %v1761 = vld [vmem:[#allocation14 + $0x770] sm:$0xff]
    %v1762 = vld [vmem:[#allocation14 + $0x778] sm:$0xff]
    %v1763 = vld [vmem:[#allocation14 + $0x780] sm:$0xff]
    %v1764 = vld [vmem:[#allocation14 + $0x788] sm:$0xff]
    %v1765 = vld [vmem:[#allocation14 + $0x790] sm:$0xff]
    %v1766 = vld [vmem:[#allocation14 + $0x798] sm:$0xff]
    %v1767 = vld [vmem:[#allocation14 + $0x7a0] sm:$0xff]
    %v1768 = vld [vmem:[#allocation14 + $0x7a8] sm:$0xff]
    %v1769 = vld [vmem:[#allocation14 + $0x7b0] sm:$0xff]
    %v1770 = vld [vmem:[#allocation14 + $0x7b8] sm:$0xff]
    %v1771 = vld [vmem:[#allocation14 + $0x7c0] sm:$0xff]
    %v1772 = vld [vmem:[#allocation14 + $0x7c8] sm:$0xff]
    %v1773 = vld [vmem:[#allocation14 + $0x7d0] sm:$0xff]
    %v1774 = vld [vmem:[#allocation14 + $0x7d8] sm:$0xff]
    %v1775 = vld [vmem:[#allocation14 + $0x7e0] sm:$0xff]
    %v1776 = vld [vmem:[#allocation14 + $0x7e8] sm:$0xff]
    %v1777 = vld [vmem:[#allocation14 + $0x7f0] sm:$0xff]
    %v1778 = vld [vmem:[#allocation14 + $0x7f8] sm:$0xff]
    %1779 = vmatprep.subr.mxu0 %v1524
    %1780 = vmatpush1.msra.mxu0 %v1523
    %1781 = vmatprep.subr.mxu0 %v1532
    %1782 = vmatpush1.msra.mxu0 %v1531
    %1783 = vmatprep.subr.mxu0 %v1540
    %1784 = vmatpush1.msra.mxu0 %v1539
    %1785 = vmatprep.subr.mxu0 %v1548
    %1786 = vmatpush1.msra.mxu0 %v1547
    %1787 = vmatprep.subr.mxu0 %v1556
    %1788 = vmatpush1.msra.mxu0 %v1555
    %1789 = vmatprep.subr.mxu0 %v1564
    %1790 = vmatpush1.msra.mxu0 %v1563
    %1791 = vmatprep.subr.mxu0 %v1572
    %1792 = vmatpush1.msra.mxu0 %v1571
    %1793 = vmatprep.subr.mxu0 %v1580
    %1794 = vmatpush1.msra.mxu0 %v1579
    %1795 = vmatprep.subr.mxu0 %v1588
    %1796 = vmatpush1.msra.mxu0 %v1587
    %1797 = vmatprep.subr.mxu0 %v1596
    %1798 = vmatpush1.msra.mxu0 %v1595
    %1799 = vmatprep.subr.mxu0 %v1604
    %1800 = vmatpush1.msra.mxu0 %v1603
    %1801 = vmatprep.subr.mxu0 %v1612
    %1802 = vmatpush1.msra.mxu0 %v1611
    %1803 = vmatprep.subr.mxu0 %v1620
    %1804 = vmatpush1.msra.mxu0 %v1619
    %1805 = vmatprep.subr.mxu0 %v1628
    %1806 = vmatpush1.msra.mxu0 %v1627
    %1807 = vmatprep.subr.mxu0 %v1636
    %1808 = vmatpush1.msra.mxu0 %v1635
    %1809 = vmatprep.subr.mxu0 %v1644
    %1810 = vmatpush1.msra.mxu0 %v1643
    %1811 = vmatprep.subr.mxu0 %v1652
    %1812 = vmatpush1.msra.mxu0 %v1651
    %1813 = vmatprep.subr.mxu0 %v1660
    %1814 = vmatpush1.msra.mxu0 %v1659
    %1815 = vmatprep.subr.mxu0 %v1668
    %1816 = vmatpush1.msra.mxu0 %v1667
    %1817 = vmatprep.subr.mxu0 %v1676
    %1818 = vmatpush1.msra.mxu0 %v1675
    %1819 = vmatprep.subr.mxu0 %v1684
    %1820 = vmatpush1.msra.mxu0 %v1683
    %1821 = vmatprep.subr.mxu0 %v1692
    %1822 = vmatpush1.msra.mxu0 %v1691
    %1823 = vmatprep.subr.mxu0 %v1700
    %1824 = vmatpush1.msra.mxu0 %v1699
    %1825 = vmatprep.subr.mxu0 %v1708
    %1826 = vmatpush1.msra.mxu0 %v1707
    %1827 = vmatprep.subr.mxu0 %v1716
    %1828 = vmatpush1.msra.mxu0 %v1715
    %1829 = vmatprep.subr.mxu0 %v1724
    %1830 = vmatpush1.msra.mxu0 %v1723
    %1831 = vmatprep.subr.mxu0 %v1732
    %1832 = vmatpush1.msra.mxu0 %v1731
    %1833 = vmatprep.subr.mxu0 %v1740
    %1834 = vmatpush1.msra.mxu0 %v1739
    %1835 = vmatprep.subr.mxu0 %v1748
    %1836 = vmatpush1.msra.mxu0 %v1747
    %1837 = vmatprep.subr.mxu0 %v1756
    %1838 = vmatpush1.msra.mxu0 %v1755
    %1839 = vmatprep.subr.mxu0 %v1764
    %1840 = vmatpush1.msra.mxu0 %v1763
    %1841 = vmatprep.subr.mxu0 %v1772
    %1842 = vmatpush1.msra.mxu0 %v1771
    %1843 = vmatprep.mubr.f32.mxu0 %v1522
    %1844 = vmatmul.mubr.f32.gmra.mrb[0].mxu0 %v1521
    %v1845 = vpop.f32.mrb[0].mxu0
    %v1846 = vadd.f32 0.0, %v1845
    %v1847 = vpop.f32.mrb[0].mxu0
    %v1848 = vadd.f32 0.0, %v1847
    %1849 = vdwg.mxu0
    %1850 = vmatprep.subr.mxu0 %v1526
    %1851 = vmatpush1.msra.mxu0 %v1525
    %1852 = vmatprep.subr.mxu0 %v1534
    %1853 = vmatpush1.msra.mxu0 %v1533
    %1854 = vmatprep.subr.mxu0 %v1542
    %1855 = vmatpush1.msra.mxu0 %v1541
    %1856 = vmatprep.subr.mxu0 %v1550
    %1857 = vmatpush1.msra.mxu0 %v1549
    %1858 = vmatprep.subr.mxu0 %v1558
    %1859 = vmatpush1.msra.mxu0 %v1557
    %1860 = vmatprep.subr.mxu0 %v1566
    %1861 = vmatpush1.msra.mxu0 %v1565
    %1862 = vmatprep.subr.mxu0 %v1574
    %1863 = vmatpush1.msra.mxu0 %v1573
    %1864 = vmatprep.subr.mxu0 %v1582
    %1865 = vmatpush1.msra.mxu0 %v1581
    %1866 = vmatprep.subr.mxu0 %v1590
    %1867 = vmatpush1.msra.mxu0 %v1589
    %1868 = vmatprep.subr.mxu0 %v1598
    %1869 = vmatpush1.msra.mxu0 %v1597
    %1870 = vmatprep.subr.mxu0 %v1606
    %1871 = vmatpush1.msra.mxu0 %v1605
    %1872 = vmatprep.subr.mxu0 %v1614
    %1873 = vmatpush1.msra.mxu0 %v1613
    %1874 = vmatprep.subr.mxu0 %v1622
    %1875 = vmatpush1.msra.mxu0 %v1621
    %1876 = vmatprep.subr.mxu0 %v1630
    %1877 = vmatpush1.msra.mxu0 %v1629
    %1878 = vmatprep.subr.mxu0 %v1638
    %1879 = vmatpush1.msra.mxu0 %v1637
    %1880 = vmatprep.subr.mxu0 %v1646
    %1881 = vmatpush1.msra.mxu0 %v1645
    %1882 = vmatprep.subr.mxu0 %v1654
    %1883 = vmatpush1.msra.mxu0 %v1653
    %1884 = vmatprep.subr.mxu0 %v1662
    %1885 = vmatpush1.msra.mxu0 %v1661
    %1886 = vmatprep.subr.mxu0 %v1670
    %1887 = vmatpush1.msra.mxu0 %v1669
    %1888 = vmatprep.subr.mxu0 %v1678
    %1889 = vmatpush1.msra.mxu0 %v1677
    %1890 = vmatprep.subr.mxu0 %v1686
    %1891 = vmatpush1.msra.mxu0 %v1685
    %1892 = vmatprep.subr.mxu0 %v1694
    %1893 = vmatpush1.msra.mxu0 %v1693
    %1894 = vmatprep.subr.mxu0 %v1702
    %1895 = vmatpush1.msra.mxu0 %v1701
    %1896 = vmatprep.subr.mxu0 %v1710
    %1897 = vmatpush1.msra.mxu0 %v1709
    %1898 = vmatprep.subr.mxu0 %v1718
    %1899 = vmatpush1.msra.mxu0 %v1717
    %1900 = vmatprep.subr.mxu0 %v1726
    %1901 = vmatpush1.msra.mxu0 %v1725
    %1902 = vmatprep.subr.mxu0 %v1734
    %1903 = vmatpush1.msra.mxu0 %v1733
    %1904 = vmatprep.subr.mxu0 %v1742
    %1905 = vmatpush1.msra.mxu0 %v1741
    %1906 = vmatprep.subr.mxu0 %v1750
    %1907 = vmatpush1.msra.mxu0 %v1749
    %1908 = vmatprep.subr.mxu0 %v1758
    %1909 = vmatpush1.msra.mxu0 %v1757
    %1910 = vmatprep.subr.mxu0 %v1766
    %1911 = vmatpush1.msra.mxu0 %v1765
    %1912 = vmatprep.subr.mxu0 %v1774
    %1913 = vmatpush1.msra.mxu0 %v1773
    %1914 = vmatprep.mubr.f32.mxu0 %v1522
    %1915 = vmatmul.mubr.f32.gmra.mrb[0].mxu0 %v1521
    %v1916 = vpop.f32.mrb[0].mxu0
    %v1917 = vadd.f32 0.0, %v1916
    %v1918 = vpop.f32.mrb[0].mxu0
    %v1919 = vadd.f32 0.0, %v1918
    %1920 = vdwg.mxu0
    %1921 = vmatprep.subr.mxu0 %v1528
    %1922 = vmatpush1.msra.mxu0 %v1527
    %1923 = vmatprep.subr.mxu0 %v1536
    %1924 = vmatpush1.msra.mxu0 %v1535
    %1925 = vmatprep.subr.mxu0 %v1544
    %1926 = vmatpush1.msra.mxu0 %v1543
    %1927 = vmatprep.subr.mxu0 %v1552
    %1928 = vmatpush1.msra.mxu0 %v1551
    %1929 = vmatprep.subr.mxu0 %v1560
    %1930 = vmatpush1.msra.mxu0 %v1559
    %1931 = vmatprep.subr.mxu0 %v1568
    %1932 = vmatpush1.msra.mxu0 %v1567
    %1933 = vmatprep.subr.mxu0 %v1576
    %1934 = vmatpush1.msra.mxu0 %v1575
    %1935 = vmatprep.subr.mxu0 %v1584
    %1936 = vmatpush1.msra.mxu0 %v1583
    %1937 = vmatprep.subr.mxu0 %v1592
    %1938 = vmatpush1.msra.mxu0 %v1591
    %1939 = vmatprep.subr.mxu0 %v1600
    %1940 = vmatpush1.msra.mxu0 %v1599
    %1941 = vmatprep.subr.mxu0 %v1608
    %1942 = vmatpush1.msra.mxu0 %v1607
    %1943 = vmatprep.subr.mxu0 %v1616
    %1944 = vmatpush1.msra.mxu0 %v1615
    %1945 = vmatprep.subr.mxu0 %v1624
    %1946 = vmatpush1.msra.mxu0 %v1623
    %1947 = vmatprep.subr.mxu0 %v1632
    %1948 = vmatpush1.msra.mxu0 %v1631
    %1949 = vmatprep.subr.mxu0 %v1640
    %1950 = vmatpush1.msra.mxu0 %v1639
    %1951 = vmatprep.subr.mxu0 %v1648
    %1952 = vmatpush1.msra.mxu0 %v1647
    %1953 = vmatprep.subr.mxu0 %v1656
    %1954 = vmatpush1.msra.mxu0 %v1655
    %1955 = vmatprep.subr.mxu0 %v1664
    %1956 = vmatpush1.msra.mxu0 %v1663
    %1957 = vmatprep.subr.mxu0 %v1672
    %1958 = vmatpush1.msra.mxu0 %v1671
    %1959 = vmatprep.subr.mxu0 %v1680
    %1960 = vmatpush1.msra.mxu0 %v1679
    %1961 = vmatprep.subr.mxu0 %v1688
    %1962 = vmatpush1.msra.mxu0 %v1687
    %1963 = vmatprep.subr.mxu0 %v1696
    %1964 = vmatpush1.msra.mxu0 %v1695
    %1965 = vmatprep.subr.mxu0 %v1704
    %1966 = vmatpush1.msra.mxu0 %v1703
    %1967 = vmatprep.subr.mxu0 %v1712
    %1968 = vmatpush1.msra.mxu0 %v1711
    %1969 = vmatprep.subr.mxu0 %v1720
    %1970 = vmatpush1.msra.mxu0 %v1719
    %1971 = vmatprep.subr.mxu0 %v1728
    %1972 = vmatpush1.msra.mxu0 %v1727
    %1973 = vmatprep.subr.mxu0 %v1736
    %1974 = vmatpush1.msra.mxu0 %v1735
    %1975 = vmatprep.subr.mxu0 %v1744
    %1976 = vmatpush1.msra.mxu0 %v1743
    %1977 = vmatprep.subr.mxu0 %v1752
    %1978 = vmatpush1.msra.mxu0 %v1751
    %1979 = vmatprep.subr.mxu0 %v1760
    %1980 = vmatpush1.msra.mxu0 %v1759
    %1981 = vmatprep.subr.mxu0 %v1768
    %1982 = vmatpush1.msra.mxu0 %v1767
    %1983 = vmatprep.subr.mxu0 %v1776
    %1984 = vmatpush1.msra.mxu0 %v1775
    %1985 = vmatprep.mubr.f32.mxu0 %v1522
    %1986 = vmatmul.mubr.f32.gmra.mrb[0].mxu0 %v1521
    %v1987 = vpop.f32.mrb[0].mxu0
    %v1988 = vadd.f32 0.0, %v1987
    %v1989 = vpop.f32.mrb[0].mxu0
    %v1990 = vadd.f32 0.0, %v1989
    %1991 = vdwg.mxu0
    %1992 = vmatprep.subr.mxu0 %v1530
    %1993 = vmatpush1.msra.mxu0 %v1529
    %1994 = vmatprep.subr.mxu0 %v1538
    %1995 = vmatpush1.msra.mxu0 %v1537
    %1996 = vmatprep.subr.mxu0 %v1546
    %1997 = vmatpush1.msra.mxu0 %v1545
    %1998 = vmatprep.subr.mxu0 %v1554
    %1999 = vmatpush1.msra.mxu0 %v1553
    %2000 = vmatprep.subr.mxu0 %v1562
    %2001 = vmatpush1.msra.mxu0 %v1561
    %2002 = vmatprep.subr.mxu0 %v1570
    %2003 = vmatpush1.msra.mxu0 %v1569
    %2004 = vmatprep.subr.mxu0 %v1578
    %2005 = vmatpush1.msra.mxu0 %v1577
    %2006 = vmatprep.subr.mxu0 %v1586
    %2007 = vmatpush1.msra.mxu0 %v1585
    %2008 = vmatprep.subr.mxu0 %v1594
    %2009 = vmatpush1.msra.mxu0 %v1593
    %2010 = vmatprep.subr.mxu0 %v1602
    %2011 = vmatpush1.msra.mxu0 %v1601
    %2012 = vmatprep.subr.mxu0 %v1610
    %2013 = vmatpush1.msra.mxu0 %v1609
    %2014 = vmatprep.subr.mxu0 %v1618
    %2015 = vmatpush1.msra.mxu0 %v1617
    %2016 = vmatprep.subr.mxu0 %v1626
    %2017 = vmatpush1.msra.mxu0 %v1625
    %2018 = vmatprep.subr.mxu0 %v1634
    %2019 = vmatpush1.msra.mxu0 %v1633
    %2020 = vmatprep.subr.mxu0 %v1642
    %2021 = vmatpush1.msra.mxu0 %v1641
    %2022 = vmatprep.subr.mxu0 %v1650
    %2023 = vmatpush1.msra.mxu0 %v1649
    %2024 = vmatprep.subr.mxu0 %v1658
    %2025 = vmatpush1.msra.mxu0 %v1657
    %2026 = vmatprep.subr.mxu0 %v1666
    %2027 = vmatpush1.msra.mxu0 %v1665
    %2028 = vmatprep.subr.mxu0 %v1674
    %2029 = vmatpush1.msra.mxu0 %v1673
    %2030 = vmatprep.subr.mxu0 %v1682
    %2031 = vmatpush1.msra.mxu0 %v1681
    %2032 = vmatprep.subr.mxu0 %v1690
    %2033 = vmatpush1.msra.mxu0 %v1689
    %2034 = vmatprep.subr.mxu0 %v1698
    %2035 = vmatpush1.msra.mxu0 %v1697
    %2036 = vmatprep.subr.mxu0 %v1706
    %2037 = vmatpush1.msra.mxu0 %v1705
    %2038 = vmatprep.subr.mxu0 %v1714
    %2039 = vmatpush1.msra.mxu0 %v1713
    %2040 = vmatprep.subr.mxu0 %v1722
    %2041 = vmatpush1.msra.mxu0 %v1721
    %2042 = vmatprep.subr.mxu0 %v1730
    %2043 = vmatpush1.msra.mxu0 %v1729
    %2044 = vmatprep.subr.mxu0 %v1738
    %2045 = vmatpush1.msra.mxu0 %v1737
    %2046 = vmatprep.subr.mxu0 %v1746
    %2047 = vmatpush1.msra.mxu0 %v1745
    %2048 = vmatprep.subr.mxu0 %v1754
    %2049 = vmatpush1.msra.mxu0 %v1753
    %2050 = vmatprep.subr.mxu0 %v1762
    %2051 = vmatpush1.msra.mxu0 %v1761
    %2052 = vmatprep.subr.mxu0 %v1770
    %2053 = vmatpush1.msra.mxu0 %v1769
    %2054 = vmatprep.subr.mxu0 %v1778
    %2055 = vmatpush1.msra.mxu0 %v1777
    %2056 = vmatprep.mubr.f32.mxu0 %v1522
    %2057 = vmatmul.mubr.f32.gmra.mrb[0].mxu0 %v1521
    %v2058 = vpop.f32.mrb[0].mxu0
    %v2059 = vadd.f32 0.0, %v2058
    %v2060 = vpop.f32.mrb[0].mxu0
    %v2061 = vadd.f32 0.0, %v2060
    %2062 = vdwg.mxu0
    %s2063 = smul.u32 1, 4
    %s2064 = smul.addr %s2063, 8
    %s2065 = scalar_lea.vmem [#allocation2], %s2064
    %v2066 = vld [vmem:[%s2065] sm:$0xff]
    %v2067 = vld [vmem:[%s2065 + $0x8] sm:$0xff]
    %v2068 = vld [vmem:[%s2065 + $0x10] sm:$0xff]
    %v2069 = vld [vmem:[%s2065 + $0x18] sm:$0xff]
    %v2070 = vadd.f32 %v2066, %v1846
    %v2071 = vadd.f32 %v2067, %v1848
    %v2072 = vadd.f32 %v2068, %v1917
    %v2073 = vadd.f32 %v2069, %v1919
    %v2074 = vld [vmem:[#allocation5] sm:$0xff]
    %v2075 = vxor.u32 %v2070, 2147483648
    %v2076 = vxor.u32 %v2071, 2147483648
    %v2077 = vxor.u32 %v2072, 2147483648
    %v2078 = vmul.f32 %v2075, 1.442695
    %v2079 = vpow.pop %v2078
    %v2080 = vmul.f32 %v2076, 1.442695
    %v2081 = vpow.pop %v2080
    %v2082 = vmul.f32 %v2077, 1.442695
    %v2083 = vpow.pop %v2082
    %v2084 = vadd.f32 %v2079, 1.0
    %v2085 = vadd.f32 %v2081, 1.0
    %v2086 = vadd.f32 %v2083, 1.0
    %v2087 = vrcp.pop %v2084
    %v2088 = vmul.f32 1.0, %v2087
    %v2089 = vrcp.pop %v2085
    %v2090 = vmul.f32 1.0, %v2089
    %v2091 = vrcp.pop %v2086
    %v2092 = vmul.f32 1.0, %v2091
    %v2093 = vtanh.pop %v2073
    %v2094 = vmul.f32 %v2090, %v2074
    %v2095 = vmul.f32 %v2088, %v2093
    %v2096 = vadd.f32 %v2094, %v2095
    %v2097 = vtanh.pop %v2096
    %v2098 = vmul.f32 %v2092, %v2097
    %s2099 = smul.u32 6, 4
    %s2100 = smul.addr %s2099, 8
    %s2101 = scalar_lea.vmem [#allocation3], %s2100
    %v2102 = vld [vmem:[%s2101] sm:$0xff]
    %v2103 = vld [vmem:[%s2101 + $0x8] sm:$0xff]
    %v2104 = vld [vmem:[%s2101 + $0x10] sm:$0xff]
    %v2105 = vld [vmem:[%s2101 + $0x18] sm:$0xff]
    %v2106 = vadd.f32 %v2102, %v1988
    %v2107 = vadd.f32 %v2103, %v1990
    %v2108 = vadd.f32 %v2104, %v2059
    %v2109 = vadd.f32 %v2105, %v2061
    %v2110 = vld [vmem:[#allocation5 + $0x8] sm:$0xff]
    %v2111 = vxor.u32 %v2106, 2147483648
    %v2112 = vxor.u32 %v2107, 2147483648
    %v2113 = vxor.u32 %v2108, 2147483648
    %v2114 = vmul.f32 %v2111, 1.442695
    %v2115 = vpow.pop %v2114
    %v2116 = vmul.f32 %v2112, 1.442695
    %v2117 = vpow.pop %v2116
    %v2118 = vmul.f32 %v2113, 1.442695
    %v2119 = vpow.pop %v2118
    %v2120 = vadd.f32 %v2115, 1.0
    %v2121 = vadd.f32 %v2117, 1.0
    %v2122 = vadd.f32 %v2119, 1.0
    %v2123 = vrcp.pop %v2120
    %v2124 = vmul.f32 1.0, %v2123
    %v2125 = vrcp.pop %v2121
    %v2126 = vmul.f32 1.0, %v2125
    %v2127 = vrcp.pop %v2122
    %v2128 = vmul.f32 1.0, %v2127
    %v2129 = vtanh.pop %v2109
    %v2130 = vmul.f32 %v2126, %v2110
    %v2131 = vmul.f32 %v2124, %v2129
    %v2132 = vadd.f32 %v2130, %v2131
    %v2133 = vtanh.pop %v2132
    %v2134 = vmul.f32 %v2128, %v2133
    %2135 = vst [vmem:[#allocation4] sm:$0xff] %v2098
    %2136 = vst [vmem:[#allocation4 + $0x8] sm:$0xff] %v2134
    %2137 = vst [vmem:[#allocation5] sm:$0xff] %v2096
    %2138 = vst [vmem:[#allocation5 + $0x8] sm:$0xff] %v2132
    %s2139 = scalar_lea.vmem [#allocation15], 8
    %2140 = vst [vmem:[%s2139] sm:$0xff] %v2098
    %s2141 = scalar_lea.vmem [#allocation16], 48
    %2142 = vst [vmem:[%s2141] sm:$0xff] %v2134
    %v2143 = vld [vmem:[#allocation4] sm:$0xff]
    %v2144 = vld [vmem:[#allocation4 + $0x8] sm:$0xff]
    %v2145 = vld [vmem:[#allocation14] sm:$0xff]
    %v2146 = vld [vmem:[#allocation14 + $0x8] sm:$0xff]
    %v2147 = vld [vmem:[#allocation14 + $0x10] sm:$0xff]
    %v2148 = vld [vmem:[#allocation14 + $0x18] sm:$0xff]
    %v2149 = vld [vmem:[#allocation14 + $0x20] sm:$0xff]
    %v2150 = vld [vmem:[#allocation14 + $0x28] sm:$0xff]
    %v2151 = vld [vmem:[#allocation14 + $0x30] sm:$0xff]
    %v2152 = vld [vmem:[#allocation14 + $0x38] sm:$0xff]
    %v2153 = vld [vmem:[#allocation14 + $0x40] sm:$0xff]
    %v2154 = vld [vmem:[#allocation14 + $0x48] sm:$0xff]
    %v2155 = vld [vmem:[#allocation14 + $0x50] sm:$0xff]
    %v2156 = vld [vmem:[#allocation14 + $0x58] sm:$0xff]
    %v2157 = vld [vmem:[#allocation14 + $0x60] sm:$0xff]
    %v2158 = vld [vmem:[#allocation14 + $0x68] sm:$0xff]
    %v2159 = vld [vmem:[#allocation14 + $0x70] sm:$0xff]
    %v2160 = vld [vmem:[#allocation14 + $0x78] sm:$0xff]
    %v2161 = vld [vmem:[#allocation14 + $0x80] sm:$0xff]
    %v2162 = vld [vmem:[#allocation14 + $0x88] sm:$0xff]
    %v2163 = vld [vmem:[#allocation14 + $0x90] sm:$0xff]
    %v2164 = vld [vmem:[#allocation14 + $0x98] sm:$0xff]
    %v2165 = vld [vmem:[#allocation14 + $0xa0] sm:$0xff]
    %v2166 = vld [vmem:[#allocation14 + $0xa8] sm:$0xff]
    %v2167 = vld [vmem:[#allocation14 + $0xb0] sm:$0xff]
    %v2168 = vld [vmem:[#allocation14 + $0xb8] sm:$0xff]
    %v2169 = vld [vmem:[#allocation14 + $0xc0] sm:$0xff]
    %v2170 = vld [vmem:[#allocation14 + $0xc8] sm:$0xff]
    %v2171 = vld [vmem:[#allocation14 + $0xd0] sm:$0xff]
    %v2172 = vld [vmem:[#allocation14 + $0xd8] sm:$0xff]
    %v2173 = vld [vmem:[#allocation14 + $0xe0] sm:$0xff]
    %v2174 = vld [vmem:[#allocation14 + $0xe8] sm:$0xff]
    %v2175 = vld [vmem:[#allocation14 + $0xf0] sm:$0xff]
    %v2176 = vld [vmem:[#allocation14 + $0xf8] sm:$0xff]
    %v2177 = vld [vmem:[#allocation14 + $0x100] sm:$0xff]
    %v2178 = vld [vmem:[#allocation14 + $0x108] sm:$0xff]
    %v2179 = vld [vmem:[#allocation14 + $0x110] sm:$0xff]
    %v2180 = vld [vmem:[#allocation14 + $0x118] sm:$0xff]
    %v2181 = vld [vmem:[#allocation14 + $0x120] sm:$0xff]
    %v2182 = vld [vmem:[#allocation14 + $0x128] sm:$0xff]
    %v2183 = vld [vmem:[#allocation14 + $0x130] sm:$0xff]
    %v2184 = vld [vmem:[#allocation14 + $0x138] sm:$0xff]
    %v2185 = vld [vmem:[#allocation14 + $0x140] sm:$0xff]
    %v2186 = vld [vmem:[#allocation14 + $0x148] sm:$0xff]
    %v2187 = vld [vmem:[#allocation14 + $0x150] sm:$0xff]
    %v2188 = vld [vmem:[#allocation14 + $0x158] sm:$0xff]
    %v2189 = vld [vmem:[#allocation14 + $0x160] sm:$0xff]
    %v2190 = vld [vmem:[#allocation14 + $0x168] sm:$0xff]
    %v2191 = vld [vmem:[#allocation14 + $0x170] sm:$0xff]
    %v2192 = vld [vmem:[#allocation14 + $0x178] sm:$0xff]
    %v2193 = vld [vmem:[#allocation14 + $0x180] sm:$0xff]
    %v2194 = vld [vmem:[#allocation14 + $0x188] sm:$0xff]
    %v2195 = vld [vmem:[#allocation14 + $0x190] sm:$0xff]
    %v2196 = vld [vmem:[#allocation14 + $0x198] sm:$0xff]
    %v2197 = vld [vmem:[#allocation14 + $0x1a0] sm:$0xff]
    %v2198 = vld [vmem:[#allocation14 + $0x1a8] sm:$0xff]
    %v2199 = vld [vmem:[#allocation14 + $0x1b0] sm:$0xff]
    %v2200 = vld [vmem:[#allocation14 + $0x1b8] sm:$0xff]
    %v2201 = vld [vmem:[#allocation14 + $0x1c0] sm:$0xff]
    %v2202 = vld [vmem:[#allocation14 + $0x1c8] sm:$0xff]
    %v2203 = vld [vmem:[#allocation14 + $0x1d0] sm:$0xff]
    %v2204 = vld [vmem:[#allocation14 + $0x1d8] sm:$0xff]
    %v2205 = vld [vmem:[#allocation14 + $0x1e0] sm:$0xff]
    %v2206 = vld [vmem:[#allocation14 + $0x1e8] sm:$0xff]
    %v2207 = vld [vmem:[#allocation14 + $0x1f0] sm:$0xff]
    %v2208 = vld [vmem:[#allocation14 + $0x1f8] sm:$0xff]
    %v2209 = vld [vmem:[#allocation14 + $0x200] sm:$0xff]
    %v2210 = vld [vmem:[#allocation14 + $0x208] sm:$0xff]
    %v2211 = vld [vmem:[#allocation14 + $0x210] sm:$0xff]
    %v2212 = vld [vmem:[#allocation14 + $0x218] sm:$0xff]
    %v2213 = vld [vmem:[#allocation14 + $0x220] sm:$0xff]
    %v2214 = vld [vmem:[#allocation14 + $0x228] sm:$0xff]
    %v2215 = vld [vmem:[#allocation14 + $0x230] sm:$0xff]
    %v2216 = vld [vmem:[#allocation14 + $0x238] sm:$0xff]
    %v2217 = vld [vmem:[#allocation14 + $0x240] sm:$0xff]
    %v2218 = vld [vmem:[#allocation14 + $0x248] sm:$0xff]
    %v2219 = vld [vmem:[#allocation14 + $0x250] sm:$0xff]
    %v2220 = vld [vmem:[#allocation14 + $0x258] sm:$0xff]
    %v2221 = vld [vmem:[#allocation14 + $0x260] sm:$0xff]
    %v2222 = vld [vmem:[#allocation14 + $0x268] sm:$0xff]
    %v2223 = vld [vmem:[#allocation14 + $0x270] sm:$0xff]
    %v2224 = vld [vmem:[#allocation14 + $0x278] sm:$0xff]
    %v2225 = vld [vmem:[#allocation14 + $0x280] sm:$0xff]
    %v2226 = vld [vmem:[#allocation14 + $0x288] sm:$0xff]
    %v2227 = vld [vmem:[#allocation14 + $0x290] sm:$0xff]
    %v2228 = vld [vmem:[#allocation14 + $0x298] sm:$0xff]
    %v2229 = vld [vmem:[#allocation14 + $0x2a0] sm:$0xff]
    %v2230 = vld [vmem:[#allocation14 + $0x2a8] sm:$0xff]
    %v2231 = vld [vmem:[#allocation14 + $0x2b0] sm:$0xff]
    %v2232 = vld [vmem:[#allocation14 + $0x2b8] sm:$0xff]
    %v2233 = vld [vmem:[#allocation14 + $0x2c0] sm:$0xff]
    %v2234 = vld [vmem:[#allocation14 + $0x2c8] sm:$0xff]
    %v2235 = vld [vmem:[#allocation14 + $0x2d0] sm:$0xff]
    %v2236 = vld [vmem:[#allocation14 + $0x2d8] sm:$0xff]
    %v2237 = vld [vmem:[#allocation14 + $0x2e0] sm:$0xff]
    %v2238 = vld [vmem:[#allocation14 + $0x2e8] sm:$0xff]
    %v2239 = vld [vmem:[#allocation14 + $0x2f0] sm:$0xff]
    %v2240 = vld [vmem:[#allocation14 + $0x2f8] sm:$0xff]
    %v2241 = vld [vmem:[#allocation14 + $0x300] sm:$0xff]
    %v2242 = vld [vmem:[#allocation14 + $0x308] sm:$0xff]
    %v2243 = vld [vmem:[#allocation14 + $0x310] sm:$0xff]
    %v2244 = vld [vmem:[#allocation14 + $0x318] sm:$0xff]
    %v2245 = vld [vmem:[#allocation14 + $0x320] sm:$0xff]
    %v2246 = vld [vmem:[#allocation14 + $0x328] sm:$0xff]
    %v2247 = vld [vmem:[#allocation14 + $0x330] sm:$0xff]
    %v2248 = vld [vmem:[#allocation14 + $0x338] sm:$0xff]
    %v2249 = vld [vmem:[#allocation14 + $0x340] sm:$0xff]
    %v2250 = vld [vmem:[#allocation14 + $0x348] sm:$0xff]
    %v2251 = vld [vmem:[#allocation14 + $0x350] sm:$0xff]
    %v2252 = vld [vmem:[#allocation14 + $0x358] sm:$0xff]
    %v2253 = vld [vmem:[#allocation14 + $0x360] sm:$0xff]
    %v2254 = vld [vmem:[#allocation14 + $0x368] sm:$0xff]
    %v2255 = vld [vmem:[#allocation14 + $0x370] sm:$0xff]
    %v2256 = vld [vmem:[#allocation14 + $0x378] sm:$0xff]
    %v2257 = vld [vmem:[#allocation14 + $0x380] sm:$0xff]
    %v2258 = vld [vmem:[#allocation14 + $0x388] sm:$0xff]
    %v2259 = vld [vmem:[#allocation14 + $0x390] sm:$0xff]
    %v2260 = vld [vmem:[#allocation14 + $0x398] sm:$0xff]
    %v2261 = vld [vmem:[#allocation14 + $0x3a0] sm:$0xff]
    %v2262 = vld [vmem:[#allocation14 + $0x3a8] sm:$0xff]
    %v2263 = vld [vmem:[#allocation14 + $0x3b0] sm:$0xff]
    %v2264 = vld [vmem:[#allocation14 + $0x3b8] sm:$0xff]
    %v2265 = vld [vmem:[#allocation14 + $0x3c0] sm:$0xff]
    %v2266 = vld [vmem:[#allocation14 + $0x3c8] sm:$0xff]
    %v2267 = vld [vmem:[#allocation14 + $0x3d0] sm:$0xff]
    %v2268 = vld [vmem:[#allocation14 + $0x3d8] sm:$0xff]
    %v2269 = vld [vmem:[#allocation14 + $0x3e0] sm:$0xff]
    %v2270 = vld [vmem:[#allocation14 + $0x3e8] sm:$0xff]
    %v2271 = vld [vmem:[#allocation14 + $0x3f0] sm:$0xff]
    %v2272 = vld [vmem:[#allocation14 + $0x3f8] sm:$0xff]
    %v2273 = vld [vmem:[#allocation14 + $0x400] sm:$0xff]
    %v2274 = vld [vmem:[#allocation14 + $0x408] sm:$0xff]
    %v2275 = vld [vmem:[#allocation14 + $0x410] sm:$0xff]
    %v2276 = vld [vmem:[#allocation14 + $0x418] sm:$0xff]
    %v2277 = vld [vmem:[#allocation14 + $0x420] sm:$0xff]
    %v2278 = vld [vmem:[#allocation14 + $0x428] sm:$0xff]
    %v2279 = vld [vmem:[#allocation14 + $0x430] sm:$0xff]
    %v2280 = vld [vmem:[#allocation14 + $0x438] sm:$0xff]
    %v2281 = vld [vmem:[#allocation14 + $0x440] sm:$0xff]
    %v2282 = vld [vmem:[#allocation14 + $0x448] sm:$0xff]
    %v2283 = vld [vmem:[#allocation14 + $0x450] sm:$0xff]
    %v2284 = vld [vmem:[#allocation14 + $0x458] sm:$0xff]
    %v2285 = vld [vmem:[#allocation14 + $0x460] sm:$0xff]
    %v2286 = vld [vmem:[#allocation14 + $0x468] sm:$0xff]
    %v2287 = vld [vmem:[#allocation14 + $0x470] sm:$0xff]
    %v2288 = vld [vmem:[#allocation14 + $0x478] sm:$0xff]
    %v2289 = vld [vmem:[#allocation14 + $0x480] sm:$0xff]
    %v2290 = vld [vmem:[#allocation14 + $0x488] sm:$0xff]
    %v2291 = vld [vmem:[#allocation14 + $0x490] sm:$0xff]
    %v2292 = vld [vmem:[#allocation14 + $0x498] sm:$0xff]
    %v2293 = vld [vmem:[#allocation14 + $0x4a0] sm:$0xff]
    %v2294 = vld [vmem:[#allocation14 + $0x4a8] sm:$0xff]
    %v2295 = vld [vmem:[#allocation14 + $0x4b0] sm:$0xff]
    %v2296 = vld [vmem:[#allocation14 + $0x4b8] sm:$0xff]
    %v2297 = vld [vmem:[#allocation14 + $0x4c0] sm:$0xff]
    %v2298 = vld [vmem:[#allocation14 + $0x4c8] sm:$0xff]
    %v2299 = vld [vmem:[#allocation14 + $0x4d0] sm:$0xff]
    %v2300 = vld [vmem:[#allocation14 + $0x4d8] sm:$0xff]
    %v2301 = vld [vmem:[#allocation14 + $0x4e0] sm:$0xff]
    %v2302 = vld [vmem:[#allocation14 + $0x4e8] sm:$0xff]
    %v2303 = vld [vmem:[#allocation14 + $0x4f0] sm:$0xff]
    %v2304 = vld [vmem:[#allocation14 + $0x4f8] sm:$0xff]
    %v2305 = vld [vmem:[#allocation14 + $0x500] sm:$0xff]
    %v2306 = vld [vmem:[#allocation14 + $0x508] sm:$0xff]
    %v2307 = vld [vmem:[#allocation14 + $0x510] sm:$0xff]
    %v2308 = vld [vmem:[#allocation14 + $0x518] sm:$0xff]
    %v2309 = vld [vmem:[#allocation14 + $0x520] sm:$0xff]
    %v2310 = vld [vmem:[#allocation14 + $0x528] sm:$0xff]
    %v2311 = vld [vmem:[#allocation14 + $0x530] sm:$0xff]
    %v2312 = vld [vmem:[#allocation14 + $0x538] sm:$0xff]
    %v2313 = vld [vmem:[#allocation14 + $0x540] sm:$0xff]
    %v2314 = vld [vmem:[#allocation14 + $0x548] sm:$0xff]
    %v2315 = vld [vmem:[#allocation14 + $0x550] sm:$0xff]
    %v2316 = vld [vmem:[#allocation14 + $0x558] sm:$0xff]
    %v2317 = vld [vmem:[#allocation14 + $0x560] sm:$0xff]
    %v2318 = vld [vmem:[#allocation14 + $0x568] sm:$0xff]
    %v2319 = vld [vmem:[#allocation14 + $0x570] sm:$0xff]
    %v2320 = vld [vmem:[#allocation14 + $0x578] sm:$0xff]
    %v2321 = vld [vmem:[#allocation14 + $0x580] sm:$0xff]
    %v2322 = vld [vmem:[#allocation14 + $0x588] sm:$0xff]
    %v2323 = vld [vmem:[#allocation14 + $0x590] sm:$0xff]
    %v2324 = vld [vmem:[#allocation14 + $0x598] sm:$0xff]
    %v2325 = vld [vmem:[#allocation14 + $0x5a0] sm:$0xff]
    %v2326 = vld [vmem:[#allocation14 + $0x5a8] sm:$0xff]
    %v2327 = vld [vmem:[#allocation14 + $0x5b0] sm:$0xff]
    %v2328 = vld [vmem:[#allocation14 + $0x5b8] sm:$0xff]
    %v2329 = vld [vmem:[#allocation14 + $0x5c0] sm:$0xff]
    %v2330 = vld [vmem:[#allocation14 + $0x5c8] sm:$0xff]
    %v2331 = vld [vmem:[#allocation14 + $0x5d0] sm:$0xff]
    %v2332 = vld [vmem:[#allocation14 + $0x5d8] sm:$0xff]
    %v2333 = vld [vmem:[#allocation14 + $0x5e0] sm:$0xff]
    %v2334 = vld [vmem:[#allocation14 + $0x5e8] sm:$0xff]
    %v2335 = vld [vmem:[#allocation14 + $0x5f0] sm:$0xff]
    %v2336 = vld [vmem:[#allocation14 + $0x5f8] sm:$0xff]
    %v2337 = vld [vmem:[#allocation14 + $0x600] sm:$0xff]
    %v2338 = vld [vmem:[#allocation14 + $0x608] sm:$0xff]
    %v2339 = vld [vmem:[#allocation14 + $0x610] sm:$0xff]
    %v2340 = vld [vmem:[#allocation14 + $0x618] sm:$0xff]
    %v2341 = vld [vmem:[#allocation14 + $0x620] sm:$0xff]
    %v2342 = vld [vmem:[#allocation14 + $0x628] sm:$0xff]
    %v2343 = vld [vmem:[#allocation14 + $0x630] sm:$0xff]
    %v2344 = vld [vmem:[#allocation14 + $0x638] sm:$0xff]
    %v2345 = vld [vmem:[#allocation14 + $0x640] sm:$0xff]
    %v2346 = vld [vmem:[#allocation14 + $0x648] sm:$0xff]
    %v2347 = vld [vmem:[#allocation14 + $0x650] sm:$0xff]
    %v2348 = vld [vmem:[#allocation14 + $0x658] sm:$0xff]
    %v2349 = vld [vmem:[#allocation14 + $0x660] sm:$0xff]
    %v2350 = vld [vmem:[#allocation14 + $0x668] sm:$0xff]
    %v2351 = vld [vmem:[#allocation14 + $0x670] sm:$0xff]
    %v2352 = vld [vmem:[#allocation14 + $0x678] sm:$0xff]
    %v2353 = vld [vmem:[#allocation14 + $0x680] sm:$0xff]
    %v2354 = vld [vmem:[#allocation14 + $0x688] sm:$0xff]
    %v2355 = vld [vmem:[#allocation14 + $0x690] sm:$0xff]
    %v2356 = vld [vmem:[#allocation14 + $0x698] sm:$0xff]
    %v2357 = vld [vmem:[#allocation14 + $0x6a0] sm:$0xff]
    %v2358 = vld [vmem:[#allocation14 + $0x6a8] sm:$0xff]
    %v2359 = vld [vmem:[#allocation14 + $0x6b0] sm:$0xff]
    %v2360 = vld [vmem:[#allocation14 + $0x6b8] sm:$0xff]
    %v2361 = vld [vmem:[#allocation14 + $0x6c0] sm:$0xff]
    %v2362 = vld [vmem:[#allocation14 + $0x6c8] sm:$0xff]
    %v2363 = vld [vmem:[#allocation14 + $0x6d0] sm:$0xff]
    %v2364 = vld [vmem:[#allocation14 + $0x6d8] sm:$0xff]
    %v2365 = vld [vmem:[#allocation14 + $0x6e0] sm:$0xff]
    %v2366 = vld [vmem:[#allocation14 + $0x6e8] sm:$0xff]
    %v2367 = vld [vmem:[#allocation14 + $0x6f0] sm:$0xff]
    %v2368 = vld [vmem:[#allocation14 + $0x6f8] sm:$0xff]
    %v2369 = vld [vmem:[#allocation14 + $0x700] sm:$0xff]
    %v2370 = vld [vmem:[#allocation14 + $0x708] sm:$0xff]
    %v2371 = vld [vmem:[#allocation14 + $0x710] sm:$0xff]
    %v2372 = vld [vmem:[#allocation14 + $0x718] sm:$0xff]
    %v2373 = vld [vmem:[#allocation14 + $0x720] sm:$0xff]
    %v2374 = vld [vmem:[#allocation14 + $0x728] sm:$0xff]
    %v2375 = vld [vmem:[#allocation14 + $0x730] sm:$0xff]
    %v2376 = vld [vmem:[#allocation14 + $0x738] sm:$0xff]
    %v2377 = vld [vmem:[#allocation14 + $0x740] sm:$0xff]
    %v2378 = vld [vmem:[#allocation14 + $0x748] sm:$0xff]
    %v2379 = vld [vmem:[#allocation14 + $0x750] sm:$0xff]
    %v2380 = vld [vmem:[#allocation14 + $0x758] sm:$0xff]
    %v2381 = vld [vmem:[#allocation14 + $0x760] sm:$0xff]
    %v2382 = vld [vmem:[#allocation14 + $0x768] sm:$0xff]
    %v2383 = vld [vmem:[#allocation14 + $0x770] sm:$0xff]
    %v2384 = vld [vmem:[#allocation14 + $0x778] sm:$0xff]
    %v2385 = vld [vmem:[#allocation14 + $0x780] sm:$0xff]
    %v2386 = vld [vmem:[#allocation14 + $0x788] sm:$0xff]
    %v2387 = vld [vmem:[#allocation14 + $0x790] sm:$0xff]
    %v2388 = vld [vmem:[#allocation14 + $0x798] sm:$0xff]
    %v2389 = vld [vmem:[#allocation14 + $0x7a0] sm:$0xff]
    %v2390 = vld [vmem:[#allocation14 + $0x7a8] sm:$0xff]
    %v2391 = vld [vmem:[#allocation14 + $0x7b0] sm:$0xff]
    %v2392 = vld [vmem:[#allocation14 + $0x7b8] sm:$0xff]
    %v2393 = vld [vmem:[#allocation14 + $0x7c0] sm:$0xff]
    %v2394 = vld [vmem:[#allocation14 + $0x7c8] sm:$0xff]
    %v2395 = vld [vmem:[#allocation14 + $0x7d0] sm:$0xff]
    %v2396 = vld [vmem:[#allocation14 + $0x7d8] sm:$0xff]
    %v2397 = vld [vmem:[#allocation14 + $0x7e0] sm:$0xff]
    %v2398 = vld [vmem:[#allocation14 + $0x7e8] sm:$0xff]
    %v2399 = vld [vmem:[#allocation14 + $0x7f0] sm:$0xff]
    %v2400 = vld [vmem:[#allocation14 + $0x7f8] sm:$0xff]
    %2401 = vmatprep.subr.mxu0 %v2146
    %2402 = vmatpush1.msra.mxu0 %v2145
    %2403 = vmatprep.subr.mxu0 %v2154
    %2404 = vmatpush1.msra.mxu0 %v2153
    %2405 = vmatprep.subr.mxu0 %v2162
    %2406 = vmatpush1.msra.mxu0 %v2161
    %2407 = vmatprep.subr.mxu0 %v2170
    %2408 = vmatpush1.msra.mxu0 %v2169
    %2409 = vmatprep.subr.mxu0 %v2178
    %2410 = vmatpush1.msra.mxu0 %v2177
    %2411 = vmatprep.subr.mxu0 %v2186
    %2412 = vmatpush1.msra.mxu0 %v2185
    %2413 = vmatprep.subr.mxu0 %v2194
    %2414 = vmatpush1.msra.mxu0 %v2193
    %2415 = vmatprep.subr.mxu0 %v2202
    %2416 = vmatpush1.msra.mxu0 %v2201
    %2417 = vmatprep.subr.mxu0 %v2210
    %2418 = vmatpush1.msra.mxu0 %v2209
    %2419 = vmatprep.subr.mxu0 %v2218
    %2420 = vmatpush1.msra.mxu0 %v2217
    %2421 = vmatprep.subr.mxu0 %v2226
    %2422 = vmatpush1.msra.mxu0 %v2225
    %2423 = vmatprep.subr.mxu0 %v2234
    %2424 = vmatpush1.msra.mxu0 %v2233
    %2425 = vmatprep.subr.mxu0 %v2242
    %2426 = vmatpush1.msra.mxu0 %v2241
    %2427 = vmatprep.subr.mxu0 %v2250
    %2428 = vmatpush1.msra.mxu0 %v2249
    %2429 = vmatprep.subr.mxu0 %v2258
    %2430 = vmatpush1.msra.mxu0 %v2257
    %2431 = vmatprep.subr.mxu0 %v2266
    %2432 = vmatpush1.msra.mxu0 %v2265
    %2433 = vmatprep.subr.mxu0 %v2274
    %2434 = vmatpush1.msra.mxu0 %v2273
    %2435 = vmatprep.subr.mxu0 %v2282
    %2436 = vmatpush1.msra.mxu0 %v2281
    %2437 = vmatprep.subr.mxu0 %v2290
    %2438 = vmatpush1.msra.mxu0 %v2289
    %2439 = vmatprep.subr.mxu0 %v2298
    %2440 = vmatpush1.msra.mxu0 %v2297
    %2441 = vmatprep.subr.mxu0 %v2306
    %2442 = vmatpush1.msra.mxu0 %v2305
    %2443 = vmatprep.subr.mxu0 %v2314
    %2444 = vmatpush1.msra.mxu0 %v2313
    %2445 = vmatprep.subr.mxu0 %v2322
    %2446 = vmatpush1.msra.mxu0 %v2321
    %2447 = vmatprep.subr.mxu0 %v2330
    %2448 = vmatpush1.msra.mxu0 %v2329
    %2449 = vmatprep.subr.mxu0 %v2338
    %2450 = vmatpush1.msra.mxu0 %v2337
    %2451 = vmatprep.subr.mxu0 %v2346
    %2452 = vmatpush1.msra.mxu0 %v2345
    %2453 = vmatprep.subr.mxu0 %v2354
    %2454 = vmatpush1.msra.mxu0 %v2353
    %2455 = vmatprep.subr.mxu0 %v2362
    %2456 = vmatpush1.msra.mxu0 %v2361
    %2457 = vmatprep.subr.mxu0 %v2370
    %2458 = vmatpush1.msra.mxu0 %v2369
    %2459 = vmatprep.subr.mxu0 %v2378
    %2460 = vmatpush1.msra.mxu0 %v2377
    %2461 = vmatprep.subr.mxu0 %v2386
    %2462 = vmatpush1.msra.mxu0 %v2385
    %2463 = vmatprep.subr.mxu0 %v2394
    %2464 = vmatpush1.msra.mxu0 %v2393
    %2465 = vmatprep.mubr.f32.mxu0 %v2144
    %2466 = vmatmul.mubr.f32.gmra.mrb[0].mxu0 %v2143
    %v2467 = vpop.f32.mrb[0].mxu0
    %v2468 = vadd.f32 0.0, %v2467
    %v2469 = vpop.f32.mrb[0].mxu0
    %v2470 = vadd.f32 0.0, %v2469
    %2471 = vdwg.mxu0
    %2472 = vmatprep.subr.mxu0 %v2148
    %2473 = vmatpush1.msra.mxu0 %v2147
    %2474 = vmatprep.subr.mxu0 %v2156
    %2475 = vmatpush1.msra.mxu0 %v2155
    %2476 = vmatprep.subr.mxu0 %v2164
    %2477 = vmatpush1.msra.mxu0 %v2163
    %2478 = vmatprep.subr.mxu0 %v2172
    %2479 = vmatpush1.msra.mxu0 %v2171
    %2480 = vmatprep.subr.mxu0 %v2180
    %2481 = vmatpush1.msra.mxu0 %v2179
    %2482 = vmatprep.subr.mxu0 %v2188
    %2483 = vmatpush1.msra.mxu0 %v2187
    %2484 = vmatprep.subr.mxu0 %v2196
    %2485 = vmatpush1.msra.mxu0 %v2195
    %2486 = vmatprep.subr.mxu0 %v2204
    %2487 = vmatpush1.msra.mxu0 %v2203
    %2488 = vmatprep.subr.mxu0 %v2212
    %2489 = vmatpush1.msra.mxu0 %v2211
    %2490 = vmatprep.subr.mxu0 %v2220
    %2491 = vmatpush1.msra.mxu0 %v2219
    %2492 = vmatprep.subr.mxu0 %v2228
    %2493 = vmatpush1.msra.mxu0 %v2227
    %2494 = vmatprep.subr.mxu0 %v2236
    %2495 = vmatpush1.msra.mxu0 %v2235
    %2496 = vmatprep.subr.mxu0 %v2244
    %2497 = vmatpush1.msra.mxu0 %v2243
    %2498 = vmatprep.subr.mxu0 %v2252
    %2499 = vmatpush1.msra.mxu0 %v2251
    %2500 = vmatprep.subr.mxu0 %v2260
    %2501 = vmatpush1.msra.mxu0 %v2259
    %2502 = vmatprep.subr.mxu0 %v2268
    %2503 = vmatpush1.msra.mxu0 %v2267
    %2504 = vmatprep.subr.mxu0 %v2276
    %2505 = vmatpush1.msra.mxu0 %v2275
    %2506 = vmatprep.subr.mxu0 %v2284
    %2507 = vmatpush1.msra.mxu0 %v2283
    %2508 = vmatprep.subr.mxu0 %v2292
    %2509 = vmatpush1.msra.mxu0 %v2291
    %2510 = vmatprep.subr.mxu0 %v2300
    %2511 = vmatpush1.msra.mxu0 %v2299
    %2512 = vmatprep.subr.mxu0 %v2308
    %2513 = vmatpush1.msra.mxu0 %v2307
    %2514 = vmatprep.subr.mxu0 %v2316
    %2515 = vmatpush1.msra.mxu0 %v2315
    %2516 = vmatprep.subr.mxu0 %v2324
    %2517 = vmatpush1.msra.mxu0 %v2323
    %2518 = vmatprep.subr.mxu0 %v2332
    %2519 = vmatpush1.msra.mxu0 %v2331
    %2520 = vmatprep.subr.mxu0 %v2340
    %2521 = vmatpush1.msra.mxu0 %v2339
    %2522 = vmatprep.subr.mxu0 %v2348
    %2523 = vmatpush1.msra.mxu0 %v2347
    %2524 = vmatprep.subr.mxu0 %v2356
    %2525 = vmatpush1.msra.mxu0 %v2355
    %2526 = vmatprep.subr.mxu0 %v2364
    %2527 = vmatpush1.msra.mxu0 %v2363
    %2528 = vmatprep.subr.mxu0 %v2372
    %2529 = vmatpush1.msra.mxu0 %v2371
    %2530 = vmatprep.subr.mxu0 %v2380
    %2531 = vmatpush1.msra.mxu0 %v2379
    %2532 = vmatprep.subr.mxu0 %v2388
    %2533 = vmatpush1.msra.mxu0 %v2387
    %2534 = vmatprep.subr.mxu0 %v2396
    %2535 = vmatpush1.msra.mxu0 %v2395
    %2536 = vmatprep.mubr.f32.mxu0 %v2144
    %2537 = vmatmul.mubr.f32.gmra.mrb[0].mxu0 %v2143
    %v2538 = vpop.f32.mrb[0].mxu0
    %v2539 = vadd.f32 0.0, %v2538
    %v2540 = vpop.f32.mrb[0].mxu0
    %v2541 = vadd.f32 0.0, %v2540
    %2542 = vdwg.mxu0
    %2543 = vmatprep.subr.mxu0 %v2150
    %2544 = vmatpush1.msra.mxu0 %v2149
    %2545 = vmatprep.subr.mxu0 %v2158
    %2546 = vmatpush1.msra.mxu0 %v2157
    %2547 = vmatprep.subr.mxu0 %v2166
    %2548 = vmatpush1.msra.mxu0 %v2165
    %2549 = vmatprep.subr.mxu0 %v2174
    %2550 = vmatpush1.msra.mxu0 %v2173
    %2551 = vmatprep.subr.mxu0 %v2182
    %2552 = vmatpush1.msra.mxu0 %v2181
    %2553 = vmatprep.subr.mxu0 %v2190
    %2554 = vmatpush1.msra.mxu0 %v2189
    %2555 = vmatprep.subr.mxu0 %v2198
    %2556 = vmatpush1.msra.mxu0 %v2197
    %2557 = vmatprep.subr.mxu0 %v2206
    %2558 = vmatpush1.msra.mxu0 %v2205
    %2559 = vmatprep.subr.mxu0 %v2214
    %2560 = vmatpush1.msra.mxu0 %v2213
    %2561 = vmatprep.subr.mxu0 %v2222
    %2562 = vmatpush1.msra.mxu0 %v2221
    %2563 = vmatprep.subr.mxu0 %v2230
    %2564 = vmatpush1.msra.mxu0 %v2229
    %2565 = vmatprep.subr.mxu0 %v2238
    %2566 = vmatpush1.msra.mxu0 %v2237
    %2567 = vmatprep.subr.mxu0 %v2246
    %2568 = vmatpush1.msra.mxu0 %v2245
    %2569 = vmatprep.subr.mxu0 %v2254
    %2570 = vmatpush1.msra.mxu0 %v2253
    %2571 = vmatprep.subr.mxu0 %v2262
    %2572 = vmatpush1.msra.mxu0 %v2261
    %2573 = vmatprep.subr.mxu0 %v2270
    %2574 = vmatpush1.msra.mxu0 %v2269
    %2575 = vmatprep.subr.mxu0 %v2278
    %2576 = vmatpush1.msra.mxu0 %v2277
    %2577 = vmatprep.subr.mxu0 %v2286
    %2578 = vmatpush1.msra.mxu0 %v2285
    %2579 = vmatprep.subr.mxu0 %v2294
    %2580 = vmatpush1.msra.mxu0 %v2293
    %2581 = vmatprep.subr.mxu0 %v2302
    %2582 = vmatpush1.msra.mxu0 %v2301
    %2583 = vmatprep.subr.mxu0 %v2310
    %2584 = vmatpush1.msra.mxu0 %v2309
    %2585 = vmatprep.subr.mxu0 %v2318
    %2586 = vmatpush1.msra.mxu0 %v2317
    %2587 = vmatprep.subr.mxu0 %v2326
    %2588 = vmatpush1.msra.mxu0 %v2325
    %2589 = vmatprep.subr.mxu0 %v2334
    %2590 = vmatpush1.msra.mxu0 %v2333
    %2591 = vmatprep.subr.mxu0 %v2342
    %2592 = vmatpush1.msra.mxu0 %v2341
    %2593 = vmatprep.subr.mxu0 %v2350
    %2594 = vmatpush1.msra.mxu0 %v2349
    %2595 = vmatprep.subr.mxu0 %v2358
    %2596 = vmatpush1.msra.mxu0 %v2357
    %2597 = vmatprep.subr.mxu0 %v2366
    %2598 = vmatpush1.msra.mxu0 %v2365
    %2599 = vmatprep.subr.mxu0 %v2374
    %2600 = vmatpush1.msra.mxu0 %v2373
    %2601 = vmatprep.subr.mxu0 %v2382
    %2602 = vmatpush1.msra.mxu0 %v2381
    %2603 = vmatprep.subr.mxu0 %v2390
    %2604 = vmatpush1.msra.mxu0 %v2389
    %2605 = vmatprep.subr.mxu0 %v2398
    %2606 = vmatpush1.msra.mxu0 %v2397
    %2607 = vmatprep.mubr.f32.mxu0 %v2144
    %2608 = vmatmul.mubr.f32.gmra.mrb[0].mxu0 %v2143
    %v2609 = vpop.f32.mrb[0].mxu0
    %v2610 = vadd.f32 0.0, %v2609
    %v2611 = vpop.f32.mrb[0].mxu0
    %v2612 = vadd.f32 0.0, %v2611
    %2613 = vdwg.mxu0
    %2614 = vmatprep.subr.mxu0 %v2152
    %2615 = vmatpush1.msra.mxu0 %v2151
    %2616 = vmatprep.subr.mxu0 %v2160
    %2617 = vmatpush1.msra.mxu0 %v2159
    %2618 = vmatprep.subr.mxu0 %v2168
    %2619 = vmatpush1.msra.mxu0 %v2167
    %2620 = vmatprep.subr.mxu0 %v2176
    %2621 = vmatpush1.msra.mxu0 %v2175
    %2622 = vmatprep.subr.mxu0 %v2184
    %2623 = vmatpush1.msra.mxu0 %v2183
    %2624 = vmatprep.subr.mxu0 %v2192
    %2625 = vmatpush1.msra.mxu0 %v2191
    %2626 = vmatprep.subr.mxu0 %v2200
    %2627 = vmatpush1.msra.mxu0 %v2199
    %2628 = vmatprep.subr.mxu0 %v2208
    %2629 = vmatpush1.msra.mxu0 %v2207
    %2630 = vmatprep.subr.mxu0 %v2216
    %2631 = vmatpush1.msra.mxu0 %v2215
    %2632 = vmatprep.subr.mxu0 %v2224
    %2633 = vmatpush1.msra.mxu0 %v2223
    %2634 = vmatprep.subr.mxu0 %v2232
    %2635 = vmatpush1.msra.mxu0 %v2231
    %2636 = vmatprep.subr.mxu0 %v2240
    %2637 = vmatpush1.msra.mxu0 %v2239
    %2638 = vmatprep.subr.mxu0 %v2248
    %2639 = vmatpush1.msra.mxu0 %v2247
    %2640 = vmatprep.subr.mxu0 %v2256
    %2641 = vmatpush1.msra.mxu0 %v2255
    %2642 = vmatprep.subr.mxu0 %v2264
    %2643 = vmatpush1.msra.mxu0 %v2263
    %2644 = vmatprep.subr.mxu0 %v2272
    %2645 = vmatpush1.msra.mxu0 %v2271
    %2646 = vmatprep.subr.mxu0 %v2280
    %2647 = vmatpush1.msra.mxu0 %v2279
    %2648 = vmatprep.subr.mxu0 %v2288
    %2649 = vmatpush1.msra.mxu0 %v2287
    %2650 = vmatprep.subr.mxu0 %v2296
    %2651 = vmatpush1.msra.mxu0 %v2295
    %2652 = vmatprep.subr.mxu0 %v2304
    %2653 = vmatpush1.msra.mxu0 %v2303
    %2654 = vmatprep.subr.mxu0 %v2312
    %2655 = vmatpush1.msra.mxu0 %v2311
    %2656 = vmatprep.subr.mxu0 %v2320
    %2657 = vmatpush1.msra.mxu0 %v2319
    %2658 = vmatprep.subr.mxu0 %v2328
    %2659 = vmatpush1.msra.mxu0 %v2327
    %2660 = vmatprep.subr.mxu0 %v2336
    %2661 = vmatpush1.msra.mxu0 %v2335
    %2662 = vmatprep.subr.mxu0 %v2344
    %2663 = vmatpush1.msra.mxu0 %v2343
    %2664 = vmatprep.subr.mxu0 %v2352
    %2665 = vmatpush1.msra.mxu0 %v2351
    %2666 = vmatprep.subr.mxu0 %v2360
    %2667 = vmatpush1.msra.mxu0 %v2359
    %2668 = vmatprep.subr.mxu0 %v2368
    %2669 = vmatpush1.msra.mxu0 %v2367
    %2670 = vmatprep.subr.mxu0 %v2376
    %2671 = vmatpush1.msra.mxu0 %v2375
    %2672 = vmatprep.subr.mxu0 %v2384
    %2673 = vmatpush1.msra.mxu0 %v2383
    %2674 = vmatprep.subr.mxu0 %v2392
    %2675 = vmatpush1.msra.mxu0 %v2391
    %2676 = vmatprep.subr.mxu0 %v2400
    %2677 = vmatpush1.msra.mxu0 %v2399
    %2678 = vmatprep.mubr.f32.mxu0 %v2144
    %2679 = vmatmul.mubr.f32.gmra.mrb[0].mxu0 %v2143
    %v2680 = vpop.f32.mrb[0].mxu0
    %v2681 = vadd.f32 0.0, %v2680
    %v2682 = vpop.f32.mrb[0].mxu0
    %v2683 = vadd.f32 0.0, %v2682
    %2684 = vdwg.mxu0
    %s2685 = smul.u32 2, 4
    %s2686 = smul.addr %s2685, 8
    %s2687 = scalar_lea.vmem [#allocation2], %s2686
    %v2688 = vld [vmem:[%s2687] sm:$0xff]
    %v2689 = vld [vmem:[%s2687 + $0x8] sm:$0xff]
    %v2690 = vld [vmem:[%s2687 + $0x10] sm:$0xff]
    %v2691 = vld [vmem:[%s2687 + $0x18] sm:$0xff]
    %v2692 = vadd.f32 %v2688, %v2468
    %v2693 = vadd.f32 %v2689, %v2470
    %v2694 = vadd.f32 %v2690, %v2539
    %v2695 = vadd.f32 %v2691, %v2541
    %v2696 = vld [vmem:[#allocation5] sm:$0xff]
    %v2697 = vxor.u32 %v2692, 2147483648
    %v2698 = vxor.u32 %v2693, 2147483648
    %v2699 = vxor.u32 %v2694, 2147483648
    %v2700 = vmul.f32 %v2697, 1.442695
    %v2701 = vpow.pop %v2700
    %v2702 = vmul.f32 %v2698, 1.442695
    %v2703 = vpow.pop %v2702
    %v2704 = vmul.f32 %v2699, 1.442695
    %v2705 = vpow.pop %v2704
    %v2706 = vadd.f32 %v2701, 1.0
    %v2707 = vadd.f32 %v2703, 1.0
    %v2708 = vadd.f32 %v2705, 1.0
    %v2709 = vrcp.pop %v2706
    %v2710 = vmul.f32 1.0, %v2709
    %v2711 = vrcp.pop %v2707
    %v2712 = vmul.f32 1.0, %v2711
    %v2713 = vrcp.pop %v2708
    %v2714 = vmul.f32 1.0, %v2713
    %v2715 = vtanh.pop %v2695
    %v2716 = vmul.f32 %v2712, %v2696
    %v2717 = vmul.f32 %v2710, %v2715
    %v2718 = vadd.f32 %v2716, %v2717
    %v2719 = vtanh.pop %v2718
    %v2720 = vmul.f32 %v2714, %v2719
    %s2721 = smul.u32 5, 4
    %s2722 = smul.addr %s2721, 8
    %s2723 = scalar_lea.vmem [#allocation3], %s2722
    %v2724 = vld [vmem:[%s2723] sm:$0xff]
    %v2725 = vld [vmem:[%s2723 + $0x8] sm:$0xff]
    %v2726 = vld [vmem:[%s2723 + $0x10] sm:$0xff]
    %v2727 = vld [vmem:[%s2723 + $0x18] sm:$0xff]
    %v2728 = vadd.f32 %v2724, %v2610
    %v2729 = vadd.f32 %v2725, %v2612
    %v2730 = vadd.f32 %v2726, %v2681
    %v2731 = vadd.f32 %v2727, %v2683
    %v2732 = vld [vmem:[#allocation5 + $0x8] sm:$0xff]
    %v2733 = vxor.u32 %v2728, 2147483648
    %v2734 = vxor.u32 %v2729, 2147483648
    %v2735 = vxor.u32 %v2730, 2147483648
    %v2736 = vmul.f32 %v2733, 1.442695
    %v2737 = vpow.pop %v2736
    %v2738 = vmul.f32 %v2734, 1.442695
    %v2739 = vpow.pop %v2738
    %v2740 = vmul.f32 %v2735, 1.442695
    %v2741 = vpow.pop %v2740
    %v2742 = vadd.f32 %v2737, 1.0
    %v2743 = vadd.f32 %v2739, 1.0
    %v2744 = vadd.f32 %v2741, 1.0
    %v2745 = vrcp.pop %v2742
    %v2746 = vmul.f32 1.0, %v2745
    %v2747 = vrcp.pop %v2743
    %v2748 = vmul.f32 1.0, %v2747
    %v2749 = vrcp.pop %v2744
    %v2750 = vmul.f32 1.0, %v2749
    %v2751 = vtanh.pop %v2731
    %v2752 = vmul.f32 %v2748, %v2732
    %v2753 = vmul.f32 %v2746, %v2751
    %v2754 = vadd.f32 %v2752, %v2753
    %v2755 = vtanh.pop %v2754
    %v2756 = vmul.f32 %v2750, %v2755
    %2757 = vst [vmem:[#allocation4] sm:$0xff] %v2720
    %2758 = vst [vmem:[#allocation4 + $0x8] sm:$0xff] %v2756
    %2759 = vst [vmem:[#allocation5] sm:$0xff] %v2718
    %2760 = vst [vmem:[#allocation5 + $0x8] sm:$0xff] %v2754
    %s2761 = scalar_lea.vmem [#allocation15], 16
    %2762 = vst [vmem:[%s2761] sm:$0xff] %v2720
    %s2763 = scalar_lea.vmem [#allocation16], 40
    %2764 = vst [vmem:[%s2763] sm:$0xff] %v2756
    %v2765 = vld [vmem:[#allocation4] sm:$0xff]
    %v2766 = vld [vmem:[#allocation4 + $0x8] sm:$0xff]
    %v2767 = vld [vmem:[#allocation14] sm:$0xff]
    %v2768 = vld [vmem:[#allocation14 + $0x8] sm:$0xff]
    %v2769 = vld [vmem:[#allocation14 + $0x10] sm:$0xff]
    %v2770 = vld [vmem:[#allocation14 + $0x18] sm:$0xff]
    %v2771 = vld [vmem:[#allocation14 + $0x20] sm:$0xff]
    %v2772 = vld [vmem:[#allocation14 + $0x28] sm:$0xff]
    %v2773 = vld [vmem:[#allocation14 + $0x30] sm:$0xff]
    %v2774 = vld [vmem:[#allocation14 + $0x38] sm:$0xff]
    %v2775 = vld [vmem:[#allocation14 + $0x40] sm:$0xff]
    %v2776 = vld [vmem:[#allocation14 + $0x48] sm:$0xff]
    %v2777 = vld [vmem:[#allocation14 + $0x50] sm:$0xff]
    %v2778 = vld [vmem:[#allocation14 + $0x58] sm:$0xff]
    %v2779 = vld [vmem:[#allocation14 + $0x60] sm:$0xff]
    %v2780 = vld [vmem:[#allocation14 + $0x68] sm:$0xff]
    %v2781 = vld [vmem:[#allocation14 + $0x70] sm:$0xff]
    %v2782 = vld [vmem:[#allocation14 + $0x78] sm:$0xff]
    %v2783 = vld [vmem:[#allocation14 + $0x80] sm:$0xff]
    %v2784 = vld [vmem:[#allocation14 + $0x88] sm:$0xff]
    %v2785 = vld [vmem:[#allocation14 + $0x90] sm:$0xff]
    %v2786 = vld [vmem:[#allocation14 + $0x98] sm:$0xff]
    %v2787 = vld [vmem:[#allocation14 + $0xa0] sm:$0xff]
    %v2788 = vld [vmem:[#allocation14 + $0xa8] sm:$0xff]
    %v2789 = vld [vmem:[#allocation14 + $0xb0] sm:$0xff]
    %v2790 = vld [vmem:[#allocation14 + $0xb8] sm:$0xff]
    %v2791 = vld [vmem:[#allocation14 + $0xc0] sm:$0xff]
    %v2792 = vld [vmem:[#allocation14 + $0xc8] sm:$0xff]
    %v2793 = vld [vmem:[#allocation14 + $0xd0] sm:$0xff]
    %v2794 = vld [vmem:[#allocation14 + $0xd8] sm:$0xff]
    %v2795 = vld [vmem:[#allocation14 + $0xe0] sm:$0xff]
    %v2796 = vld [vmem:[#allocation14 + $0xe8] sm:$0xff]
    %v2797 = vld [vmem:[#allocation14 + $0xf0] sm:$0xff]
    %v2798 = vld [vmem:[#allocation14 + $0xf8] sm:$0xff]
    %v2799 = vld [vmem:[#allocation14 + $0x100] sm:$0xff]
    %v2800 = vld [vmem:[#allocation14 + $0x108] sm:$0xff]
    %v2801 = vld [vmem:[#allocation14 + $0x110] sm:$0xff]
    %v2802 = vld [vmem:[#allocation14 + $0x118] sm:$0xff]
    %v2803 = vld [vmem:[#allocation14 + $0x120] sm:$0xff]
    %v2804 = vld [vmem:[#allocation14 + $0x128] sm:$0xff]
    %v2805 = vld [vmem:[#allocation14 + $0x130] sm:$0xff]
    %v2806 = vld [vmem:[#allocation14 + $0x138] sm:$0xff]
    %v2807 = vld [vmem:[#allocation14 + $0x140] sm:$0xff]
    %v2808 = vld [vmem:[#allocation14 + $0x148] sm:$0xff]
    %v2809 = vld [vmem:[#allocation14 + $0x150] sm:$0xff]
    %v2810 = vld [vmem:[#allocation14 + $0x158] sm:$0xff]
    %v2811 = vld [vmem:[#allocation14 + $0x160] sm:$0xff]
    %v2812 = vld [vmem:[#allocation14 + $0x168] sm:$0xff]
    %v2813 = vld [vmem:[#allocation14 + $0x170] sm:$0xff]
    %v2814 = vld [vmem:[#allocation14 + $0x178] sm:$0xff]
    %v2815 = vld [vmem:[#allocation14 + $0x180] sm:$0xff]
    %v2816 = vld [vmem:[#allocation14 + $0x188] sm:$0xff]
    %v2817 = vld [vmem:[#allocation14 + $0x190] sm:$0xff]
    %v2818 = vld [vmem:[#allocation14 + $0x198] sm:$0xff]
    %v2819 = vld [vmem:[#allocation14 + $0x1a0] sm:$0xff]
    %v2820 = vld [vmem:[#allocation14 + $0x1a8] sm:$0xff]
    %v2821 = vld [vmem:[#allocation14 + $0x1b0] sm:$0xff]
    %v2822 = vld [vmem:[#allocation14 + $0x1b8] sm:$0xff]
    %v2823 = vld [vmem:[#allocation14 + $0x1c0] sm:$0xff]
    %v2824 = vld [vmem:[#allocation14 + $0x1c8] sm:$0xff]
    %v2825 = vld [vmem:[#allocation14 + $0x1d0] sm:$0xff]
    %v2826 = vld [vmem:[#allocation14 + $0x1d8] sm:$0xff]
    %v2827 = vld [vmem:[#allocation14 + $0x1e0] sm:$0xff]
    %v2828 = vld [vmem:[#allocation14 + $0x1e8] sm:$0xff]
    %v2829 = vld [vmem:[#allocation14 + $0x1f0] sm:$0xff]
    %v2830 = vld [vmem:[#allocation14 + $0x1f8] sm:$0xff]
    %v2831 = vld [vmem:[#allocation14 + $0x200] sm:$0xff]
    %v2832 = vld [vmem:[#allocation14 + $0x208] sm:$0xff]
    %v2833 = vld [vmem:[#allocation14 + $0x210] sm:$0xff]
    %v2834 = vld [vmem:[#allocation14 + $0x218] sm:$0xff]
    %v2835 = vld [vmem:[#allocation14 + $0x220] sm:$0xff]
    %v2836 = vld [vmem:[#allocation14 + $0x228] sm:$0xff]
    %v2837 = vld [vmem:[#allocation14 + $0x230] sm:$0xff]
    %v2838 = vld [vmem:[#allocation14 + $0x238] sm:$0xff]
    %v2839 = vld [vmem:[#allocation14 + $0x240] sm:$0xff]
    %v2840 = vld [vmem:[#allocation14 + $0x248] sm:$0xff]
    %v2841 = vld [vmem:[#allocation14 + $0x250] sm:$0xff]
    %v2842 = vld [vmem:[#allocation14 + $0x258] sm:$0xff]
    %v2843 = vld [vmem:[#allocation14 + $0x260] sm:$0xff]
    %v2844 = vld [vmem:[#allocation14 + $0x268] sm:$0xff]
    %v2845 = vld [vmem:[#allocation14 + $0x270] sm:$0xff]
    %v2846 = vld [vmem:[#allocation14 + $0x278] sm:$0xff]
    %v2847 = vld [vmem:[#allocation14 + $0x280] sm:$0xff]
    %v2848 = vld [vmem:[#allocation14 + $0x288] sm:$0xff]
    %v2849 = vld [vmem:[#allocation14 + $0x290] sm:$0xff]
    %v2850 = vld [vmem:[#allocation14 + $0x298] sm:$0xff]
    %v2851 = vld [vmem:[#allocation14 + $0x2a0] sm:$0xff]
    %v2852 = vld [vmem:[#allocation14 + $0x2a8] sm:$0xff]
    %v2853 = vld [vmem:[#allocation14 + $0x2b0] sm:$0xff]
    %v2854 = vld [vmem:[#allocation14 + $0x2b8] sm:$0xff]
    %v2855 = vld [vmem:[#allocation14 + $0x2c0] sm:$0xff]
    %v2856 = vld [vmem:[#allocation14 + $0x2c8] sm:$0xff]
    %v2857 = vld [vmem:[#allocation14 + $0x2d0] sm:$0xff]
    %v2858 = vld [vmem:[#allocation14 + $0x2d8] sm:$0xff]
    %v2859 = vld [vmem:[#allocation14 + $0x2e0] sm:$0xff]
    %v2860 = vld [vmem:[#allocation14 + $0x2e8] sm:$0xff]
    %v2861 = vld [vmem:[#allocation14 + $0x2f0] sm:$0xff]
    %v2862 = vld [vmem:[#allocation14 + $0x2f8] sm:$0xff]
    %v2863 = vld [vmem:[#allocation14 + $0x300] sm:$0xff]
    %v2864 = vld [vmem:[#allocation14 + $0x308] sm:$0xff]
    %v2865 = vld [vmem:[#allocation14 + $0x310] sm:$0xff]
    %v2866 = vld [vmem:[#allocation14 + $0x318] sm:$0xff]
    %v2867 = vld [vmem:[#allocation14 + $0x320] sm:$0xff]
    %v2868 = vld [vmem:[#allocation14 + $0x328] sm:$0xff]
    %v2869 = vld [vmem:[#allocation14 + $0x330] sm:$0xff]
    %v2870 = vld [vmem:[#allocation14 + $0x338] sm:$0xff]
    %v2871 = vld [vmem:[#allocation14 + $0x340] sm:$0xff]
    %v2872 = vld [vmem:[#allocation14 + $0x348] sm:$0xff]
    %v2873 = vld [vmem:[#allocation14 + $0x350] sm:$0xff]
    %v2874 = vld [vmem:[#allocation14 + $0x358] sm:$0xff]
    %v2875 = vld [vmem:[#allocation14 + $0x360] sm:$0xff]
    %v2876 = vld [vmem:[#allocation14 + $0x368] sm:$0xff]
    %v2877 = vld [vmem:[#allocation14 + $0x370] sm:$0xff]
    %v2878 = vld [vmem:[#allocation14 + $0x378] sm:$0xff]
    %v2879 = vld [vmem:[#allocation14 + $0x380] sm:$0xff]
    %v2880 = vld [vmem:[#allocation14 + $0x388] sm:$0xff]
    %v2881 = vld [vmem:[#allocation14 + $0x390] sm:$0xff]
    %v2882 = vld [vmem:[#allocation14 + $0x398] sm:$0xff]
    %v2883 = vld [vmem:[#allocation14 + $0x3a0] sm:$0xff]
    %v2884 = vld [vmem:[#allocation14 + $0x3a8] sm:$0xff]
    %v2885 = vld [vmem:[#allocation14 + $0x3b0] sm:$0xff]
    %v2886 = vld [vmem:[#allocation14 + $0x3b8] sm:$0xff]
    %v2887 = vld [vmem:[#allocation14 + $0x3c0] sm:$0xff]
    %v2888 = vld [vmem:[#allocation14 + $0x3c8] sm:$0xff]
    %v2889 = vld [vmem:[#allocation14 + $0x3d0] sm:$0xff]
    %v2890 = vld [vmem:[#allocation14 + $0x3d8] sm:$0xff]
    %v2891 = vld [vmem:[#allocation14 + $0x3e0] sm:$0xff]
    %v2892 = vld [vmem:[#allocation14 + $0x3e8] sm:$0xff]
    %v2893 = vld [vmem:[#allocation14 + $0x3f0] sm:$0xff]
    %v2894 = vld [vmem:[#allocation14 + $0x3f8] sm:$0xff]
    %v2895 = vld [vmem:[#allocation14 + $0x400] sm:$0xff]
    %v2896 = vld [vmem:[#allocation14 + $0x408] sm:$0xff]
    %v2897 = vld [vmem:[#allocation14 + $0x410] sm:$0xff]
    %v2898 = vld [vmem:[#allocation14 + $0x418] sm:$0xff]
    %v2899 = vld [vmem:[#allocation14 + $0x420] sm:$0xff]
    %v2900 = vld [vmem:[#allocation14 + $0x428] sm:$0xff]
    %v2901 = vld [vmem:[#allocation14 + $0x430] sm:$0xff]
    %v2902 = vld [vmem:[#allocation14 + $0x438] sm:$0xff]
    %v2903 = vld [vmem:[#allocation14 + $0x440] sm:$0xff]
    %v2904 = vld [vmem:[#allocation14 + $0x448] sm:$0xff]
    %v2905 = vld [vmem:[#allocation14 + $0x450] sm:$0xff]
    %v2906 = vld [vmem:[#allocation14 + $0x458] sm:$0xff]
    %v2907 = vld [vmem:[#allocation14 + $0x460] sm:$0xff]
    %v2908 = vld [vmem:[#allocation14 + $0x468] sm:$0xff]
    %v2909 = vld [vmem:[#allocation14 + $0x470] sm:$0xff]
    %v2910 = vld [vmem:[#allocation14 + $0x478] sm:$0xff]
    %v2911 = vld [vmem:[#allocation14 + $0x480] sm:$0xff]
    %v2912 = vld [vmem:[#allocation14 + $0x488] sm:$0xff]
    %v2913 = vld [vmem:[#allocation14 + $0x490] sm:$0xff]
    %v2914 = vld [vmem:[#allocation14 + $0x498] sm:$0xff]
    %v2915 = vld [vmem:[#allocation14 + $0x4a0] sm:$0xff]
    %v2916 = vld [vmem:[#allocation14 + $0x4a8] sm:$0xff]
    %v2917 = vld [vmem:[#allocation14 + $0x4b0] sm:$0xff]
    %v2918 = vld [vmem:[#allocation14 + $0x4b8] sm:$0xff]
    %v2919 = vld [vmem:[#allocation14 + $0x4c0] sm:$0xff]
    %v2920 = vld [vmem:[#allocation14 + $0x4c8] sm:$0xff]
    %v2921 = vld [vmem:[#allocation14 + $0x4d0] sm:$0xff]
    %v2922 = vld [vmem:[#allocation14 + $0x4d8] sm:$0xff]
    %v2923 = vld [vmem:[#allocation14 + $0x4e0] sm:$0xff]
    %v2924 = vld [vmem:[#allocation14 + $0x4e8] sm:$0xff]
    %v2925 = vld [vmem:[#allocation14 + $0x4f0] sm:$0xff]
    %v2926 = vld [vmem:[#allocation14 + $0x4f8] sm:$0xff]
    %v2927 = vld [vmem:[#allocation14 + $0x500] sm:$0xff]
    %v2928 = vld [vmem:[#allocation14 + $0x508] sm:$0xff]
    %v2929 = vld [vmem:[#allocation14 + $0x510] sm:$0xff]
    %v2930 = vld [vmem:[#allocation14 + $0x518] sm:$0xff]
    %v2931 = vld [vmem:[#allocation14 + $0x520] sm:$0xff]
    %v2932 = vld [vmem:[#allocation14 + $0x528] sm:$0xff]
    %v2933 = vld [vmem:[#allocation14 + $0x530] sm:$0xff]
    %v2934 = vld [vmem:[#allocation14 + $0x538] sm:$0xff]
    %v2935 = vld [vmem:[#allocation14 + $0x540] sm:$0xff]
    %v2936 = vld [vmem:[#allocation14 + $0x548] sm:$0xff]
    %v2937 = vld [vmem:[#allocation14 + $0x550] sm:$0xff]
    %v2938 = vld [vmem:[#allocation14 + $0x558] sm:$0xff]
    %v2939 = vld [vmem:[#allocation14 + $0x560] sm:$0xff]
    %v2940 = vld [vmem:[#allocation14 + $0x568] sm:$0xff]
    %v2941 = vld [vmem:[#allocation14 + $0x570] sm:$0xff]
    %v2942 = vld [vmem:[#allocation14 + $0x578] sm:$0xff]
    %v2943 = vld [vmem:[#allocation14 + $0x580] sm:$0xff]
    %v2944 = vld [vmem:[#allocation14 + $0x588] sm:$0xff]
    %v2945 = vld [vmem:[#allocation14 + $0x590] sm:$0xff]
    %v2946 = vld [vmem:[#allocation14 + $0x598] sm:$0xff]
    %v2947 = vld [vmem:[#allocation14 + $0x5a0] sm:$0xff]
    %v2948 = vld [vmem:[#allocation14 + $0x5a8] sm:$0xff]
    %v2949 = vld [vmem:[#allocation14 + $0x5b0] sm:$0xff]
    %v2950 = vld [vmem:[#allocation14 + $0x5b8] sm:$0xff]
    %v2951 = vld [vmem:[#allocation14 + $0x5c0] sm:$0xff]
    %v2952 = vld [vmem:[#allocation14 + $0x5c8] sm:$0xff]
    %v2953 = vld [vmem:[#allocation14 + $0x5d0] sm:$0xff]
    %v2954 = vld [vmem:[#allocation14 + $0x5d8] sm:$0xff]
    %v2955 = vld [vmem:[#allocation14 + $0x5e0] sm:$0xff]
    %v2956 = vld [vmem:[#allocation14 + $0x5e8] sm:$0xff]
    %v2957 = vld [vmem:[#allocation14 + $0x5f0] sm:$0xff]
    %v2958 = vld [vmem:[#allocation14 + $0x5f8] sm:$0xff]
    %v2959 = vld [vmem:[#allocation14 + $0x600] sm:$0xff]
    %v2960 = vld [vmem:[#allocation14 + $0x608] sm:$0xff]
    %v2961 = vld [vmem:[#allocation14 + $0x610] sm:$0xff]
    %v2962 = vld [vmem:[#allocation14 + $0x618] sm:$0xff]
    %v2963 = vld [vmem:[#allocation14 + $0x620] sm:$0xff]
    %v2964 = vld [vmem:[#allocation14 + $0x628] sm:$0xff]
    %v2965 = vld [vmem:[#allocation14 + $0x630] sm:$0xff]
    %v2966 = vld [vmem:[#allocation14 + $0x638] sm:$0xff]
    %v2967 = vld [vmem:[#allocation14 + $0x640] sm:$0xff]
    %v2968 = vld [vmem:[#allocation14 + $0x648] sm:$0xff]
    %v2969 = vld [vmem:[#allocation14 + $0x650] sm:$0xff]
    %v2970 = vld [vmem:[#allocation14 + $0x658] sm:$0xff]
    %v2971 = vld [vmem:[#allocation14 + $0x660] sm:$0xff]
    %v2972 = vld [vmem:[#allocation14 + $0x668] sm:$0xff]
    %v2973 = vld [vmem:[#allocation14 + $0x670] sm:$0xff]
    %v2974 = vld [vmem:[#allocation14 + $0x678] sm:$0xff]
    %v2975 = vld [vmem:[#allocation14 + $0x680] sm:$0xff]
    %v2976 = vld [vmem:[#allocation14 + $0x688] sm:$0xff]
    %v2977 = vld [vmem:[#allocation14 + $0x690] sm:$0xff]
    %v2978 = vld [vmem:[#allocation14 + $0x698] sm:$0xff]
    %v2979 = vld [vmem:[#allocation14 + $0x6a0] sm:$0xff]
    %v2980 = vld [vmem:[#allocation14 + $0x6a8] sm:$0xff]
    %v2981 = vld [vmem:[#allocation14 + $0x6b0] sm:$0xff]
    %v2982 = vld [vmem:[#allocation14 + $0x6b8] sm:$0xff]
    %v2983 = vld [vmem:[#allocation14 + $0x6c0] sm:$0xff]
    %v2984 = vld [vmem:[#allocation14 + $0x6c8] sm:$0xff]
    %v2985 = vld [vmem:[#allocation14 + $0x6d0] sm:$0xff]
    %v2986 = vld [vmem:[#allocation14 + $0x6d8] sm:$0xff]
    %v2987 = vld [vmem:[#allocation14 + $0x6e0] sm:$0xff]
    %v2988 = vld [vmem:[#allocation14 + $0x6e8] sm:$0xff]
    %v2989 = vld [vmem:[#allocation14 + $0x6f0] sm:$0xff]
    %v2990 = vld [vmem:[#allocation14 + $0x6f8] sm:$0xff]
    %v2991 = vld [vmem:[#allocation14 + $0x700] sm:$0xff]
    %v2992 = vld [vmem:[#allocation14 + $0x708] sm:$0xff]
    %v2993 = vld [vmem:[#allocation14 + $0x710] sm:$0xff]
    %v2994 = vld [vmem:[#allocation14 + $0x718] sm:$0xff]
    %v2995 = vld [vmem:[#allocation14 + $0x720] sm:$0xff]
    %v2996 = vld [vmem:[#allocation14 + $0x728] sm:$0xff]
    %v2997 = vld [vmem:[#allocation14 + $0x730] sm:$0xff]
    %v2998 = vld [vmem:[#allocation14 + $0x738] sm:$0xff]
    %v2999 = vld [vmem:[#allocation14 + $0x740] sm:$0xff]
    %v3000 = vld [vmem:[#allocation14 + $0x748] sm:$0xff]
    %v3001 = vld [vmem:[#allocation14 + $0x750] sm:$0xff]
    %v3002 = vld [vmem:[#allocation14 + $0x758] sm:$0xff]
    %v3003 = vld [vmem:[#allocation14 + $0x760] sm:$0xff]
    %v3004 = vld [vmem:[#allocation14 + $0x768] sm:$0xff]
    %v3005 = vld [vmem:[#allocation14 + $0x770] sm:$0xff]
    %v3006 = vld [vmem:[#allocation14 + $0x778] sm:$0xff]
    %v3007 = vld [vmem:[#allocation14 + $0x780] sm:$0xff]
    %v3008 = vld [vmem:[#allocation14 + $0x788] sm:$0xff]
    %v3009 = vld [vmem:[#allocation14 + $0x790] sm:$0xff]
    %v3010 = vld [vmem:[#allocation14 + $0x798] sm:$0xff]
    %v3011 = vld [vmem:[#allocation14 + $0x7a0] sm:$0xff]
    %v3012 = vld [vmem:[#allocation14 + $0x7a8] sm:$0xff]
    %v3013 = vld [vmem:[#allocation14 + $0x7b0] sm:$0xff]
    %v3014 = vld [vmem:[#allocation14 + $0x7b8] sm:$0xff]
    %v3015 = vld [vmem:[#allocation14 + $0x7c0] sm:$0xff]
    %v3016 = vld [vmem:[#allocation14 + $0x7c8] sm:$0xff]
    %v3017 = vld [vmem:[#allocation14 + $0x7d0] sm:$0xff]
    %v3018 = vld [vmem:[#allocation14 + $0x7d8] sm:$0xff]
    %v3019 = vld [vmem:[#allocation14 + $0x7e0] sm:$0xff]
    %v3020 = vld [vmem:[#allocation14 + $0x7e8] sm:$0xff]
    %v3021 = vld [vmem:[#allocation14 + $0x7f0] sm:$0xff]
    %v3022 = vld [vmem:[#allocation14 + $0x7f8] sm:$0xff]
    %3023 = vmatprep.subr.mxu0 %v2768
    %3024 = vmatpush1.msra.mxu0 %v2767
    %3025 = vmatprep.subr.mxu0 %v2776
    %3026 = vmatpush1.msra.mxu0 %v2775
    %3027 = vmatprep.subr.mxu0 %v2784
    %3028 = vmatpush1.msra.mxu0 %v2783
    %3029 = vmatprep.subr.mxu0 %v2792
    %3030 = vmatpush1.msra.mxu0 %v2791
    %3031 = vmatprep.subr.mxu0 %v2800
    %3032 = vmatpush1.msra.mxu0 %v2799
    %3033 = vmatprep.subr.mxu0 %v2808
    %3034 = vmatpush1.msra.mxu0 %v2807
    %3035 = vmatprep.subr.mxu0 %v2816
    %3036 = vmatpush1.msra.mxu0 %v2815
    %3037 = vmatprep.subr.mxu0 %v2824
    %3038 = vmatpush1.msra.mxu0 %v2823
    %3039 = vmatprep.subr.mxu0 %v2832
    %3040 = vmatpush1.msra.mxu0 %v2831
    %3041 = vmatprep.subr.mxu0 %v2840
    %3042 = vmatpush1.msra.mxu0 %v2839
    %3043 = vmatprep.subr.mxu0 %v2848
    %3044 = vmatpush1.msra.mxu0 %v2847
    %3045 = vmatprep.subr.mxu0 %v2856
    %3046 = vmatpush1.msra.mxu0 %v2855
    %3047 = vmatprep.subr.mxu0 %v2864
    %3048 = vmatpush1.msra.mxu0 %v2863
    %3049 = vmatprep.subr.mxu0 %v2872
    %3050 = vmatpush1.msra.mxu0 %v2871
    %3051 = vmatprep.subr.mxu0 %v2880
    %3052 = vmatpush1.msra.mxu0 %v2879
    %3053 = vmatprep.subr.mxu0 %v2888
    %3054 = vmatpush1.msra.mxu0 %v2887
    %3055 = vmatprep.subr.mxu0 %v2896
    %3056 = vmatpush1.msra.mxu0 %v2895
    %3057 = vmatprep.subr.mxu0 %v2904
    %3058 = vmatpush1.msra.mxu0 %v2903
    %3059 = vmatprep.subr.mxu0 %v2912
    %3060 = vmatpush1.msra.mxu0 %v2911
    %3061 = vmatprep.subr.mxu0 %v2920
    %3062 = vmatpush1.msra.mxu0 %v2919
    %3063 = vmatprep.subr.mxu0 %v2928
    %3064 = vmatpush1.msra.mxu0 %v2927
    %3065 = vmatprep.subr.mxu0 %v2936
    %3066 = vmatpush1.msra.mxu0 %v2935
    %3067 = vmatprep.subr.mxu0 %v2944
    %3068 = vmatpush1.msra.mxu0 %v2943
    %3069 = vmatprep.subr.mxu0 %v2952
    %3070 = vmatpush1.msra.mxu0 %v2951
    %3071 = vmatprep.subr.mxu0 %v2960
    %3072 = vmatpush1.msra.mxu0 %v2959
    %3073 = vmatprep.subr.mxu0 %v2968
    %3074 = vmatpush1.msra.mxu0 %v2967
    %3075 = vmatprep.subr.mxu0 %v2976
    %3076 = vmatpush1.msra.mxu0 %v2975
    %3077 = vmatprep.subr.mxu0 %v2984
    %3078 = vmatpush1.msra.mxu0 %v2983
    %3079 = vmatprep.subr.mxu0 %v2992
    %3080 = vmatpush1.msra.mxu0 %v2991
    %3081 = vmatprep.subr.mxu0 %v3000
    %3082 = vmatpush1.msra.mxu0 %v2999
    %3083 = vmatprep.subr.mxu0 %v3008
    %3084 = vmatpush1.msra.mxu0 %v3007
    %3085 = vmatprep.subr.mxu0 %v3016
    %3086 = vmatpush1.msra.mxu0 %v3015
    %3087 = vmatprep.mubr.f32.mxu0 %v2766
    %3088 = vmatmul.mubr.f32.gmra.mrb[0].mxu0 %v2765
    %v3089 = vpop.f32.mrb[0].mxu0
    %v3090 = vadd.f32 0.0, %v3089
    %v3091 = vpop.f32.mrb[0].mxu0
    %v3092 = vadd.f32 0.0, %v3091
    %3093 = vdwg.mxu0
    %3094 = vmatprep.subr.mxu0 %v2770
    %3095 = vmatpush1.msra.mxu0 %v2769
    %3096 = vmatprep.subr.mxu0 %v2778
    %3097 = vmatpush1.msra.mxu0 %v2777
    %3098 = vmatprep.subr.mxu0 %v2786
    %3099 = vmatpush1.msra.mxu0 %v2785
    %3100 = vmatprep.subr.mxu0 %v2794
    %3101 = vmatpush1.msra.mxu0 %v2793
    %3102 = vmatprep.subr.mxu0 %v2802
    %3103 = vmatpush1.msra.mxu0 %v2801
    %3104 = vmatprep.subr.mxu0 %v2810
    %3105 = vmatpush1.msra.mxu0 %v2809
    %3106 = vmatprep.subr.mxu0 %v2818
    %3107 = vmatpush1.msra.mxu0 %v2817
    %3108 = vmatprep.subr.mxu0 %v2826
    %3109 = vmatpush1.msra.mxu0 %v2825
    %3110 = vmatprep.subr.mxu0 %v2834
    %3111 = vmatpush1.msra.mxu0 %v2833
    %3112 = vmatprep.subr.mxu0 %v2842
    %3113 = vmatpush1.msra.mxu0 %v2841
    %3114 = vmatprep.subr.mxu0 %v2850
    %3115 = vmatpush1.msra.mxu0 %v2849
    %3116 = vmatprep.subr.mxu0 %v2858
    %3117 = vmatpush1.msra.mxu0 %v2857
    %3118 = vmatprep.subr.mxu0 %v2866
    %3119 = vmatpush1.msra.mxu0 %v2865
    %3120 = vmatprep.subr.mxu0 %v2874
    %3121 = vmatpush1.msra.mxu0 %v2873
    %3122 = vmatprep.subr.mxu0 %v2882
    %3123 = vmatpush1.msra.mxu0 %v2881
    %3124 = vmatprep.subr.mxu0 %v2890
    %3125 = vmatpush1.msra.mxu0 %v2889
    %3126 = vmatprep.subr.mxu0 %v2898
    %3127 = vmatpush1.msra.mxu0 %v2897
    %3128 = vmatprep.subr.mxu0 %v2906
    %3129 = vmatpush1.msra.mxu0 %v2905
    %3130 = vmatprep.subr.mxu0 %v2914
    %3131 = vmatpush1.msra.mxu0 %v2913
    %3132 = vmatprep.subr.mxu0 %v2922
    %3133 = vmatpush1.msra.mxu0 %v2921
    %3134 = vmatprep.subr.mxu0 %v2930
    %3135 = vmatpush1.msra.mxu0 %v2929
    %3136 = vmatprep.subr.mxu0 %v2938
    %3137 = vmatpush1.msra.mxu0 %v2937
    %3138 = vmatprep.subr.mxu0 %v2946
    %3139 = vmatpush1.msra.mxu0 %v2945
    %3140 = vmatprep.subr.mxu0 %v2954
    %3141 = vmatpush1.msra.mxu0 %v2953
    %3142 = vmatprep.subr.mxu0 %v2962
    %3143 = vmatpush1.msra.mxu0 %v2961
    %3144 = vmatprep.subr.mxu0 %v2970
    %3145 = vmatpush1.msra.mxu0 %v2969
    %3146 = vmatprep.subr.mxu0 %v2978
    %3147 = vmatpush1.msra.mxu0 %v2977
    %3148 = vmatprep.subr.mxu0 %v2986
    %3149 = vmatpush1.msra.mxu0 %v2985
    %3150 = vmatprep.subr.mxu0 %v2994
    %3151 = vmatpush1.msra.mxu0 %v2993
    %3152 = vmatprep.subr.mxu0 %v3002
    %3153 = vmatpush1.msra.mxu0 %v3001
    %3154 = vmatprep.subr.mxu0 %v3010
    %3155 = vmatpush1.msra.mxu0 %v3009
    %3156 = vmatprep.subr.mxu0 %v3018
    %3157 = vmatpush1.msra.mxu0 %v3017
    %3158 = vmatprep.mubr.f32.mxu0 %v2766
    %3159 = vmatmul.mubr.f32.gmra.mrb[0].mxu0 %v2765
    %v3160 = vpop.f32.mrb[0].mxu0
    %v3161 = vadd.f32 0.0, %v3160
    %v3162 = vpop.f32.mrb[0].mxu0
    %v3163 = vadd.f32 0.0, %v3162
    %3164 = vdwg.mxu0
    %3165 = vmatprep.subr.mxu0 %v2772
    %3166 = vmatpush1.msra.mxu0 %v2771
    %3167 = vmatprep.subr.mxu0 %v2780
    %3168 = vmatpush1.msra.mxu0 %v2779
    %3169 = vmatprep.subr.mxu0 %v2788
    %3170 = vmatpush1.msra.mxu0 %v2787
    %3171 = vmatprep.subr.mxu0 %v2796
    %3172 = vmatpush1.msra.mxu0 %v2795
    %3173 = vmatprep.subr.mxu0 %v2804
    %3174 = vmatpush1.msra.mxu0 %v2803
    %3175 = vmatprep.subr.mxu0 %v2812
    %3176 = vmatpush1.msra.mxu0 %v2811
    %3177 = vmatprep.subr.mxu0 %v2820
    %3178 = vmatpush1.msra.mxu0 %v2819
    %3179 = vmatprep.subr.mxu0 %v2828
    %3180 = vmatpush1.msra.mxu0 %v2827
    %3181 = vmatprep.subr.mxu0 %v2836
    %3182 = vmatpush1.msra.mxu0 %v2835
    %3183 = vmatprep.subr.mxu0 %v2844
    %3184 = vmatpush1.msra.mxu0 %v2843
    %3185 = vmatprep.subr.mxu0 %v2852
    %3186 = vmatpush1.msra.mxu0 %v2851
    %3187 = vmatprep.subr.mxu0 %v2860
    %3188 = vmatpush1.msra.mxu0 %v2859
    %3189 = vmatprep.subr.mxu0 %v2868
    %3190 = vmatpush1.msra.mxu0 %v2867
    %3191 = vmatprep.subr.mxu0 %v2876
    %3192 = vmatpush1.msra.mxu0 %v2875
    %3193 = vmatprep.subr.mxu0 %v2884
    %3194 = vmatpush1.msra.mxu0 %v2883
    %3195 = vmatprep.subr.mxu0 %v2892
    %3196 = vmatpush1.msra.mxu0 %v2891
    %3197 = vmatprep.subr.mxu0 %v2900
    %3198 = vmatpush1.msra.mxu0 %v2899
    %3199 = vmatprep.subr.mxu0 %v2908
    %3200 = vmatpush1.msra.mxu0 %v2907
    %3201 = vmatprep.subr.mxu0 %v2916
    %3202 = vmatpush1.msra.mxu0 %v2915
    %3203 = vmatprep.subr.mxu0 %v2924
    %3204 = vmatpush1.msra.mxu0 %v2923
    %3205 = vmatprep.subr.mxu0 %v2932
    %3206 = vmatpush1.msra.mxu0 %v2931
    %3207 = vmatprep.subr.mxu0 %v2940
    %3208 = vmatpush1.msra.mxu0 %v2939
    %3209 = vmatprep.subr.mxu0 %v2948
    %3210 = vmatpush1.msra.mxu0 %v2947
    %3211 = vmatprep.subr.mxu0 %v2956
    %3212 = vmatpush1.msra.mxu0 %v2955
    %3213 = vmatprep.subr.mxu0 %v2964
    %3214 = vmatpush1.msra.mxu0 %v2963
    %3215 = vmatprep.subr.mxu0 %v2972
    %3216 = vmatpush1.msra.mxu0 %v2971
    %3217 = vmatprep.subr.mxu0 %v2980
    %3218 = vmatpush1.msra.mxu0 %v2979
    %3219 = vmatprep.subr.mxu0 %v2988
    %3220 = vmatpush1.msra.mxu0 %v2987
    %3221 = vmatprep.subr.mxu0 %v2996
    %3222 = vmatpush1.msra.mxu0 %v2995
    %3223 = vmatprep.subr.mxu0 %v3004
    %3224 = vmatpush1.msra.mxu0 %v3003
    %3225 = vmatprep.subr.mxu0 %v3012
    %3226 = vmatpush1.msra.mxu0 %v3011
    %3227 = vmatprep.subr.mxu0 %v3020
    %3228 = vmatpush1.msra.mxu0 %v3019
    %3229 = vmatprep.mubr.f32.mxu0 %v2766
    %3230 = vmatmul.mubr.f32.gmra.mrb[0].mxu0 %v2765
    %v3231 = vpop.f32.mrb[0].mxu0
    %v3232 = vadd.f32 0.0, %v3231
    %v3233 = vpop.f32.mrb[0].mxu0
    %v3234 = vadd.f32 0.0, %v3233
    %3235 = vdwg.mxu0
    %3236 = vmatprep.subr.mxu0 %v2774
    %3237 = vmatpush1.msra.mxu0 %v2773
    %3238 = vmatprep.subr.mxu0 %v2782
    %3239 = vmatpush1.msra.mxu0 %v2781
    %3240 = vmatprep.subr.mxu0 %v2790
    %3241 = vmatpush1.msra.mxu0 %v2789
    %3242 = vmatprep.subr.mxu0 %v2798
    %3243 = vmatpush1.msra.mxu0 %v2797
    %3244 = vmatprep.subr.mxu0 %v2806
    %3245 = vmatpush1.msra.mxu0 %v2805
    %3246 = vmatprep.subr.mxu0 %v2814
    %3247 = vmatpush1.msra.mxu0 %v2813
    %3248 = vmatprep.subr.mxu0 %v2822
    %3249 = vmatpush1.msra.mxu0 %v2821
    %3250 = vmatprep.subr.mxu0 %v2830
    %3251 = vmatpush1.msra.mxu0 %v2829
    %3252 = vmatprep.subr.mxu0 %v2838
    %3253 = vmatpush1.msra.mxu0 %v2837
    %3254 = vmatprep.subr.mxu0 %v2846
    %3255 = vmatpush1.msra.mxu0 %v2845
    %3256 = vmatprep.subr.mxu0 %v2854
    %3257 = vmatpush1.msra.mxu0 %v2853
    %3258 = vmatprep.subr.mxu0 %v2862
    %3259 = vmatpush1.msra.mxu0 %v2861
    %3260 = vmatprep.subr.mxu0 %v2870
    %3261 = vmatpush1.msra.mxu0 %v2869
    %3262 = vmatprep.subr.mxu0 %v2878
    %3263 = vmatpush1.msra.mxu0 %v2877
    %3264 = vmatprep.subr.mxu0 %v2886
    %3265 = vmatpush1.msra.mxu0 %v2885
    %3266 = vmatprep.subr.mxu0 %v2894
    %3267 = vmatpush1.msra.mxu0 %v2893
    %3268 = vmatprep.subr.mxu0 %v2902
    %3269 = vmatpush1.msra.mxu0 %v2901
    %3270 = vmatprep.subr.mxu0 %v2910
    %3271 = vmatpush1.msra.mxu0 %v2909
    %3272 = vmatprep.subr.mxu0 %v2918
    %3273 = vmatpush1.msra.mxu0 %v2917
    %3274 = vmatprep.subr.mxu0 %v2926
    %3275 = vmatpush1.msra.mxu0 %v2925
    %3276 = vmatprep.subr.mxu0 %v2934
    %3277 = vmatpush1.msra.mxu0 %v2933
    %3278 = vmatprep.subr.mxu0 %v2942
    %3279 = vmatpush1.msra.mxu0 %v2941
    %3280 = vmatprep.subr.mxu0 %v2950
    %3281 = vmatpush1.msra.mxu0 %v2949
    %3282 = vmatprep.subr.mxu0 %v2958
    %3283 = vmatpush1.msra.mxu0 %v2957
    %3284 = vmatprep.subr.mxu0 %v2966
    %3285 = vmatpush1.msra.mxu0 %v2965
    %3286 = vmatprep.subr.mxu0 %v2974
    %3287 = vmatpush1.msra.mxu0 %v2973
    %3288 = vmatprep.subr.mxu0 %v2982
    %3289 = vmatpush1.msra.mxu0 %v2981
    %3290 = vmatprep.subr.mxu0 %v2990
    %3291 = vmatpush1.msra.mxu0 %v2989
    %3292 = vmatprep.subr.mxu0 %v2998
    %3293 = vmatpush1.msra.mxu0 %v2997
    %3294 = vmatprep.subr.mxu0 %v3006
    %3295 = vmatpush1.msra.mxu0 %v3005
    %3296 = vmatprep.subr.mxu0 %v3014
    %3297 = vmatpush1.msra.mxu0 %v3013
    %3298 = vmatprep.subr.mxu0 %v3022
    %3299 = vmatpush1.msra.mxu0 %v3021
    %3300 = vmatprep.mubr.f32.mxu0 %v2766
    %3301 = vmatmul.mubr.f32.gmra.mrb[0].mxu0 %v2765
    %v3302 = vpop.f32.mrb[0].mxu0
    %v3303 = vadd.f32 0.0, %v3302
    %v3304 = vpop.f32.mrb[0].mxu0
    %v3305 = vadd.f32 0.0, %v3304
    %3306 = vdwg.mxu0
    %s3307 = smul.u32 3, 4
    %s3308 = smul.addr %s3307, 8
    %s3309 = scalar_lea.vmem [#allocation2], %s3308
    %v3310 = vld [vmem:[%s3309] sm:$0xff]
    %v3311 = vld [vmem:[%s3309 + $0x8] sm:$0xff]
    %v3312 = vld [vmem:[%s3309 + $0x10] sm:$0xff]
    %v3313 = vld [vmem:[%s3309 + $0x18] sm:$0xff]
    %v3314 = vadd.f32 %v3310, %v3090
    %v3315 = vadd.f32 %v3311, %v3092
    %v3316 = vadd.f32 %v3312, %v3161
    %v3317 = vadd.f32 %v3313, %v3163
    %v3318 = vld [vmem:[#allocation5] sm:$0xff]
    %v3319 = vxor.u32 %v3314, 2147483648
    %v3320 = vxor.u32 %v3315, 2147483648
    %v3321 = vxor.u32 %v3316, 2147483648
    %v3322 = vmul.f32 %v3319, 1.442695
    %v3323 = vpow.pop %v3322
    %v3324 = vmul.f32 %v3320, 1.442695
    %v3325 = vpow.pop %v3324
    %v3326 = vmul.f32 %v3321, 1.442695
    %v3327 = vpow.pop %v3326
    %v3328 = vadd.f32 %v3323, 1.0
    %v3329 = vadd.f32 %v3325, 1.0
    %v3330 = vadd.f32 %v3327, 1.0
    %v3331 = vrcp.pop %v3328
    %v3332 = vmul.f32 1.0, %v3331
    %v3333 = vrcp.pop %v3329
    %v3334 = vmul.f32 1.0, %v3333
    %v3335 = vrcp.pop %v3330
    %v3336 = vmul.f32 1.0, %v3335
    %v3337 = vtanh.pop %v3317
    %v3338 = vmul.f32 %v3334, %v3318
    %v3339 = vmul.f32 %v3332, %v3337
    %v3340 = vadd.f32 %v3338, %v3339
    %v3341 = vtanh.pop %v3340
    %v3342 = vmul.f32 %v3336, %v3341
    %s3343 = smul.u32 4, 4
    %s3344 = smul.addr %s3343, 8
    %s3345 = scalar_lea.vmem [#allocation3], %s3344
    %v3346 = vld [vmem:[%s3345] sm:$0xff]
    %v3347 = vld [vmem:[%s3345 + $0x8] sm:$0xff]
    %v3348 = vld [vmem:[%s3345 + $0x10] sm:$0xff]
    %v3349 = vld [vmem:[%s3345 + $0x18] sm:$0xff]
    %v3350 = vadd.f32 %v3346, %v3232
    %v3351 = vadd.f32 %v3347, %v3234
    %v3352 = vadd.f32 %v3348, %v3303
    %v3353 = vadd.f32 %v3349, %v3305
    %v3354 = vld [vmem:[#allocation5 + $0x8] sm:$0xff]
    %v3355 = vxor.u32 %v3350, 2147483648
    %v3356 = vxor.u32 %v3351, 2147483648
    %v3357 = vxor.u32 %v3352, 2147483648
    %v3358 = vmul.f32 %v3355, 1.442695
    %v3359 = vpow.pop %v3358
    %v3360 = vmul.f32 %v3356, 1.442695
    %v3361 = vpow.pop %v3360
    %v3362 = vmul.f32 %v3357, 1.442695
    %v3363 = vpow.pop %v3362
    %v3364 = vadd.f32 %v3359, 1.0
    %v3365 = vadd.f32 %v3361, 1.0
    %v3366 = vadd.f32 %v3363, 1.0
    %v3367 = vrcp.pop %v3364
    %v3368 = vmul.f32 1.0, %v3367
    %v3369 = vrcp.pop %v3365
    %v3370 = vmul.f32 1.0, %v3369
    %v3371 = vrcp.pop %v3366
    %v3372 = vmul.f32 1.0, %v3371
    %v3373 = vtanh.pop %v3353
    %v3374 = vmul.f32 %v3370, %v3354
    %v3375 = vmul.f32 %v3368, %v3373
    %v3376 = vadd.f32 %v3374, %v3375
    %v3377 = vtanh.pop %v3376
    %v3378 = vmul.f32 %v3372, %v3377
    %3379 = vst [vmem:[#allocation4] sm:$0xff] %v3342
    %3380 = vst [vmem:[#allocation4 + $0x8] sm:$0xff] %v3378
    %3381 = vst [vmem:[#allocation5] sm:$0xff] %v3340
    %3382 = vst [vmem:[#allocation5 + $0x8] sm:$0xff] %v3376
    %s3383 = scalar_lea.vmem [#allocation15], 24
    %3384 = vst [vmem:[%s3383] sm:$0xff] %v3342
    %s3385 = scalar_lea.vmem [#allocation16], 32
    %3386 = vst [vmem:[%s3385] sm:$0xff] %v3378
    %v3387 = vld [vmem:[#allocation4] sm:$0xff]
    %v3388 = vld [vmem:[#allocation4 + $0x8] sm:$0xff]
    %v3389 = vld [vmem:[#allocation14] sm:$0xff]
    %v3390 = vld [vmem:[#allocation14 + $0x8] sm:$0xff]
    %v3391 = vld [vmem:[#allocation14 + $0x10] sm:$0xff]
    %v3392 = vld [vmem:[#allocation14 + $0x18] sm:$0xff]
    %v3393 = vld [vmem:[#allocation14 + $0x20] sm:$0xff]
    %v3394 = vld [vmem:[#allocation14 + $0x28] sm:$0xff]
    %v3395 = vld [vmem:[#allocation14 + $0x30] sm:$0xff]
    %v3396 = vld [vmem:[#allocation14 + $0x38] sm:$0xff]
    %v3397 = vld [vmem:[#allocation14 + $0x40] sm:$0xff]
    %v3398 = vld [vmem:[#allocation14 + $0x48] sm:$0xff]
    %v3399 = vld [vmem:[#allocation14 + $0x50] sm:$0xff]
    %v3400 = vld [vmem:[#allocation14 + $0x58] sm:$0xff]
    %v3401 = vld [vmem:[#allocation14 + $0x60] sm:$0xff]
    %v3402 = vld [vmem:[#allocation14 + $0x68] sm:$0xff]
    %v3403 = vld [vmem:[#allocation14 + $0x70] sm:$0xff]
    %v3404 = vld [vmem:[#allocation14 + $0x78] sm:$0xff]
    %v3405 = vld [vmem:[#allocation14 + $0x80] sm:$0xff]
    %v3406 = vld [vmem:[#allocation14 + $0x88] sm:$0xff]
    %v3407 = vld [vmem:[#allocation14 + $0x90] sm:$0xff]
    %v3408 = vld [vmem:[#allocation14 + $0x98] sm:$0xff]
    %v3409 = vld [vmem:[#allocation14 + $0xa0] sm:$0xff]
    %v3410 = vld [vmem:[#allocation14 + $0xa8] sm:$0xff]
    %v3411 = vld [vmem:[#allocation14 + $0xb0] sm:$0xff]
    %v3412 = vld [vmem:[#allocation14 + $0xb8] sm:$0xff]
    %v3413 = vld [vmem:[#allocation14 + $0xc0] sm:$0xff]
    %v3414 = vld [vmem:[#allocation14 + $0xc8] sm:$0xff]
    %v3415 = vld [vmem:[#allocation14 + $0xd0] sm:$0xff]
    %v3416 = vld [vmem:[#allocation14 + $0xd8] sm:$0xff]
    %v3417 = vld [vmem:[#allocation14 + $0xe0] sm:$0xff]
    %v3418 = vld [vmem:[#allocation14 + $0xe8] sm:$0xff]
    %v3419 = vld [vmem:[#allocation14 + $0xf0] sm:$0xff]
    %v3420 = vld [vmem:[#allocation14 + $0xf8] sm:$0xff]
    %v3421 = vld [vmem:[#allocation14 + $0x100] sm:$0xff]
    %v3422 = vld [vmem:[#allocation14 + $0x108] sm:$0xff]
    %v3423 = vld [vmem:[#allocation14 + $0x110] sm:$0xff]
    %v3424 = vld [vmem:[#allocation14 + $0x118] sm:$0xff]
    %v3425 = vld [vmem:[#allocation14 + $0x120] sm:$0xff]
    %v3426 = vld [vmem:[#allocation14 + $0x128] sm:$0xff]
    %v3427 = vld [vmem:[#allocation14 + $0x130] sm:$0xff]
    %v3428 = vld [vmem:[#allocation14 + $0x138] sm:$0xff]
    %v3429 = vld [vmem:[#allocation14 + $0x140] sm:$0xff]
    %v3430 = vld [vmem:[#allocation14 + $0x148] sm:$0xff]
    %v3431 = vld [vmem:[#allocation14 + $0x150] sm:$0xff]
    %v3432 = vld [vmem:[#allocation14 + $0x158] sm:$0xff]
    %v3433 = vld [vmem:[#allocation14 + $0x160] sm:$0xff]
    %v3434 = vld [vmem:[#allocation14 + $0x168] sm:$0xff]
    %v3435 = vld [vmem:[#allocation14 + $0x170] sm:$0xff]
    %v3436 = vld [vmem:[#allocation14 + $0x178] sm:$0xff]
    %v3437 = vld [vmem:[#allocation14 + $0x180] sm:$0xff]
    %v3438 = vld [vmem:[#allocation14 + $0x188] sm:$0xff]
    %v3439 = vld [vmem:[#allocation14 + $0x190] sm:$0xff]
    %v3440 = vld [vmem:[#allocation14 + $0x198] sm:$0xff]
    %v3441 = vld [vmem:[#allocation14 + $0x1a0] sm:$0xff]
    %v3442 = vld [vmem:[#allocation14 + $0x1a8] sm:$0xff]
    %v3443 = vld [vmem:[#allocation14 + $0x1b0] sm:$0xff]
    %v3444 = vld [vmem:[#allocation14 + $0x1b8] sm:$0xff]
    %v3445 = vld [vmem:[#allocation14 + $0x1c0] sm:$0xff]
    %v3446 = vld [vmem:[#allocation14 + $0x1c8] sm:$0xff]
    %v3447 = vld [vmem:[#allocation14 + $0x1d0] sm:$0xff]
    %v3448 = vld [vmem:[#allocation14 + $0x1d8] sm:$0xff]
    %v3449 = vld [vmem:[#allocation14 + $0x1e0] sm:$0xff]
    %v3450 = vld [vmem:[#allocation14 + $0x1e8] sm:$0xff]
    %v3451 = vld [vmem:[#allocation14 + $0x1f0] sm:$0xff]
    %v3452 = vld [vmem:[#allocation14 + $0x1f8] sm:$0xff]
    %v3453 = vld [vmem:[#allocation14 + $0x200] sm:$0xff]
    %v3454 = vld [vmem:[#allocation14 + $0x208] sm:$0xff]
    %v3455 = vld [vmem:[#allocation14 + $0x210] sm:$0xff]
    %v3456 = vld [vmem:[#allocation14 + $0x218] sm:$0xff]
    %v3457 = vld [vmem:[#allocation14 + $0x220] sm:$0xff]
    %v3458 = vld [vmem:[#allocation14 + $0x228] sm:$0xff]
    %v3459 = vld [vmem:[#allocation14 + $0x230] sm:$0xff]
    %v3460 = vld [vmem:[#allocation14 + $0x238] sm:$0xff]
    %v3461 = vld [vmem:[#allocation14 + $0x240] sm:$0xff]
    %v3462 = vld [vmem:[#allocation14 + $0x248] sm:$0xff]
    %v3463 = vld [vmem:[#allocation14 + $0x250] sm:$0xff]
    %v3464 = vld [vmem:[#allocation14 + $0x258] sm:$0xff]
    %v3465 = vld [vmem:[#allocation14 + $0x260] sm:$0xff]
    %v3466 = vld [vmem:[#allocation14 + $0x268] sm:$0xff]
    %v3467 = vld [vmem:[#allocation14 + $0x270] sm:$0xff]
    %v3468 = vld [vmem:[#allocation14 + $0x278] sm:$0xff]
    %v3469 = vld [vmem:[#allocation14 + $0x280] sm:$0xff]
    %v3470 = vld [vmem:[#allocation14 + $0x288] sm:$0xff]
    %v3471 = vld [vmem:[#allocation14 + $0x290] sm:$0xff]
    %v3472 = vld [vmem:[#allocation14 + $0x298] sm:$0xff]
    %v3473 = vld [vmem:[#allocation14 + $0x2a0] sm:$0xff]
    %v3474 = vld [vmem:[#allocation14 + $0x2a8] sm:$0xff]
    %v3475 = vld [vmem:[#allocation14 + $0x2b0] sm:$0xff]
    %v3476 = vld [vmem:[#allocation14 + $0x2b8] sm:$0xff]
    %v3477 = vld [vmem:[#allocation14 + $0x2c0] sm:$0xff]
    %v3478 = vld [vmem:[#allocation14 + $0x2c8] sm:$0xff]
    %v3479 = vld [vmem:[#allocation14 + $0x2d0] sm:$0xff]
    %v3480 = vld [vmem:[#allocation14 + $0x2d8] sm:$0xff]
    %v3481 = vld [vmem:[#allocation14 + $0x2e0] sm:$0xff]
    %v3482 = vld [vmem:[#allocation14 + $0x2e8] sm:$0xff]
    %v3483 = vld [vmem:[#allocation14 + $0x2f0] sm:$0xff]
    %v3484 = vld [vmem:[#allocation14 + $0x2f8] sm:$0xff]
    %v3485 = vld [vmem:[#allocation14 + $0x300] sm:$0xff]
    %v3486 = vld [vmem:[#allocation14 + $0x308] sm:$0xff]
    %v3487 = vld [vmem:[#allocation14 + $0x310] sm:$0xff]
    %v3488 = vld [vmem:[#allocation14 + $0x318] sm:$0xff]
    %v3489 = vld [vmem:[#allocation14 + $0x320] sm:$0xff]
    %v3490 = vld [vmem:[#allocation14 + $0x328] sm:$0xff]
    %v3491 = vld [vmem:[#allocation14 + $0x330] sm:$0xff]
    %v3492 = vld [vmem:[#allocation14 + $0x338] sm:$0xff]
    %v3493 = vld [vmem:[#allocation14 + $0x340] sm:$0xff]
    %v3494 = vld [vmem:[#allocation14 + $0x348] sm:$0xff]
    %v3495 = vld [vmem:[#allocation14 + $0x350] sm:$0xff]
    %v3496 = vld [vmem:[#allocation14 + $0x358] sm:$0xff]
    %v3497 = vld [vmem:[#allocation14 + $0x360] sm:$0xff]
    %v3498 = vld [vmem:[#allocation14 + $0x368] sm:$0xff]
    %v3499 = vld [vmem:[#allocation14 + $0x370] sm:$0xff]
    %v3500 = vld [vmem:[#allocation14 + $0x378] sm:$0xff]
    %v3501 = vld [vmem:[#allocation14 + $0x380] sm:$0xff]
    %v3502 = vld [vmem:[#allocation14 + $0x388] sm:$0xff]
    %v3503 = vld [vmem:[#allocation14 + $0x390] sm:$0xff]
    %v3504 = vld [vmem:[#allocation14 + $0x398] sm:$0xff]
    %v3505 = vld [vmem:[#allocation14 + $0x3a0] sm:$0xff]
    %v3506 = vld [vmem:[#allocation14 + $0x3a8] sm:$0xff]
    %v3507 = vld [vmem:[#allocation14 + $0x3b0] sm:$0xff]
    %v3508 = vld [vmem:[#allocation14 + $0x3b8] sm:$0xff]
    %v3509 = vld [vmem:[#allocation14 + $0x3c0] sm:$0xff]
    %v3510 = vld [vmem:[#allocation14 + $0x3c8] sm:$0xff]
    %v3511 = vld [vmem:[#allocation14 + $0x3d0] sm:$0xff]
    %v3512 = vld [vmem:[#allocation14 + $0x3d8] sm:$0xff]
    %v3513 = vld [vmem:[#allocation14 + $0x3e0] sm:$0xff]
    %v3514 = vld [vmem:[#allocation14 + $0x3e8] sm:$0xff]
    %v3515 = vld [vmem:[#allocation14 + $0x3f0] sm:$0xff]
    %v3516 = vld [vmem:[#allocation14 + $0x3f8] sm:$0xff]
    %v3517 = vld [vmem:[#allocation14 + $0x400] sm:$0xff]
    %v3518 = vld [vmem:[#allocation14 + $0x408] sm:$0xff]
    %v3519 = vld [vmem:[#allocation14 + $0x410] sm:$0xff]
    %v3520 = vld [vmem:[#allocation14 + $0x418] sm:$0xff]
    %v3521 = vld [vmem:[#allocation14 + $0x420] sm:$0xff]
    %v3522 = vld [vmem:[#allocation14 + $0x428] sm:$0xff]
    %v3523 = vld [vmem:[#allocation14 + $0x430] sm:$0xff]
    %v3524 = vld [vmem:[#allocation14 + $0x438] sm:$0xff]
    %v3525 = vld [vmem:[#allocation14 + $0x440] sm:$0xff]
    %v3526 = vld [vmem:[#allocation14 + $0x448] sm:$0xff]
    %v3527 = vld [vmem:[#allocation14 + $0x450] sm:$0xff]
    %v3528 = vld [vmem:[#allocation14 + $0x458] sm:$0xff]
    %v3529 = vld [vmem:[#allocation14 + $0x460] sm:$0xff]
    %v3530 = vld [vmem:[#allocation14 + $0x468] sm:$0xff]
    %v3531 = vld [vmem:[#allocation14 + $0x470] sm:$0xff]
    %v3532 = vld [vmem:[#allocation14 + $0x478] sm:$0xff]
    %v3533 = vld [vmem:[#allocation14 + $0x480] sm:$0xff]
    %v3534 = vld [vmem:[#allocation14 + $0x488] sm:$0xff]
    %v3535 = vld [vmem:[#allocation14 + $0x490] sm:$0xff]
    %v3536 = vld [vmem:[#allocation14 + $0x498] sm:$0xff]
    %v3537 = vld [vmem:[#allocation14 + $0x4a0] sm:$0xff]
    %v3538 = vld [vmem:[#allocation14 + $0x4a8] sm:$0xff]
    %v3539 = vld [vmem:[#allocation14 + $0x4b0] sm:$0xff]
    %v3540 = vld [vmem:[#allocation14 + $0x4b8] sm:$0xff]
    %v3541 = vld [vmem:[#allocation14 + $0x4c0] sm:$0xff]
    %v3542 = vld [vmem:[#allocation14 + $0x4c8] sm:$0xff]
    %v3543 = vld [vmem:[#allocation14 + $0x4d0] sm:$0xff]
    %v3544 = vld [vmem:[#allocation14 + $0x4d8] sm:$0xff]
    %v3545 = vld [vmem:[#allocation14 + $0x4e0] sm:$0xff]
    %v3546 = vld [vmem:[#allocation14 + $0x4e8] sm:$0xff]
    %v3547 = vld [vmem:[#allocation14 + $0x4f0] sm:$0xff]
    %v3548 = vld [vmem:[#allocation14 + $0x4f8] sm:$0xff]
    %v3549 = vld [vmem:[#allocation14 + $0x500] sm:$0xff]
    %v3550 = vld [vmem:[#allocation14 + $0x508] sm:$0xff]
    %v3551 = vld [vmem:[#allocation14 + $0x510] sm:$0xff]
    %v3552 = vld [vmem:[#allocation14 + $0x518] sm:$0xff]
    %v3553 = vld [vmem:[#allocation14 + $0x520] sm:$0xff]
    %v3554 = vld [vmem:[#allocation14 + $0x528] sm:$0xff]
    %v3555 = vld [vmem:[#allocation14 + $0x530] sm:$0xff]
    %v3556 = vld [vmem:[#allocation14 + $0x538] sm:$0xff]
    %v3557 = vld [vmem:[#allocation14 + $0x540] sm:$0xff]
    %v3558 = vld [vmem:[#allocation14 + $0x548] sm:$0xff]
    %v3559 = vld [vmem:[#allocation14 + $0x550] sm:$0xff]
    %v3560 = vld [vmem:[#allocation14 + $0x558] sm:$0xff]
    %v3561 = vld [vmem:[#allocation14 + $0x560] sm:$0xff]
    %v3562 = vld [vmem:[#allocation14 + $0x568] sm:$0xff]
    %v3563 = vld [vmem:[#allocation14 + $0x570] sm:$0xff]
    %v3564 = vld [vmem:[#allocation14 + $0x578] sm:$0xff]
    %v3565 = vld [vmem:[#allocation14 + $0x580] sm:$0xff]
    %v3566 = vld [vmem:[#allocation14 + $0x588] sm:$0xff]
    %v3567 = vld [vmem:[#allocation14 + $0x590] sm:$0xff]
    %v3568 = vld [vmem:[#allocation14 + $0x598] sm:$0xff]
    %v3569 = vld [vmem:[#allocation14 + $0x5a0] sm:$0xff]
    %v3570 = vld [vmem:[#allocation14 + $0x5a8] sm:$0xff]
    %v3571 = vld [vmem:[#allocation14 + $0x5b0] sm:$0xff]
    %v3572 = vld [vmem:[#allocation14 + $0x5b8] sm:$0xff]
    %v3573 = vld [vmem:[#allocation14 + $0x5c0] sm:$0xff]
    %v3574 = vld [vmem:[#allocation14 + $0x5c8] sm:$0xff]
    %v3575 = vld [vmem:[#allocation14 + $0x5d0] sm:$0xff]
    %v3576 = vld [vmem:[#allocation14 + $0x5d8] sm:$0xff]
    %v3577 = vld [vmem:[#allocation14 + $0x5e0] sm:$0xff]
    %v3578 = vld [vmem:[#allocation14 + $0x5e8] sm:$0xff]
    %v3579 = vld [vmem:[#allocation14 + $0x5f0] sm:$0xff]
    %v3580 = vld [vmem:[#allocation14 + $0x5f8] sm:$0xff]
    %v3581 = vld [vmem:[#allocation14 + $0x600] sm:$0xff]
    %v3582 = vld [vmem:[#allocation14 + $0x608] sm:$0xff]
    %v3583 = vld [vmem:[#allocation14 + $0x610] sm:$0xff]
    %v3584 = vld [vmem:[#allocation14 + $0x618] sm:$0xff]
    %v3585 = vld [vmem:[#allocation14 + $0x620] sm:$0xff]
    %v3586 = vld [vmem:[#allocation14 + $0x628] sm:$0xff]
    %v3587 = vld [vmem:[#allocation14 + $0x630] sm:$0xff]
    %v3588 = vld [vmem:[#allocation14 + $0x638] sm:$0xff]
    %v3589 = vld [vmem:[#allocation14 + $0x640] sm:$0xff]
    %v3590 = vld [vmem:[#allocation14 + $0x648] sm:$0xff]
    %v3591 = vld [vmem:[#allocation14 + $0x650] sm:$0xff]
    %v3592 = vld [vmem:[#allocation14 + $0x658] sm:$0xff]
    %v3593 = vld [vmem:[#allocation14 + $0x660] sm:$0xff]
    %v3594 = vld [vmem:[#allocation14 + $0x668] sm:$0xff]
    %v3595 = vld [vmem:[#allocation14 + $0x670] sm:$0xff]
    %v3596 = vld [vmem:[#allocation14 + $0x678] sm:$0xff]
    %v3597 = vld [vmem:[#allocation14 + $0x680] sm:$0xff]
    %v3598 = vld [vmem:[#allocation14 + $0x688] sm:$0xff]
    %v3599 = vld [vmem:[#allocation14 + $0x690] sm:$0xff]
    %v3600 = vld [vmem:[#allocation14 + $0x698] sm:$0xff]
    %v3601 = vld [vmem:[#allocation14 + $0x6a0] sm:$0xff]
    %v3602 = vld [vmem:[#allocation14 + $0x6a8] sm:$0xff]
    %v3603 = vld [vmem:[#allocation14 + $0x6b0] sm:$0xff]
    %v3604 = vld [vmem:[#allocation14 + $0x6b8] sm:$0xff]
    %v3605 = vld [vmem:[#allocation14 + $0x6c0] sm:$0xff]
    %v3606 = vld [vmem:[#allocation14 + $0x6c8] sm:$0xff]
    %v3607 = vld [vmem:[#allocation14 + $0x6d0] sm:$0xff]
    %v3608 = vld [vmem:[#allocation14 + $0x6d8] sm:$0xff]
    %v3609 = vld [vmem:[#allocation14 + $0x6e0] sm:$0xff]
    %v3610 = vld [vmem:[#allocation14 + $0x6e8] sm:$0xff]
    %v3611 = vld [vmem:[#allocation14 + $0x6f0] sm:$0xff]
    %v3612 = vld [vmem:[#allocation14 + $0x6f8] sm:$0xff]
    %v3613 = vld [vmem:[#allocation14 + $0x700] sm:$0xff]
    %v3614 = vld [vmem:[#allocation14 + $0x708] sm:$0xff]
    %v3615 = vld [vmem:[#allocation14 + $0x710] sm:$0xff]
    %v3616 = vld [vmem:[#allocation14 + $0x718] sm:$0xff]
    %v3617 = vld [vmem:[#allocation14 + $0x720] sm:$0xff]
    %v3618 = vld [vmem:[#allocation14 + $0x728] sm:$0xff]
    %v3619 = vld [vmem:[#allocation14 + $0x730] sm:$0xff]
    %v3620 = vld [vmem:[#allocation14 + $0x738] sm:$0xff]
    %v3621 = vld [vmem:[#allocation14 + $0x740] sm:$0xff]
    %v3622 = vld [vmem:[#allocation14 + $0x748] sm:$0xff]
    %v3623 = vld [vmem:[#allocation14 + $0x750] sm:$0xff]
    %v3624 = vld [vmem:[#allocation14 + $0x758] sm:$0xff]
    %v3625 = vld [vmem:[#allocation14 + $0x760] sm:$0xff]
    %v3626 = vld [vmem:[#allocation14 + $0x768] sm:$0xff]
    %v3627 = vld [vmem:[#allocation14 + $0x770] sm:$0xff]
    %v3628 = vld [vmem:[#allocation14 + $0x778] sm:$0xff]
    %v3629 = vld [vmem:[#allocation14 + $0x780] sm:$0xff]
    %v3630 = vld [vmem:[#allocation14 + $0x788] sm:$0xff]
    %v3631 = vld [vmem:[#allocation14 + $0x790] sm:$0xff]
    %v3632 = vld [vmem:[#allocation14 + $0x798] sm:$0xff]
    %v3633 = vld [vmem:[#allocation14 + $0x7a0] sm:$0xff]
    %v3634 = vld [vmem:[#allocation14 + $0x7a8] sm:$0xff]
    %v3635 = vld [vmem:[#allocation14 + $0x7b0] sm:$0xff]
    %v3636 = vld [vmem:[#allocation14 + $0x7b8] sm:$0xff]
    %v3637 = vld [vmem:[#allocation14 + $0x7c0] sm:$0xff]
    %v3638 = vld [vmem:[#allocation14 + $0x7c8] sm:$0xff]
    %v3639 = vld [vmem:[#allocation14 + $0x7d0] sm:$0xff]
    %v3640 = vld [vmem:[#allocation14 + $0x7d8] sm:$0xff]
    %v3641 = vld [vmem:[#allocation14 + $0x7e0] sm:$0xff]
    %v3642 = vld [vmem:[#allocation14 + $0x7e8] sm:$0xff]
    %v3643 = vld [vmem:[#allocation14 + $0x7f0] sm:$0xff]
    %v3644 = vld [vmem:[#allocation14 + $0x7f8] sm:$0xff]
    %3645 = vmatprep.subr.mxu0 %v3390
    %3646 = vmatpush1.msra.mxu0 %v3389
    %3647 = vmatprep.subr.mxu0 %v3398
    %3648 = vmatpush1.msra.mxu0 %v3397
    %3649 = vmatprep.subr.mxu0 %v3406
    %3650 = vmatpush1.msra.mxu0 %v3405
    %3651 = vmatprep.subr.mxu0 %v3414
    %3652 = vmatpush1.msra.mxu0 %v3413
    %3653 = vmatprep.subr.mxu0 %v3422
    %3654 = vmatpush1.msra.mxu0 %v3421
    %3655 = vmatprep.subr.mxu0 %v3430
    %3656 = vmatpush1.msra.mxu0 %v3429
    %3657 = vmatprep.subr.mxu0 %v3438
    %3658 = vmatpush1.msra.mxu0 %v3437
    %3659 = vmatprep.subr.mxu0 %v3446
    %3660 = vmatpush1.msra.mxu0 %v3445
    %3661 = vmatprep.subr.mxu0 %v3454
    %3662 = vmatpush1.msra.mxu0 %v3453
    %3663 = vmatprep.subr.mxu0 %v3462
    %3664 = vmatpush1.msra.mxu0 %v3461
    %3665 = vmatprep.subr.mxu0 %v3470
    %3666 = vmatpush1.msra.mxu0 %v3469
    %3667 = vmatprep.subr.mxu0 %v3478
    %3668 = vmatpush1.msra.mxu0 %v3477
    %3669 = vmatprep.subr.mxu0 %v3486
    %3670 = vmatpush1.msra.mxu0 %v3485
    %3671 = vmatprep.subr.mxu0 %v3494
    %3672 = vmatpush1.msra.mxu0 %v3493
    %3673 = vmatprep.subr.mxu0 %v3502
    %3674 = vmatpush1.msra.mxu0 %v3501
    %3675 = vmatprep.subr.mxu0 %v3510
    %3676 = vmatpush1.msra.mxu0 %v3509
    %3677 = vmatprep.subr.mxu0 %v3518
    %3678 = vmatpush1.msra.mxu0 %v3517
    %3679 = vmatprep.subr.mxu0 %v3526
    %3680 = vmatpush1.msra.mxu0 %v3525
    %3681 = vmatprep.subr.mxu0 %v3534
    %3682 = vmatpush1.msra.mxu0 %v3533
    %3683 = vmatprep.subr.mxu0 %v3542
    %3684 = vmatpush1.msra.mxu0 %v3541
    %3685 = vmatprep.subr.mxu0 %v3550
    %3686 = vmatpush1.msra.mxu0 %v3549
    %3687 = vmatprep.subr.mxu0 %v3558
    %3688 = vmatpush1.msra.mxu0 %v3557
    %3689 = vmatprep.subr.mxu0 %v3566
    %3690 = vmatpush1.msra.mxu0 %v3565
    %3691 = vmatprep.subr.mxu0 %v3574
    %3692 = vmatpush1.msra.mxu0 %v3573
    %3693 = vmatprep.subr.mxu0 %v3582
    %3694 = vmatpush1.msra.mxu0 %v3581
    %3695 = vmatprep.subr.mxu0 %v3590
    %3696 = vmatpush1.msra.mxu0 %v3589
    %3697 = vmatprep.subr.mxu0 %v3598
    %3698 = vmatpush1.msra.mxu0 %v3597
    %3699 = vmatprep.subr.mxu0 %v3606
    %3700 = vmatpush1.msra.mxu0 %v3605
    %3701 = vmatprep.subr.mxu0 %v3614
    %3702 = vmatpush1.msra.mxu0 %v3613
    %3703 = vmatprep.subr.mxu0 %v3622
    %3704 = vmatpush1.msra.mxu0 %v3621
    %3705 = vmatprep.subr.mxu0 %v3630
    %3706 = vmatpush1.msra.mxu0 %v3629
    %3707 = vmatprep.subr.mxu0 %v3638
    %3708 = vmatpush1.msra.mxu0 %v3637
    %3709 = vmatprep.mubr.f32.mxu0 %v3388
    %3710 = vmatmul.mubr.f32.gmra.mrb[0].mxu0 %v3387
    %v3711 = vpop.f32.mrb[0].mxu0
    %v3712 = vadd.f32 0.0, %v3711
    %v3713 = vpop.f32.mrb[0].mxu0
    %v3714 = vadd.f32 0.0, %v3713
    %3715 = vdwg.mxu0
    %3716 = vmatprep.subr.mxu0 %v3392
    %3717 = vmatpush1.msra.mxu0 %v3391
    %3718 = vmatprep.subr.mxu0 %v3400
    %3719 = vmatpush1.msra.mxu0 %v3399
    %3720 = vmatprep.subr.mxu0 %v3408
    %3721 = vmatpush1.msra.mxu0 %v3407
    %3722 = vmatprep.subr.mxu0 %v3416
    %3723 = vmatpush1.msra.mxu0 %v3415
    %3724 = vmatprep.subr.mxu0 %v3424
    %3725 = vmatpush1.msra.mxu0 %v3423
    %3726 = vmatprep.subr.mxu0 %v3432
    %3727 = vmatpush1.msra.mxu0 %v3431
    %3728 = vmatprep.subr.mxu0 %v3440
    %3729 = vmatpush1.msra.mxu0 %v3439
    %3730 = vmatprep.subr.mxu0 %v3448
    %3731 = vmatpush1.msra.mxu0 %v3447
    %3732 = vmatprep.subr.mxu0 %v3456
    %3733 = vmatpush1.msra.mxu0 %v3455
    %3734 = vmatprep.subr.mxu0 %v3464
    %3735 = vmatpush1.msra.mxu0 %v3463
    %3736 = vmatprep.subr.mxu0 %v3472
    %3737 = vmatpush1.msra.mxu0 %v3471
    %3738 = vmatprep.subr.mxu0 %v3480
    %3739 = vmatpush1.msra.mxu0 %v3479
    %3740 = vmatprep.subr.mxu0 %v3488
    %3741 = vmatpush1.msra.mxu0 %v3487
    %3742 = vmatprep.subr.mxu0 %v3496
    %3743 = vmatpush1.msra.mxu0 %v3495
    %3744 = vmatprep.subr.mxu0 %v3504
    %3745 = vmatpush1.msra.mxu0 %v3503
    %3746 = vmatprep.subr.mxu0 %v3512
    %3747 = vmatpush1.msra.mxu0 %v3511
    %3748 = vmatprep.subr.mxu0 %v3520
    %3749 = vmatpush1.msra.mxu0 %v3519
    %3750 = vmatprep.subr.mxu0 %v3528
    %3751 = vmatpush1.msra.mxu0 %v3527
    %3752 = vmatprep.subr.mxu0 %v3536
    %3753 = vmatpush1.msra.mxu0 %v3535
    %3754 = vmatprep.subr.mxu0 %v3544
    %3755 = vmatpush1.msra.mxu0 %v3543
    %3756 = vmatprep.subr.mxu0 %v3552
    %3757 = vmatpush1.msra.mxu0 %v3551
    %3758 = vmatprep.subr.mxu0 %v3560
    %3759 = vmatpush1.msra.mxu0 %v3559
    %3760 = vmatprep.subr.mxu0 %v3568
    %3761 = vmatpush1.msra.mxu0 %v3567
    %3762 = vmatprep.subr.mxu0 %v3576
    %3763 = vmatpush1.msra.mxu0 %v3575
    %3764 = vmatprep.subr.mxu0 %v3584
    %3765 = vmatpush1.msra.mxu0 %v3583
    %3766 = vmatprep.subr.mxu0 %v3592
    %3767 = vmatpush1.msra.mxu0 %v3591
    %3768 = vmatprep.subr.mxu0 %v3600
    %3769 = vmatpush1.msra.mxu0 %v3599
    %3770 = vmatprep.subr.mxu0 %v3608
    %3771 = vmatpush1.msra.mxu0 %v3607
    %3772 = vmatprep.subr.mxu0 %v3616
    %3773 = vmatpush1.msra.mxu0 %v3615
    %3774 = vmatprep.subr.mxu0 %v3624
    %3775 = vmatpush1.msra.mxu0 %v3623
    %3776 = vmatprep.subr.mxu0 %v3632
    %3777 = vmatpush1.msra.mxu0 %v3631
    %3778 = vmatprep.subr.mxu0 %v3640
    %3779 = vmatpush1.msra.mxu0 %v3639
    %3780 = vmatprep.mubr.f32.mxu0 %v3388
    %3781 = vmatmul.mubr.f32.gmra.mrb[0].mxu0 %v3387
    %v3782 = vpop.f32.mrb[0].mxu0
    %v3783 = vadd.f32 0.0, %v3782
    %v3784 = vpop.f32.mrb[0].mxu0
    %v3785 = vadd.f32 0.0, %v3784
    %3786 = vdwg.mxu0
    %3787 = vmatprep.subr.mxu0 %v3394
    %3788 = vmatpush1.msra.mxu0 %v3393
    %3789 = vmatprep.subr.mxu0 %v3402
    %3790 = vmatpush1.msra.mxu0 %v3401
    %3791 = vmatprep.subr.mxu0 %v3410
    %3792 = vmatpush1.msra.mxu0 %v3409
    %3793 = vmatprep.subr.mxu0 %v3418
    %3794 = vmatpush1.msra.mxu0 %v3417
    %3795 = vmatprep.subr.mxu0 %v3426
    %3796 = vmatpush1.msra.mxu0 %v3425
    %3797 = vmatprep.subr.mxu0 %v3434
    %3798 = vmatpush1.msra.mxu0 %v3433
    %3799 = vmatprep.subr.mxu0 %v3442
    %3800 = vmatpush1.msra.mxu0 %v3441
    %3801 = vmatprep.subr.mxu0 %v3450
    %3802 = vmatpush1.msra.mxu0 %v3449
    %3803 = vmatprep.subr.mxu0 %v3458
    %3804 = vmatpush1.msra.mxu0 %v3457
    %3805 = vmatprep.subr.mxu0 %v3466
    %3806 = vmatpush1.msra.mxu0 %v3465
    %3807 = vmatprep.subr.mxu0 %v3474
    %3808 = vmatpush1.msra.mxu0 %v3473
    %3809 = vmatprep.subr.mxu0 %v3482
    %3810 = vmatpush1.msra.mxu0 %v3481
    %3811 = vmatprep.subr.mxu0 %v3490
    %3812 = vmatpush1.msra.mxu0 %v3489
    %3813 = vmatprep.subr.mxu0 %v3498
    %3814 = vmatpush1.msra.mxu0 %v3497
    %3815 = vmatprep.subr.mxu0 %v3506
    %3816 = vmatpush1.msra.mxu0 %v3505
    %3817 = vmatprep.subr.mxu0 %v3514
    %3818 = vmatpush1.msra.mxu0 %v3513
    %3819 = vmatprep.subr.mxu0 %v3522
    %3820 = vmatpush1.msra.mxu0 %v3521
    %3821 = vmatprep.subr.mxu0 %v3530
    %3822 = vmatpush1.msra.mxu0 %v3529
    %3823 = vmatprep.subr.mxu0 %v3538
    %3824 = vmatpush1.msra.mxu0 %v3537
    %3825 = vmatprep.subr.mxu0 %v3546
    %3826 = vmatpush1.msra.mxu0 %v3545
    %3827 = vmatprep.subr.mxu0 %v3554
    %3828 = vmatpush1.msra.mxu0 %v3553
    %3829 = vmatprep.subr.mxu0 %v3562
    %3830 = vmatpush1.msra.mxu0 %v3561
    %3831 = vmatprep.subr.mxu0 %v3570
    %3832 = vmatpush1.msra.mxu0 %v3569
    %3833 = vmatprep.subr.mxu0 %v3578
    %3834 = vmatpush1.msra.mxu0 %v3577
    %3835 = vmatprep.subr.mxu0 %v3586
    %3836 = vmatpush1.msra.mxu0 %v3585
    %3837 = vmatprep.subr.mxu0 %v3594
    %3838 = vmatpush1.msra.mxu0 %v3593
    %3839 = vmatprep.subr.mxu0 %v3602
    %3840 = vmatpush1.msra.mxu0 %v3601
    %3841 = vmatprep.subr.mxu0 %v3610
    %3842 = vmatpush1.msra.mxu0 %v3609
    %3843 = vmatprep.subr.mxu0 %v3618
    %3844 = vmatpush1.msra.mxu0 %v3617
    %3845 = vmatprep.subr.mxu0 %v3626
    %3846 = vmatpush1.msra.mxu0 %v3625
    %3847 = vmatprep.subr.mxu0 %v3634
    %3848 = vmatpush1.msra.mxu0 %v3633
    %3849 = vmatprep.subr.mxu0 %v3642
    %3850 = vmatpush1.msra.mxu0 %v3641
    %3851 = vmatprep.mubr.f32.mxu0 %v3388
    %3852 = vmatmul.mubr.f32.gmra.mrb[0].mxu0 %v3387
    %v3853 = vpop.f32.mrb[0].mxu0
    %v3854 = vadd.f32 0.0, %v3853
    %v3855 = vpop.f32.mrb[0].mxu0
    %v3856 = vadd.f32 0.0, %v3855
    %3857 = vdwg.mxu0
    %3858 = vmatprep.subr.mxu0 %v3396
    %3859 = vmatpush1.msra.mxu0 %v3395
    %3860 = vmatprep.subr.mxu0 %v3404
    %3861 = vmatpush1.msra.mxu0 %v3403
    %3862 = vmatprep.subr.mxu0 %v3412
    %3863 = vmatpush1.msra.mxu0 %v3411
    %3864 = vmatprep.subr.mxu0 %v3420
    %3865 = vmatpush1.msra.mxu0 %v3419
    %3866 = vmatprep.subr.mxu0 %v3428
    %3867 = vmatpush1.msra.mxu0 %v3427
    %3868 = vmatprep.subr.mxu0 %v3436
    %3869 = vmatpush1.msra.mxu0 %v3435
    %3870 = vmatprep.subr.mxu0 %v3444
    %3871 = vmatpush1.msra.mxu0 %v3443
    %3872 = vmatprep.subr.mxu0 %v3452
    %3873 = vmatpush1.msra.mxu0 %v3451
    %3874 = vmatprep.subr.mxu0 %v3460
    %3875 = vmatpush1.msra.mxu0 %v3459
    %3876 = vmatprep.subr.mxu0 %v3468
    %3877 = vmatpush1.msra.mxu0 %v3467
    %3878 = vmatprep.subr.mxu0 %v3476
    %3879 = vmatpush1.msra.mxu0 %v3475
    %3880 = vmatprep.subr.mxu0 %v3484
    %3881 = vmatpush1.msra.mxu0 %v3483
    %3882 = vmatprep.subr.mxu0 %v3492
    %3883 = vmatpush1.msra.mxu0 %v3491
    %3884 = vmatprep.subr.mxu0 %v3500
    %3885 = vmatpush1.msra.mxu0 %v3499
    %3886 = vmatprep.subr.mxu0 %v3508
    %3887 = vmatpush1.msra.mxu0 %v3507
    %3888 = vmatprep.subr.mxu0 %v3516
    %3889 = vmatpush1.msra.mxu0 %v3515
    %3890 = vmatprep.subr.mxu0 %v3524
    %3891 = vmatpush1.msra.mxu0 %v3523
    %3892 = vmatprep.subr.mxu0 %v3532
    %3893 = vmatpush1.msra.mxu0 %v3531
    %3894 = vmatprep.subr.mxu0 %v3540
    %3895 = vmatpush1.msra.mxu0 %v3539
    %3896 = vmatprep.subr.mxu0 %v3548
    %3897 = vmatpush1.msra.mxu0 %v3547
    %3898 = vmatprep.subr.mxu0 %v3556
    %3899 = vmatpush1.msra.mxu0 %v3555
    %3900 = vmatprep.subr.mxu0 %v3564
    %3901 = vmatpush1.msra.mxu0 %v3563
    %3902 = vmatprep.subr.mxu0 %v3572
    %3903 = vmatpush1.msra.mxu0 %v3571
    %3904 = vmatprep.subr.mxu0 %v3580
    %3905 = vmatpush1.msra.mxu0 %v3579
    %3906 = vmatprep.subr.mxu0 %v3588
    %3907 = vmatpush1.msra.mxu0 %v3587
    %3908 = vmatprep.subr.mxu0 %v3596
    %3909 = vmatpush1.msra.mxu0 %v3595
    %3910 = vmatprep.subr.mxu0 %v3604
    %3911 = vmatpush1.msra.mxu0 %v3603
    %3912 = vmatprep.subr.mxu0 %v3612
    %3913 = vmatpush1.msra.mxu0 %v3611
    %3914 = vmatprep.subr.mxu0 %v3620
    %3915 = vmatpush1.msra.mxu0 %v3619
    %3916 = vmatprep.subr.mxu0 %v3628
    %3917 = vmatpush1.msra.mxu0 %v3627
    %3918 = vmatprep.subr.mxu0 %v3636
    %3919 = vmatpush1.msra.mxu0 %v3635
    %3920 = vmatprep.subr.mxu0 %v3644
    %3921 = vmatpush1.msra.mxu0 %v3643
    %3922 = vmatprep.mubr.f32.mxu0 %v3388
    %3923 = vmatmul.mubr.f32.gmra.mrb[0].mxu0 %v3387
    %v3924 = vpop.f32.mrb[0].mxu0
    %v3925 = vadd.f32 0.0, %v3924
    %v3926 = vpop.f32.mrb[0].mxu0
    %v3927 = vadd.f32 0.0, %v3926
    %3928 = vdwg.mxu0
    %s3929 = smul.addr %s3343, 8
    %s3930 = scalar_lea.vmem [#allocation2], %s3929
    %v3931 = vld [vmem:[%s3930] sm:$0xff]
    %v3932 = vld [vmem:[%s3930 + $0x8] sm:$0xff]
    %v3933 = vld [vmem:[%s3930 + $0x10] sm:$0xff]
    %v3934 = vld [vmem:[%s3930 + $0x18] sm:$0xff]
    %v3935 = vadd.f32 %v3931, %v3712
    %v3936 = vadd.f32 %v3932, %v3714
    %v3937 = vadd.f32 %v3933, %v3783
    %v3938 = vadd.f32 %v3934, %v3785
    %v3939 = vld [vmem:[#allocation5] sm:$0xff]
    %v3940 = vxor.u32 %v3935, 2147483648
    %v3941 = vxor.u32 %v3936, 2147483648
    %v3942 = vxor.u32 %v3937, 2147483648
    %v3943 = vmul.f32 %v3940, 1.442695
    %v3944 = vpow.pop %v3943
    %v3945 = vmul.f32 %v3941, 1.442695
    %v3946 = vpow.pop %v3945
    %v3947 = vmul.f32 %v3942, 1.442695
    %v3948 = vpow.pop %v3947
    %v3949 = vadd.f32 %v3944, 1.0
    %v3950 = vadd.f32 %v3946, 1.0
    %v3951 = vadd.f32 %v3948, 1.0
    %v3952 = vrcp.pop %v3949
    %v3953 = vmul.f32 1.0, %v3952
    %v3954 = vrcp.pop %v3950
    %v3955 = vmul.f32 1.0, %v3954
    %v3956 = vrcp.pop %v3951
    %v3957 = vmul.f32 1.0, %v3956
    %v3958 = vtanh.pop %v3938
    %v3959 = vmul.f32 %v3955, %v3939
    %v3960 = vmul.f32 %v3953, %v3958
    %v3961 = vadd.f32 %v3959, %v3960
    %v3962 = vtanh.pop %v3961
    %v3963 = vmul.f32 %v3957, %v3962
    %s3964 = smul.addr %s3307, 8
    %s3965 = scalar_lea.vmem [#allocation3], %s3964
    %v3966 = vld [vmem:[%s3965] sm:$0xff]
    %v3967 = vld [vmem:[%s3965 + $0x8] sm:$0xff]
    %v3968 = vld [vmem:[%s3965 + $0x10] sm:$0xff]
    %v3969 = vld [vmem:[%s3965 + $0x18] sm:$0xff]
    %v3970 = vadd.f32 %v3966, %v3854
    %v3971 = vadd.f32 %v3967, %v3856
    %v3972 = vadd.f32 %v3968, %v3925
    %v3973 = vadd.f32 %v3969, %v3927
    %v3974 = vld [vmem:[#allocation5 + $0x8] sm:$0xff]
    %v3975 = vxor.u32 %v3970, 2147483648
    %v3976 = vxor.u32 %v3971, 2147483648
    %v3977 = vxor.u32 %v3972, 2147483648
    %v3978 = vmul.f32 %v3975, 1.442695
    %v3979 = vpow.pop %v3978
    %v3980 = vmul.f32 %v3976, 1.442695
    %v3981 = vpow.pop %v3980
    %v3982 = vmul.f32 %v3977, 1.442695
    %v3983 = vpow.pop %v3982
    %v3984 = vadd.f32 %v3979, 1.0
    %v3985 = vadd.f32 %v3981, 1.0
    %v3986 = vadd.f32 %v3983, 1.0
    %v3987 = vrcp.pop %v3984
    %v3988 = vmul.f32 1.0, %v3987
    %v3989 = vrcp.pop %v3985
    %v3990 = vmul.f32 1.0, %v3989
    %v3991 = vrcp.pop %v3986
    %v3992 = vmul.f32 1.0, %v3991
    %v3993 = vtanh.pop %v3973
    %v3994 = vmul.f32 %v3990, %v3974
    %v3995 = vmul.f32 %v3988, %v3993
    %v3996 = vadd.f32 %v3994, %v3995
    %v3997 = vtanh.pop %v3996
    %v3998 = vmul.f32 %v3992, %v3997
    %3999 = vst [vmem:[#allocation4] sm:$0xff] %v3963
    %4000 = vst [vmem:[#allocation4 + $0x8] sm:$0xff] %v3998
    %4001 = vst [vmem:[#allocation5] sm:$0xff] %v3961
    %4002 = vst [vmem:[#allocation5 + $0x8] sm:$0xff] %v3996
    %s4003 = scalar_lea.vmem [#allocation15], 32
    %4004 = vst [vmem:[%s4003] sm:$0xff] %v3963
    %s4005 = scalar_lea.vmem [#allocation16], 24
    %4006 = vst [vmem:[%s4005] sm:$0xff] %v3998
    %v4007 = vld [vmem:[#allocation4] sm:$0xff]
    %v4008 = vld [vmem:[#allocation4 + $0x8] sm:$0xff]
    %v4009 = vld [vmem:[#allocation14] sm:$0xff]
    %v4010 = vld [vmem:[#allocation14 + $0x8] sm:$0xff]
    %v4011 = vld [vmem:[#allocation14 + $0x10] sm:$0xff]
    %v4012 = vld [vmem:[#allocation14 + $0x18] sm:$0xff]
    %v4013 = vld [vmem:[#allocation14 + $0x20] sm:$0xff]
    %v4014 = vld [vmem:[#allocation14 + $0x28] sm:$0xff]
    %v4015 = vld [vmem:[#allocation14 + $0x30] sm:$0xff]
    %v4016 = vld [vmem:[#allocation14 + $0x38] sm:$0xff]
    %v4017 = vld [vmem:[#allocation14 + $0x40] sm:$0xff]
    %v4018 = vld [vmem:[#allocation14 + $0x48] sm:$0xff]
    %v4019 = vld [vmem:[#allocation14 + $0x50] sm:$0xff]
    %v4020 = vld [vmem:[#allocation14 + $0x58] sm:$0xff]
    %v4021 = vld [vmem:[#allocation14 + $0x60] sm:$0xff]
    %v4022 = vld [vmem:[#allocation14 + $0x68] sm:$0xff]
    %v4023 = vld [vmem:[#allocation14 + $0x70] sm:$0xff]
    %v4024 = vld [vmem:[#allocation14 + $0x78] sm:$0xff]
    %v4025 = vld [vmem:[#allocation14 + $0x80] sm:$0xff]
    %v4026 = vld [vmem:[#allocation14 + $0x88] sm:$0xff]
    %v4027 = vld [vmem:[#allocation14 + $0x90] sm:$0xff]
    %v4028 = vld [vmem:[#allocation14 + $0x98] sm:$0xff]
    %v4029 = vld [vmem:[#allocation14 + $0xa0] sm:$0xff]
    %v4030 = vld [vmem:[#allocation14 + $0xa8] sm:$0xff]
    %v4031 = vld [vmem:[#allocation14 + $0xb0] sm:$0xff]
    %v4032 = vld [vmem:[#allocation14 + $0xb8] sm:$0xff]
    %v4033 = vld [vmem:[#allocation14 + $0xc0] sm:$0xff]
    %v4034 = vld [vmem:[#allocation14 + $0xc8] sm:$0xff]
    %v4035 = vld [vmem:[#allocation14 + $0xd0] sm:$0xff]
    %v4036 = vld [vmem:[#allocation14 + $0xd8] sm:$0xff]
    %v4037 = vld [vmem:[#allocation14 + $0xe0] sm:$0xff]
    %v4038 = vld [vmem:[#allocation14 + $0xe8] sm:$0xff]
    %v4039 = vld [vmem:[#allocation14 + $0xf0] sm:$0xff]
    %v4040 = vld [vmem:[#allocation14 + $0xf8] sm:$0xff]
    %v4041 = vld [vmem:[#allocation14 + $0x100] sm:$0xff]
    %v4042 = vld [vmem:[#allocation14 + $0x108] sm:$0xff]
    %v4043 = vld [vmem:[#allocation14 + $0x110] sm:$0xff]
    %v4044 = vld [vmem:[#allocation14 + $0x118] sm:$0xff]
    %v4045 = vld [vmem:[#allocation14 + $0x120] sm:$0xff]
    %v4046 = vld [vmem:[#allocation14 + $0x128] sm:$0xff]
    %v4047 = vld [vmem:[#allocation14 + $0x130] sm:$0xff]
    %v4048 = vld [vmem:[#allocation14 + $0x138] sm:$0xff]
    %v4049 = vld [vmem:[#allocation14 + $0x140] sm:$0xff]
    %v4050 = vld [vmem:[#allocation14 + $0x148] sm:$0xff]
    %v4051 = vld [vmem:[#allocation14 + $0x150] sm:$0xff]
    %v4052 = vld [vmem:[#allocation14 + $0x158] sm:$0xff]
    %v4053 = vld [vmem:[#allocation14 + $0x160] sm:$0xff]
    %v4054 = vld [vmem:[#allocation14 + $0x168] sm:$0xff]
    %v4055 = vld [vmem:[#allocation14 + $0x170] sm:$0xff]
    %v4056 = vld [vmem:[#allocation14 + $0x178] sm:$0xff]
    %v4057 = vld [vmem:[#allocation14 + $0x180] sm:$0xff]
    %v4058 = vld [vmem:[#allocation14 + $0x188] sm:$0xff]
    %v4059 = vld [vmem:[#allocation14 + $0x190] sm:$0xff]
    %v4060 = vld [vmem:[#allocation14 + $0x198] sm:$0xff]
    %v4061 = vld [vmem:[#allocation14 + $0x1a0] sm:$0xff]
    %v4062 = vld [vmem:[#allocation14 + $0x1a8] sm:$0xff]
    %v4063 = vld [vmem:[#allocation14 + $0x1b0] sm:$0xff]
    %v4064 = vld [vmem:[#allocation14 + $0x1b8] sm:$0xff]
    %v4065 = vld [vmem:[#allocation14 + $0x1c0] sm:$0xff]
    %v4066 = vld [vmem:[#allocation14 + $0x1c8] sm:$0xff]
    %v4067 = vld [vmem:[#allocation14 + $0x1d0] sm:$0xff]
    %v4068 = vld [vmem:[#allocation14 + $0x1d8] sm:$0xff]
    %v4069 = vld [vmem:[#allocation14 + $0x1e0] sm:$0xff]
    %v4070 = vld [vmem:[#allocation14 + $0x1e8] sm:$0xff]
    %v4071 = vld [vmem:[#allocation14 + $0x1f0] sm:$0xff]
    %v4072 = vld [vmem:[#allocation14 + $0x1f8] sm:$0xff]
    %v4073 = vld [vmem:[#allocation14 + $0x200] sm:$0xff]
    %v4074 = vld [vmem:[#allocation14 + $0x208] sm:$0xff]
    %v4075 = vld [vmem:[#allocation14 + $0x210] sm:$0xff]
    %v4076 = vld [vmem:[#allocation14 + $0x218] sm:$0xff]
    %v4077 = vld [vmem:[#allocation14 + $0x220] sm:$0xff]
    %v4078 = vld [vmem:[#allocation14 + $0x228] sm:$0xff]
    %v4079 = vld [vmem:[#allocation14 + $0x230] sm:$0xff]
    %v4080 = vld [vmem:[#allocation14 + $0x238] sm:$0xff]
    %v4081 = vld [vmem:[#allocation14 + $0x240] sm:$0xff]
    %v4082 = vld [vmem:[#allocation14 + $0x248] sm:$0xff]
    %v4083 = vld [vmem:[#allocation14 + $0x250] sm:$0xff]
    %v4084 = vld [vmem:[#allocation14 + $0x258] sm:$0xff]
    %v4085 = vld [vmem:[#allocation14 + $0x260] sm:$0xff]
    %v4086 = vld [vmem:[#allocation14 + $0x268] sm:$0xff]
    %v4087 = vld [vmem:[#allocation14 + $0x270] sm:$0xff]
    %v4088 = vld [vmem:[#allocation14 + $0x278] sm:$0xff]
    %v4089 = vld [vmem:[#allocation14 + $0x280] sm:$0xff]
    %v4090 = vld [vmem:[#allocation14 + $0x288] sm:$0xff]
    %v4091 = vld [vmem:[#allocation14 + $0x290] sm:$0xff]
    %v4092 = vld [vmem:[#allocation14 + $0x298] sm:$0xff]
    %v4093 = vld [vmem:[#allocation14 + $0x2a0] sm:$0xff]
    %v4094 = vld [vmem:[#allocation14 + $0x2a8] sm:$0xff]
    %v4095 = vld [vmem:[#allocation14 + $0x2b0] sm:$0xff]
    %v4096 = vld [vmem:[#allocation14 + $0x2b8] sm:$0xff]
    %v4097 = vld [vmem:[#allocation14 + $0x2c0] sm:$0xff]
    %v4098 = vld [vmem:[#allocation14 + $0x2c8] sm:$0xff]
    %v4099 = vld [vmem:[#allocation14 + $0x2d0] sm:$0xff]
    %v4100 = vld [vmem:[#allocation14 + $0x2d8] sm:$0xff]
    %v4101 = vld [vmem:[#allocation14 + $0x2e0] sm:$0xff]
    %v4102 = vld [vmem:[#allocation14 + $0x2e8] sm:$0xff]
    %v4103 = vld [vmem:[#allocation14 + $0x2f0] sm:$0xff]
    %v4104 = vld [vmem:[#allocation14 + $0x2f8] sm:$0xff]
    %v4105 = vld [vmem:[#allocation14 + $0x300] sm:$0xff]
    %v4106 = vld [vmem:[#allocation14 + $0x308] sm:$0xff]
    %v4107 = vld [vmem:[#allocation14 + $0x310] sm:$0xff]
    %v4108 = vld [vmem:[#allocation14 + $0x318] sm:$0xff]
    %v4109 = vld [vmem:[#allocation14 + $0x320] sm:$0xff]
    %v4110 = vld [vmem:[#allocation14 + $0x328] sm:$0xff]
    %v4111 = vld [vmem:[#allocation14 + $0x330] sm:$0xff]
    %v4112 = vld [vmem:[#allocation14 + $0x338] sm:$0xff]
    %v4113 = vld [vmem:[#allocation14 + $0x340] sm:$0xff]
    %v4114 = vld [vmem:[#allocation14 + $0x348] sm:$0xff]
    %v4115 = vld [vmem:[#allocation14 + $0x350] sm:$0xff]
    %v4116 = vld [vmem:[#allocation14 + $0x358] sm:$0xff]
    %v4117 = vld [vmem:[#allocation14 + $0x360] sm:$0xff]
    %v4118 = vld [vmem:[#allocation14 + $0x368] sm:$0xff]
    %v4119 = vld [vmem:[#allocation14 + $0x370] sm:$0xff]
    %v4120 = vld [vmem:[#allocation14 + $0x378] sm:$0xff]
    %v4121 = vld [vmem:[#allocation14 + $0x380] sm:$0xff]
    %v4122 = vld [vmem:[#allocation14 + $0x388] sm:$0xff]
    %v4123 = vld [vmem:[#allocation14 + $0x390] sm:$0xff]
    %v4124 = vld [vmem:[#allocation14 + $0x398] sm:$0xff]
    %v4125 = vld [vmem:[#allocation14 + $0x3a0] sm:$0xff]
    %v4126 = vld [vmem:[#allocation14 + $0x3a8] sm:$0xff]
    %v4127 = vld [vmem:[#allocation14 + $0x3b0] sm:$0xff]
    %v4128 = vld [vmem:[#allocation14 + $0x3b8] sm:$0xff]
    %v4129 = vld [vmem:[#allocation14 + $0x3c0] sm:$0xff]
    %v4130 = vld [vmem:[#allocation14 + $0x3c8] sm:$0xff]
    %v4131 = vld [vmem:[#allocation14 + $0x3d0] sm:$0xff]
    %v4132 = vld [vmem:[#allocation14 + $0x3d8] sm:$0xff]
    %v4133 = vld [vmem:[#allocation14 + $0x3e0] sm:$0xff]
    %v4134 = vld [vmem:[#allocation14 + $0x3e8] sm:$0xff]
    %v4135 = vld [vmem:[#allocation14 + $0x3f0] sm:$0xff]
    %v4136 = vld [vmem:[#allocation14 + $0x3f8] sm:$0xff]
    %v4137 = vld [vmem:[#allocation14 + $0x400] sm:$0xff]
    %v4138 = vld [vmem:[#allocation14 + $0x408] sm:$0xff]
    %v4139 = vld [vmem:[#allocation14 + $0x410] sm:$0xff]
    %v4140 = vld [vmem:[#allocation14 + $0x418] sm:$0xff]
    %v4141 = vld [vmem:[#allocation14 + $0x420] sm:$0xff]
    %v4142 = vld [vmem:[#allocation14 + $0x428] sm:$0xff]
    %v4143 = vld [vmem:[#allocation14 + $0x430] sm:$0xff]
    %v4144 = vld [vmem:[#allocation14 + $0x438] sm:$0xff]
    %v4145 = vld [vmem:[#allocation14 + $0x440] sm:$0xff]
    %v4146 = vld [vmem:[#allocation14 + $0x448] sm:$0xff]
    %v4147 = vld [vmem:[#allocation14 + $0x450] sm:$0xff]
    %v4148 = vld [vmem:[#allocation14 + $0x458] sm:$0xff]
    %v4149 = vld [vmem:[#allocation14 + $0x460] sm:$0xff]
    %v4150 = vld [vmem:[#allocation14 + $0x468] sm:$0xff]
    %v4151 = vld [vmem:[#allocation14 + $0x470] sm:$0xff]
    %v4152 = vld [vmem:[#allocation14 + $0x478] sm:$0xff]
    %v4153 = vld [vmem:[#allocation14 + $0x480] sm:$0xff]
    %v4154 = vld [vmem:[#allocation14 + $0x488] sm:$0xff]
    %v4155 = vld [vmem:[#allocation14 + $0x490] sm:$0xff]
    %v4156 = vld [vmem:[#allocation14 + $0x498] sm:$0xff]
    %v4157 = vld [vmem:[#allocation14 + $0x4a0] sm:$0xff]
    %v4158 = vld [vmem:[#allocation14 + $0x4a8] sm:$0xff]
    %v4159 = vld [vmem:[#allocation14 + $0x4b0] sm:$0xff]
    %v4160 = vld [vmem:[#allocation14 + $0x4b8] sm:$0xff]
    %v4161 = vld [vmem:[#allocation14 + $0x4c0] sm:$0xff]
    %v4162 = vld [vmem:[#allocation14 + $0x4c8] sm:$0xff]
    %v4163 = vld [vmem:[#allocation14 + $0x4d0] sm:$0xff]
    %v4164 = vld [vmem:[#allocation14 + $0x4d8] sm:$0xff]
    %v4165 = vld [vmem:[#allocation14 + $0x4e0] sm:$0xff]
    %v4166 = vld [vmem:[#allocation14 + $0x4e8] sm:$0xff]
    %v4167 = vld [vmem:[#allocation14 + $0x4f0] sm:$0xff]
    %v4168 = vld [vmem:[#allocation14 + $0x4f8] sm:$0xff]
    %v4169 = vld [vmem:[#allocation14 + $0x500] sm:$0xff]
    %v4170 = vld [vmem:[#allocation14 + $0x508] sm:$0xff]
    %v4171 = vld [vmem:[#allocation14 + $0x510] sm:$0xff]
    %v4172 = vld [vmem:[#allocation14 + $0x518] sm:$0xff]
    %v4173 = vld [vmem:[#allocation14 + $0x520] sm:$0xff]
    %v4174 = vld [vmem:[#allocation14 + $0x528] sm:$0xff]
    %v4175 = vld [vmem:[#allocation14 + $0x530] sm:$0xff]
    %v4176 = vld [vmem:[#allocation14 + $0x538] sm:$0xff]
    %v4177 = vld [vmem:[#allocation14 + $0x540] sm:$0xff]
    %v4178 = vld [vmem:[#allocation14 + $0x548] sm:$0xff]
    %v4179 = vld [vmem:[#allocation14 + $0x550] sm:$0xff]
    %v4180 = vld [vmem:[#allocation14 + $0x558] sm:$0xff]
    %v4181 = vld [vmem:[#allocation14 + $0x560] sm:$0xff]
    %v4182 = vld [vmem:[#allocation14 + $0x568] sm:$0xff]
    %v4183 = vld [vmem:[#allocation14 + $0x570] sm:$0xff]
    %v4184 = vld [vmem:[#allocation14 + $0x578] sm:$0xff]
    %v4185 = vld [vmem:[#allocation14 + $0x580] sm:$0xff]
    %v4186 = vld [vmem:[#allocation14 + $0x588] sm:$0xff]
    %v4187 = vld [vmem:[#allocation14 + $0x590] sm:$0xff]
    %v4188 = vld [vmem:[#allocation14 + $0x598] sm:$0xff]
    %v4189 = vld [vmem:[#allocation14 + $0x5a0] sm:$0xff]
    %v4190 = vld [vmem:[#allocation14 + $0x5a8] sm:$0xff]
    %v4191 = vld [vmem:[#allocation14 + $0x5b0] sm:$0xff]
    %v4192 = vld [vmem:[#allocation14 + $0x5b8] sm:$0xff]
    %v4193 = vld [vmem:[#allocation14 + $0x5c0] sm:$0xff]
    %v4194 = vld [vmem:[#allocation14 + $0x5c8] sm:$0xff]
    %v4195 = vld [vmem:[#allocation14 + $0x5d0] sm:$0xff]
    %v4196 = vld [vmem:[#allocation14 + $0x5d8] sm:$0xff]
    %v4197 = vld [vmem:[#allocation14 + $0x5e0] sm:$0xff]
    %v4198 = vld [vmem:[#allocation14 + $0x5e8] sm:$0xff]
    %v4199 = vld [vmem:[#allocation14 + $0x5f0] sm:$0xff]
    %v4200 = vld [vmem:[#allocation14 + $0x5f8] sm:$0xff]
    %v4201 = vld [vmem:[#allocation14 + $0x600] sm:$0xff]
    %v4202 = vld [vmem:[#allocation14 + $0x608] sm:$0xff]
    %v4203 = vld [vmem:[#allocation14 + $0x610] sm:$0xff]
    %v4204 = vld [vmem:[#allocation14 + $0x618] sm:$0xff]
    %v4205 = vld [vmem:[#allocation14 + $0x620] sm:$0xff]
    %v4206 = vld [vmem:[#allocation14 + $0x628] sm:$0xff]
    %v4207 = vld [vmem:[#allocation14 + $0x630] sm:$0xff]
    %v4208 = vld [vmem:[#allocation14 + $0x638] sm:$0xff]
    %v4209 = vld [vmem:[#allocation14 + $0x640] sm:$0xff]
    %v4210 = vld [vmem:[#allocation14 + $0x648] sm:$0xff]
    %v4211 = vld [vmem:[#allocation14 + $0x650] sm:$0xff]
    %v4212 = vld [vmem:[#allocation14 + $0x658] sm:$0xff]
    %v4213 = vld [vmem:[#allocation14 + $0x660] sm:$0xff]
    %v4214 = vld [vmem:[#allocation14 + $0x668] sm:$0xff]
    %v4215 = vld [vmem:[#allocation14 + $0x670] sm:$0xff]
    %v4216 = vld [vmem:[#allocation14 + $0x678] sm:$0xff]
    %v4217 = vld [vmem:[#allocation14 + $0x680] sm:$0xff]
    %v4218 = vld [vmem:[#allocation14 + $0x688] sm:$0xff]
    %v4219 = vld [vmem:[#allocation14 + $0x690] sm:$0xff]
    %v4220 = vld [vmem:[#allocation14 + $0x698] sm:$0xff]
    %v4221 = vld [vmem:[#allocation14 + $0x6a0] sm:$0xff]
    %v4222 = vld [vmem:[#allocation14 + $0x6a8] sm:$0xff]
    %v4223 = vld [vmem:[#allocation14 + $0x6b0] sm:$0xff]
    %v4224 = vld [vmem:[#allocation14 + $0x6b8] sm:$0xff]
    %v4225 = vld [vmem:[#allocation14 + $0x6c0] sm:$0xff]
    %v4226 = vld [vmem:[#allocation14 + $0x6c8] sm:$0xff]
    %v4227 = vld [vmem:[#allocation14 + $0x6d0] sm:$0xff]
    %v4228 = vld [vmem:[#allocation14 + $0x6d8] sm:$0xff]
    %v4229 = vld [vmem:[#allocation14 + $0x6e0] sm:$0xff]
    %v4230 = vld [vmem:[#allocation14 + $0x6e8] sm:$0xff]
    %v4231 = vld [vmem:[#allocation14 + $0x6f0] sm:$0xff]
    %v4232 = vld [vmem:[#allocation14 + $0x6f8] sm:$0xff]
    %v4233 = vld [vmem:[#allocation14 + $0x700] sm:$0xff]
    %v4234 = vld [vmem:[#allocation14 + $0x708] sm:$0xff]
    %v4235 = vld [vmem:[#allocation14 + $0x710] sm:$0xff]
    %v4236 = vld [vmem:[#allocation14 + $0x718] sm:$0xff]
    %v4237 = vld [vmem:[#allocation14 + $0x720] sm:$0xff]
    %v4238 = vld [vmem:[#allocation14 + $0x728] sm:$0xff]
    %v4239 = vld [vmem:[#allocation14 + $0x730] sm:$0xff]
    %v4240 = vld [vmem:[#allocation14 + $0x738] sm:$0xff]
    %v4241 = vld [vmem:[#allocation14 + $0x740] sm:$0xff]
    %v4242 = vld [vmem:[#allocation14 + $0x748] sm:$0xff]
    %v4243 = vld [vmem:[#allocation14 + $0x750] sm:$0xff]
    %v4244 = vld [vmem:[#allocation14 + $0x758] sm:$0xff]
    %v4245 = vld [vmem:[#allocation14 + $0x760] sm:$0xff]
    %v4246 = vld [vmem:[#allocation14 + $0x768] sm:$0xff]
    %v4247 = vld [vmem:[#allocation14 + $0x770] sm:$0xff]
    %v4248 = vld [vmem:[#allocation14 + $0x778] sm:$0xff]
    %v4249 = vld [vmem:[#allocation14 + $0x780] sm:$0xff]
    %v4250 = vld [vmem:[#allocation14 + $0x788] sm:$0xff]
    %v4251 = vld [vmem:[#allocation14 + $0x790] sm:$0xff]
    %v4252 = vld [vmem:[#allocation14 + $0x798] sm:$0xff]
    %v4253 = vld [vmem:[#allocation14 + $0x7a0] sm:$0xff]
    %v4254 = vld [vmem:[#allocation14 + $0x7a8] sm:$0xff]
    %v4255 = vld [vmem:[#allocation14 + $0x7b0] sm:$0xff]
    %v4256 = vld [vmem:[#allocation14 + $0x7b8] sm:$0xff]
    %v4257 = vld [vmem:[#allocation14 + $0x7c0] sm:$0xff]
    %v4258 = vld [vmem:[#allocation14 + $0x7c8] sm:$0xff]
    %v4259 = vld [vmem:[#allocation14 + $0x7d0] sm:$0xff]
    %v4260 = vld [vmem:[#allocation14 + $0x7d8] sm:$0xff]
    %v4261 = vld [vmem:[#allocation14 + $0x7e0] sm:$0xff]
    %v4262 = vld [vmem:[#allocation14 + $0x7e8] sm:$0xff]
    %v4263 = vld [vmem:[#allocation14 + $0x7f0] sm:$0xff]
    %v4264 = vld [vmem:[#allocation14 + $0x7f8] sm:$0xff]
    %4265 = vmatprep.subr.mxu0 %v4010
    %4266 = vmatpush1.msra.mxu0 %v4009
    %4267 = vmatprep.subr.mxu0 %v4018
    %4268 = vmatpush1.msra.mxu0 %v4017
    %4269 = vmatprep.subr.mxu0 %v4026
    %4270 = vmatpush1.msra.mxu0 %v4025
    %4271 = vmatprep.subr.mxu0 %v4034
    %4272 = vmatpush1.msra.mxu0 %v4033
    %4273 = vmatprep.subr.mxu0 %v4042
    %4274 = vmatpush1.msra.mxu0 %v4041
    %4275 = vmatprep.subr.mxu0 %v4050
    %4276 = vmatpush1.msra.mxu0 %v4049
    %4277 = vmatprep.subr.mxu0 %v4058
    %4278 = vmatpush1.msra.mxu0 %v4057
    %4279 = vmatprep.subr.mxu0 %v4066
    %4280 = vmatpush1.msra.mxu0 %v4065
    %4281 = vmatprep.subr.mxu0 %v4074
    %4282 = vmatpush1.msra.mxu0 %v4073
    %4283 = vmatprep.subr.mxu0 %v4082
    %4284 = vmatpush1.msra.mxu0 %v4081
    %4285 = vmatprep.subr.mxu0 %v4090
    %4286 = vmatpush1.msra.mxu0 %v4089
    %4287 = vmatprep.subr.mxu0 %v4098
    %4288 = vmatpush1.msra.mxu0 %v4097
    %4289 = vmatprep.subr.mxu0 %v4106
    %4290 = vmatpush1.msra.mxu0 %v4105
    %4291 = vmatprep.subr.mxu0 %v4114
    %4292 = vmatpush1.msra.mxu0 %v4113
    %4293 = vmatprep.subr.mxu0 %v4122
    %4294 = vmatpush1.msra.mxu0 %v4121
    %4295 = vmatprep.subr.mxu0 %v4130
    %4296 = vmatpush1.msra.mxu0 %v4129
    %4297 = vmatprep.subr.mxu0 %v4138
    %4298 = vmatpush1.msra.mxu0 %v4137
    %4299 = vmatprep.subr.mxu0 %v4146
    %4300 = vmatpush1.msra.mxu0 %v4145
    %4301 = vmatprep.subr.mxu0 %v4154
    %4302 = vmatpush1.msra.mxu0 %v4153
    %4303 = vmatprep.subr.mxu0 %v4162
    %4304 = vmatpush1.msra.mxu0 %v4161
    %4305 = vmatprep.subr.mxu0 %v4170
    %4306 = vmatpush1.msra.mxu0 %v4169
    %4307 = vmatprep.subr.mxu0 %v4178
    %4308 = vmatpush1.msra.mxu0 %v4177
    %4309 = vmatprep.subr.mxu0 %v4186
    %4310 = vmatpush1.msra.mxu0 %v4185
    %4311 = vmatprep.subr.mxu0 %v4194
    %4312 = vmatpush1.msra.mxu0 %v4193
    %4313 = vmatprep.subr.mxu0 %v4202
    %4314 = vmatpush1.msra.mxu0 %v4201
    %4315 = vmatprep.subr.mxu0 %v4210
    %4316 = vmatpush1.msra.mxu0 %v4209
    %4317 = vmatprep.subr.mxu0 %v4218
    %4318 = vmatpush1.msra.mxu0 %v4217
    %4319 = vmatprep.subr.mxu0 %v4226
    %4320 = vmatpush1.msra.mxu0 %v4225
    %4321 = vmatprep.subr.mxu0 %v4234
    %4322 = vmatpush1.msra.mxu0 %v4233
    %4323 = vmatprep.subr.mxu0 %v4242
    %4324 = vmatpush1.msra.mxu0 %v4241
    %4325 = vmatprep.subr.mxu0 %v4250
    %4326 = vmatpush1.msra.mxu0 %v4249
    %4327 = vmatprep.subr.mxu0 %v4258
    %4328 = vmatpush1.msra.mxu0 %v4257
    %4329 = vmatprep.mubr.f32.mxu0 %v4008
    %4330 = vmatmul.mubr.f32.gmra.mrb[0].mxu0 %v4007
    %v4331 = vpop.f32.mrb[0].mxu0
    %v4332 = vadd.f32 0.0, %v4331
    %v4333 = vpop.f32.mrb[0].mxu0
    %v4334 = vadd.f32 0.0, %v4333
    %4335 = vdwg.mxu0
    %4336 = vmatprep.subr.mxu0 %v4012
    %4337 = vmatpush1.msra.mxu0 %v4011
    %4338 = vmatprep.subr.mxu0 %v4020
    %4339 = vmatpush1.msra.mxu0 %v4019
    %4340 = vmatprep.subr.mxu0 %v4028
    %4341 = vmatpush1.msra.mxu0 %v4027
    %4342 = vmatprep.subr.mxu0 %v4036
    %4343 = vmatpush1.msra.mxu0 %v4035
    %4344 = vmatprep.subr.mxu0 %v4044
    %4345 = vmatpush1.msra.mxu0 %v4043
    %4346 = vmatprep.subr.mxu0 %v4052
    %4347 = vmatpush1.msra.mxu0 %v4051
    %4348 = vmatprep.subr.mxu0 %v4060
    %4349 = vmatpush1.msra.mxu0 %v4059
    %4350 = vmatprep.subr.mxu0 %v4068
    %4351 = vmatpush1.msra.mxu0 %v4067
    %4352 = vmatprep.subr.mxu0 %v4076
    %4353 = vmatpush1.msra.mxu0 %v4075
    %4354 = vmatprep.subr.mxu0 %v4084
    %4355 = vmatpush1.msra.mxu0 %v4083
    %4356 = vmatprep.subr.mxu0 %v4092
    %4357 = vmatpush1.msra.mxu0 %v4091
    %4358 = vmatprep.subr.mxu0 %v4100
    %4359 = vmatpush1.msra.mxu0 %v4099
    %4360 = vmatprep.subr.mxu0 %v4108
    %4361 = vmatpush1.msra.mxu0 %v4107
    %4362 = vmatprep.subr.mxu0 %v4116
    %4363 = vmatpush1.msra.mxu0 %v4115
    %4364 = vmatprep.subr.mxu0 %v4124
    %4365 = vmatpush1.msra.mxu0 %v4123
    %4366 = vmatprep.subr.mxu0 %v4132
    %4367 = vmatpush1.msra.mxu0 %v4131
    %4368 = vmatprep.subr.mxu0 %v4140
    %4369 = vmatpush1.msra.mxu0 %v4139
    %4370 = vmatprep.subr.mxu0 %v4148
    %4371 = vmatpush1.msra.mxu0 %v4147
    %4372 = vmatprep.subr.mxu0 %v4156
    %4373 = vmatpush1.msra.mxu0 %v4155
    %4374 = vmatprep.subr.mxu0 %v4164
    %4375 = vmatpush1.msra.mxu0 %v4163
    %4376 = vmatprep.subr.mxu0 %v4172
    %4377 = vmatpush1.msra.mxu0 %v4171
    %4378 = vmatprep.subr.mxu0 %v4180
    %4379 = vmatpush1.msra.mxu0 %v4179
    %4380 = vmatprep.subr.mxu0 %v4188
    %4381 = vmatpush1.msra.mxu0 %v4187
    %4382 = vmatprep.subr.mxu0 %v4196
    %4383 = vmatpush1.msra.mxu0 %v4195
    %4384 = vmatprep.subr.mxu0 %v4204
    %4385 = vmatpush1.msra.mxu0 %v4203
    %4386 = vmatprep.subr.mxu0 %v4212
    %4387 = vmatpush1.msra.mxu0 %v4211
    %4388 = vmatprep.subr.mxu0 %v4220
    %4389 = vmatpush1.msra.mxu0 %v4219
    %4390 = vmatprep.subr.mxu0 %v4228
    %4391 = vmatpush1.msra.mxu0 %v4227
    %4392 = vmatprep.subr.mxu0 %v4236
    %4393 = vmatpush1.msra.mxu0 %v4235
    %4394 = vmatprep.subr.mxu0 %v4244
    %4395 = vmatpush1.msra.mxu0 %v4243
    %4396 = vmatprep.subr.mxu0 %v4252
    %4397 = vmatpush1.msra.mxu0 %v4251
    %4398 = vmatprep.subr.mxu0 %v4260
    %4399 = vmatpush1.msra.mxu0 %v4259
    %4400 = vmatprep.mubr.f32.mxu0 %v4008
    %4401 = vmatmul.mubr.f32.gmra.mrb[0].mxu0 %v4007
    %v4402 = vpop.f32.mrb[0].mxu0
    %v4403 = vadd.f32 0.0, %v4402
    %v4404 = vpop.f32.mrb[0].mxu0
    %v4405 = vadd.f32 0.0, %v4404
    %4406 = vdwg.mxu0
    %4407 = vmatprep.subr.mxu0 %v4014
    %4408 = vmatpush1.msra.mxu0 %v4013
    %4409 = vmatprep.subr.mxu0 %v4022
    %4410 = vmatpush1.msra.mxu0 %v4021
    %4411 = vmatprep.subr.mxu0 %v4030
    %4412 = vmatpush1.msra.mxu0 %v4029
    %4413 = vmatprep.subr.mxu0 %v4038
    %4414 = vmatpush1.msra.mxu0 %v4037
    %4415 = vmatprep.subr.mxu0 %v4046
    %4416 = vmatpush1.msra.mxu0 %v4045
    %4417 = vmatprep.subr.mxu0 %v4054
    %4418 = vmatpush1.msra.mxu0 %v4053
    %4419 = vmatprep.subr.mxu0 %v4062
    %4420 = vmatpush1.msra.mxu0 %v4061
    %4421 = vmatprep.subr.mxu0 %v4070
    %4422 = vmatpush1.msra.mxu0 %v4069
    %4423 = vmatprep.subr.mxu0 %v4078
    %4424 = vmatpush1.msra.mxu0 %v4077
    %4425 = vmatprep.subr.mxu0 %v4086
    %4426 = vmatpush1.msra.mxu0 %v4085
    %4427 = vmatprep.subr.mxu0 %v4094
    %4428 = vmatpush1.msra.mxu0 %v4093
    %4429 = vmatprep.subr.mxu0 %v4102
    %4430 = vmatpush1.msra.mxu0 %v4101
    %4431 = vmatprep.subr.mxu0 %v4110
    %4432 = vmatpush1.msra.mxu0 %v4109
    %4433 = vmatprep.subr.mxu0 %v4118
    %4434 = vmatpush1.msra.mxu0 %v4117
    %4435 = vmatprep.subr.mxu0 %v4126
    %4436 = vmatpush1.msra.mxu0 %v4125
    %4437 = vmatprep.subr.mxu0 %v4134
    %4438 = vmatpush1.msra.mxu0 %v4133
    %4439 = vmatprep.subr.mxu0 %v4142
    %4440 = vmatpush1.msra.mxu0 %v4141
    %4441 = vmatprep.subr.mxu0 %v4150
    %4442 = vmatpush1.msra.mxu0 %v4149
    %4443 = vmatprep.subr.mxu0 %v4158
    %4444 = vmatpush1.msra.mxu0 %v4157
    %4445 = vmatprep.subr.mxu0 %v4166
    %4446 = vmatpush1.msra.mxu0 %v4165
    %4447 = vmatprep.subr.mxu0 %v4174
    %4448 = vmatpush1.msra.mxu0 %v4173
    %4449 = vmatprep.subr.mxu0 %v4182
    %4450 = vmatpush1.msra.mxu0 %v4181
    %4451 = vmatprep.subr.mxu0 %v4190
    %4452 = vmatpush1.msra.mxu0 %v4189
    %4453 = vmatprep.subr.mxu0 %v4198
    %4454 = vmatpush1.msra.mxu0 %v4197
    %4455 = vmatprep.subr.mxu0 %v4206
    %4456 = vmatpush1.msra.mxu0 %v4205
    %4457 = vmatprep.subr.mxu0 %v4214
    %4458 = vmatpush1.msra.mxu0 %v4213
    %4459 = vmatprep.subr.mxu0 %v4222
    %4460 = vmatpush1.msra.mxu0 %v4221
    %4461 = vmatprep.subr.mxu0 %v4230
    %4462 = vmatpush1.msra.mxu0 %v4229
    %4463 = vmatprep.subr.mxu0 %v4238
    %4464 = vmatpush1.msra.mxu0 %v4237
    %4465 = vmatprep.subr.mxu0 %v4246
    %4466 = vmatpush1.msra.mxu0 %v4245
    %4467 = vmatprep.subr.mxu0 %v4254
    %4468 = vmatpush1.msra.mxu0 %v4253
    %4469 = vmatprep.subr.mxu0 %v4262
    %4470 = vmatpush1.msra.mxu0 %v4261
    %4471 = vmatprep.mubr.f32.mxu0 %v4008
    %4472 = vmatmul.mubr.f32.gmra.mrb[0].mxu0 %v4007
    %v4473 = vpop.f32.mrb[0].mxu0
    %v4474 = vadd.f32 0.0, %v4473
    %v4475 = vpop.f32.mrb[0].mxu0
    %v4476 = vadd.f32 0.0, %v4475
    %4477 = vdwg.mxu0
    %4478 = vmatprep.subr.mxu0 %v4016
    %4479 = vmatpush1.msra.mxu0 %v4015
    %4480 = vmatprep.subr.mxu0 %v4024
    %4481 = vmatpush1.msra.mxu0 %v4023
    %4482 = vmatprep.subr.mxu0 %v4032
    %4483 = vmatpush1.msra.mxu0 %v4031
    %4484 = vmatprep.subr.mxu0 %v4040
    %4485 = vmatpush1.msra.mxu0 %v4039
    %4486 = vmatprep.subr.mxu0 %v4048
    %4487 = vmatpush1.msra.mxu0 %v4047
    %4488 = vmatprep.subr.mxu0 %v4056
    %4489 = vmatpush1.msra.mxu0 %v4055
    %4490 = vmatprep.subr.mxu0 %v4064
    %4491 = vmatpush1.msra.mxu0 %v4063
    %4492 = vmatprep.subr.mxu0 %v4072
    %4493 = vmatpush1.msra.mxu0 %v4071
    %4494 = vmatprep.subr.mxu0 %v4080
    %4495 = vmatpush1.msra.mxu0 %v4079
    %4496 = vmatprep.subr.mxu0 %v4088
    %4497 = vmatpush1.msra.mxu0 %v4087
    %4498 = vmatprep.subr.mxu0 %v4096
    %4499 = vmatpush1.msra.mxu0 %v4095
    %4500 = vmatprep.subr.mxu0 %v4104
    %4501 = vmatpush1.msra.mxu0 %v4103
    %4502 = vmatprep.subr.mxu0 %v4112
    %4503 = vmatpush1.msra.mxu0 %v4111
    %4504 = vmatprep.subr.mxu0 %v4120
    %4505 = vmatpush1.msra.mxu0 %v4119
    %4506 = vmatprep.subr.mxu0 %v4128
    %4507 = vmatpush1.msra.mxu0 %v4127
    %4508 = vmatprep.subr.mxu0 %v4136
    %4509 = vmatpush1.msra.mxu0 %v4135
    %4510 = vmatprep.subr.mxu0 %v4144
    %4511 = vmatpush1.msra.mxu0 %v4143
    %4512 = vmatprep.subr.mxu0 %v4152
    %4513 = vmatpush1.msra.mxu0 %v4151
    %4514 = vmatprep.subr.mxu0 %v4160
    %4515 = vmatpush1.msra.mxu0 %v4159
    %4516 = vmatprep.subr.mxu0 %v4168
    %4517 = vmatpush1.msra.mxu0 %v4167
    %4518 = vmatprep.subr.mxu0 %v4176
    %4519 = vmatpush1.msra.mxu0 %v4175
    %4520 = vmatprep.subr.mxu0 %v4184
    %4521 = vmatpush1.msra.mxu0 %v4183
    %4522 = vmatprep.subr.mxu0 %v4192
    %4523 = vmatpush1.msra.mxu0 %v4191
    %4524 = vmatprep.subr.mxu0 %v4200
    %4525 = vmatpush1.msra.mxu0 %v4199
    %4526 = vmatprep.subr.mxu0 %v4208
    %4527 = vmatpush1.msra.mxu0 %v4207
    %4528 = vmatprep.subr.mxu0 %v4216
    %4529 = vmatpush1.msra.mxu0 %v4215
    %4530 = vmatprep.subr.mxu0 %v4224
    %4531 = vmatpush1.msra.mxu0 %v4223
    %4532 = vmatprep.subr.mxu0 %v4232
    %4533 = vmatpush1.msra.mxu0 %v4231
    %4534 = vmatprep.subr.mxu0 %v4240
    %4535 = vmatpush1.msra.mxu0 %v4239
    %4536 = vmatprep.subr.mxu0 %v4248
    %4537 = vmatpush1.msra.mxu0 %v4247
    %4538 = vmatprep.subr.mxu0 %v4256
    %4539 = vmatpush1.msra.mxu0 %v4255
    %4540 = vmatprep.subr.mxu0 %v4264
    %4541 = vmatpush1.msra.mxu0 %v4263
    %4542 = vmatprep.mubr.f32.mxu0 %v4008
    %4543 = vmatmul.mubr.f32.gmra.mrb[0].mxu0 %v4007
    %v4544 = vpop.f32.mrb[0].mxu0
    %v4545 = vadd.f32 0.0, %v4544
    %v4546 = vpop.f32.mrb[0].mxu0
    %v4547 = vadd.f32 0.0, %v4546
    %4548 = vdwg.mxu0
    %s4549 = smul.addr %s2721, 8
    %s4550 = scalar_lea.vmem [#allocation2], %s4549
    %v4551 = vld [vmem:[%s4550] sm:$0xff]
    %v4552 = vld [vmem:[%s4550 + $0x8] sm:$0xff]
    %v4553 = vld [vmem:[%s4550 + $0x10] sm:$0xff]
    %v4554 = vld [vmem:[%s4550 + $0x18] sm:$0xff]
    %v4555 = vadd.f32 %v4551, %v4332
    %v4556 = vadd.f32 %v4552, %v4334
    %v4557 = vadd.f32 %v4553, %v4403
    %v4558 = vadd.f32 %v4554, %v4405
    %v4559 = vld [vmem:[#allocation5] sm:$0xff]
    %v4560 = vxor.u32 %v4555, 2147483648
    %v4561 = vxor.u32 %v4556, 2147483648
    %v4562 = vxor.u32 %v4557, 2147483648
    %v4563 = vmul.f32 %v4560, 1.442695
    %v4564 = vpow.pop %v4563
    %v4565 = vmul.f32 %v4561, 1.442695
    %v4566 = vpow.pop %v4565
    %v4567 = vmul.f32 %v4562, 1.442695
    %v4568 = vpow.pop %v4567
    %v4569 = vadd.f32 %v4564, 1.0
    %v4570 = vadd.f32 %v4566, 1.0
    %v4571 = vadd.f32 %v4568, 1.0
    %v4572 = vrcp.pop %v4569
    %v4573 = vmul.f32 1.0, %v4572
    %v4574 = vrcp.pop %v4570
    %v4575 = vmul.f32 1.0, %v4574
    %v4576 = vrcp.pop %v4571
    %v4577 = vmul.f32 1.0, %v4576
    %v4578 = vtanh.pop %v4558
    %v4579 = vmul.f32 %v4575, %v4559
    %v4580 = vmul.f32 %v4573, %v4578
    %v4581 = vadd.f32 %v4579, %v4580
    %v4582 = vtanh.pop %v4581
    %v4583 = vmul.f32 %v4577, %v4582
    %s4584 = smul.addr %s2685, 8
    %s4585 = scalar_lea.vmem [#allocation3], %s4584
    %v4586 = vld [vmem:[%s4585] sm:$0xff]
    %v4587 = vld [vmem:[%s4585 + $0x8] sm:$0xff]
    %v4588 = vld [vmem:[%s4585 + $0x10] sm:$0xff]
    %v4589 = vld [vmem:[%s4585 + $0x18] sm:$0xff]
    %v4590 = vadd.f32 %v4586, %v4474
    %v4591 = vadd.f32 %v4587, %v4476
    %v4592 = vadd.f32 %v4588, %v4545
    %v4593 = vadd.f32 %v4589, %v4547
    %v4594 = vld [vmem:[#allocation5 + $0x8] sm:$0xff]
    %v4595 = vxor.u32 %v4590, 2147483648
    %v4596 = vxor.u32 %v4591, 2147483648
    %v4597 = vxor.u32 %v4592, 2147483648
    %v4598 = vmul.f32 %v4595, 1.442695
    %v4599 = vpow.pop %v4598
    %v4600 = vmul.f32 %v4596, 1.442695
    %v4601 = vpow.pop %v4600
    %v4602 = vmul.f32 %v4597, 1.442695
    %v4603 = vpow.pop %v4602
    %v4604 = vadd.f32 %v4599, 1.0
    %v4605 = vadd.f32 %v4601, 1.0
    %v4606 = vadd.f32 %v4603, 1.0
    %v4607 = vrcp.pop %v4604
    %v4608 = vmul.f32 1.0, %v4607
    %v4609 = vrcp.pop %v4605
    %v4610 = vmul.f32 1.0, %v4609
    %v4611 = vrcp.pop %v4606
    %v4612 = vmul.f32 1.0, %v4611
    %v4613 = vtanh.pop %v4593
    %v4614 = vmul.f32 %v4610, %v4594
    %v4615 = vmul.f32 %v4608, %v4613
    %v4616 = vadd.f32 %v4614, %v4615
    %v4617 = vtanh.pop %v4616
    %v4618 = vmul.f32 %v4612, %v4617
    %4619 = vst [vmem:[#allocation4] sm:$0xff] %v4583
    %4620 = vst [vmem:[#allocation4 + $0x8] sm:$0xff] %v4618
    %4621 = vst [vmem:[#allocation5] sm:$0xff] %v4581
    %4622 = vst [vmem:[#allocation5 + $0x8] sm:$0xff] %v4616
    %s4623 = scalar_lea.vmem [#allocation15], 40
    %4624 = vst [vmem:[%s4623] sm:$0xff] %v4583
    %s4625 = scalar_lea.vmem [#allocation16], 16
    %4626 = vst [vmem:[%s4625] sm:$0xff] %v4618
    %v4627 = vld [vmem:[#allocation4] sm:$0xff]
    %v4628 = vld [vmem:[#allocation4 + $0x8] sm:$0xff]
    %v4629 = vld [vmem:[#allocation14] sm:$0xff]
    %v4630 = vld [vmem:[#allocation14 + $0x8] sm:$0xff]
    %v4631 = vld [vmem:[#allocation14 + $0x10] sm:$0xff]
    %v4632 = vld [vmem:[#allocation14 + $0x18] sm:$0xff]
    %v4633 = vld [vmem:[#allocation14 + $0x20] sm:$0xff]
    %v4634 = vld [vmem:[#allocation14 + $0x28] sm:$0xff]
    %v4635 = vld [vmem:[#allocation14 + $0x30] sm:$0xff]
    %v4636 = vld [vmem:[#allocation14 + $0x38] sm:$0xff]
    %v4637 = vld [vmem:[#allocation14 + $0x40] sm:$0xff]
    %v4638 = vld [vmem:[#allocation14 + $0x48] sm:$0xff]
    %v4639 = vld [vmem:[#allocation14 + $0x50] sm:$0xff]
    %v4640 = vld [vmem:[#allocation14 + $0x58] sm:$0xff]
    %v4641 = vld [vmem:[#allocation14 + $0x60] sm:$0xff]
    %v4642 = vld [vmem:[#allocation14 + $0x68] sm:$0xff]
    %v4643 = vld [vmem:[#allocation14 + $0x70] sm:$0xff]
    %v4644 = vld [vmem:[#allocation14 + $0x78] sm:$0xff]
    %v4645 = vld [vmem:[#allocation14 + $0x80] sm:$0xff]
    %v4646 = vld [vmem:[#allocation14 + $0x88] sm:$0xff]
    %v4647 = vld [vmem:[#allocation14 + $0x90] sm:$0xff]
    %v4648 = vld [vmem:[#allocation14 + $0x98] sm:$0xff]
    %v4649 = vld [vmem:[#allocation14 + $0xa0] sm:$0xff]
    %v4650 = vld [vmem:[#allocation14 + $0xa8] sm:$0xff]
    %v4651 = vld [vmem:[#allocation14 + $0xb0] sm:$0xff]
    %v4652 = vld [vmem:[#allocation14 + $0xb8] sm:$0xff]
    %v4653 = vld [vmem:[#allocation14 + $0xc0] sm:$0xff]
    %v4654 = vld [vmem:[#allocation14 + $0xc8] sm:$0xff]
    %v4655 = vld [vmem:[#allocation14 + $0xd0] sm:$0xff]
    %v4656 = vld [vmem:[#allocation14 + $0xd8] sm:$0xff]
    %v4657 = vld [vmem:[#allocation14 + $0xe0] sm:$0xff]
    %v4658 = vld [vmem:[#allocation14 + $0xe8] sm:$0xff]
    %v4659 = vld [vmem:[#allocation14 + $0xf0] sm:$0xff]
    %v4660 = vld [vmem:[#allocation14 + $0xf8] sm:$0xff]
    %v4661 = vld [vmem:[#allocation14 + $0x100] sm:$0xff]
    %v4662 = vld [vmem:[#allocation14 + $0x108] sm:$0xff]
    %v4663 = vld [vmem:[#allocation14 + $0x110] sm:$0xff]
    %v4664 = vld [vmem:[#allocation14 + $0x118] sm:$0xff]
    %v4665 = vld [vmem:[#allocation14 + $0x120] sm:$0xff]
    %v4666 = vld [vmem:[#allocation14 + $0x128] sm:$0xff]
    %v4667 = vld [vmem:[#allocation14 + $0x130] sm:$0xff]
    %v4668 = vld [vmem:[#allocation14 + $0x138] sm:$0xff]
    %v4669 = vld [vmem:[#allocation14 + $0x140] sm:$0xff]
    %v4670 = vld [vmem:[#allocation14 + $0x148] sm:$0xff]
    %v4671 = vld [vmem:[#allocation14 + $0x150] sm:$0xff]
    %v4672 = vld [vmem:[#allocation14 + $0x158] sm:$0xff]
    %v4673 = vld [vmem:[#allocation14 + $0x160] sm:$0xff]
    %v4674 = vld [vmem:[#allocation14 + $0x168] sm:$0xff]
    %v4675 = vld [vmem:[#allocation14 + $0x170] sm:$0xff]
    %v4676 = vld [vmem:[#allocation14 + $0x178] sm:$0xff]
    %v4677 = vld [vmem:[#allocation14 + $0x180] sm:$0xff]
    %v4678 = vld [vmem:[#allocation14 + $0x188] sm:$0xff]
    %v4679 = vld [vmem:[#allocation14 + $0x190] sm:$0xff]
    %v4680 = vld [vmem:[#allocation14 + $0x198] sm:$0xff]
    %v4681 = vld [vmem:[#allocation14 + $0x1a0] sm:$0xff]
    %v4682 = vld [vmem:[#allocation14 + $0x1a8] sm:$0xff]
    %v4683 = vld [vmem:[#allocation14 + $0x1b0] sm:$0xff]
    %v4684 = vld [vmem:[#allocation14 + $0x1b8] sm:$0xff]
    %v4685 = vld [vmem:[#allocation14 + $0x1c0] sm:$0xff]
    %v4686 = vld [vmem:[#allocation14 + $0x1c8] sm:$0xff]
    %v4687 = vld [vmem:[#allocation14 + $0x1d0] sm:$0xff]
    %v4688 = vld [vmem:[#allocation14 + $0x1d8] sm:$0xff]
    %v4689 = vld [vmem:[#allocation14 + $0x1e0] sm:$0xff]
    %v4690 = vld [vmem:[#allocation14 + $0x1e8] sm:$0xff]
    %v4691 = vld [vmem:[#allocation14 + $0x1f0] sm:$0xff]
    %v4692 = vld [vmem:[#allocation14 + $0x1f8] sm:$0xff]
    %v4693 = vld [vmem:[#allocation14 + $0x200] sm:$0xff]
    %v4694 = vld [vmem:[#allocation14 + $0x208] sm:$0xff]
    %v4695 = vld [vmem:[#allocation14 + $0x210] sm:$0xff]
    %v4696 = vld [vmem:[#allocation14 + $0x218] sm:$0xff]
    %v4697 = vld [vmem:[#allocation14 + $0x220] sm:$0xff]
    %v4698 = vld [vmem:[#allocation14 + $0x228] sm:$0xff]
    %v4699 = vld [vmem:[#allocation14 + $0x230] sm:$0xff]
    %v4700 = vld [vmem:[#allocation14 + $0x238] sm:$0xff]
    %v4701 = vld [vmem:[#allocation14 + $0x240] sm:$0xff]
    %v4702 = vld [vmem:[#allocation14 + $0x248] sm:$0xff]
    %v4703 = vld [vmem:[#allocation14 + $0x250] sm:$0xff]
    %v4704 = vld [vmem:[#allocation14 + $0x258] sm:$0xff]
    %v4705 = vld [vmem:[#allocation14 + $0x260] sm:$0xff]
    %v4706 = vld [vmem:[#allocation14 + $0x268] sm:$0xff]
    %v4707 = vld [vmem:[#allocation14 + $0x270] sm:$0xff]
    %v4708 = vld [vmem:[#allocation14 + $0x278] sm:$0xff]
    %v4709 = vld [vmem:[#allocation14 + $0x280] sm:$0xff]
    %v4710 = vld [vmem:[#allocation14 + $0x288] sm:$0xff]
    %v4711 = vld [vmem:[#allocation14 + $0x290] sm:$0xff]
    %v4712 = vld [vmem:[#allocation14 + $0x298] sm:$0xff]
    %v4713 = vld [vmem:[#allocation14 + $0x2a0] sm:$0xff]
    %v4714 = vld [vmem:[#allocation14 + $0x2a8] sm:$0xff]
    %v4715 = vld [vmem:[#allocation14 + $0x2b0] sm:$0xff]
    %v4716 = vld [vmem:[#allocation14 + $0x2b8] sm:$0xff]
    %v4717 = vld [vmem:[#allocation14 + $0x2c0] sm:$0xff]
    %v4718 = vld [vmem:[#allocation14 + $0x2c8] sm:$0xff]
    %v4719 = vld [vmem:[#allocation14 + $0x2d0] sm:$0xff]
    %v4720 = vld [vmem:[#allocation14 + $0x2d8] sm:$0xff]
    %v4721 = vld [vmem:[#allocation14 + $0x2e0] sm:$0xff]
    %v4722 = vld [vmem:[#allocation14 + $0x2e8] sm:$0xff]
    %v4723 = vld [vmem:[#allocation14 + $0x2f0] sm:$0xff]
    %v4724 = vld [vmem:[#allocation14 + $0x2f8] sm:$0xff]
    %v4725 = vld [vmem:[#allocation14 + $0x300] sm:$0xff]
    %v4726 = vld [vmem:[#allocation14 + $0x308] sm:$0xff]
    %v4727 = vld [vmem:[#allocation14 + $0x310] sm:$0xff]
    %v4728 = vld [vmem:[#allocation14 + $0x318] sm:$0xff]
    %v4729 = vld [vmem:[#allocation14 + $0x320] sm:$0xff]
    %v4730 = vld [vmem:[#allocation14 + $0x328] sm:$0xff]
    %v4731 = vld [vmem:[#allocation14 + $0x330] sm:$0xff]
    %v4732 = vld [vmem:[#allocation14 + $0x338] sm:$0xff]
    %v4733 = vld [vmem:[#allocation14 + $0x340] sm:$0xff]
    %v4734 = vld [vmem:[#allocation14 + $0x348] sm:$0xff]
    %v4735 = vld [vmem:[#allocation14 + $0x350] sm:$0xff]
    %v4736 = vld [vmem:[#allocation14 + $0x358] sm:$0xff]
    %v4737 = vld [vmem:[#allocation14 + $0x360] sm:$0xff]
    %v4738 = vld [vmem:[#allocation14 + $0x368] sm:$0xff]
    %v4739 = vld [vmem:[#allocation14 + $0x370] sm:$0xff]
    %v4740 = vld [vmem:[#allocation14 + $0x378] sm:$0xff]
    %v4741 = vld [vmem:[#allocation14 + $0x380] sm:$0xff]
    %v4742 = vld [vmem:[#allocation14 + $0x388] sm:$0xff]
    %v4743 = vld [vmem:[#allocation14 + $0x390] sm:$0xff]
    %v4744 = vld [vmem:[#allocation14 + $0x398] sm:$0xff]
    %v4745 = vld [vmem:[#allocation14 + $0x3a0] sm:$0xff]
    %v4746 = vld [vmem:[#allocation14 + $0x3a8] sm:$0xff]
    %v4747 = vld [vmem:[#allocation14 + $0x3b0] sm:$0xff]
    %v4748 = vld [vmem:[#allocation14 + $0x3b8] sm:$0xff]
    %v4749 = vld [vmem:[#allocation14 + $0x3c0] sm:$0xff]
    %v4750 = vld [vmem:[#allocation14 + $0x3c8] sm:$0xff]
    %v4751 = vld [vmem:[#allocation14 + $0x3d0] sm:$0xff]
    %v4752 = vld [vmem:[#allocation14 + $0x3d8] sm:$0xff]
    %v4753 = vld [vmem:[#allocation14 + $0x3e0] sm:$0xff]
    %v4754 = vld [vmem:[#allocation14 + $0x3e8] sm:$0xff]
    %v4755 = vld [vmem:[#allocation14 + $0x3f0] sm:$0xff]
    %v4756 = vld [vmem:[#allocation14 + $0x3f8] sm:$0xff]
    %v4757 = vld [vmem:[#allocation14 + $0x400] sm:$0xff]
    %v4758 = vld [vmem:[#allocation14 + $0x408] sm:$0xff]
    %v4759 = vld [vmem:[#allocation14 + $0x410] sm:$0xff]
    %v4760 = vld [vmem:[#allocation14 + $0x418] sm:$0xff]
    %v4761 = vld [vmem:[#allocation14 + $0x420] sm:$0xff]
    %v4762 = vld [vmem:[#allocation14 + $0x428] sm:$0xff]
    %v4763 = vld [vmem:[#allocation14 + $0x430] sm:$0xff]
    %v4764 = vld [vmem:[#allocation14 + $0x438] sm:$0xff]
    %v4765 = vld [vmem:[#allocation14 + $0x440] sm:$0xff]
    %v4766 = vld [vmem:[#allocation14 + $0x448] sm:$0xff]
    %v4767 = vld [vmem:[#allocation14 + $0x450] sm:$0xff]
    %v4768 = vld [vmem:[#allocation14 + $0x458] sm:$0xff]
    %v4769 = vld [vmem:[#allocation14 + $0x460] sm:$0xff]
    %v4770 = vld [vmem:[#allocation14 + $0x468] sm:$0xff]
    %v4771 = vld [vmem:[#allocation14 + $0x470] sm:$0xff]
    %v4772 = vld [vmem:[#allocation14 + $0x478] sm:$0xff]
    %v4773 = vld [vmem:[#allocation14 + $0x480] sm:$0xff]
    %v4774 = vld [vmem:[#allocation14 + $0x488] sm:$0xff]
    %v4775 = vld [vmem:[#allocation14 + $0x490] sm:$0xff]
    %v4776 = vld [vmem:[#allocation14 + $0x498] sm:$0xff]
    %v4777 = vld [vmem:[#allocation14 + $0x4a0] sm:$0xff]
    %v4778 = vld [vmem:[#allocation14 + $0x4a8] sm:$0xff]
    %v4779 = vld [vmem:[#allocation14 + $0x4b0] sm:$0xff]
    %v4780 = vld [vmem:[#allocation14 + $0x4b8] sm:$0xff]
    %v4781 = vld [vmem:[#allocation14 + $0x4c0] sm:$0xff]
    %v4782 = vld [vmem:[#allocation14 + $0x4c8] sm:$0xff]
    %v4783 = vld [vmem:[#allocation14 + $0x4d0] sm:$0xff]
    %v4784 = vld [vmem:[#allocation14 + $0x4d8] sm:$0xff]
    %v4785 = vld [vmem:[#allocation14 + $0x4e0] sm:$0xff]
    %v4786 = vld [vmem:[#allocation14 + $0x4e8] sm:$0xff]
    %v4787 = vld [vmem:[#allocation14 + $0x4f0] sm:$0xff]
    %v4788 = vld [vmem:[#allocation14 + $0x4f8] sm:$0xff]
    %v4789 = vld [vmem:[#allocation14 + $0x500] sm:$0xff]
    %v4790 = vld [vmem:[#allocation14 + $0x508] sm:$0xff]
    %v4791 = vld [vmem:[#allocation14 + $0x510] sm:$0xff]
    %v4792 = vld [vmem:[#allocation14 + $0x518] sm:$0xff]
    %v4793 = vld [vmem:[#allocation14 + $0x520] sm:$0xff]
    %v4794 = vld [vmem:[#allocation14 + $0x528] sm:$0xff]
    %v4795 = vld [vmem:[#allocation14 + $0x530] sm:$0xff]
    %v4796 = vld [vmem:[#allocation14 + $0x538] sm:$0xff]
    %v4797 = vld [vmem:[#allocation14 + $0x540] sm:$0xff]
    %v4798 = vld [vmem:[#allocation14 + $0x548] sm:$0xff]
    %v4799 = vld [vmem:[#allocation14 + $0x550] sm:$0xff]
    %v4800 = vld [vmem:[#allocation14 + $0x558] sm:$0xff]
    %v4801 = vld [vmem:[#allocation14 + $0x560] sm:$0xff]
    %v4802 = vld [vmem:[#allocation14 + $0x568] sm:$0xff]
    %v4803 = vld [vmem:[#allocation14 + $0x570] sm:$0xff]
    %v4804 = vld [vmem:[#allocation14 + $0x578] sm:$0xff]
    %v4805 = vld [vmem:[#allocation14 + $0x580] sm:$0xff]
    %v4806 = vld [vmem:[#allocation14 + $0x588] sm:$0xff]
    %v4807 = vld [vmem:[#allocation14 + $0x590] sm:$0xff]
    %v4808 = vld [vmem:[#allocation14 + $0x598] sm:$0xff]
    %v4809 = vld [vmem:[#allocation14 + $0x5a0] sm:$0xff]
    %v4810 = vld [vmem:[#allocation14 + $0x5a8] sm:$0xff]
    %v4811 = vld [vmem:[#allocation14 + $0x5b0] sm:$0xff]
    %v4812 = vld [vmem:[#allocation14 + $0x5b8] sm:$0xff]
    %v4813 = vld [vmem:[#allocation14 + $0x5c0] sm:$0xff]
    %v4814 = vld [vmem:[#allocation14 + $0x5c8] sm:$0xff]
    %v4815 = vld [vmem:[#allocation14 + $0x5d0] sm:$0xff]
    %v4816 = vld [vmem:[#allocation14 + $0x5d8] sm:$0xff]
    %v4817 = vld [vmem:[#allocation14 + $0x5e0] sm:$0xff]
    %v4818 = vld [vmem:[#allocation14 + $0x5e8] sm:$0xff]
    %v4819 = vld [vmem:[#allocation14 + $0x5f0] sm:$0xff]
    %v4820 = vld [vmem:[#allocation14 + $0x5f8] sm:$0xff]
    %v4821 = vld [vmem:[#allocation14 + $0x600] sm:$0xff]
    %v4822 = vld [vmem:[#allocation14 + $0x608] sm:$0xff]
    %v4823 = vld [vmem:[#allocation14 + $0x610] sm:$0xff]
    %v4824 = vld [vmem:[#allocation14 + $0x618] sm:$0xff]
    %v4825 = vld [vmem:[#allocation14 + $0x620] sm:$0xff]
    %v4826 = vld [vmem:[#allocation14 + $0x628] sm:$0xff]
    %v4827 = vld [vmem:[#allocation14 + $0x630] sm:$0xff]
    %v4828 = vld [vmem:[#allocation14 + $0x638] sm:$0xff]
    %v4829 = vld [vmem:[#allocation14 + $0x640] sm:$0xff]
    %v4830 = vld [vmem:[#allocation14 + $0x648] sm:$0xff]
    %v4831 = vld [vmem:[#allocation14 + $0x650] sm:$0xff]
    %v4832 = vld [vmem:[#allocation14 + $0x658] sm:$0xff]
    %v4833 = vld [vmem:[#allocation14 + $0x660] sm:$0xff]
    %v4834 = vld [vmem:[#allocation14 + $0x668] sm:$0xff]
    %v4835 = vld [vmem:[#allocation14 + $0x670] sm:$0xff]
    %v4836 = vld [vmem:[#allocation14 + $0x678] sm:$0xff]
    %v4837 = vld [vmem:[#allocation14 + $0x680] sm:$0xff]
    %v4838 = vld [vmem:[#allocation14 + $0x688] sm:$0xff]
    %v4839 = vld [vmem:[#allocation14 + $0x690] sm:$0xff]
    %v4840 = vld [vmem:[#allocation14 + $0x698] sm:$0xff]
    %v4841 = vld [vmem:[#allocation14 + $0x6a0] sm:$0xff]
    %v4842 = vld [vmem:[#allocation14 + $0x6a8] sm:$0xff]
    %v4843 = vld [vmem:[#allocation14 + $0x6b0] sm:$0xff]
    %v4844 = vld [vmem:[#allocation14 + $0x6b8] sm:$0xff]
    %v4845 = vld [vmem:[#allocation14 + $0x6c0] sm:$0xff]
    %v4846 = vld [vmem:[#allocation14 + $0x6c8] sm:$0xff]
    %v4847 = vld [vmem:[#allocation14 + $0x6d0] sm:$0xff]
    %v4848 = vld [vmem:[#allocation14 + $0x6d8] sm:$0xff]
    %v4849 = vld [vmem:[#allocation14 + $0x6e0] sm:$0xff]
    %v4850 = vld [vmem:[#allocation14 + $0x6e8] sm:$0xff]
    %v4851 = vld [vmem:[#allocation14 + $0x6f0] sm:$0xff]
    %v4852 = vld [vmem:[#allocation14 + $0x6f8] sm:$0xff]
    %v4853 = vld [vmem:[#allocation14 + $0x700] sm:$0xff]
    %v4854 = vld [vmem:[#allocation14 + $0x708] sm:$0xff]
    %v4855 = vld [vmem:[#allocation14 + $0x710] sm:$0xff]
    %v4856 = vld [vmem:[#allocation14 + $0x718] sm:$0xff]
    %v4857 = vld [vmem:[#allocation14 + $0x720] sm:$0xff]
    %v4858 = vld [vmem:[#allocation14 + $0x728] sm:$0xff]
    %v4859 = vld [vmem:[#allocation14 + $0x730] sm:$0xff]
    %v4860 = vld [vmem:[#allocation14 + $0x738] sm:$0xff]
    %v4861 = vld [vmem:[#allocation14 + $0x740] sm:$0xff]
    %v4862 = vld [vmem:[#allocation14 + $0x748] sm:$0xff]
    %v4863 = vld [vmem:[#allocation14 + $0x750] sm:$0xff]
    %v4864 = vld [vmem:[#allocation14 + $0x758] sm:$0xff]
    %v4865 = vld [vmem:[#allocation14 + $0x760] sm:$0xff]
    %v4866 = vld [vmem:[#allocation14 + $0x768] sm:$0xff]
    %v4867 = vld [vmem:[#allocation14 + $0x770] sm:$0xff]
    %v4868 = vld [vmem:[#allocation14 + $0x778] sm:$0xff]
    %v4869 = vld [vmem:[#allocation14 + $0x780] sm:$0xff]
    %v4870 = vld [vmem:[#allocation14 + $0x788] sm:$0xff]
    %v4871 = vld [vmem:[#allocation14 + $0x790] sm:$0xff]
    %v4872 = vld [vmem:[#allocation14 + $0x798] sm:$0xff]
    %v4873 = vld [vmem:[#allocation14 + $0x7a0] sm:$0xff]
    %v4874 = vld [vmem:[#allocation14 + $0x7a8] sm:$0xff]
    %v4875 = vld [vmem:[#allocation14 + $0x7b0] sm:$0xff]
    %v4876 = vld [vmem:[#allocation14 + $0x7b8] sm:$0xff]
    %v4877 = vld [vmem:[#allocation14 + $0x7c0] sm:$0xff]
    %v4878 = vld [vmem:[#allocation14 + $0x7c8] sm:$0xff]
    %v4879 = vld [vmem:[#allocation14 + $0x7d0] sm:$0xff]
    %v4880 = vld [vmem:[#allocation14 + $0x7d8] sm:$0xff]
    %v4881 = vld [vmem:[#allocation14 + $0x7e0] sm:$0xff]
    %v4882 = vld [vmem:[#allocation14 + $0x7e8] sm:$0xff]
    %v4883 = vld [vmem:[#allocation14 + $0x7f0] sm:$0xff]
    %v4884 = vld [vmem:[#allocation14 + $0x7f8] sm:$0xff]
    %4885 = vmatprep.subr.mxu0 %v4630
    %4886 = vmatpush1.msra.mxu0 %v4629
    %4887 = vmatprep.subr.mxu0 %v4638
    %4888 = vmatpush1.msra.mxu0 %v4637
    %4889 = vmatprep.subr.mxu0 %v4646
    %4890 = vmatpush1.msra.mxu0 %v4645
    %4891 = vmatprep.subr.mxu0 %v4654
    %4892 = vmatpush1.msra.mxu0 %v4653
    %4893 = vmatprep.subr.mxu0 %v4662
    %4894 = vmatpush1.msra.mxu0 %v4661
    %4895 = vmatprep.subr.mxu0 %v4670
    %4896 = vmatpush1.msra.mxu0 %v4669
    %4897 = vmatprep.subr.mxu0 %v4678
    %4898 = vmatpush1.msra.mxu0 %v4677
    %4899 = vmatprep.subr.mxu0 %v4686
    %4900 = vmatpush1.msra.mxu0 %v4685
    %4901 = vmatprep.subr.mxu0 %v4694
    %4902 = vmatpush1.msra.mxu0 %v4693
    %4903 = vmatprep.subr.mxu0 %v4702
    %4904 = vmatpush1.msra.mxu0 %v4701
    %4905 = vmatprep.subr.mxu0 %v4710
    %4906 = vmatpush1.msra.mxu0 %v4709
    %4907 = vmatprep.subr.mxu0 %v4718
    %4908 = vmatpush1.msra.mxu0 %v4717
    %4909 = vmatprep.subr.mxu0 %v4726
    %4910 = vmatpush1.msra.mxu0 %v4725
    %4911 = vmatprep.subr.mxu0 %v4734
    %4912 = vmatpush1.msra.mxu0 %v4733
    %4913 = vmatprep.subr.mxu0 %v4742
    %4914 = vmatpush1.msra.mxu0 %v4741
    %4915 = vmatprep.subr.mxu0 %v4750
    %4916 = vmatpush1.msra.mxu0 %v4749
    %4917 = vmatprep.subr.mxu0 %v4758
    %4918 = vmatpush1.msra.mxu0 %v4757
    %4919 = vmatprep.subr.mxu0 %v4766
    %4920 = vmatpush1.msra.mxu0 %v4765
    %4921 = vmatprep.subr.mxu0 %v4774
    %4922 = vmatpush1.msra.mxu0 %v4773
    %4923 = vmatprep.subr.mxu0 %v4782
    %4924 = vmatpush1.msra.mxu0 %v4781
    %4925 = vmatprep.subr.mxu0 %v4790
    %4926 = vmatpush1.msra.mxu0 %v4789
    %4927 = vmatprep.subr.mxu0 %v4798
    %4928 = vmatpush1.msra.mxu0 %v4797
    %4929 = vmatprep.subr.mxu0 %v4806
    %4930 = vmatpush1.msra.mxu0 %v4805
    %4931 = vmatprep.subr.mxu0 %v4814
    %4932 = vmatpush1.msra.mxu0 %v4813
    %4933 = vmatprep.subr.mxu0 %v4822
    %4934 = vmatpush1.msra.mxu0 %v4821
    %4935 = vmatprep.subr.mxu0 %v4830
    %4936 = vmatpush1.msra.mxu0 %v4829
    %4937 = vmatprep.subr.mxu0 %v4838
    %4938 = vmatpush1.msra.mxu0 %v4837
    %4939 = vmatprep.subr.mxu0 %v4846
    %4940 = vmatpush1.msra.mxu0 %v4845
    %4941 = vmatprep.subr.mxu0 %v4854
    %4942 = vmatpush1.msra.mxu0 %v4853
    %4943 = vmatprep.subr.mxu0 %v4862
    %4944 = vmatpush1.msra.mxu0 %v4861
    %4945 = vmatprep.subr.mxu0 %v4870
    %4946 = vmatpush1.msra.mxu0 %v4869
    %4947 = vmatprep.subr.mxu0 %v4878
    %4948 = vmatpush1.msra.mxu0 %v4877
    %4949 = vmatprep.mubr.f32.mxu0 %v4628
    %4950 = vmatmul.mubr.f32.gmra.mrb[0].mxu0 %v4627
    %v4951 = vpop.f32.mrb[0].mxu0
    %v4952 = vadd.f32 0.0, %v4951
    %v4953 = vpop.f32.mrb[0].mxu0
    %v4954 = vadd.f32 0.0, %v4953
    %4955 = vdwg.mxu0
    %4956 = vmatprep.subr.mxu0 %v4632
    %4957 = vmatpush1.msra.mxu0 %v4631
    %4958 = vmatprep.subr.mxu0 %v4640
    %4959 = vmatpush1.msra.mxu0 %v4639
    %4960 = vmatprep.subr.mxu0 %v4648
    %4961 = vmatpush1.msra.mxu0 %v4647
    %4962 = vmatprep.subr.mxu0 %v4656
    %4963 = vmatpush1.msra.mxu0 %v4655
    %4964 = vmatprep.subr.mxu0 %v4664
    %4965 = vmatpush1.msra.mxu0 %v4663
    %4966 = vmatprep.subr.mxu0 %v4672
    %4967 = vmatpush1.msra.mxu0 %v4671
    %4968 = vmatprep.subr.mxu0 %v4680
    %4969 = vmatpush1.msra.mxu0 %v4679
    %4970 = vmatprep.subr.mxu0 %v4688
    %4971 = vmatpush1.msra.mxu0 %v4687
    %4972 = vmatprep.subr.mxu0 %v4696
    %4973 = vmatpush1.msra.mxu0 %v4695
    %4974 = vmatprep.subr.mxu0 %v4704
    %4975 = vmatpush1.msra.mxu0 %v4703
    %4976 = vmatprep.subr.mxu0 %v4712
    %4977 = vmatpush1.msra.mxu0 %v4711
    %4978 = vmatprep.subr.mxu0 %v4720
    %4979 = vmatpush1.msra.mxu0 %v4719
    %4980 = vmatprep.subr.mxu0 %v4728
    %4981 = vmatpush1.msra.mxu0 %v4727
    %4982 = vmatprep.subr.mxu0 %v4736
    %4983 = vmatpush1.msra.mxu0 %v4735
    %4984 = vmatprep.subr.mxu0 %v4744
    %4985 = vmatpush1.msra.mxu0 %v4743
    %4986 = vmatprep.subr.mxu0 %v4752
    %4987 = vmatpush1.msra.mxu0 %v4751
    %4988 = vmatprep.subr.mxu0 %v4760
    %4989 = vmatpush1.msra.mxu0 %v4759
    %4990 = vmatprep.subr.mxu0 %v4768
    %4991 = vmatpush1.msra.mxu0 %v4767
    %4992 = vmatprep.subr.mxu0 %v4776
    %4993 = vmatpush1.msra.mxu0 %v4775
    %4994 = vmatprep.subr.mxu0 %v4784
    %4995 = vmatpush1.msra.mxu0 %v4783
    %4996 = vmatprep.subr.mxu0 %v4792
    %4997 = vmatpush1.msra.mxu0 %v4791
    %4998 = vmatprep.subr.mxu0 %v4800
    %4999 = vmatpush1.msra.mxu0 %v4799
    %5000 = vmatprep.subr.mxu0 %v4808
    %5001 = vmatpush1.msra.mxu0 %v4807
    %5002 = vmatprep.subr.mxu0 %v4816
    %5003 = vmatpush1.msra.mxu0 %v4815
    %5004 = vmatprep.subr.mxu0 %v4824
    %5005 = vmatpush1.msra.mxu0 %v4823
    %5006 = vmatprep.subr.mxu0 %v4832
    %5007 = vmatpush1.msra.mxu0 %v4831
    %5008 = vmatprep.subr.mxu0 %v4840
    %5009 = vmatpush1.msra.mxu0 %v4839
    %5010 = vmatprep.subr.mxu0 %v4848
    %5011 = vmatpush1.msra.mxu0 %v4847
    %5012 = vmatprep.subr.mxu0 %v4856
    %5013 = vmatpush1.msra.mxu0 %v4855
    %5014 = vmatprep.subr.mxu0 %v4864
    %5015 = vmatpush1.msra.mxu0 %v4863
    %5016 = vmatprep.subr.mxu0 %v4872
    %5017 = vmatpush1.msra.mxu0 %v4871
    %5018 = vmatprep.subr.mxu0 %v4880
    %5019 = vmatpush1.msra.mxu0 %v4879
    %5020 = vmatprep.mubr.f32.mxu0 %v4628
    %5021 = vmatmul.mubr.f32.gmra.mrb[0].mxu0 %v4627
    %v5022 = vpop.f32.mrb[0].mxu0
    %v5023 = vadd.f32 0.0, %v5022
    %v5024 = vpop.f32.mrb[0].mxu0
    %v5025 = vadd.f32 0.0, %v5024
    %5026 = vdwg.mxu0
    %5027 = vmatprep.subr.mxu0 %v4634
    %5028 = vmatpush1.msra.mxu0 %v4633
    %5029 = vmatprep.subr.mxu0 %v4642
    %5030 = vmatpush1.msra.mxu0 %v4641
    %5031 = vmatprep.subr.mxu0 %v4650
    %5032 = vmatpush1.msra.mxu0 %v4649
    %5033 = vmatprep.subr.mxu0 %v4658
    %5034 = vmatpush1.msra.mxu0 %v4657
    %5035 = vmatprep.subr.mxu0 %v4666
    %5036 = vmatpush1.msra.mxu0 %v4665
    %5037 = vmatprep.subr.mxu0 %v4674
    %5038 = vmatpush1.msra.mxu0 %v4673
    %5039 = vmatprep.subr.mxu0 %v4682
    %5040 = vmatpush1.msra.mxu0 %v4681
    %5041 = vmatprep.subr.mxu0 %v4690
    %5042 = vmatpush1.msra.mxu0 %v4689
    %5043 = vmatprep.subr.mxu0 %v4698
    %5044 = vmatpush1.msra.mxu0 %v4697
    %5045 = vmatprep.subr.mxu0 %v4706
    %5046 = vmatpush1.msra.mxu0 %v4705
    %5047 = vmatprep.subr.mxu0 %v4714
    %5048 = vmatpush1.msra.mxu0 %v4713
    %5049 = vmatprep.subr.mxu0 %v4722
    %5050 = vmatpush1.msra.mxu0 %v4721
    %5051 = vmatprep.subr.mxu0 %v4730
    %5052 = vmatpush1.msra.mxu0 %v4729
    %5053 = vmatprep.subr.mxu0 %v4738
    %5054 = vmatpush1.msra.mxu0 %v4737
    %5055 = vmatprep.subr.mxu0 %v4746
    %5056 = vmatpush1.msra.mxu0 %v4745
    %5057 = vmatprep.subr.mxu0 %v4754
    %5058 = vmatpush1.msra.mxu0 %v4753
    %5059 = vmatprep.subr.mxu0 %v4762
    %5060 = vmatpush1.msra.mxu0 %v4761
    %5061 = vmatprep.subr.mxu0 %v4770
    %5062 = vmatpush1.msra.mxu0 %v4769
    %5063 = vmatprep.subr.mxu0 %v4778
    %5064 = vmatpush1.msra.mxu0 %v4777
    %5065 = vmatprep.subr.mxu0 %v4786
    %5066 = vmatpush1.msra.mxu0 %v4785
    %5067 = vmatprep.subr.mxu0 %v4794
    %5068 = vmatpush1.msra.mxu0 %v4793
    %5069 = vmatprep.subr.mxu0 %v4802
    %5070 = vmatpush1.msra.mxu0 %v4801
    %5071 = vmatprep.subr.mxu0 %v4810
    %5072 = vmatpush1.msra.mxu0 %v4809
    %5073 = vmatprep.subr.mxu0 %v4818
    %5074 = vmatpush1.msra.mxu0 %v4817
    %5075 = vmatprep.subr.mxu0 %v4826
    %5076 = vmatpush1.msra.mxu0 %v4825
    %5077 = vmatprep.subr.mxu0 %v4834
    %5078 = vmatpush1.msra.mxu0 %v4833
    %5079 = vmatprep.subr.mxu0 %v4842
    %5080 = vmatpush1.msra.mxu0 %v4841
    %5081 = vmatprep.subr.mxu0 %v4850
    %5082 = vmatpush1.msra.mxu0 %v4849
    %5083 = vmatprep.subr.mxu0 %v4858
    %5084 = vmatpush1.msra.mxu0 %v4857
    %5085 = vmatprep.subr.mxu0 %v4866
    %5086 = vmatpush1.msra.mxu0 %v4865
    %5087 = vmatprep.subr.mxu0 %v4874
    %5088 = vmatpush1.msra.mxu0 %v4873
    %5089 = vmatprep.subr.mxu0 %v4882
    %5090 = vmatpush1.msra.mxu0 %v4881
    %5091 = vmatprep.mubr.f32.mxu0 %v4628
    %5092 = vmatmul.mubr.f32.gmra.mrb[0].mxu0 %v4627
    %v5093 = vpop.f32.mrb[0].mxu0
    %v5094 = vadd.f32 0.0, %v5093
    %v5095 = vpop.f32.mrb[0].mxu0
    %v5096 = vadd.f32 0.0, %v5095
    %5097 = vdwg.mxu0
    %5098 = vmatprep.subr.mxu0 %v4636
    %5099 = vmatpush1.msra.mxu0 %v4635
    %5100 = vmatprep.subr.mxu0 %v4644
    %5101 = vmatpush1.msra.mxu0 %v4643
    %5102 = vmatprep.subr.mxu0 %v4652
    %5103 = vmatpush1.msra.mxu0 %v4651
    %5104 = vmatprep.subr.mxu0 %v4660
    %5105 = vmatpush1.msra.mxu0 %v4659
    %5106 = vmatprep.subr.mxu0 %v4668
    %5107 = vmatpush1.msra.mxu0 %v4667
    %5108 = vmatprep.subr.mxu0 %v4676
    %5109 = vmatpush1.msra.mxu0 %v4675
    %5110 = vmatprep.subr.mxu0 %v4684
    %5111 = vmatpush1.msra.mxu0 %v4683
    %5112 = vmatprep.subr.mxu0 %v4692
    %5113 = vmatpush1.msra.mxu0 %v4691
    %5114 = vmatprep.subr.mxu0 %v4700
    %5115 = vmatpush1.msra.mxu0 %v4699
    %5116 = vmatprep.subr.mxu0 %v4708
    %5117 = vmatpush1.msra.mxu0 %v4707
    %5118 = vmatprep.subr.mxu0 %v4716
    %5119 = vmatpush1.msra.mxu0 %v4715
    %5120 = vmatprep.subr.mxu0 %v4724
    %5121 = vmatpush1.msra.mxu0 %v4723
    %5122 = vmatprep.subr.mxu0 %v4732
    %5123 = vmatpush1.msra.mxu0 %v4731
    %5124 = vmatprep.subr.mxu0 %v4740
    %5125 = vmatpush1.msra.mxu0 %v4739
    %5126 = vmatprep.subr.mxu0 %v4748
    %5127 = vmatpush1.msra.mxu0 %v4747
    %5128 = vmatprep.subr.mxu0 %v4756
    %5129 = vmatpush1.msra.mxu0 %v4755
    %5130 = vmatprep.subr.mxu0 %v4764
    %5131 = vmatpush1.msra.mxu0 %v4763
    %5132 = vmatprep.subr.mxu0 %v4772
    %5133 = vmatpush1.msra.mxu0 %v4771
    %5134 = vmatprep.subr.mxu0 %v4780
    %5135 = vmatpush1.msra.mxu0 %v4779
    %5136 = vmatprep.subr.mxu0 %v4788
    %5137 = vmatpush1.msra.mxu0 %v4787
    %5138 = vmatprep.subr.mxu0 %v4796
    %5139 = vmatpush1.msra.mxu0 %v4795
    %5140 = vmatprep.subr.mxu0 %v4804
    %5141 = vmatpush1.msra.mxu0 %v4803
    %5142 = vmatprep.subr.mxu0 %v4812
    %5143 = vmatpush1.msra.mxu0 %v4811
    %5144 = vmatprep.subr.mxu0 %v4820
    %5145 = vmatpush1.msra.mxu0 %v4819
    %5146 = vmatprep.subr.mxu0 %v4828
    %5147 = vmatpush1.msra.mxu0 %v4827
    %5148 = vmatprep.subr.mxu0 %v4836
    %5149 = vmatpush1.msra.mxu0 %v4835
    %5150 = vmatprep.subr.mxu0 %v4844
    %5151 = vmatpush1.msra.mxu0 %v4843
    %5152 = vmatprep.subr.mxu0 %v4852
    %5153 = vmatpush1.msra.mxu0 %v4851
    %5154 = vmatprep.subr.mxu0 %v4860
    %5155 = vmatpush1.msra.mxu0 %v4859
    %5156 = vmatprep.subr.mxu0 %v4868
    %5157 = vmatpush1.msra.mxu0 %v4867
    %5158 = vmatprep.subr.mxu0 %v4876
    %5159 = vmatpush1.msra.mxu0 %v4875
    %5160 = vmatprep.subr.mxu0 %v4884
    %5161 = vmatpush1.msra.mxu0 %v4883
    %5162 = vmatprep.mubr.f32.mxu0 %v4628
    %5163 = vmatmul.mubr.f32.gmra.mrb[0].mxu0 %v4627
    %v5164 = vpop.f32.mrb[0].mxu0
    %v5165 = vadd.f32 0.0, %v5164
    %v5166 = vpop.f32.mrb[0].mxu0
    %v5167 = vadd.f32 0.0, %v5166
    %5168 = vdwg.mxu0
    %s5169 = smul.addr %s2099, 8
    %s5170 = scalar_lea.vmem [#allocation2], %s5169
    %v5171 = vld [vmem:[%s5170] sm:$0xff]
    %v5172 = vld [vmem:[%s5170 + $0x8] sm:$0xff]
    %v5173 = vld [vmem:[%s5170 + $0x10] sm:$0xff]
    %v5174 = vld [vmem:[%s5170 + $0x18] sm:$0xff]
    %v5175 = vadd.f32 %v5171, %v4952
    %v5176 = vadd.f32 %v5172, %v4954
    %v5177 = vadd.f32 %v5173, %v5023
    %v5178 = vadd.f32 %v5174, %v5025
    %v5179 = vld [vmem:[#allocation5] sm:$0xff]
    %v5180 = vxor.u32 %v5175, 2147483648
    %v5181 = vxor.u32 %v5176, 2147483648
    %v5182 = vxor.u32 %v5177, 2147483648
    %v5183 = vmul.f32 %v5180, 1.442695
    %v5184 = vpow.pop %v5183
    %v5185 = vmul.f32 %v5181, 1.442695
    %v5186 = vpow.pop %v5185
    %v5187 = vmul.f32 %v5182, 1.442695
    %v5188 = vpow.pop %v5187
    %v5189 = vadd.f32 %v5184, 1.0
    %v5190 = vadd.f32 %v5186, 1.0
    %v5191 = vadd.f32 %v5188, 1.0
    %v5192 = vrcp.pop %v5189
    %v5193 = vmul.f32 1.0, %v5192
    %v5194 = vrcp.pop %v5190
    %v5195 = vmul.f32 1.0, %v5194
    %v5196 = vrcp.pop %v5191
    %v5197 = vmul.f32 1.0, %v5196
    %v5198 = vtanh.pop %v5178
    %v5199 = vmul.f32 %v5195, %v5179
    %v5200 = vmul.f32 %v5193, %v5198
    %v5201 = vadd.f32 %v5199, %v5200
    %v5202 = vtanh.pop %v5201
    %v5203 = vmul.f32 %v5197, %v5202
    %s5204 = smul.addr %s2063, 8
    %s5205 = scalar_lea.vmem [#allocation3], %s5204
    %v5206 = vld [vmem:[%s5205] sm:$0xff]
    %v5207 = vld [vmem:[%s5205 + $0x8] sm:$0xff]
    %v5208 = vld [vmem:[%s5205 + $0x10] sm:$0xff]
    %v5209 = vld [vmem:[%s5205 + $0x18] sm:$0xff]
    %v5210 = vadd.f32 %v5206, %v5094
    %v5211 = vadd.f32 %v5207, %v5096
    %v5212 = vadd.f32 %v5208, %v5165
    %v5213 = vadd.f32 %v5209, %v5167
    %v5214 = vld [vmem:[#allocation5 + $0x8] sm:$0xff]
    %v5215 = vxor.u32 %v5210, 2147483648
    %v5216 = vxor.u32 %v5211, 2147483648
    %v5217 = vxor.u32 %v5212, 2147483648
    %v5218 = vmul.f32 %v5215, 1.442695
    %v5219 = vpow.pop %v5218
    %v5220 = vmul.f32 %v5216, 1.442695
    %v5221 = vpow.pop %v5220
    %v5222 = vmul.f32 %v5217, 1.442695
    %v5223 = vpow.pop %v5222
    %v5224 = vadd.f32 %v5219, 1.0
    %v5225 = vadd.f32 %v5221, 1.0
    %v5226 = vadd.f32 %v5223, 1.0
    %v5227 = vrcp.pop %v5224
    %v5228 = vmul.f32 1.0, %v5227
    %v5229 = vrcp.pop %v5225
    %v5230 = vmul.f32 1.0, %v5229
    %v5231 = vrcp.pop %v5226
    %v5232 = vmul.f32 1.0, %v5231
    %v5233 = vtanh.pop %v5213
    %v5234 = vmul.f32 %v5230, %v5214
    %v5235 = vmul.f32 %v5228, %v5233
    %v5236 = vadd.f32 %v5234, %v5235
    %v5237 = vtanh.pop %v5236
    %v5238 = vmul.f32 %v5232, %v5237
    %5239 = vst [vmem:[#allocation4] sm:$0xff] %v5203
    %5240 = vst [vmem:[#allocation4 + $0x8] sm:$0xff] %v5238
    %5241 = vst [vmem:[#allocation5] sm:$0xff] %v5201
    %5242 = vst [vmem:[#allocation5 + $0x8] sm:$0xff] %v5236
    %s5243 = scalar_lea.vmem [#allocation15], 48
    %5244 = vst [vmem:[%s5243] sm:$0xff] %v5203
    %s5245 = scalar_lea.vmem [#allocation16], 8
    %5246 = vst [vmem:[%s5245] sm:$0xff] %v5238
    %v5247 = vld [vmem:[#allocation4] sm:$0xff]
    %v5248 = vld [vmem:[#allocation4 + $0x8] sm:$0xff]
    %v5249 = vld [vmem:[#allocation14] sm:$0xff]
    %v5250 = vld [vmem:[#allocation14 + $0x8] sm:$0xff]
    %v5251 = vld [vmem:[#allocation14 + $0x10] sm:$0xff]
    %v5252 = vld [vmem:[#allocation14 + $0x18] sm:$0xff]
    %v5253 = vld [vmem:[#allocation14 + $0x20] sm:$0xff]
    %v5254 = vld [vmem:[#allocation14 + $0x28] sm:$0xff]
    %v5255 = vld [vmem:[#allocation14 + $0x30] sm:$0xff]
    %v5256 = vld [vmem:[#allocation14 + $0x38] sm:$0xff]
    %v5257 = vld [vmem:[#allocation14 + $0x40] sm:$0xff]
    %v5258 = vld [vmem:[#allocation14 + $0x48] sm:$0xff]
    %v5259 = vld [vmem:[#allocation14 + $0x50] sm:$0xff]
    %v5260 = vld [vmem:[#allocation14 + $0x58] sm:$0xff]
    %v5261 = vld [vmem:[#allocation14 + $0x60] sm:$0xff]
    %v5262 = vld [vmem:[#allocation14 + $0x68] sm:$0xff]
    %v5263 = vld [vmem:[#allocation14 + $0x70] sm:$0xff]
    %v5264 = vld [vmem:[#allocation14 + $0x78] sm:$0xff]
    %v5265 = vld [vmem:[#allocation14 + $0x80] sm:$0xff]
    %v5266 = vld [vmem:[#allocation14 + $0x88] sm:$0xff]
    %v5267 = vld [vmem:[#allocation14 + $0x90] sm:$0xff]
    %v5268 = vld [vmem:[#allocation14 + $0x98] sm:$0xff]
    %v5269 = vld [vmem:[#allocation14 + $0xa0] sm:$0xff]
    %v5270 = vld [vmem:[#allocation14 + $0xa8] sm:$0xff]
    %v5271 = vld [vmem:[#allocation14 + $0xb0] sm:$0xff]
    %v5272 = vld [vmem:[#allocation14 + $0xb8] sm:$0xff]
    %v5273 = vld [vmem:[#allocation14 + $0xc0] sm:$0xff]
    %v5274 = vld [vmem:[#allocation14 + $0xc8] sm:$0xff]
    %v5275 = vld [vmem:[#allocation14 + $0xd0] sm:$0xff]
    %v5276 = vld [vmem:[#allocation14 + $0xd8] sm:$0xff]
    %v5277 = vld [vmem:[#allocation14 + $0xe0] sm:$0xff]
    %v5278 = vld [vmem:[#allocation14 + $0xe8] sm:$0xff]
    %v5279 = vld [vmem:[#allocation14 + $0xf0] sm:$0xff]
    %v5280 = vld [vmem:[#allocation14 + $0xf8] sm:$0xff]
    %v5281 = vld [vmem:[#allocation14 + $0x100] sm:$0xff]
    %v5282 = vld [vmem:[#allocation14 + $0x108] sm:$0xff]
    %v5283 = vld [vmem:[#allocation14 + $0x110] sm:$0xff]
    %v5284 = vld [vmem:[#allocation14 + $0x118] sm:$0xff]
    %v5285 = vld [vmem:[#allocation14 + $0x120] sm:$0xff]
    %v5286 = vld [vmem:[#allocation14 + $0x128] sm:$0xff]
    %v5287 = vld [vmem:[#allocation14 + $0x130] sm:$0xff]
    %v5288 = vld [vmem:[#allocation14 + $0x138] sm:$0xff]
    %v5289 = vld [vmem:[#allocation14 + $0x140] sm:$0xff]
    %v5290 = vld [vmem:[#allocation14 + $0x148] sm:$0xff]
    %v5291 = vld [vmem:[#allocation14 + $0x150] sm:$0xff]
    %v5292 = vld [vmem:[#allocation14 + $0x158] sm:$0xff]
    %v5293 = vld [vmem:[#allocation14 + $0x160] sm:$0xff]
    %v5294 = vld [vmem:[#allocation14 + $0x168] sm:$0xff]
    %v5295 = vld [vmem:[#allocation14 + $0x170] sm:$0xff]
    %v5296 = vld [vmem:[#allocation14 + $0x178] sm:$0xff]
    %v5297 = vld [vmem:[#allocation14 + $0x180] sm:$0xff]
    %v5298 = vld [vmem:[#allocation14 + $0x188] sm:$0xff]
    %v5299 = vld [vmem:[#allocation14 + $0x190] sm:$0xff]
    %v5300 = vld [vmem:[#allocation14 + $0x198] sm:$0xff]
    %v5301 = vld [vmem:[#allocation14 + $0x1a0] sm:$0xff]
    %v5302 = vld [vmem:[#allocation14 + $0x1a8] sm:$0xff]
    %v5303 = vld [vmem:[#allocation14 + $0x1b0] sm:$0xff]
    %v5304 = vld [vmem:[#allocation14 + $0x1b8] sm:$0xff]
    %v5305 = vld [vmem:[#allocation14 + $0x1c0] sm:$0xff]
    %v5306 = vld [vmem:[#allocation14 + $0x1c8] sm:$0xff]
    %v5307 = vld [vmem:[#allocation14 + $0x1d0] sm:$0xff]
    %v5308 = vld [vmem:[#allocation14 + $0x1d8] sm:$0xff]
    %v5309 = vld [vmem:[#allocation14 + $0x1e0] sm:$0xff]
    %v5310 = vld [vmem:[#allocation14 + $0x1e8] sm:$0xff]
    %v5311 = vld [vmem:[#allocation14 + $0x1f0] sm:$0xff]
    %v5312 = vld [vmem:[#allocation14 + $0x1f8] sm:$0xff]
    %v5313 = vld [vmem:[#allocation14 + $0x200] sm:$0xff]
    %v5314 = vld [vmem:[#allocation14 + $0x208] sm:$0xff]
    %v5315 = vld [vmem:[#allocation14 + $0x210] sm:$0xff]
    %v5316 = vld [vmem:[#allocation14 + $0x218] sm:$0xff]
    %v5317 = vld [vmem:[#allocation14 + $0x220] sm:$0xff]
    %v5318 = vld [vmem:[#allocation14 + $0x228] sm:$0xff]
    %v5319 = vld [vmem:[#allocation14 + $0x230] sm:$0xff]
    %v5320 = vld [vmem:[#allocation14 + $0x238] sm:$0xff]
    %v5321 = vld [vmem:[#allocation14 + $0x240] sm:$0xff]
    %v5322 = vld [vmem:[#allocation14 + $0x248] sm:$0xff]
    %v5323 = vld [vmem:[#allocation14 + $0x250] sm:$0xff]
    %v5324 = vld [vmem:[#allocation14 + $0x258] sm:$0xff]
    %v5325 = vld [vmem:[#allocation14 + $0x260] sm:$0xff]
    %v5326 = vld [vmem:[#allocation14 + $0x268] sm:$0xff]
    %v5327 = vld [vmem:[#allocation14 + $0x270] sm:$0xff]
    %v5328 = vld [vmem:[#allocation14 + $0x278] sm:$0xff]
    %v5329 = vld [vmem:[#allocation14 + $0x280] sm:$0xff]
    %v5330 = vld [vmem:[#allocation14 + $0x288] sm:$0xff]
    %v5331 = vld [vmem:[#allocation14 + $0x290] sm:$0xff]
    %v5332 = vld [vmem:[#allocation14 + $0x298] sm:$0xff]
    %v5333 = vld [vmem:[#allocation14 + $0x2a0] sm:$0xff]
    %v5334 = vld [vmem:[#allocation14 + $0x2a8] sm:$0xff]
    %v5335 = vld [vmem:[#allocation14 + $0x2b0] sm:$0xff]
    %v5336 = vld [vmem:[#allocation14 + $0x2b8] sm:$0xff]
    %v5337 = vld [vmem:[#allocation14 + $0x2c0] sm:$0xff]
    %v5338 = vld [vmem:[#allocation14 + $0x2c8] sm:$0xff]
    %v5339 = vld [vmem:[#allocation14 + $0x2d0] sm:$0xff]
    %v5340 = vld [vmem:[#allocation14 + $0x2d8] sm:$0xff]
    %v5341 = vld [vmem:[#allocation14 + $0x2e0] sm:$0xff]
    %v5342 = vld [vmem:[#allocation14 + $0x2e8] sm:$0xff]
    %v5343 = vld [vmem:[#allocation14 + $0x2f0] sm:$0xff]
    %v5344 = vld [vmem:[#allocation14 + $0x2f8] sm:$0xff]
    %v5345 = vld [vmem:[#allocation14 + $0x300] sm:$0xff]
    %v5346 = vld [vmem:[#allocation14 + $0x308] sm:$0xff]
    %v5347 = vld [vmem:[#allocation14 + $0x310] sm:$0xff]
    %v5348 = vld [vmem:[#allocation14 + $0x318] sm:$0xff]
    %v5349 = vld [vmem:[#allocation14 + $0x320] sm:$0xff]
    %v5350 = vld [vmem:[#allocation14 + $0x328] sm:$0xff]
    %v5351 = vld [vmem:[#allocation14 + $0x330] sm:$0xff]
    %v5352 = vld [vmem:[#allocation14 + $0x338] sm:$0xff]
    %v5353 = vld [vmem:[#allocation14 + $0x340] sm:$0xff]
    %v5354 = vld [vmem:[#allocation14 + $0x348] sm:$0xff]
    %v5355 = vld [vmem:[#allocation14 + $0x350] sm:$0xff]
    %v5356 = vld [vmem:[#allocation14 + $0x358] sm:$0xff]
    %v5357 = vld [vmem:[#allocation14 + $0x360] sm:$0xff]
    %v5358 = vld [vmem:[#allocation14 + $0x368] sm:$0xff]
    %v5359 = vld [vmem:[#allocation14 + $0x370] sm:$0xff]
    %v5360 = vld [vmem:[#allocation14 + $0x378] sm:$0xff]
    %v5361 = vld [vmem:[#allocation14 + $0x380] sm:$0xff]
    %v5362 = vld [vmem:[#allocation14 + $0x388] sm:$0xff]
    %v5363 = vld [vmem:[#allocation14 + $0x390] sm:$0xff]
    %v5364 = vld [vmem:[#allocation14 + $0x398] sm:$0xff]
    %v5365 = vld [vmem:[#allocation14 + $0x3a0] sm:$0xff]
    %v5366 = vld [vmem:[#allocation14 + $0x3a8] sm:$0xff]
    %v5367 = vld [vmem:[#allocation14 + $0x3b0] sm:$0xff]
    %v5368 = vld [vmem:[#allocation14 + $0x3b8] sm:$0xff]
    %v5369 = vld [vmem:[#allocation14 + $0x3c0] sm:$0xff]
    %v5370 = vld [vmem:[#allocation14 + $0x3c8] sm:$0xff]
    %v5371 = vld [vmem:[#allocation14 + $0x3d0] sm:$0xff]
    %v5372 = vld [vmem:[#allocation14 + $0x3d8] sm:$0xff]
    %v5373 = vld [vmem:[#allocation14 + $0x3e0] sm:$0xff]
    %v5374 = vld [vmem:[#allocation14 + $0x3e8] sm:$0xff]
    %v5375 = vld [vmem:[#allocation14 + $0x3f0] sm:$0xff]
    %v5376 = vld [vmem:[#allocation14 + $0x3f8] sm:$0xff]
    %v5377 = vld [vmem:[#allocation14 + $0x400] sm:$0xff]
    %v5378 = vld [vmem:[#allocation14 + $0x408] sm:$0xff]
    %v5379 = vld [vmem:[#allocation14 + $0x410] sm:$0xff]
    %v5380 = vld [vmem:[#allocation14 + $0x418] sm:$0xff]
    %v5381 = vld [vmem:[#allocation14 + $0x420] sm:$0xff]
    %v5382 = vld [vmem:[#allocation14 + $0x428] sm:$0xff]
    %v5383 = vld [vmem:[#allocation14 + $0x430] sm:$0xff]
    %v5384 = vld [vmem:[#allocation14 + $0x438] sm:$0xff]
    %v5385 = vld [vmem:[#allocation14 + $0x440] sm:$0xff]
    %v5386 = vld [vmem:[#allocation14 + $0x448] sm:$0xff]
    %v5387 = vld [vmem:[#allocation14 + $0x450] sm:$0xff]
    %v5388 = vld [vmem:[#allocation14 + $0x458] sm:$0xff]
    %v5389 = vld [vmem:[#allocation14 + $0x460] sm:$0xff]
    %v5390 = vld [vmem:[#allocation14 + $0x468] sm:$0xff]
    %v5391 = vld [vmem:[#allocation14 + $0x470] sm:$0xff]
    %v5392 = vld [vmem:[#allocation14 + $0x478] sm:$0xff]
    %v5393 = vld [vmem:[#allocation14 + $0x480] sm:$0xff]
    %v5394 = vld [vmem:[#allocation14 + $0x488] sm:$0xff]
    %v5395 = vld [vmem:[#allocation14 + $0x490] sm:$0xff]
    %v5396 = vld [vmem:[#allocation14 + $0x498] sm:$0xff]
    %v5397 = vld [vmem:[#allocation14 + $0x4a0] sm:$0xff]
    %v5398 = vld [vmem:[#allocation14 + $0x4a8] sm:$0xff]
    %v5399 = vld [vmem:[#allocation14 + $0x4b0] sm:$0xff]
    %v5400 = vld [vmem:[#allocation14 + $0x4b8] sm:$0xff]
    %v5401 = vld [vmem:[#allocation14 + $0x4c0] sm:$0xff]
    %v5402 = vld [vmem:[#allocation14 + $0x4c8] sm:$0xff]
    %v5403 = vld [vmem:[#allocation14 + $0x4d0] sm:$0xff]
    %v5404 = vld [vmem:[#allocation14 + $0x4d8] sm:$0xff]
    %v5405 = vld [vmem:[#allocation14 + $0x4e0] sm:$0xff]
    %v5406 = vld [vmem:[#allocation14 + $0x4e8] sm:$0xff]
    %v5407 = vld [vmem:[#allocation14 + $0x4f0] sm:$0xff]
    %v5408 = vld [vmem:[#allocation14 + $0x4f8] sm:$0xff]
    %v5409 = vld [vmem:[#allocation14 + $0x500] sm:$0xff]
    %v5410 = vld [vmem:[#allocation14 + $0x508] sm:$0xff]
    %v5411 = vld [vmem:[#allocation14 + $0x510] sm:$0xff]
    %v5412 = vld [vmem:[#allocation14 + $0x518] sm:$0xff]
    %v5413 = vld [vmem:[#allocation14 + $0x520] sm:$0xff]
    %v5414 = vld [vmem:[#allocation14 + $0x528] sm:$0xff]
    %v5415 = vld [vmem:[#allocation14 + $0x530] sm:$0xff]
    %v5416 = vld [vmem:[#allocation14 + $0x538] sm:$0xff]
    %v5417 = vld [vmem:[#allocation14 + $0x540] sm:$0xff]
    %v5418 = vld [vmem:[#allocation14 + $0x548] sm:$0xff]
    %v5419 = vld [vmem:[#allocation14 + $0x550] sm:$0xff]
    %v5420 = vld [vmem:[#allocation14 + $0x558] sm:$0xff]
    %v5421 = vld [vmem:[#allocation14 + $0x560] sm:$0xff]
    %v5422 = vld [vmem:[#allocation14 + $0x568] sm:$0xff]
    %v5423 = vld [vmem:[#allocation14 + $0x570] sm:$0xff]
    %v5424 = vld [vmem:[#allocation14 + $0x578] sm:$0xff]
    %v5425 = vld [vmem:[#allocation14 + $0x580] sm:$0xff]
    %v5426 = vld [vmem:[#allocation14 + $0x588] sm:$0xff]
    %v5427 = vld [vmem:[#allocation14 + $0x590] sm:$0xff]
    %v5428 = vld [vmem:[#allocation14 + $0x598] sm:$0xff]
    %v5429 = vld [vmem:[#allocation14 + $0x5a0] sm:$0xff]
    %v5430 = vld [vmem:[#allocation14 + $0x5a8] sm:$0xff]
    %v5431 = vld [vmem:[#allocation14 + $0x5b0] sm:$0xff]
    %v5432 = vld [vmem:[#allocation14 + $0x5b8] sm:$0xff]
    %v5433 = vld [vmem:[#allocation14 + $0x5c0] sm:$0xff]
    %v5434 = vld [vmem:[#allocation14 + $0x5c8] sm:$0xff]
    %v5435 = vld [vmem:[#allocation14 + $0x5d0] sm:$0xff]
    %v5436 = vld [vmem:[#allocation14 + $0x5d8] sm:$0xff]
    %v5437 = vld [vmem:[#allocation14 + $0x5e0] sm:$0xff]
    %v5438 = vld [vmem:[#allocation14 + $0x5e8] sm:$0xff]
    %v5439 = vld [vmem:[#allocation14 + $0x5f0] sm:$0xff]
    %v5440 = vld [vmem:[#allocation14 + $0x5f8] sm:$0xff]
    %v5441 = vld [vmem:[#allocation14 + $0x600] sm:$0xff]
    %v5442 = vld [vmem:[#allocation14 + $0x608] sm:$0xff]
    %v5443 = vld [vmem:[#allocation14 + $0x610] sm:$0xff]
    %v5444 = vld [vmem:[#allocation14 + $0x618] sm:$0xff]
    %v5445 = vld [vmem:[#allocation14 + $0x620] sm:$0xff]
    %v5446 = vld [vmem:[#allocation14 + $0x628] sm:$0xff]
    %v5447 = vld [vmem:[#allocation14 + $0x630] sm:$0xff]
    %v5448 = vld [vmem:[#allocation14 + $0x638] sm:$0xff]
    %v5449 = vld [vmem:[#allocation14 + $0x640] sm:$0xff]
    %v5450 = vld [vmem:[#allocation14 + $0x648] sm:$0xff]
    %v5451 = vld [vmem:[#allocation14 + $0x650] sm:$0xff]
    %v5452 = vld [vmem:[#allocation14 + $0x658] sm:$0xff]
    %v5453 = vld [vmem:[#allocation14 + $0x660] sm:$0xff]
    %v5454 = vld [vmem:[#allocation14 + $0x668] sm:$0xff]
    %v5455 = vld [vmem:[#allocation14 + $0x670] sm:$0xff]
    %v5456 = vld [vmem:[#allocation14 + $0x678] sm:$0xff]
    %v5457 = vld [vmem:[#allocation14 + $0x680] sm:$0xff]
    %v5458 = vld [vmem:[#allocation14 + $0x688] sm:$0xff]
    %v5459 = vld [vmem:[#allocation14 + $0x690] sm:$0xff]
    %v5460 = vld [vmem:[#allocation14 + $0x698] sm:$0xff]
    %v5461 = vld [vmem:[#allocation14 + $0x6a0] sm:$0xff]
    %v5462 = vld [vmem:[#allocation14 + $0x6a8] sm:$0xff]
    %v5463 = vld [vmem:[#allocation14 + $0x6b0] sm:$0xff]
    %v5464 = vld [vmem:[#allocation14 + $0x6b8] sm:$0xff]
    %v5465 = vld [vmem:[#allocation14 + $0x6c0] sm:$0xff]
    %v5466 = vld [vmem:[#allocation14 + $0x6c8] sm:$0xff]
    %v5467 = vld [vmem:[#allocation14 + $0x6d0] sm:$0xff]
    %v5468 = vld [vmem:[#allocation14 + $0x6d8] sm:$0xff]
    %v5469 = vld [vmem:[#allocation14 + $0x6e0] sm:$0xff]
    %v5470 = vld [vmem:[#allocation14 + $0x6e8] sm:$0xff]
    %v5471 = vld [vmem:[#allocation14 + $0x6f0] sm:$0xff]
    %v5472 = vld [vmem:[#allocation14 + $0x6f8] sm:$0xff]
    %v5473 = vld [vmem:[#allocation14 + $0x700] sm:$0xff]
    %v5474 = vld [vmem:[#allocation14 + $0x708] sm:$0xff]
    %v5475 = vld [vmem:[#allocation14 + $0x710] sm:$0xff]
    %v5476 = vld [vmem:[#allocation14 + $0x718] sm:$0xff]
    %v5477 = vld [vmem:[#allocation14 + $0x720] sm:$0xff]
    %v5478 = vld [vmem:[#allocation14 + $0x728] sm:$0xff]
    %v5479 = vld [vmem:[#allocation14 + $0x730] sm:$0xff]
    %v5480 = vld [vmem:[#allocation14 + $0x738] sm:$0xff]
    %v5481 = vld [vmem:[#allocation14 + $0x740] sm:$0xff]
    %v5482 = vld [vmem:[#allocation14 + $0x748] sm:$0xff]
    %v5483 = vld [vmem:[#allocation14 + $0x750] sm:$0xff]
    %v5484 = vld [vmem:[#allocation14 + $0x758] sm:$0xff]
    %v5485 = vld [vmem:[#allocation14 + $0x760] sm:$0xff]
    %v5486 = vld [vmem:[#allocation14 + $0x768] sm:$0xff]
    %v5487 = vld [vmem:[#allocation14 + $0x770] sm:$0xff]
    %v5488 = vld [vmem:[#allocation14 + $0x778] sm:$0xff]
    %v5489 = vld [vmem:[#allocation14 + $0x780] sm:$0xff]
    %v5490 = vld [vmem:[#allocation14 + $0x788] sm:$0xff]
    %v5491 = vld [vmem:[#allocation14 + $0x790] sm:$0xff]
    %v5492 = vld [vmem:[#allocation14 + $0x798] sm:$0xff]
    %v5493 = vld [vmem:[#allocation14 + $0x7a0] sm:$0xff]
    %v5494 = vld [vmem:[#allocation14 + $0x7a8] sm:$0xff]
    %v5495 = vld [vmem:[#allocation14 + $0x7b0] sm:$0xff]
    %v5496 = vld [vmem:[#allocation14 + $0x7b8] sm:$0xff]
    %v5497 = vld [vmem:[#allocation14 + $0x7c0] sm:$0xff]
    %v5498 = vld [vmem:[#allocation14 + $0x7c8] sm:$0xff]
    %v5499 = vld [vmem:[#allocation14 + $0x7d0] sm:$0xff]
    %v5500 = vld [vmem:[#allocation14 + $0x7d8] sm:$0xff]
    %v5501 = vld [vmem:[#allocation14 + $0x7e0] sm:$0xff]
    %v5502 = vld [vmem:[#allocation14 + $0x7e8] sm:$0xff]
    %v5503 = vld [vmem:[#allocation14 + $0x7f0] sm:$0xff]
    %v5504 = vld [vmem:[#allocation14 + $0x7f8] sm:$0xff]
    %5505 = vmatprep.subr.mxu0 %v5250
    %5506 = vmatpush1.msra.mxu0 %v5249
    %5507 = vmatprep.subr.mxu0 %v5258
    %5508 = vmatpush1.msra.mxu0 %v5257
    %5509 = vmatprep.subr.mxu0 %v5266
    %5510 = vmatpush1.msra.mxu0 %v5265
    %5511 = vmatprep.subr.mxu0 %v5274
    %5512 = vmatpush1.msra.mxu0 %v5273
    %5513 = vmatprep.subr.mxu0 %v5282
    %5514 = vmatpush1.msra.mxu0 %v5281
    %5515 = vmatprep.subr.mxu0 %v5290
    %5516 = vmatpush1.msra.mxu0 %v5289
    %5517 = vmatprep.subr.mxu0 %v5298
    %5518 = vmatpush1.msra.mxu0 %v5297
    %5519 = vmatprep.subr.mxu0 %v5306
    %5520 = vmatpush1.msra.mxu0 %v5305
    %5521 = vmatprep.subr.mxu0 %v5314
    %5522 = vmatpush1.msra.mxu0 %v5313
    %5523 = vmatprep.subr.mxu0 %v5322
    %5524 = vmatpush1.msra.mxu0 %v5321
    %5525 = vmatprep.subr.mxu0 %v5330
    %5526 = vmatpush1.msra.mxu0 %v5329
    %5527 = vmatprep.subr.mxu0 %v5338
    %5528 = vmatpush1.msra.mxu0 %v5337
    %5529 = vmatprep.subr.mxu0 %v5346
    %5530 = vmatpush1.msra.mxu0 %v5345
    %5531 = vmatprep.subr.mxu0 %v5354
    %5532 = vmatpush1.msra.mxu0 %v5353
    %5533 = vmatprep.subr.mxu0 %v5362
    %5534 = vmatpush1.msra.mxu0 %v5361
    %5535 = vmatprep.subr.mxu0 %v5370
    %5536 = vmatpush1.msra.mxu0 %v5369
    %5537 = vmatprep.subr.mxu0 %v5378
    %5538 = vmatpush1.msra.mxu0 %v5377
    %5539 = vmatprep.subr.mxu0 %v5386
    %5540 = vmatpush1.msra.mxu0 %v5385
    %5541 = vmatprep.subr.mxu0 %v5394
    %5542 = vmatpush1.msra.mxu0 %v5393
    %5543 = vmatprep.subr.mxu0 %v5402
    %5544 = vmatpush1.msra.mxu0 %v5401
    %5545 = vmatprep.subr.mxu0 %v5410
    %5546 = vmatpush1.msra.mxu0 %v5409
    %5547 = vmatprep.subr.mxu0 %v5418
    %5548 = vmatpush1.msra.mxu0 %v5417
    %5549 = vmatprep.subr.mxu0 %v5426
    %5550 = vmatpush1.msra.mxu0 %v5425
    %5551 = vmatprep.subr.mxu0 %v5434
    %5552 = vmatpush1.msra.mxu0 %v5433
    %5553 = vmatprep.subr.mxu0 %v5442
    %5554 = vmatpush1.msra.mxu0 %v5441
    %5555 = vmatprep.subr.mxu0 %v5450
    %5556 = vmatpush1.msra.mxu0 %v5449
    %5557 = vmatprep.subr.mxu0 %v5458
    %5558 = vmatpush1.msra.mxu0 %v5457
    %5559 = vmatprep.subr.mxu0 %v5466
    %5560 = vmatpush1.msra.mxu0 %v5465
    %5561 = vmatprep.subr.mxu0 %v5474
    %5562 = vmatpush1.msra.mxu0 %v5473
    %5563 = vmatprep.subr.mxu0 %v5482
    %5564 = vmatpush1.msra.mxu0 %v5481
    %5565 = vmatprep.subr.mxu0 %v5490
    %5566 = vmatpush1.msra.mxu0 %v5489
    %5567 = vmatprep.subr.mxu0 %v5498
    %5568 = vmatpush1.msra.mxu0 %v5497
    %5569 = vmatprep.mubr.f32.mxu0 %v5248
    %5570 = vmatmul.mubr.f32.gmra.mrb[0].mxu0 %v5247
    %v5571 = vpop.f32.mrb[0].mxu0
    %v5572 = vadd.f32 0.0, %v5571
    %v5573 = vpop.f32.mrb[0].mxu0
    %v5574 = vadd.f32 0.0, %v5573
    %5575 = vdwg.mxu0
    %5576 = vmatprep.subr.mxu0 %v5252
    %5577 = vmatpush1.msra.mxu0 %v5251
    %5578 = vmatprep.subr.mxu0 %v5260
    %5579 = vmatpush1.msra.mxu0 %v5259
    %5580 = vmatprep.subr.mxu0 %v5268
    %5581 = vmatpush1.msra.mxu0 %v5267
    %5582 = vmatprep.subr.mxu0 %v5276
    %5583 = vmatpush1.msra.mxu0 %v5275
    %5584 = vmatprep.subr.mxu0 %v5284
    %5585 = vmatpush1.msra.mxu0 %v5283
    %5586 = vmatprep.subr.mxu0 %v5292
    %5587 = vmatpush1.msra.mxu0 %v5291
    %5588 = vmatprep.subr.mxu0 %v5300
    %5589 = vmatpush1.msra.mxu0 %v5299
    %5590 = vmatprep.subr.mxu0 %v5308
    %5591 = vmatpush1.msra.mxu0 %v5307
    %5592 = vmatprep.subr.mxu0 %v5316
    %5593 = vmatpush1.msra.mxu0 %v5315
    %5594 = vmatprep.subr.mxu0 %v5324
    %5595 = vmatpush1.msra.mxu0 %v5323
    %5596 = vmatprep.subr.mxu0 %v5332
    %5597 = vmatpush1.msra.mxu0 %v5331
    %5598 = vmatprep.subr.mxu0 %v5340
    %5599 = vmatpush1.msra.mxu0 %v5339
    %5600 = vmatprep.subr.mxu0 %v5348
    %5601 = vmatpush1.msra.mxu0 %v5347
    %5602 = vmatprep.subr.mxu0 %v5356
    %5603 = vmatpush1.msra.mxu0 %v5355
    %5604 = vmatprep.subr.mxu0 %v5364
    %5605 = vmatpush1.msra.mxu0 %v5363
    %5606 = vmatprep.subr.mxu0 %v5372
    %5607 = vmatpush1.msra.mxu0 %v5371
    %5608 = vmatprep.subr.mxu0 %v5380
    %5609 = vmatpush1.msra.mxu0 %v5379
    %5610 = vmatprep.subr.mxu0 %v5388
    %5611 = vmatpush1.msra.mxu0 %v5387
    %5612 = vmatprep.subr.mxu0 %v5396
    %5613 = vmatpush1.msra.mxu0 %v5395
    %5614 = vmatprep.subr.mxu0 %v5404
    %5615 = vmatpush1.msra.mxu0 %v5403
    %5616 = vmatprep.subr.mxu0 %v5412
    %5617 = vmatpush1.msra.mxu0 %v5411
    %5618 = vmatprep.subr.mxu0 %v5420
    %5619 = vmatpush1.msra.mxu0 %v5419
    %5620 = vmatprep.subr.mxu0 %v5428
    %5621 = vmatpush1.msra.mxu0 %v5427
    %5622 = vmatprep.subr.mxu0 %v5436
    %5623 = vmatpush1.msra.mxu0 %v5435
    %5624 = vmatprep.subr.mxu0 %v5444
    %5625 = vmatpush1.msra.mxu0 %v5443
    %5626 = vmatprep.subr.mxu0 %v5452
    %5627 = vmatpush1.msra.mxu0 %v5451
    %5628 = vmatprep.subr.mxu0 %v5460
    %5629 = vmatpush1.msra.mxu0 %v5459
    %5630 = vmatprep.subr.mxu0 %v5468
    %5631 = vmatpush1.msra.mxu0 %v5467
    %5632 = vmatprep.subr.mxu0 %v5476
    %5633 = vmatpush1.msra.mxu0 %v5475
    %5634 = vmatprep.subr.mxu0 %v5484
    %5635 = vmatpush1.msra.mxu0 %v5483
    %5636 = vmatprep.subr.mxu0 %v5492
    %5637 = vmatpush1.msra.mxu0 %v5491
    %5638 = vmatprep.subr.mxu0 %v5500
    %5639 = vmatpush1.msra.mxu0 %v5499
    %5640 = vmatprep.mubr.f32.mxu0 %v5248
    %5641 = vmatmul.mubr.f32.gmra.mrb[0].mxu0 %v5247
    %v5642 = vpop.f32.mrb[0].mxu0
    %v5643 = vadd.f32 0.0, %v5642
    %v5644 = vpop.f32.mrb[0].mxu0
    %v5645 = vadd.f32 0.0, %v5644
    %5646 = vdwg.mxu0
    %5647 = vmatprep.subr.mxu0 %v5254
    %5648 = vmatpush1.msra.mxu0 %v5253
    %5649 = vmatprep.subr.mxu0 %v5262
    %5650 = vmatpush1.msra.mxu0 %v5261
    %5651 = vmatprep.subr.mxu0 %v5270
    %5652 = vmatpush1.msra.mxu0 %v5269
    %5653 = vmatprep.subr.mxu0 %v5278
    %5654 = vmatpush1.msra.mxu0 %v5277
    %5655 = vmatprep.subr.mxu0 %v5286
    %5656 = vmatpush1.msra.mxu0 %v5285
    %5657 = vmatprep.subr.mxu0 %v5294
    %5658 = vmatpush1.msra.mxu0 %v5293
    %5659 = vmatprep.subr.mxu0 %v5302
    %5660 = vmatpush1.msra.mxu0 %v5301
    %5661 = vmatprep.subr.mxu0 %v5310
    %5662 = vmatpush1.msra.mxu0 %v5309
    %5663 = vmatprep.subr.mxu0 %v5318
    %5664 = vmatpush1.msra.mxu0 %v5317
    %5665 = vmatprep.subr.mxu0 %v5326
    %5666 = vmatpush1.msra.mxu0 %v5325
    %5667 = vmatprep.subr.mxu0 %v5334
    %5668 = vmatpush1.msra.mxu0 %v5333
    %5669 = vmatprep.subr.mxu0 %v5342
    %5670 = vmatpush1.msra.mxu0 %v5341
    %5671 = vmatprep.subr.mxu0 %v5350
    %5672 = vmatpush1.msra.mxu0 %v5349
    %5673 = vmatprep.subr.mxu0 %v5358
    %5674 = vmatpush1.msra.mxu0 %v5357
    %5675 = vmatprep.subr.mxu0 %v5366
    %5676 = vmatpush1.msra.mxu0 %v5365
    %5677 = vmatprep.subr.mxu0 %v5374
    %5678 = vmatpush1.msra.mxu0 %v5373
    %5679 = vmatprep.subr.mxu0 %v5382
    %5680 = vmatpush1.msra.mxu0 %v5381
    %5681 = vmatprep.subr.mxu0 %v5390
    %5682 = vmatpush1.msra.mxu0 %v5389
    %5683 = vmatprep.subr.mxu0 %v5398
    %5684 = vmatpush1.msra.mxu0 %v5397
    %5685 = vmatprep.subr.mxu0 %v5406
    %5686 = vmatpush1.msra.mxu0 %v5405
    %5687 = vmatprep.subr.mxu0 %v5414
    %5688 = vmatpush1.msra.mxu0 %v5413
    %5689 = vmatprep.subr.mxu0 %v5422
    %5690 = vmatpush1.msra.mxu0 %v5421
    %5691 = vmatprep.subr.mxu0 %v5430
    %5692 = vmatpush1.msra.mxu0 %v5429
    %5693 = vmatprep.subr.mxu0 %v5438
    %5694 = vmatpush1.msra.mxu0 %v5437
    %5695 = vmatprep.subr.mxu0 %v5446
    %5696 = vmatpush1.msra.mxu0 %v5445
    %5697 = vmatprep.subr.mxu0 %v5454
    %5698 = vmatpush1.msra.mxu0 %v5453
    %5699 = vmatprep.subr.mxu0 %v5462
    %5700 = vmatpush1.msra.mxu0 %v5461
    %5701 = vmatprep.subr.mxu0 %v5470
    %5702 = vmatpush1.msra.mxu0 %v5469
    %5703 = vmatprep.subr.mxu0 %v5478
    %5704 = vmatpush1.msra.mxu0 %v5477
    %5705 = vmatprep.subr.mxu0 %v5486
    %5706 = vmatpush1.msra.mxu0 %v5485
    %5707 = vmatprep.subr.mxu0 %v5494
    %5708 = vmatpush1.msra.mxu0 %v5493
    %5709 = vmatprep.subr.mxu0 %v5502
    %5710 = vmatpush1.msra.mxu0 %v5501
    %5711 = vmatprep.mubr.f32.mxu0 %v5248
    %5712 = vmatmul.mubr.f32.gmra.mrb[0].mxu0 %v5247
    %v5713 = vpop.f32.mrb[0].mxu0
    %v5714 = vadd.f32 0.0, %v5713
    %v5715 = vpop.f32.mrb[0].mxu0
    %v5716 = vadd.f32 0.0, %v5715
    %5717 = vdwg.mxu0
    %5718 = vmatprep.subr.mxu0 %v5256
    %5719 = vmatpush1.msra.mxu0 %v5255
    %5720 = vmatprep.subr.mxu0 %v5264
    %5721 = vmatpush1.msra.mxu0 %v5263
    %5722 = vmatprep.subr.mxu0 %v5272
    %5723 = vmatpush1.msra.mxu0 %v5271
    %5724 = vmatprep.subr.mxu0 %v5280
    %5725 = vmatpush1.msra.mxu0 %v5279
    %5726 = vmatprep.subr.mxu0 %v5288
    %5727 = vmatpush1.msra.mxu0 %v5287
    %5728 = vmatprep.subr.mxu0 %v5296
    %5729 = vmatpush1.msra.mxu0 %v5295
    %5730 = vmatprep.subr.mxu0 %v5304
    %5731 = vmatpush1.msra.mxu0 %v5303
    %5732 = vmatprep.subr.mxu0 %v5312
    %5733 = vmatpush1.msra.mxu0 %v5311
    %5734 = vmatprep.subr.mxu0 %v5320
    %5735 = vmatpush1.msra.mxu0 %v5319
    %5736 = vmatprep.subr.mxu0 %v5328
    %5737 = vmatpush1.msra.mxu0 %v5327
    %5738 = vmatprep.subr.mxu0 %v5336
    %5739 = vmatpush1.msra.mxu0 %v5335
    %5740 = vmatprep.subr.mxu0 %v5344
    %5741 = vmatpush1.msra.mxu0 %v5343
    %5742 = vmatprep.subr.mxu0 %v5352
    %5743 = vmatpush1.msra.mxu0 %v5351
    %5744 = vmatprep.subr.mxu0 %v5360
    %5745 = vmatpush1.msra.mxu0 %v5359
    %5746 = vmatprep.subr.mxu0 %v5368
    %5747 = vmatpush1.msra.mxu0 %v5367
    %5748 = vmatprep.subr.mxu0 %v5376
    %5749 = vmatpush1.msra.mxu0 %v5375
    %5750 = vmatprep.subr.mxu0 %v5384
    %5751 = vmatpush1.msra.mxu0 %v5383
    %5752 = vmatprep.subr.mxu0 %v5392
    %5753 = vmatpush1.msra.mxu0 %v5391
    %5754 = vmatprep.subr.mxu0 %v5400
    %5755 = vmatpush1.msra.mxu0 %v5399
    %5756 = vmatprep.subr.mxu0 %v5408
    %5757 = vmatpush1.msra.mxu0 %v5407
    %5758 = vmatprep.subr.mxu0 %v5416
    %5759 = vmatpush1.msra.mxu0 %v5415
    %5760 = vmatprep.subr.mxu0 %v5424
    %5761 = vmatpush1.msra.mxu0 %v5423
    %5762 = vmatprep.subr.mxu0 %v5432
    %5763 = vmatpush1.msra.mxu0 %v5431
    %5764 = vmatprep.subr.mxu0 %v5440
    %5765 = vmatpush1.msra.mxu0 %v5439
    %5766 = vmatprep.subr.mxu0 %v5448
    %5767 = vmatpush1.msra.mxu0 %v5447
    %5768 = vmatprep.subr.mxu0 %v5456
    %5769 = vmatpush1.msra.mxu0 %v5455
    %5770 = vmatprep.subr.mxu0 %v5464
    %5771 = vmatpush1.msra.mxu0 %v5463
    %5772 = vmatprep.subr.mxu0 %v5472
    %5773 = vmatpush1.msra.mxu0 %v5471
    %5774 = vmatprep.subr.mxu0 %v5480
    %5775 = vmatpush1.msra.mxu0 %v5479
    %5776 = vmatprep.subr.mxu0 %v5488
    %5777 = vmatpush1.msra.mxu0 %v5487
    %5778 = vmatprep.subr.mxu0 %v5496
    %5779 = vmatpush1.msra.mxu0 %v5495
    %5780 = vmatprep.subr.mxu0 %v5504
    %5781 = vmatpush1.msra.mxu0 %v5503
    %5782 = vmatprep.mubr.f32.mxu0 %v5248
    %5783 = vmatmul.mubr.f32.gmra.mrb[0].mxu0 %v5247
    %v5784 = vpop.f32.mrb[0].mxu0
    %v5785 = vadd.f32 0.0, %v5784
    %v5786 = vpop.f32.mrb[0].mxu0
    %v5787 = vadd.f32 0.0, %v5786
    %5788 = vdwg.mxu0
    %s5789 = smul.addr %s1478, 8
    %s5790 = scalar_lea.vmem [#allocation2], %s5789
    %v5791 = vld [vmem:[%s5790] sm:$0xff]
    %v5792 = vld [vmem:[%s5790 + $0x8] sm:$0xff]
    %v5793 = vld [vmem:[%s5790 + $0x10] sm:$0xff]
    %v5794 = vld [vmem:[%s5790 + $0x18] sm:$0xff]
    %v5795 = vadd.f32 %v5791, %v5572
    %v5796 = vadd.f32 %v5792, %v5574
    %v5797 = vadd.f32 %v5793, %v5643
    %v5798 = vadd.f32 %v5794, %v5645
    %v5799 = vld [vmem:[#allocation5] sm:$0xff]
    %v5800 = vxor.u32 %v5795, 2147483648
    %v5801 = vxor.u32 %v5796, 2147483648
    %v5802 = vxor.u32 %v5797, 2147483648
    %v5803 = vmul.f32 %v5800, 1.442695
    %v5804 = vpow.pop %v5803
    %v5805 = vmul.f32 %v5801, 1.442695
    %v5806 = vpow.pop %v5805
    %v5807 = vmul.f32 %v5802, 1.442695
    %v5808 = vpow.pop %v5807
    %v5809 = vadd.f32 %v5804, 1.0
    %v5810 = vadd.f32 %v5806, 1.0
    %v5811 = vadd.f32 %v5808, 1.0
    %v5812 = vrcp.pop %v5809
    %v5813 = vmul.f32 1.0, %v5812
    %v5814 = vrcp.pop %v5810
    %v5815 = vmul.f32 1.0, %v5814
    %v5816 = vrcp.pop %v5811
    %v5817 = vmul.f32 1.0, %v5816
    %v5818 = vtanh.pop %v5798
    %v5819 = vmul.f32 %v5815, %v5799
    %v5820 = vmul.f32 %v5813, %v5818
    %v5821 = vadd.f32 %v5819, %v5820
    %v5822 = vtanh.pop %v5821
    %v5823 = vmul.f32 %v5817, %v5822
    %s5824 = smul.addr %s1442, 8
    %s5825 = scalar_lea.vmem [#allocation3], %s5824
    %v5826 = vld [vmem:[%s5825] sm:$0xff]
    %v5827 = vld [vmem:[%s5825 + $0x8] sm:$0xff]
    %v5828 = vld [vmem:[%s5825 + $0x10] sm:$0xff]
    %v5829 = vld [vmem:[%s5825 + $0x18] sm:$0xff]
    %v5830 = vadd.f32 %v5826, %v5714
    %v5831 = vadd.f32 %v5827, %v5716
    %v5832 = vadd.f32 %v5828, %v5785
    %v5833 = vadd.f32 %v5829, %v5787
    %v5834 = vld [vmem:[#allocation5 + $0x8] sm:$0xff]
    %v5835 = vxor.u32 %v5830, 2147483648
    %v5836 = vxor.u32 %v5831, 2147483648
    %v5837 = vxor.u32 %v5832, 2147483648
    %v5838 = vmul.f32 %v5835, 1.442695
    %v5839 = vpow.pop %v5838
    %v5840 = vmul.f32 %v5836, 1.442695
    %v5841 = vpow.pop %v5840
    %v5842 = vmul.f32 %v5837, 1.442695
    %v5843 = vpow.pop %v5842
    %v5844 = vadd.f32 %v5839, 1.0
    %v5845 = vadd.f32 %v5841, 1.0
    %v5846 = vadd.f32 %v5843, 1.0
    %v5847 = vrcp.pop %v5844
    %v5848 = vmul.f32 1.0, %v5847
    %v5849 = vrcp.pop %v5845
    %v5850 = vmul.f32 1.0, %v5849
    %v5851 = vrcp.pop %v5846
    %v5852 = vmul.f32 1.0, %v5851
    %v5853 = vtanh.pop %v5833
    %v5854 = vmul.f32 %v5850, %v5834
    %v5855 = vmul.f32 %v5848, %v5853
    %v5856 = vadd.f32 %v5854, %v5855
    %v5857 = vtanh.pop %v5856
    %v5858 = vmul.f32 %v5852, %v5857
    %5859 = vst [vmem:[#allocation4] sm:$0xff] %v5823
    %5860 = vst [vmem:[#allocation4 + $0x8] sm:$0xff] %v5858
    %5861 = vst [vmem:[#allocation5] sm:$0xff] %v5821
    %5862 = vst [vmem:[#allocation5 + $0x8] sm:$0xff] %v5856
    %s5863 = scalar_lea.vmem [#allocation15], 56
    %5864 = vst [vmem:[%s5863] sm:$0xff] %v5823
    %5865 = vst [vmem:[#allocation16] sm:$0xff] %v5858
    // Predicated region
    $region54: #{tpu_custom_call.1} parent=1 // pred_check
      _
    $region55: #{tpu_custom_call.1} parent=1 // pred_check_branch
      %5867 = sbr.rel (0) target = $region57
    $region56: #{tpu_custom_call.1} parent=1 // pred_region
      %s5869 = ssub.s32 1024, 1024
      %5870 = vsyncadd [#allocation8], %s5869
      %s5871 = sshll.u32 [#allocation15], 4
      %s5872 = int_to_ptr.vmem [resolvable:$true] %s5871
      %5877 = dma.vmem_to_hbm [thread:$0]  %s5872, 1024, %s7, [#allocation8], 128, 128, 8
    $region57: #{tpu_custom_call.1} parent=1 // pred_fallthru
      _
    // Predicated region
    $region58: #{tpu_custom_call.1} parent=1 // pred_check
      _
    $region59: #{tpu_custom_call.1} parent=1 // pred_check_branch
      %5879 = sbr.rel (0) target = $region61
    $region60: #{tpu_custom_call.1} parent=1 // pred_region
      %s5880 = ssub.s32 0, 0
      %s5881 = smul.u32 8, %s5880
      %s5883 = ssub.s32 1024, 1024
      %5884 = vsyncadd [#allocation17], %s5883
      %s5885 = smul.addr %s5881, 128
      %s5886 = scalar_lea.hbm %s8, %s5885
      %s5887 = sshll.u32 [#allocation16], 4
      %s5888 = int_to_ptr.vmem [resolvable:$true] %s5887
      %5893 = dma.vmem_to_hbm [thread:$0]  %s5888, 1024, %s5886, [#allocation17], 128, 128, 8
    $region61: #{tpu_custom_call.1} parent=1 // pred_fallthru
      _
    // Predicated region
    $region62: #{tpu_custom_call.1} parent=1 // pred_check
      _
    $region63: #{tpu_custom_call.1} parent=1 // pred_check_branch
      %5895 = sbr.rel (0) target = $region65
    $region64: #{tpu_custom_call.1} parent=1 // pred_region
      %5896 = dma.done [#allocation8], 1024
    $region65: #{tpu_custom_call.1} parent=1 // pred_fallthru
      _
    // Predicated region
    $region66: #{tpu_custom_call.1} parent=1 // pred_check
      _
    $region67: #{tpu_custom_call.1} parent=1 // pred_check_branch
      %5898 = sbr.rel (0) target = $region69
    $region68: #{tpu_custom_call.1} parent=1 // pred_region
      %5899 = dma.done [#allocation17], 1024
    $region69: #{tpu_custom_call.1} parent=1 // pred_fallthru
      _
    %5900 = vsyncpa [#allocation7], 1
    %5901 = vsyncpa [#allocation10], 1
    %5902 = vsyncpa [#allocation13], 1
    %5903 = vsyncpa [#allocation8], 1
    %5904 = vsyncpa [#allocation17], 1

</llo_original>
